<compile_context>
chip_gen: v7x
topology: tpu7x:2x2x1
jax: 0.10.0
libtpu: 0.0.40
codegen_flags: <defaults>
</compile_context>

<pallas_src>
import functools

import jax
import jax.numpy as jnp
from jax.experimental import pallas as pl
from jax.experimental.pallas import tpu as pltpu

# ----------------------------- configuration (small) -----------------------------
B, T, S_BERT = 2, 8, 10
WORD_VOCAB, BERT_VOCAB = 50, 60
CHAR_PART, WORD_PART = 16, 16
WORD_EMB = CHAR_PART + WORD_PART          # 32
BERT_DIM = 32
ENC_H, DEC_H = 32, 32
ENC_IN = WORD_EMB + BERT_DIM              # 64
DEC_IN = 2 * ENC_H                        # 64
ENC_MLP, DEC_MLP = 32, 24                 # all enc_*_mlp_dim / dec_*_mlp_dim
NUM_LABELS = 5                            # num_constituent_labels
MAX_ATTACH = 3                            # max_attachment_order
NUM_POSES = 4                             # num_terminal_poses
MORPH_PROPS = {"case": 3, "number": 2}    # morph_prop_classes

# heads and their biaffine class counts (order fixed, matches output unpacking)
HEADS = tuple(
    [("att", 1), ("lab", NUM_LABELS), ("attach", MAX_ATTACH), ("pos", NUM_POSES)]
    + [(f"morph_{k}", NUM_POSES * n) for k, n in MORPH_PROPS.items()]
)
N_HEADS = len(HEADS)                      # 6
C_TOTAL = sum(c for _, c in HEADS)        # 33
DE1 = ENC_MLP + 1                         # 33 (enc biaffine dim + bias feature)
DD1 = DEC_MLP + 1                         # 25 (dec biaffine dim + bias feature)


# ----------------------------------- kernel --------------------------------------
def tiger_fused_kernel(xemb_ref, bert_ref, trans_ref, encmask_ref, decmask_ref, negmask_ref,
                       wih_ref, bih_ref, whh_ref, h0_ref, c0_ref,
                       e2dw_ref, e2db_ref, wdih_ref, bdec_ref, wdhh_ref,
                       wenc_ref, benc_ref, wdm_ref, bdm_ref, ucat_ref,
                       out_ref,
                       xg_ref, encbuf_ref, encbuf2_ref, decg_ref, decbuf_ref,
                       *, batch, seqlen):
    """Entire TigerModel forward (post embedding lookup) in one VMEM-resident kernel."""
    Bb, Tt = batch, seqlen
    B2 = 2 * Bb
    H, Hd = ENC_H, DEC_H
    Te = Tt + 1
    f32 = jnp.float32

    def elu(x):
        # clamp the exp argument so the untaken branch never produces inf
        return jnp.where(x > 0.0, x, jnp.exp(jnp.minimum(x, 0.0)) - 1.0)

    # ---- phase 1: token->word transform + encoder input gate projection (3 dots) ----
    # rows of xemb/trans are already in recurrence step order (fwd/bwd slots duplicated).
    wih = wih_ref[...]                                            # (ENC_IN, 8H) interleaved strips
    bert_proj = jnp.dot(bert_ref[...], wih[WORD_EMB:ENC_IN, :],
                        preferred_element_type=f32)               # (B*S, 8H)
    xg_ref[...] = (jnp.dot(xemb_ref[...], wih[0:WORD_EMB, :], preferred_element_type=f32)
                   + jnp.dot(trans_ref[...], bert_proj, preferred_element_type=f32)
                   + bih_ref[...])                                # (T*2B, 8H), step-ordered

    # root ("virtual head 0") rows of the padded encoder output
    h0 = h0_ref[...]                                              # (2B, 2H) block-diag layout
    for b in range(Bb):
        encbuf_ref[b * Te:b * Te + 1, 0:H] = h0[b:b + 1, 0:H]
        encbuf_ref[b * Te:b * Te + 1, H:2 * H] = h0[Bb + b:Bb + b + 1, H:2 * H]

    # hoisted per-step validity masks (precomputed in the wrapper, only load+compare here)
    enc_masks = [encmask_ref[s * B2:(s + 1) * B2, :] != 0.0 for s in range(Tt)]
    dec_masks = [decmask_ref[t * Bb:(t + 1) * Bb, :] != 0.0 for t in range(Tt)]

    # ---- phase 2: bidirectional encoder LSTM (fwd & bwd stacked on rows, block-diag state) ----
    # gate strips: [i_f,i_b,f_f,f_b,o_f,o_b,g_f,g_b]; sigmoid block = [0:6H], tanh block = [6H:8H]
    whh = whh_ref[...]                                            # (2H, 8H) block-diagonal
    h = h0
    c = c0_ref[...]
    for s in range(Tt):
        gates = xg_ref[s * B2:(s + 1) * B2, :] + jnp.dot(h, whh, preferred_element_type=f32)
        sig = 0.5 * jnp.tanh(0.5 * gates[:, 0:6 * H]) + 0.5       # i|f|o, one EUP pass
        g = jnp.tanh(gates[:, 6 * H:8 * H])                       # cell gate only
        c_new = sig[:, 2 * H:4 * H] * c + sig[:, 0:2 * H] * g
        h_new = sig[:, 4 * H:6 * H] * jnp.tanh(c_new)
        m = enc_masks[s]
        h = jnp.where(m, h_new, h)                                # hold state through padding
        c = jnp.where(m, c_new, c)
        # writeback at final offsets: fwd half of word row t=s, bwd half of word row t=T-1-s
        for b in range(Bb):
            encbuf_ref[b * Te + 1 + s:b * Te + 2 + s, 0:H] = h_new[b:b + 1, 0:H]
            encbuf_ref[b * Te + Tt - s:b * Te + Tt - s + 1, H:2 * H] = \
                h_new[Bb + b:Bb + b + 1, H:2 * H]
        encbuf2_ref[s * Bb:(s + 1) * Bb, 0:H] = h_new[0:Bb, 0:H]
        encbuf2_ref[(Tt - 1 - s) * Bb:(Tt - s) * Bb, H:2 * H] = h_new[Bb:B2, H:2 * H]

    # ---- phase 3: decoder init from the concatenated final encoder cell state ----
    c_cat = jnp.concatenate([c[0:Bb, 0:H], c[Bb:B2, H:2 * H]], axis=1)        # (B, 2H)
    cd = jnp.dot(c_cat, e2dw_ref[...], preferred_element_type=f32) + e2db_ref[...]
    hd = jnp.tanh(cd)                                                          # h_dec = tanh(c_dec)

    # ---- phase 4a: decoder input gates for all timesteps in one dot ----
    decg_ref[...] = (jnp.dot(encbuf2_ref[...], wdih_ref[...], preferred_element_type=f32)
                     + bdec_ref[...])                                          # (T*B, 4Hd)

    # ---- phase 4b: decoder recurrence (only the recurrent dot per step) ----
    wdhh = wdhh_ref[...]
    for t in range(Tt):
        gates = decg_ref[t * Bb:(t + 1) * Bb, :] + jnp.dot(hd, wdhh, preferred_element_type=f32)
        sig = 0.5 * jnp.tanh(0.5 * gates[:, 0:3 * Hd]) + 0.5
        g = jnp.tanh(gates[:, 3 * Hd:4 * Hd])
        c_new = sig[:, Hd:2 * Hd] * cd + sig[:, 0:Hd] * g
        h_new = sig[:, 2 * Hd:3 * Hd] * jnp.tanh(c_new)
        m = dec_masks[t]
        hd = jnp.where(m, h_new, hd)
        cd = jnp.where(m, c_new, cd)
        for b in range(Bb):
            decbuf_ref[b * Tt + t:b * Tt + t + 1, :] = h_new[b:b + 1, :]

    # ---- phase 5: all 6 head MLPs (ELU), biaffine "+1" bias feature folded in ----
    wenc = wenc_ref[...]
    benc = benc_ref[...]
    ench = []                                                     # per-batch (T+1, 6*33)
    for b in range(Bb):
        e_in = encbuf_ref[b * Te:(b + 1) * Te, :]
        ench.append(elu(jnp.dot(e_in, wenc, preferred_element_type=f32) + benc))
    dec_h = elu(jnp.dot(decbuf_ref[...], wdm_ref[...], preferred_element_type=f32)
                + bdm_ref[...])                                   # (B*T, 6*25)

    # ---- phases 6+7: biaffine (per-head dense stage-1 dot, per-(head,batch) block-diag
    #      stage-2 dot), fused -inf masking, ONE lane-dense full-slab writeback ----
    ucat = ucat_ref[...]                                          # (25, 1089)
    zrow = jnp.zeros((Te, DE1), f32)
    slabs = [[] for _ in range(Bb)]
    u_off = 0
    for k, (_, ck) in enumerate(HEADS):
        u_k = ucat[:, u_off * DE1:(u_off + ck) * DE1]             # (25, ck*33)
        tmp_k = jnp.dot(dec_h[:, k * DD1:(k + 1) * DD1], u_k,
                        preferred_element_type=f32)               # (B*T, ck*33)
        for b in range(Bb):
            e_k = ench[b][:, k * DE1:(k + 1) * DE1]               # (T+1, 33)
            if ck == 1:
                rhs = e_k
            else:
                # kron(I_ck, e_k): block-diagonal RHS -> one dot for all ck classes
                rows = []
                for cix in range(ck):
                    pieces = [zrow] * cix + [e_k] + [zrow] * (ck - 1 - cix)
                    rows.append(jnp.concatenate(pieces, axis=1))
                rhs = jnp.concatenate(rows, axis=0)               # (ck*(T+1), ck*33)
            slabs[b].append(jnp.einsum("tj,ej->te", tmp_k[b * Tt:(b + 1) * Tt, :], rhs,
                                       preferred_element_type=f32))   # (T, ck*(T+1))
        u_off += ck

    slab = jnp.concatenate([jnp.concatenate(slabs[b], axis=1) for b in range(Bb)], axis=0)
    out_ref[...] = slab + negmask_ref[...]                        # additive -inf length mask


# --------------------------------- param packing ----------------------------------
def _gate_split(w, h):
    """split a PyTorch gate-stacked [i; f; g; o] leading axis of a (4h, ...) tensor."""
    return w[0:h], w[h:2 * h], w[2 * h:3 * h], w[3 * h:4 * h]


def pack_params(p, batch):
    """Host/XLA-side one-time parameter packing for the fused kernel."""
    f32 = jnp.float32
    H, Hd = ENC_H, DEC_H

    def cols_ifog(w, h):
        # (4h, n) torch layout -> per-gate (n, h) column blocks, reordered to (i, f, o, g)
        i, f, g, o = _gate_split(w, h)
        return i.T, f.T, o.T, g.T

    def bias_ifog(b_ih, b_hh, h):
        i, f, g, o = _gate_split(b_ih + b_hh, h)
        return i, f, o, g

    # encoder: interleave fwd/bwd per-gate strips -> [i_f,i_b,f_f,f_b,o_f,o_b,g_f,g_b]
    fi, ff, fo, fg = cols_ifog(p["enc_fwd_w_ih"], H)
    bi, bf, bo, bg = cols_ifog(p["enc_bwd_w_ih"], H)
    wih_full = jnp.concatenate([fi, bi, ff, bf, fo, bo, fg, bg], axis=1)      # (64, 256)

    fbi, fbf, fbo, fbg = bias_ifog(p["enc_fwd_b_ih"], p["enc_fwd_b_hh"], H)
    bbi, bbf, bbo, bbg = bias_ifog(p["enc_bwd_b_ih"], p["enc_bwd_b_hh"], H)
    bih_full = jnp.concatenate([fbi, bbi, fbf, bbf, fbo, bbo, fbg, bbg]).reshape(1, 8 * H)

    hfi, hff, hfo, hfg = cols_ifog(p["enc_fwd_w_hh"], H)
    hbi, hbf, hbo, hbg = cols_ifog(p["enc_bwd_w_hh"], H)
    Z = jnp.zeros((H, H), f32)
    whh_blk = jnp.concatenate([
        jnp.concatenate([hfi, Z, hff, Z, hfo, Z, hfg, Z], axis=1),
        jnp.concatenate([Z, hbi, Z, hbf, Z, hbo, Z, hbg], axis=1)], axis=0)   # (2H, 8H)

    # initial encoder state, block-diagonal (2B, 2H) layout (off-block zeros)
    cf = jnp.tile(p["enc_init_state"][0], (batch, 1))
    cb = jnp.tile(p["enc_init_state"][1], (batch, 1))
    ZB = jnp.zeros((batch, H), f32)
    c0_blk = jnp.concatenate([jnp.concatenate([cf, ZB], axis=1),
                              jnp.concatenate([ZB, cb], axis=1)], axis=0)     # (2B, 2H)
    h0_blk = jnp.tanh(c0_blk)

    e2dw = p["e2d_w"].T                                                       # (2H, Hd)
    e2db = p["e2d_b"].reshape(1, Hd)

    di, df, do, dg = cols_ifog(p["dec_w_ih"], Hd)
    wdec_ih = jnp.concatenate([di, df, do, dg], axis=1)                       # (2H, 4Hd)
    ri, rf, ro, rg = cols_ifog(p["dec_w_hh"], Hd)
    wdec_hh = jnp.concatenate([ri, rf, ro, rg], axis=1)                       # (Hd, 4Hd)
    dbi, dbf, dbo, dbg = bias_ifog(p["dec_b_ih"], p["dec_b_hh"], Hd)
    bdec = jnp.concatenate([dbi, dbf, dbo, dbg]).reshape(1, 4 * Hd)

    # head MLPs with the biaffine "+1" feature folded in as a constant-one output column
    wenc_cols, benc_cols, wdm_cols, bdm_cols = [], [], [], []
    for name, _ in HEADS:
        wenc_cols += [p[f"enc_{name}_w"].T, jnp.zeros((2 * H, 1), f32)]
        benc_cols += [p[f"enc_{name}_b"], jnp.ones((1,), f32)]
        wdm_cols += [p[f"dec_{name}_w"].T, jnp.zeros((Hd, 1), f32)]
        bdm_cols += [p[f"dec_{name}_b"], jnp.ones((1,), f32)]
    wenc_aug = jnp.concatenate(wenc_cols, axis=1)                             # (2H, 6*33)
    benc_aug = jnp.concatenate(benc_cols).reshape(1, -1)
    wdm_aug = jnp.concatenate(wdm_cols, axis=1)                               # (Hd, 6*25)
    bdm_aug = jnp.concatenate(bdm_cols).reshape(1, -1)

    # biaffine U, packed as dense per-head (DD1, ck*DE1) column blocks (no zero padding)
    ucat = jnp.concatenate(
        [jnp.transpose(p[f"U_{name}"], (1, 0, 2)).reshape(DD1, ck * DE1) for name, ck in HEADS],
        axis=1)                                                               # (25, 1089)

    return (wih_full, bih_full, whh_blk, h0_blk, c0_blk,
            e2dw, e2db, wdec_ih, bdec, wdec_hh,
            wenc_aug, benc_aug, wdm_aug, bdm_aug, ucat)


# ---------------------------------- wrapper ---------------------------------------
def tiger_forward(p, word_ids, bert_tokens, lengths, transformations):
    Bb, Tt = word_ids.shape
    Te = Tt + 1
    f32 = jnp.float32

    # embeddings (word char+id part and BERT part); see TODO(synk) at the top.
    x_emb = p["word_emb"][word_ids]                               # (B, T, 32)
    bert_flat = p["bert_emb"][bert_tokens].reshape(Bb * S_BERT, BERT_DIM)

    # recurrence-step-ordered, fwd/bwd-stacked, duplicated-row phase-1 inputs:
    #   row s*2B + b      -> (batch b, time s)       forward-direction slot
    #   row s*2B + B + b  -> (batch b, time T-1-s)   backward-direction slot
    x_tm = jnp.transpose(x_emb, (1, 0, 2))                        # (T, B, 32)
    x_steps = jnp.concatenate([x_tm, x_tm[::-1]], axis=1).reshape(Tt * 2 * Bb, WORD_EMB)
    tr_tm = jnp.transpose(transformations.astype(f32), (1, 0, 2))  # (T, B, S)
    tr_steps = jnp.concatenate([tr_tm, tr_tm[::-1]], axis=1)       # (T, 2B, S)
    eyer = jnp.concatenate([jnp.eye(Bb, dtype=f32)] * 2, axis=0)   # (2B, B)
    trans_blk = (tr_steps[:, :, None, :] * eyer[None, :, :, None]).reshape(
        Tt * 2 * Bb, Bb * S_BERT)                                  # block-diag over batch

    # packed-sequence validity masks (precomputed, kernel only does hoisted load+compare)
    lens = lengths.astype(jnp.int32)
    s_idx = jnp.arange(Tt, dtype=jnp.int32)
    fwd_valid = s_idx[:, None] < lens[None, :]                     # (T, B)
    bwd_valid = (Tt - 1 - s_idx)[:, None] < lens[None, :]
    enc_mask = jnp.concatenate([fwd_valid, bwd_valid], axis=1).reshape(Tt * 2 * Bb, 1)
    enc_mask = jnp.broadcast_to(enc_mask, (Tt * 2 * Bb, 2 * ENC_H)).astype(f32)
    dec_mask = jnp.broadcast_to(fwd_valid.reshape(Tt * Bb, 1), (Tt * Bb, DEC_H)).astype(f32)

    # additive -inf score mask (the original _mask_out_ semantics)
    dep_inv = jnp.arange(Tt, dtype=jnp.int32)[None, :] >= lens[:, None]        # (B, T)
    head_inv = jnp.arange(Te, dtype=jnp.int32)[None, :] >= (lens[:, None] + 1)  # (B, T+1)
    inv = dep_inv[:, :, None] | head_inv[:, None, :]
    neg = jnp.where(inv, -jnp.inf, 0.0).astype(f32)
    negmask = jnp.broadcast_to(neg[:, :, None, :], (Bb, Tt, C_TOTAL, Te)).reshape(
        Bb * Tt, C_TOTAL * Te)

    packed = pack_params(p, Bb)
    inputs = (x_steps, bert_flat, trans_blk, enc_mask, dec_mask, negmask) + packed

    scores2d = pl.pallas_call(
        functools.partial(tiger_fused_kernel, batch=Bb, seqlen=Tt),
        out_shape=jax.ShapeDtypeStruct((Bb * Tt, C_TOTAL * Te), jnp.float32),
        in_specs=[pl.BlockSpec(memory_space=pltpu.MemorySpace.VMEM) for _ in inputs],
        out_specs=pl.BlockSpec(memory_space=pltpu.MemorySpace.VMEM),
        scratch_shapes=[
            pltpu.VMEM((Tt * 2 * Bb, 8 * ENC_H), jnp.float32),  # step-ordered input gates
            pltpu.VMEM((Bb * Te, 2 * ENC_H), jnp.float32),      # enc_out_pad, b-major (+roots)
            pltpu.VMEM((Tt * Bb, 2 * ENC_H), jnp.float32),      # enc_out, t-major (dec input)
            pltpu.VMEM((Tt * Bb, 4 * DEC_H), jnp.float32),      # precomputed decoder gates
            pltpu.VMEM((Bb * Tt, DEC_H), jnp.float32),          # dec_out, b-major
        ],
    )(*inputs)

    # unpack the lane-dense score slab into the module's output layout (pure XLA reshuffles)
    scores = scores2d.reshape(Bb, Tt, C_TOTAL, Te)

    def take(c0, ckk):
        return jnp.transpose(scores[:, :, c0:c0 + ckk, :], (0, 1, 3, 2))       # (B,T,T+1,ck)

    off = 0
    self_attention = take(off, 1)[..., 0]
    off += 1
    constituent_labels = take(off, NUM_LABELS)
    off += NUM_LABELS
    attachment_orders = take(off, MAX_ATTACH)
    off += MAX_ATTACH
    poses = take(off, NUM_POSES)
    off += NUM_POSES
    morphs = {}
    for prop, n in MORPH_PROPS.items():
        ckk = NUM_POSES * n
        morphs[prop] = take(off, ckk).reshape(Bb, Tt, Te, NUM_POSES, n)
        off += ckk

    indices = jnp.arange(Tt)[None, :] < lengths[:, None]                       # _get_batch_indices
    return self_attention, constituent_labels, poses, attachment_orders, morphs, indices


# --------------------------------- parameters -------------------------------------
def init_params(key):
    keys = iter(jax.random.split(key, 64))

    def nrm(shape, scale=0.1):
        return jax.random.normal(next(keys), shape, jnp.float32) * scale

    p = {}
    p["word_emb"] = nrm((WORD_VOCAB, WORD_EMB))
    p["bert_emb"] = nrm((BERT_VOCAB, BERT_DIM))
    p["enc_init_state"] = nrm((2, 1, ENC_H))                      # xavier-like, deterministic
    for d in ("fwd", "bwd"):
        p[f"enc_{d}_w_ih"] = nrm((4 * ENC_H, ENC_IN))             # PyTorch LSTM layout (i,f,g,o)
        p[f"enc_{d}_w_hh"] = nrm((4 * ENC_H, ENC_H))
        p[f"enc_{d}_b_ih"] = jnp.zeros((4 * ENC_H,), jnp.float32)
        p[f"enc_{d}_b_hh"] = jnp.zeros((4 * ENC_H,), jnp.float32)
    p["dec_w_ih"] = nrm((4 * DEC_H, DEC_IN))
    p["dec_w_hh"] = nrm((4 * DEC_H, DEC_H))
    p["dec_b_ih"] = jnp.zeros((4 * DEC_H,), jnp.float32)
    p["dec_b_hh"] = jnp.zeros((4 * DEC_H,), jnp.float32)
    p["e2d_w"] = nrm((DEC_H, 2 * ENC_H))                          # torch Linear weight layout
    p["e2d_b"] = jnp.zeros((DEC_H,), jnp.float32)
    for name, ck in HEADS:
        p[f"enc_{name}_w"] = nrm((ENC_MLP, 2 * ENC_H))
        p[f"enc_{name}_b"] = jnp.zeros((ENC_MLP,), jnp.float32)
        p[f"dec_{name}_w"] = nrm((DEC_MLP, DEC_H))
        p[f"dec_{name}_b"] = jnp.zeros((DEC_MLP,), jnp.float32)
        p[f"U_{name}"] = nrm((ck, DD1, DE1))
    return p


# ------------------------------------ main -----------------------------------------
if __name__ == "__main__":
    key = jax.random.PRNGKey(0)
    k_par, k_w, k_t, k_tr = jax.random.split(key, 4)
    params = init_params(k_par)

    word_ids = jax.random.randint(k_w, (B, T), 0, WORD_VOCAB, dtype=jnp.int32)
    bert_tokens = jax.random.randint(k_t, (B, S_BERT), 0, BERT_VOCAB, dtype=jnp.int32)
    lengths = jnp.array([T, 6], dtype=jnp.int32)                  # sorted descending
    transformations = jax.random.normal(k_tr, (B, T, S_BERT), jnp.float32)

    fwd = jax.jit(tiger_forward)
    outs = fwd(params, word_ids, bert_tokens, lengths, transformations)
    jax.block_until_ready(outs)

    self_attention, constituent_labels, poses, attachment_orders, morphs, indices = outs
    assert self_attention.shape == (B, T, T + 1)
    assert constituent_labels.shape == (B, T, T + 1, NUM_LABELS)
    assert poses.shape == (B, T, T + 1, NUM_POSES)
    assert attachment_orders.shape == (B, T, T + 1, MAX_ATTACH)
    for prop, n in MORPH_PROPS.items():
        assert morphs[prop].shape == (B, T, T + 1, NUM_POSES, n)
    assert indices.shape == (B, T)
    # length masking sanity: batch 0 (len=T) fully valid; batch 1 (len=6) padded dec pos -> -inf
    assert bool(jnp.all(jnp.isfinite(self_attention[0])))
    assert bool(jnp.isneginf(self_attention[1, 7, 0]))
    print("KERNEL_OK")
</pallas_src>

<mosaic_0001>
module attributes {stable_mosaic.version = 11 : i64} {
  func.func @tiger_fused_kernel(%arg0: memref<32x32xf32, #tpu.memory_space<vmem>>, %arg1: memref<20x32xf32, #tpu.memory_space<vmem>>, %arg2: memref<32x20xf32, #tpu.memory_space<vmem>>, %arg3: memref<32x64xf32, #tpu.memory_space<vmem>>, %arg4: memref<16x32xf32, #tpu.memory_space<vmem>>, %arg5: memref<16x297xf32, #tpu.memory_space<vmem>>, %arg6: memref<64x256xf32, #tpu.memory_space<vmem>>, %arg7: memref<1x256xf32, #tpu.memory_space<vmem>>, %arg8: memref<64x256xf32, #tpu.memory_space<vmem>>, %arg9: memref<4x64xf32, #tpu.memory_space<vmem>>, %arg10: memref<4x64xf32, #tpu.memory_space<vmem>>, %arg11: memref<64x32xf32, #tpu.memory_space<vmem>>, %arg12: memref<1x32xf32, #tpu.memory_space<vmem>>, %arg13: memref<64x128xf32, #tpu.memory_space<vmem>>, %arg14: memref<1x128xf32, #tpu.memory_space<vmem>>, %arg15: memref<32x128xf32, #tpu.memory_space<vmem>>, %arg16: memref<64x198xf32, #tpu.memory_space<vmem>>, %arg17: memref<1x198xf32, #tpu.memory_space<vmem>>, %arg18: memref<32x150xf32, #tpu.memory_space<vmem>>, %arg19: memref<1x150xf32, #tpu.memory_space<vmem>>, %arg20: memref<25x1089xf32, #tpu.memory_space<vmem>>, %arg21: memref<16x297xf32, #tpu.memory_space<vmem>>, %arg22: memref<32x256xf32, #tpu.memory_space<vmem>>, %arg23: memref<18x64xf32, #tpu.memory_space<vmem>>, %arg24: memref<16x64xf32, #tpu.memory_space<vmem>>, %arg25: memref<16x128xf32, #tpu.memory_space<vmem>>, %arg26: memref<16x32xf32, #tpu.memory_space<vmem>>) attributes {dimension_semantics = [], scalar_prefetch = 0 : i64, scratch_operands = 5 : i64, tpu.core_type = #tpu.core_type<tc>} {
    %c0 = arith.constant 0 : index
    %c0_0 = arith.constant 0 : index
    %0 = vector.load %arg6[%c0, %c0_0] : memref<64x256xf32, #tpu.memory_space<vmem>>, vector<64x256xf32>
    %c0_1 = arith.constant 0 : index
    %c0_2 = arith.constant 0 : index
    %1 = vector.load %arg1[%c0_1, %c0_2] : memref<20x32xf32, #tpu.memory_space<vmem>>, vector<20x32xf32>
    %2 = vector.extract_strided_slice %0 {offsets = [32, 0], sizes = [32, 256], strides = [1, 1]} : vector<64x256xf32> to vector<32x256xf32>
    %cst = arith.constant dense<0.000000e+00> : vector<20x256xf32>
    %3 = tpu.matmul %1, %2, %cst {dimension_numbers = #tpu.dot_dimension_numbers<[1], [0], [0], [1], [0, 0, 1, 1], [], []>} : vector<20x32xf32>, vector<32x256xf32>, vector<20x256xf32> -> vector<20x256xf32>
    %c0_3 = arith.constant 0 : index
    %c0_4 = arith.constant 0 : index
    %4 = vector.load %arg0[%c0_3, %c0_4] : memref<32x32xf32, #tpu.memory_space<vmem>>, vector<32x32xf32>
    %5 = vector.extract_strided_slice %0 {offsets = [0, 0], sizes = [32, 256], strides = [1, 1]} : vector<64x256xf32> to vector<32x256xf32>
    %cst_5 = arith.constant dense<0.000000e+00> : vector<32x256xf32>
    %6 = tpu.matmul %4, %5, %cst_5 {dimension_numbers = #tpu.dot_dimension_numbers<[1], [0], [0], [1], [0, 0, 1, 1], [], []>} : vector<32x32xf32>, vector<32x256xf32>, vector<32x256xf32> -> vector<32x256xf32>
    %c0_6 = arith.constant 0 : index
    %c0_7 = arith.constant 0 : index
    %7 = vector.load %arg2[%c0_6, %c0_7] : memref<32x20xf32, #tpu.memory_space<vmem>>, vector<32x20xf32>
    %cst_8 = arith.constant dense<0.000000e+00> : vector<32x256xf32>
    %8 = tpu.matmul %7, %3, %cst_8 {dimension_numbers = #tpu.dot_dimension_numbers<[1], [0], [0], [1], [0, 0, 1, 1], [], []>} : vector<32x20xf32>, vector<20x256xf32>, vector<32x256xf32> -> vector<32x256xf32>
    %9 = arith.addf %6, %8 : vector<32x256xf32>
    %c0_9 = arith.constant 0 : index
    %c0_10 = arith.constant 0 : index
    %10 = vector.load %arg7[%c0_9, %c0_10] : memref<1x256xf32, #tpu.memory_space<vmem>>, vector<1x256xf32>
    %11 = vector.broadcast %10 : vector<1x256xf32> to vector<32x256xf32>
    %12 = arith.addf %9, %11 : vector<32x256xf32>
    %c0_11 = arith.constant 0 : index
    %c0_12 = arith.constant 0 : index
    %13 = vector.load %arg22[%c0_11, %c0_12] : memref<32x256xf32, #tpu.memory_space<vmem>>, vector<32x256xf32>
    tpu.vector_store %arg22[%c0_11, %c0_12], %12 {strides = array<i32>} : memref<32x256xf32, #tpu.memory_space<vmem>>, vector<32x256xf32>,
    %c0_13 = arith.constant 0 : index
    %c0_14 = arith.constant 0 : index
    %14 = vector.load %arg9[%c0_13, %c0_14] : memref<4x64xf32, #tpu.memory_space<vmem>>, vector<4x64xf32>
    %15 = vector.extract_strided_slice %14 {offsets = [0, 0], sizes = [1, 32], strides = [1, 1]} : vector<4x64xf32> to vector<1x32xf32>
    %c0_15 = arith.constant 0 : index
    %c0_16 = arith.constant 0 : index
    %16 = vector.load %arg23[%c0_15, %c0_16] : memref<18x64xf32, #tpu.memory_space<vmem>>, vector<1x32xf32>
    tpu.vector_store %arg23[%c0_15, %c0_16], %15 {strides = array<i32>} : memref<18x64xf32, #tpu.memory_space<vmem>>, vector<1x32xf32>,
    %17 = vector.extract_strided_slice %14 {offsets = [2, 32], sizes = [1, 32], strides = [1, 1]} : vector<4x64xf32> to vector<1x32xf32>
    %c0_17 = arith.constant 0 : index
    %c32 = arith.constant 32 : index
    %18 = vector.load %arg23[%c0_17, %c32] : memref<18x64xf32, #tpu.memory_space<vmem>>, vector<1x32xf32>
    tpu.vector_store %arg23[%c0_17, %c32], %17 {strides = array<i32>} : memref<18x64xf32, #tpu.memory_space<vmem>>, vector<1x32xf32>,
    %19 = vector.extract_strided_slice %14 {offsets = [1, 0], sizes = [1, 32], strides = [1, 1]} : vector<4x64xf32> to vector<1x32xf32>
    %c9 = arith.constant 9 : index
    %c0_18 = arith.constant 0 : index
    %20 = vector.load %arg23[%c9, %c0_18] : memref<18x64xf32, #tpu.memory_space<vmem>>, vector<1x32xf32>
    tpu.vector_store %arg23[%c9, %c0_18], %19 {strides = array<i32>} : memref<18x64xf32, #tpu.memory_space<vmem>>, vector<1x32xf32>,
    %21 = vector.extract_strided_slice %14 {offsets = [3, 32], sizes = [1, 32], strides = [1, 1]} : vector<4x64xf32> to vector<1x32xf32>
    %c9_19 = arith.constant 9 : index
    %c32_20 = arith.constant 32 : index
    %22 = vector.load %arg23[%c9_19, %c32_20] : memref<18x64xf32, #tpu.memory_space<vmem>>, vector<1x32xf32>
    tpu.vector_store %arg23[%c9_19, %c32_20], %21 {strides = array<i32>} : memref<18x64xf32, #tpu.memory_space<vmem>>, vector<1x32xf32>,
    %c0_21 = arith.constant 0 : index
    %c0_22 = arith.constant 0 : index
    %23 = vector.load %arg3[%c0_21, %c0_22] : memref<32x64xf32, #tpu.memory_space<vmem>>, vector<4x64xf32>
    %cst_23 = arith.constant 0.000000e+00 : f32
    %24 = vector.broadcast %cst_23 : f32 to vector<4x64xf32>
    %25 = arith.cmpf one, %23, %24 : vector<4x64xf32>
    %c4 = arith.constant 4 : index
    %c0_24 = arith.constant 0 : index
    %26 = vector.load %arg3[%c4, %c0_24] : memref<32x64xf32, #tpu.memory_space<vmem>>, vector<4x64xf32>
    %cst_25 = arith.constant 0.000000e+00 : f32
    %27 = vector.broadcast %cst_25 : f32 to vector<4x64xf32>
    %28 = arith.cmpf one, %26, %27 : vector<4x64xf32>
    %c8 = arith.constant 8 : index
    %c0_26 = arith.constant 0 : index
    %29 = vector.load %arg3[%c8, %c0_26] : memref<32x64xf32, #tpu.memory_space<vmem>>, vector<4x64xf32>
    %cst_27 = arith.constant 0.000000e+00 : f32
    %30 = vector.broadcast %cst_27 : f32 to vector<4x64xf32>
    %31 = arith.cmpf one, %29, %30 : vector<4x64xf32>
    %c12 = arith.constant 12 : index
    %c0_28 = arith.constant 0 : index
    %32 = vector.load %arg3[%c12, %c0_28] : memref<32x64xf32, #tpu.memory_space<vmem>>, vector<4x64xf32>
    %cst_29 = arith.constant 0.000000e+00 : f32
    %33 = vector.broadcast %cst_29 : f32 to vector<4x64xf32>
    %34 = arith.cmpf one, %32, %33 : vector<4x64xf32>
    %c16 = arith.constant 16 : index
    %c0_30 = arith.constant 0 : index
    %35 = vector.load %arg3[%c16, %c0_30] : memref<32x64xf32, #tpu.memory_space<vmem>>, vector<4x64xf32>
    %cst_31 = arith.constant 0.000000e+00 : f32
    %36 = vector.broadcast %cst_31 : f32 to vector<4x64xf32>
    %37 = arith.cmpf one, %35, %36 : vector<4x64xf32>
    %c20 = arith.constant 20 : index
    %c0_32 = arith.constant 0 : index
    %38 = vector.load %arg3[%c20, %c0_32] : memref<32x64xf32, #tpu.memory_space<vmem>>, vector<4x64xf32>
    %cst_33 = arith.constant 0.000000e+00 : f32
    %39 = vector.broadcast %cst_33 : f32 to vector<4x64xf32>
    %40 = arith.cmpf one, %38, %39 : vector<4x64xf32>
    %c24 = arith.constant 24 : index
    %c0_34 = arith.constant 0 : index
    %41 = vector.load %arg3[%c24, %c0_34] : memref<32x64xf32, #tpu.memory_space<vmem>>, vector<4x64xf32>
    %cst_35 = arith.constant 0.000000e+00 : f32
    %42 = vector.broadcast %cst_35 : f32 to vector<4x64xf32>
    %43 = arith.cmpf one, %41, %42 : vector<4x64xf32>
    %c28 = arith.constant 28 : index
    %c0_36 = arith.constant 0 : index
    %44 = vector.load %arg3[%c28, %c0_36] : memref<32x64xf32, #tpu.memory_space<vmem>>, vector<4x64xf32>
    %cst_37 = arith.constant 0.000000e+00 : f32
    %45 = vector.broadcast %cst_37 : f32 to vector<4x64xf32>
    %46 = arith.cmpf one, %44, %45 : vector<4x64xf32>
    %c0_38 = arith.constant 0 : index
    %c0_39 = arith.constant 0 : index
    %47 = vector.load %arg4[%c0_38, %c0_39] : memref<16x32xf32, #tpu.memory_space<vmem>>, vector<2x32xf32>
    %cst_40 = arith.constant 0.000000e+00 : f32
    %48 = vector.broadcast %cst_40 : f32 to vector<2x32xf32>
    %49 = arith.cmpf one, %47, %48 : vector<2x32xf32>
    %c2 = arith.constant 2 : index
    %c0_41 = arith.constant 0 : index
    %50 = vector.load %arg4[%c2, %c0_41] : memref<16x32xf32, #tpu.memory_space<vmem>>, vector<2x32xf32>
    %cst_42 = arith.constant 0.000000e+00 : f32
    %51 = vector.broadcast %cst_42 : f32 to vector<2x32xf32>
    %52 = arith.cmpf one, %50, %51 : vector<2x32xf32>
    %c4_43 = arith.constant 4 : index
    %c0_44 = arith.constant 0 : index
    %53 = vector.load %arg4[%c4_43, %c0_44] : memref<16x32xf32, #tpu.memory_space<vmem>>, vector<2x32xf32>
    %cst_45 = arith.constant 0.000000e+00 : f32
    %54 = vector.broadcast %cst_45 : f32 to vector<2x32xf32>
    %55 = arith.cmpf one, %53, %54 : vector<2x32xf32>
    %c6 = arith.constant 6 : index
    %c0_46 = arith.constant 0 : index
    %56 = vector.load %arg4[%c6, %c0_46] : memref<16x32xf32, #tpu.memory_space<vmem>>, vector<2x32xf32>
    %cst_47 = arith.constant 0.000000e+00 : f32
    %57 = vector.broadcast %cst_47 : f32 to vector<2x32xf32>
    %58 = arith.cmpf one, %56, %57 : vector<2x32xf32>
    %c8_48 = arith.constant 8 : index
    %c0_49 = arith.constant 0 : index
    %59 = vector.load %arg4[%c8_48, %c0_49] : memref<16x32xf32, #tpu.memory_space<vmem>>, vector<2x32xf32>
    %cst_50 = arith.constant 0.000000e+00 : f32
    %60 = vector.broadcast %cst_50 : f32 to vector<2x32xf32>
    %61 = arith.cmpf one, %59, %60 : vector<2x32xf32>
    %c10 = arith.constant 10 : index
    %c0_51 = arith.constant 0 : index
    %62 = vector.load %arg4[%c10, %c0_51] : memref<16x32xf32, #tpu.memory_space<vmem>>, vector<2x32xf32>
    %cst_52 = arith.constant 0.000000e+00 : f32
    %63 = vector.broadcast %cst_52 : f32 to vector<2x32xf32>
    %64 = arith.cmpf one, %62, %63 : vector<2x32xf32>
    %c12_53 = arith.constant 12 : index
    %c0_54 = arith.constant 0 : index
    %65 = vector.load %arg4[%c12_53, %c0_54] : memref<16x32xf32, #tpu.memory_space<vmem>>, vector<2x32xf32>
    %cst_55 = arith.constant 0.000000e+00 : f32
    %66 = vector.broadcast %cst_55 : f32 to vector<2x32xf32>
    %67 = arith.cmpf one, %65, %66 : vector<2x32xf32>
    %c0_56 = arith.constant 0 : index
    %c0_57 = arith.constant 0 : index
    %68 = vector.load %arg8[%c0_56, %c0_57] : memref<64x256xf32, #tpu.memory_space<vmem>>, vector<64x256xf32>
    %c0_58 = arith.constant 0 : index
    %c0_59 = arith.constant 0 : index
    %69 = vector.load %arg10[%c0_58, %c0_59] : memref<4x64xf32, #tpu.memory_space<vmem>>, vector<4x64xf32>
    %c0_60 = arith.constant 0 : index
    %c0_61 = arith.constant 0 : index
    %70 = vector.load %arg22[%c0_60, %c0_61] : memref<32x256xf32, #tpu.memory_space<vmem>>, vector<4x256xf32>
    %cst_62 = arith.constant dense<0.000000e+00> : vector<4x256xf32>
    %71 = tpu.matmul %14, %68, %cst_62 {dimension_numbers = #tpu.dot_dimension_numbers<[1], [0], [0], [1], [0, 0, 1, 1], [], []>} : vector<4x64xf32>, vector<64x256xf32>, vector<4x256xf32> -> vector<4x256xf32>
    %72 = arith.addf %70, %71 : vector<4x256xf32>
    %73 = vector.extract_strided_slice %72 {offsets = [0, 0], sizes = [4, 192], strides = [1, 1]} : vector<4x256xf32> to vector<4x192xf32>
    %cst_63 = arith.constant 5.000000e-01 : f32
    %74 = vector.broadcast %cst_63 : f32 to vector<4x192xf32>
    %75 = arith.mulf %74, %73 : vector<4x192xf32>
    %76 = math.tanh %75 : vector<4x192xf32>
    %cst_64 = arith.constant 5.000000e-01 : f32
    %77 = vector.broadcast %cst_64 : f32 to vector<4x192xf32>
    %78 = arith.mulf %77, %76 : vector<4x192xf32>
    %cst_65 = arith.constant 5.000000e-01 : f32
    %79 = vector.broadcast %cst_65 : f32 to vector<4x192xf32>
    %80 = arith.addf %78, %79 : vector<4x192xf32>
    %81 = vector.extract_strided_slice %72 {offsets = [0, 192], sizes = [4, 64], strides = [1, 1]} : vector<4x256xf32> to vector<4x64xf32>
    %82 = math.tanh %81 : vector<4x64xf32>
    %83 = vector.extract_strided_slice %80 {offsets = [0, 64], sizes = [4, 64], strides = [1, 1]} : vector<4x192xf32> to vector<4x64xf32>
    %84 = arith.mulf %83, %69 : vector<4x64xf32>
    %85 = vector.extract_strided_slice %80 {offsets = [0, 0], sizes = [4, 64], strides = [1, 1]} : vector<4x192xf32> to vector<4x64xf32>
    %86 = arith.mulf %85, %82 : vector<4x64xf32>
    %87 = arith.addf %84, %86 : vector<4x64xf32>
    %88 = vector.extract_strided_slice %80 {offsets = [0, 128], sizes = [4, 64], strides = [1, 1]} : vector<4x192xf32> to vector<4x64xf32>
    %89 = math.tanh %87 : vector<4x64xf32>
    %90 = arith.mulf %88, %89 : vector<4x64xf32>
    %91 = arith.select %25, %90, %14 : vector<4x64xi1>, vector<4x64xf32>
    %92 = arith.select %25, %87, %69 : vector<4x64xi1>, vector<4x64xf32>
    %93 = vector.extract_strided_slice %90 {offsets = [0, 0], sizes = [1, 32], strides = [1, 1]} : vector<4x64xf32> to vector<1x32xf32>
    %c1 = arith.constant 1 : index
    %c0_66 = arith.constant 0 : index
    %94 = vector.load %arg23[%c1, %c0_66] : memref<18x64xf32, #tpu.memory_space<vmem>>, vector<1x32xf32>
    tpu.vector_store %arg23[%c1, %c0_66], %93 {strides = array<i32>} : memref<18x64xf32, #tpu.memory_space<vmem>>, vector<1x32xf32>,
    %95 = vector.extract_strided_slice %90 {offsets = [2, 32], sizes = [1, 32], strides = [1, 1]} : vector<4x64xf32> to vector<1x32xf32>
    %c8_67 = arith.constant 8 : index
    %c32_68 = arith.constant 32 : index
    %96 = vector.load %arg23[%c8_67, %c32_68] : memref<18x64xf32, #tpu.memory_space<vmem>>, vector<1x32xf32>
    tpu.vector_store %arg23[%c8_67, %c32_68], %95 {strides = array<i32>} : memref<18x64xf32, #tpu.memory_space<vmem>>, vector<1x32xf32>,
    %97 = vector.extract_strided_slice %90 {offsets = [1, 0], sizes = [1, 32], strides = [1, 1]} : vector<4x64xf32> to vector<1x32xf32>
    %c10_69 = arith.constant 10 : index
    %c0_70 = arith.constant 0 : index
    %98 = vector.load %arg23[%c10_69, %c0_70] : memref<18x64xf32, #tpu.memory_space<vmem>>, vector<1x32xf32>
    tpu.vector_store %arg23[%c10_69, %c0_70], %97 {strides = array<i32>} : memref<18x64xf32, #tpu.memory_space<vmem>>, vector<1x32xf32>,
    %99 = vector.extract_strided_slice %90 {offsets = [3, 32], sizes = [1, 32], strides = [1, 1]} : vector<4x64xf32> to vector<1x32xf32>
    %c17 = arith.constant 17 : index
    %c32_71 = arith.constant 32 : index
    %100 = vector.load %arg23[%c17, %c32_71] : memref<18x64xf32, #tpu.memory_space<vmem>>, vector<1x32xf32>
    tpu.vector_store %arg23[%c17, %c32_71], %99 {strides = array<i32>} : memref<18x64xf32, #tpu.memory_space<vmem>>, vector<1x32xf32>,
    %101 = vector.extract_strided_slice %90 {offsets = [0, 0], sizes = [2, 32], strides = [1, 1]} : vector<4x64xf32> to vector<2x32xf32>
    %c0_72 = arith.constant 0 : index
    %c0_73 = arith.constant 0 : index
    %102 = vector.load %arg24[%c0_72, %c0_73] : memref<16x64xf32, #tpu.memory_space<vmem>>, vector<2x32xf32>
    tpu.vector_store %arg24[%c0_72, %c0_73], %101 {strides = array<i32>} : memref<16x64xf32, #tpu.memory_space<vmem>>, vector<2x32xf32>,
    %103 = vector.extract_strided_slice %90 {offsets = [2, 32], sizes = [2, 32], strides = [1, 1]} : vector<4x64xf32> to vector<2x32xf32>
    %c14 = arith.constant 14 : index
    %c32_74 = arith.constant 32 : index
    %104 = vector.load %arg24[%c14, %c32_74] : memref<16x64xf32, #tpu.memory_space<vmem>>, vector<2x32xf32>
    tpu.vector_store %arg24[%c14, %c32_74], %103 {strides = array<i32>} : memref<16x64xf32, #tpu.memory_space<vmem>>, vector<2x32xf32>,
    %c4_75 = arith.constant 4 : index
    %c0_76 = arith.constant 0 : index
    %105 = vector.load %arg22[%c4_75, %c0_76] : memref<32x256xf32, #tpu.memory_space<vmem>>, vector<4x256xf32>
    %cst_77 = arith.constant dense<0.000000e+00> : vector<4x256xf32>
    %106 = tpu.matmul %91, %68, %cst_77 {dimension_numbers = #tpu.dot_dimension_numbers<[1], [0], [0], [1], [0, 0, 1, 1], [], []>} : vector<4x64xf32>, vector<64x256xf32>, vector<4x256xf32> -> vector<4x256xf32>
    %107 = arith.addf %105, %106 : vector<4x256xf32>
    %108 = vector.extract_strided_slice %107 {offsets = [0, 0], sizes = [4, 192], strides = [1, 1]} : vector<4x256xf32> to vector<4x192xf32>
    %cst_78 = arith.constant 5.000000e-01 : f32
    %109 = vector.broadcast %cst_78 : f32 to vector<4x192xf32>
    %110 = arith.mulf %109, %108 : vector<4x192xf32>
    %111 = math.tanh %110 : vector<4x192xf32>
    %cst_79 = arith.constant 5.000000e-01 : f32
    %112 = vector.broadcast %cst_79 : f32 to vector<4x192xf32>
    %113 = arith.mulf %112, %111 : vector<4x192xf32>
    %cst_80 = arith.constant 5.000000e-01 : f32
    %114 = vector.broadcast %cst_80 : f32 to vector<4x192xf32>
    %115 = arith.addf %113, %114 : vector<4x192xf32>
    %116 = vector.extract_strided_slice %107 {offsets = [0, 192], sizes = [4, 64], strides = [1, 1]} : vector<4x256xf32> to vector<4x64xf32>
    %117 = math.tanh %116 : vector<4x64xf32>
    %118 = vector.extract_strided_slice %115 {offsets = [0, 64], sizes = [4, 64], strides = [1, 1]} : vector<4x192xf32> to vector<4x64xf32>
    %119 = arith.mulf %118, %92 : vector<4x64xf32>
    %120 = vector.extract_strided_slice %115 {offsets = [0, 0], sizes = [4, 64], strides = [1, 1]} : vector<4x192xf32> to vector<4x64xf32>
    %121 = arith.mulf %120, %117 : vector<4x64xf32>
    %122 = arith.addf %119, %121 : vector<4x64xf32>
    %123 = vector.extract_strided_slice %115 {offsets = [0, 128], sizes = [4, 64], strides = [1, 1]} : vector<4x192xf32> to vector<4x64xf32>
    %124 = math.tanh %122 : vector<4x64xf32>
    %125 = arith.mulf %123, %124 : vector<4x64xf32>
    %126 = arith.select %28, %125, %91 : vector<4x64xi1>, vector<4x64xf32>
    %127 = arith.select %28, %122, %92 : vector<4x64xi1>, vector<4x64xf32>
    %128 = vector.extract_strided_slice %125 {offsets = [0, 0], sizes = [1, 32], strides = [1, 1]} : vector<4x64xf32> to vector<1x32xf32>
    %c2_81 = arith.constant 2 : index
    %c0_82 = arith.constant 0 : index
    %129 = vector.load %arg23[%c2_81, %c0_82] : memref<18x64xf32, #tpu.memory_space<vmem>>, vector<1x32xf32>
    tpu.vector_store %arg23[%c2_81, %c0_82], %128 {strides = array<i32>} : memref<18x64xf32, #tpu.memory_space<vmem>>, vector<1x32xf32>,
    %130 = vector.extract_strided_slice %125 {offsets = [2, 32], sizes = [1, 32], strides = [1, 1]} : vector<4x64xf32> to vector<1x32xf32>
    %c7 = arith.constant 7 : index
    %c32_83 = arith.constant 32 : index
    %131 = vector.load %arg23[%c7, %c32_83] : memref<18x64xf32, #tpu.memory_space<vmem>>, vector<1x32xf32>
    tpu.vector_store %arg23[%c7, %c32_83], %130 {strides = array<i32>} : memref<18x64xf32, #tpu.memory_space<vmem>>, vector<1x32xf32>,
    %132 = vector.extract_strided_slice %125 {offsets = [1, 0], sizes = [1, 32], strides = [1, 1]} : vector<4x64xf32> to vector<1x32xf32>
    %c11 = arith.constant 11 : index
    %c0_84 = arith.constant 0 : index
    %133 = vector.load %arg23[%c11, %c0_84] : memref<18x64xf32, #tpu.memory_space<vmem>>, vector<1x32xf32>
    tpu.vector_store %arg23[%c11, %c0_84], %132 {strides = array<i32>} : memref<18x64xf32, #tpu.memory_space<vmem>>, vector<1x32xf32>,
    %134 = vector.extract_strided_slice %125 {offsets = [3, 32], sizes = [1, 32], strides = [1, 1]} : vector<4x64xf32> to vector<1x32xf32>
    %c16_85 = arith.constant 16 : index
    %c32_86 = arith.constant 32 : index
    %135 = vector.load %arg23[%c16_85, %c32_86] : memref<18x64xf32, #tpu.memory_space<vmem>>, vector<1x32xf32>
    tpu.vector_store %arg23[%c16_85, %c32_86], %134 {strides = array<i32>} : memref<18x64xf32, #tpu.memory_space<vmem>>, vector<1x32xf32>,
    %136 = vector.extract_strided_slice %125 {offsets = [0, 0], sizes = [2, 32], strides = [1, 1]} : vector<4x64xf32> to vector<2x32xf32>
    %c2_87 = arith.constant 2 : index
    %c0_88 = arith.constant 0 : index
    %137 = vector.load %arg24[%c2_87, %c0_88] : memref<16x64xf32, #tpu.memory_space<vmem>>, vector<2x32xf32>
    tpu.vector_store %arg24[%c2_87, %c0_88], %136 {strides = array<i32>} : memref<16x64xf32, #tpu.memory_space<vmem>>, vector<2x32xf32>,
    %138 = vector.extract_strided_slice %125 {offsets = [2, 32], sizes = [2, 32], strides = [1, 1]} : vector<4x64xf32> to vector<2x32xf32>
    %c12_89 = arith.constant 12 : index
    %c32_90 = arith.constant 32 : index
    %139 = vector.load %arg24[%c12_89, %c32_90] : memref<16x64xf32, #tpu.memory_space<vmem>>, vector<2x32xf32>
    tpu.vector_store %arg24[%c12_89, %c32_90], %138 {strides = array<i32>} : memref<16x64xf32, #tpu.memory_space<vmem>>, vector<2x32xf32>,
    %c8_91 = arith.constant 8 : index
    %c0_92 = arith.constant 0 : index
    %140 = vector.load %arg22[%c8_91, %c0_92] : memref<32x256xf32, #tpu.memory_space<vmem>>, vector<4x256xf32>
    %cst_93 = arith.constant dense<0.000000e+00> : vector<4x256xf32>
    %141 = tpu.matmul %126, %68, %cst_93 {dimension_numbers = #tpu.dot_dimension_numbers<[1], [0], [0], [1], [0, 0, 1, 1], [], []>} : vector<4x64xf32>, vector<64x256xf32>, vector<4x256xf32> -> vector<4x256xf32>
    %142 = arith.addf %140, %141 : vector<4x256xf32>
    %143 = vector.extract_strided_slice %142 {offsets = [0, 0], sizes = [4, 192], strides = [1, 1]} : vector<4x256xf32> to vector<4x192xf32>
    %cst_94 = arith.constant 5.000000e-01 : f32
    %144 = vector.broadcast %cst_94 : f32 to vector<4x192xf32>
    %145 = arith.mulf %144, %143 : vector<4x192xf32>
    %146 = math.tanh %145 : vector<4x192xf32>
    %cst_95 = arith.constant 5.000000e-01 : f32
    %147 = vector.broadcast %cst_95 : f32 to vector<4x192xf32>
    %148 = arith.mulf %147, %146 : vector<4x192xf32>
    %cst_96 = arith.constant 5.000000e-01 : f32
    %149 = vector.broadcast %cst_96 : f32 to vector<4x192xf32>
    %150 = arith.addf %148, %149 : vector<4x192xf32>
    %151 = vector.extract_strided_slice %142 {offsets = [0, 192], sizes = [4, 64], strides = [1, 1]} : vector<4x256xf32> to vector<4x64xf32>
    %152 = math.tanh %151 : vector<4x64xf32>
    %153 = vector.extract_strided_slice %150 {offsets = [0, 64], sizes = [4, 64], strides = [1, 1]} : vector<4x192xf32> to vector<4x64xf32>
    %154 = arith.mulf %153, %127 : vector<4x64xf32>
    %155 = vector.extract_strided_slice %150 {offsets = [0, 0], sizes = [4, 64], strides = [1, 1]} : vector<4x192xf32> to vector<4x64xf32>
    %156 = arith.mulf %155, %152 : vector<4x64xf32>
    %157 = arith.addf %154, %156 : vector<4x64xf32>
    %158 = vector.extract_strided_slice %150 {offsets = [0, 128], sizes = [4, 64], strides = [1, 1]} : vector<4x192xf32> to vector<4x64xf32>
    %159 = math.tanh %157 : vector<4x64xf32>
    %160 = arith.mulf %158, %159 : vector<4x64xf32>
    %161 = arith.select %31, %160, %126 : vector<4x64xi1>, vector<4x64xf32>
    %162 = arith.select %31, %157, %127 : vector<4x64xi1>, vector<4x64xf32>
    %163 = vector.extract_strided_slice %160 {offsets = [0, 0], sizes = [1, 32], strides = [1, 1]} : vector<4x64xf32> to vector<1x32xf32>
    %c3 = arith.constant 3 : index
    %c0_97 = arith.constant 0 : index
    %164 = vector.load %arg23[%c3, %c0_97] : memref<18x64xf32, #tpu.memory_space<vmem>>, vector<1x32xf32>
    tpu.vector_store %arg23[%c3, %c0_97], %163 {strides = array<i32>} : memref<18x64xf32, #tpu.memory_space<vmem>>, vector<1x32xf32>,
    %165 = vector.extract_strided_slice %160 {offsets = [2, 32], sizes = [1, 32], strides = [1, 1]} : vector<4x64xf32> to vector<1x32xf32>
    %c6_98 = arith.constant 6 : index
    %c32_99 = arith.constant 32 : index
    %166 = vector.load %arg23[%c6_98, %c32_99] : memref<18x64xf32, #tpu.memory_space<vmem>>, vector<1x32xf32>
    tpu.vector_store %arg23[%c6_98, %c32_99], %165 {strides = array<i32>} : memref<18x64xf32, #tpu.memory_space<vmem>>, vector<1x32xf32>,
    %167 = vector.extract_strided_slice %160 {offsets = [1, 0], sizes = [1, 32], strides = [1, 1]} : vector<4x64xf32> to vector<1x32xf32>
    %c12_100 = arith.constant 12 : index
    %c0_101 = arith.constant 0 : index
    %168 = vector.load %arg23[%c12_100, %c0_101] : memref<18x64xf32, #tpu.memory_space<vmem>>, vector<1x32xf32>
    tpu.vector_store %arg23[%c12_100, %c0_101], %167 {strides = array<i32>} : memref<18x64xf32, #tpu.memory_space<vmem>>, vector<1x32xf32>,
    %169 = vector.extract_strided_slice %160 {offsets = [3, 32], sizes = [1, 32], strides = [1, 1]} : vector<4x64xf32> to vector<1x32xf32>
    %c15 = arith.constant 15 : index
    %c32_102 = arith.constant 32 : index
    %170 = vector.load %arg23[%c15, %c32_102] : memref<18x64xf32, #tpu.memory_space<vmem>>, vector<1x32xf32>
    tpu.vector_store %arg23[%c15, %c32_102], %169 {strides = array<i32>} : memref<18x64xf32, #tpu.memory_space<vmem>>, vector<1x32xf32>,
    %171 = vector.extract_strided_slice %160 {offsets = [0, 0], sizes = [2, 32], strides = [1, 1]} : vector<4x64xf32> to vector<2x32xf32>
    %c4_103 = arith.constant 4 : index
    %c0_104 = arith.constant 0 : index
    %172 = vector.load %arg24[%c4_103, %c0_104] : memref<16x64xf32, #tpu.memory_space<vmem>>, vector<2x32xf32>
    tpu.vector_store %arg24[%c4_103, %c0_104], %171 {strides = array<i32>} : memref<16x64xf32, #tpu.memory_space<vmem>>, vector<2x32xf32>,
    %173 = vector.extract_strided_slice %160 {offsets = [2, 32], sizes = [2, 32], strides = [1, 1]} : vector<4x64xf32> to vector<2x32xf32>
    %c10_105 = arith.constant 10 : index
    %c32_106 = arith.constant 32 : index
    %174 = vector.load %arg24[%c10_105, %c32_106] : memref<16x64xf32, #tpu.memory_space<vmem>>, vector<2x32xf32>
    tpu.vector_store %arg24[%c10_105, %c32_106], %173 {strides = array<i32>} : memref<16x64xf32, #tpu.memory_space<vmem>>, vector<2x32xf32>,
    %c12_107 = arith.constant 12 : index
    %c0_108 = arith.constant 0 : index
    %175 = vector.load %arg22[%c12_107, %c0_108] : memref<32x256xf32, #tpu.memory_space<vmem>>, vector<4x256xf32>
    %cst_109 = arith.constant dense<0.000000e+00> : vector<4x256xf32>
    %176 = tpu.matmul %161, %68, %cst_109 {dimension_numbers = #tpu.dot_dimension_numbers<[1], [0], [0], [1], [0, 0, 1, 1], [], []>} : vector<4x64xf32>, vector<64x256xf32>, vector<4x256xf32> -> vector<4x256xf32>
    %177 = arith.addf %175, %176 : vector<4x256xf32>
    %178 = vector.extract_strided_slice %177 {offsets = [0, 0], sizes = [4, 192], strides = [1, 1]} : vector<4x256xf32> to vector<4x192xf32>
    %cst_110 = arith.constant 5.000000e-01 : f32
    %179 = vector.broadcast %cst_110 : f32 to vector<4x192xf32>
    %180 = arith.mulf %179, %178 : vector<4x192xf32>
    %181 = math.tanh %180 : vector<4x192xf32>
    %cst_111 = arith.constant 5.000000e-01 : f32
    %182 = vector.broadcast %cst_111 : f32 to vector<4x192xf32>
    %183 = arith.mulf %182, %181 : vector<4x192xf32>
    %cst_112 = arith.constant 5.000000e-01 : f32
    %184 = vector.broadcast %cst_112 : f32 to vector<4x192xf32>
    %185 = arith.addf %183, %184 : vector<4x192xf32>
    %186 = vector.extract_strided_slice %177 {offsets = [0, 192], sizes = [4, 64], strides = [1, 1]} : vector<4x256xf32> to vector<4x64xf32>
    %187 = math.tanh %186 : vector<4x64xf32>
    %188 = vector.extract_strided_slice %185 {offsets = [0, 64], sizes = [4, 64], strides = [1, 1]} : vector<4x192xf32> to vector<4x64xf32>
    %189 = arith.mulf %188, %162 : vector<4x64xf32>
    %190 = vector.extract_strided_slice %185 {offsets = [0, 0], sizes = [4, 64], strides = [1, 1]} : vector<4x192xf32> to vector<4x64xf32>
    %191 = arith.mulf %190, %187 : vector<4x64xf32>
    %192 = arith.addf %189, %191 : vector<4x64xf32>
    %193 = vector.extract_strided_slice %185 {offsets = [0, 128], sizes = [4, 64], strides = [1, 1]} : vector<4x192xf32> to vector<4x64xf32>
    %194 = math.tanh %192 : vector<4x64xf32>
    %195 = arith.mulf %193, %194 : vector<4x64xf32>
    %196 = arith.select %34, %195, %161 : vector<4x64xi1>, vector<4x64xf32>
    %197 = arith.select %34, %192, %162 : vector<4x64xi1>, vector<4x64xf32>
    %198 = vector.extract_strided_slice %195 {offsets = [0, 0], sizes = [1, 32], strides = [1, 1]} : vector<4x64xf32> to vector<1x32xf32>
    %c4_113 = arith.constant 4 : index
    %c0_114 = arith.constant 0 : index
    %199 = vector.load %arg23[%c4_113, %c0_114] : memref<18x64xf32, #tpu.memory_space<vmem>>, vector<1x32xf32>
    tpu.vector_store %arg23[%c4_113, %c0_114], %198 {strides = array<i32>} : memref<18x64xf32, #tpu.memory_space<vmem>>, vector<1x32xf32>,
    %200 = vector.extract_strided_slice %195 {offsets = [2, 32], sizes = [1, 32], strides = [1, 1]} : vector<4x64xf32> to vector<1x32xf32>
    %c5 = arith.constant 5 : index
    %c32_115 = arith.constant 32 : index
    %201 = vector.load %arg23[%c5, %c32_115] : memref<18x64xf32, #tpu.memory_space<vmem>>, vector<1x32xf32>
    tpu.vector_store %arg23[%c5, %c32_115], %200 {strides = array<i32>} : memref<18x64xf32, #tpu.memory_space<vmem>>, vector<1x32xf32>,
    %202 = vector.extract_strided_slice %195 {offsets = [1, 0], sizes = [1, 32], strides = [1, 1]} : vector<4x64xf32> to vector<1x32xf32>
    %c13 = arith.constant 13 : index
    %c0_116 = arith.constant 0 : index
    %203 = vector.load %arg23[%c13, %c0_116] : memref<18x64xf32, #tpu.memory_space<vmem>>, vector<1x32xf32>
    tpu.vector_store %arg23[%c13, %c0_116], %202 {strides = array<i32>} : memref<18x64xf32, #tpu.memory_space<vmem>>, vector<1x32xf32>,
    %204 = vector.extract_strided_slice %195 {offsets = [3, 32], sizes = [1, 32], strides = [1, 1]} : vector<4x64xf32> to vector<1x32xf32>
    %c14_117 = arith.constant 14 : index
    %c32_118 = arith.constant 32 : index
    %205 = vector.load %arg23[%c14_117, %c32_118] : memref<18x64xf32, #tpu.memory_space<vmem>>, vector<1x32xf32>
    tpu.vector_store %arg23[%c14_117, %c32_118], %204 {strides = array<i32>} : memref<18x64xf32, #tpu.memory_space<vmem>>, vector<1x32xf32>,
    %206 = vector.extract_strided_slice %195 {offsets = [0, 0], sizes = [2, 32], strides = [1, 1]} : vector<4x64xf32> to vector<2x32xf32>
    %c6_119 = arith.constant 6 : index
    %c0_120 = arith.constant 0 : index
    %207 = vector.load %arg24[%c6_119, %c0_120] : memref<16x64xf32, #tpu.memory_space<vmem>>, vector<2x32xf32>
    tpu.vector_store %arg24[%c6_119, %c0_120], %206 {strides = array<i32>} : memref<16x64xf32, #tpu.memory_space<vmem>>, vector<2x32xf32>,
    %208 = vector.extract_strided_slice %195 {offsets = [2, 32], sizes = [2, 32], strides = [1, 1]} : vector<4x64xf32> to vector<2x32xf32>
    %c8_121 = arith.constant 8 : index
    %c32_122 = arith.constant 32 : index
    %209 = vector.load %arg24[%c8_121, %c32_122] : memref<16x64xf32, #tpu.memory_space<vmem>>, vector<2x32xf32>
    tpu.vector_store %arg24[%c8_121, %c32_122], %208 {strides = array<i32>} : memref<16x64xf32, #tpu.memory_space<vmem>>, vector<2x32xf32>,
    %c16_123 = arith.constant 16 : index
    %c0_124 = arith.constant 0 : index
    %210 = vector.load %arg22[%c16_123, %c0_124] : memref<32x256xf32, #tpu.memory_space<vmem>>, vector<4x256xf32>
    %cst_125 = arith.constant dense<0.000000e+00> : vector<4x256xf32>
    %211 = tpu.matmul %196, %68, %cst_125 {dimension_numbers = #tpu.dot_dimension_numbers<[1], [0], [0], [1], [0, 0, 1, 1], [], []>} : vector<4x64xf32>, vector<64x256xf32>, vector<4x256xf32> -> vector<4x256xf32>
    %212 = arith.addf %210, %211 : vector<4x256xf32>
    %213 = vector.extract_strided_slice %212 {offsets = [0, 0], sizes = [4, 192], strides = [1, 1]} : vector<4x256xf32> to vector<4x192xf32>
    %cst_126 = arith.constant 5.000000e-01 : f32
    %214 = vector.broadcast %cst_126 : f32 to vector<4x192xf32>
    %215 = arith.mulf %214, %213 : vector<4x192xf32>
    %216 = math.tanh %215 : vector<4x192xf32>
    %cst_127 = arith.constant 5.000000e-01 : f32
    %217 = vector.broadcast %cst_127 : f32 to vector<4x192xf32>
    %218 = arith.mulf %217, %216 : vector<4x192xf32>
    %cst_128 = arith.constant 5.000000e-01 : f32
    %219 = vector.broadcast %cst_128 : f32 to vector<4x192xf32>
    %220 = arith.addf %218, %219 : vector<4x192xf32>
    %221 = vector.extract_strided_slice %212 {offsets = [0, 192], sizes = [4, 64], strides = [1, 1]} : vector<4x256xf32> to vector<4x64xf32>
    %222 = math.tanh %221 : vector<4x64xf32>
    %223 = vector.extract_strided_slice %220 {offsets = [0, 64], sizes = [4, 64], strides = [1, 1]} : vector<4x192xf32> to vector<4x64xf32>
    %224 = arith.mulf %223, %197 : vector<4x64xf32>
    %225 = vector.extract_strided_slice %220 {offsets = [0, 0], sizes = [4, 64], strides = [1, 1]} : vector<4x192xf32> to vector<4x64xf32>
    %226 = arith.mulf %225, %222 : vector<4x64xf32>
    %227 = arith.addf %224, %226 : vector<4x64xf32>
    %228 = vector.extract_strided_slice %220 {offsets = [0, 128], sizes = [4, 64], strides = [1, 1]} : vector<4x192xf32> to vector<4x64xf32>
    %229 = math.tanh %227 : vector<4x64xf32>
    %230 = arith.mulf %228, %229 : vector<4x64xf32>
    %231 = arith.select %37, %230, %196 : vector<4x64xi1>, vector<4x64xf32>
    %232 = arith.select %37, %227, %197 : vector<4x64xi1>, vector<4x64xf32>
    %233 = vector.extract_strided_slice %230 {offsets = [0, 0], sizes = [1, 32], strides = [1, 1]} : vector<4x64xf32> to vector<1x32xf32>
    %c5_129 = arith.constant 5 : index
    %c0_130 = arith.constant 0 : index
    %234 = vector.load %arg23[%c5_129, %c0_130] : memref<18x64xf32, #tpu.memory_space<vmem>>, vector<1x32xf32>
    tpu.vector_store %arg23[%c5_129, %c0_130], %233 {strides = array<i32>} : memref<18x64xf32, #tpu.memory_space<vmem>>, vector<1x32xf32>,
    %235 = vector.extract_strided_slice %230 {offsets = [2, 32], sizes = [1, 32], strides = [1, 1]} : vector<4x64xf32> to vector<1x32xf32>
    %c4_131 = arith.constant 4 : index
    %c32_132 = arith.constant 32 : index
    %236 = vector.load %arg23[%c4_131, %c32_132] : memref<18x64xf32, #tpu.memory_space<vmem>>, vector<1x32xf32>
    tpu.vector_store %arg23[%c4_131, %c32_132], %235 {strides = array<i32>} : memref<18x64xf32, #tpu.memory_space<vmem>>, vector<1x32xf32>,
    %237 = vector.extract_strided_slice %230 {offsets = [1, 0], sizes = [1, 32], strides = [1, 1]} : vector<4x64xf32> to vector<1x32xf32>
    %c14_133 = arith.constant 14 : index
    %c0_134 = arith.constant 0 : index
    %238 = vector.load %arg23[%c14_133, %c0_134] : memref<18x64xf32, #tpu.memory_space<vmem>>, vector<1x32xf32>
    tpu.vector_store %arg23[%c14_133, %c0_134], %237 {strides = array<i32>} : memref<18x64xf32, #tpu.memory_space<vmem>>, vector<1x32xf32>,
    %239 = vector.extract_strided_slice %230 {offsets = [3, 32], sizes = [1, 32], strides = [1, 1]} : vector<4x64xf32> to vector<1x32xf32>
    %c13_135 = arith.constant 13 : index
    %c32_136 = arith.constant 32 : index
    %240 = vector.load %arg23[%c13_135, %c32_136] : memref<18x64xf32, #tpu.memory_space<vmem>>, vector<1x32xf32>
    tpu.vector_store %arg23[%c13_135, %c32_136], %239 {strides = array<i32>} : memref<18x64xf32, #tpu.memory_space<vmem>>, vector<1x32xf32>,
    %241 = vector.extract_strided_slice %230 {offsets = [0, 0], sizes = [2, 32], strides = [1, 1]} : vector<4x64xf32> to vector<2x32xf32>
    %c8_137 = arith.constant 8 : index
    %c0_138 = arith.constant 0 : index
    %242 = vector.load %arg24[%c8_137, %c0_138] : memref<16x64xf32, #tpu.memory_space<vmem>>, vector<2x32xf32>
    tpu.vector_store %arg24[%c8_137, %c0_138], %241 {strides = array<i32>} : memref<16x64xf32, #tpu.memory_space<vmem>>, vector<2x32xf32>,
    %243 = vector.extract_strided_slice %230 {offsets = [2, 32], sizes = [2, 32], strides = [1, 1]} : vector<4x64xf32> to vector<2x32xf32>
    %c6_139 = arith.constant 6 : index
    %c32_140 = arith.constant 32 : index
    %244 = vector.load %arg24[%c6_139, %c32_140] : memref<16x64xf32, #tpu.memory_space<vmem>>, vector<2x32xf32>
    tpu.vector_store %arg24[%c6_139, %c32_140], %243 {strides = array<i32>} : memref<16x64xf32, #tpu.memory_space<vmem>>, vector<2x32xf32>,
    %c20_141 = arith.constant 20 : index
    %c0_142 = arith.constant 0 : index
    %245 = vector.load %arg22[%c20_141, %c0_142] : memref<32x256xf32, #tpu.memory_space<vmem>>, vector<4x256xf32>
    %cst_143 = arith.constant dense<0.000000e+00> : vector<4x256xf32>
    %246 = tpu.matmul %231, %68, %cst_143 {dimension_numbers = #tpu.dot_dimension_numbers<[1], [0], [0], [1], [0, 0, 1, 1], [], []>} : vector<4x64xf32>, vector<64x256xf32>, vector<4x256xf32> -> vector<4x256xf32>
    %247 = arith.addf %245, %246 : vector<4x256xf32>
    %248 = vector.extract_strided_slice %247 {offsets = [0, 0], sizes = [4, 192], strides = [1, 1]} : vector<4x256xf32> to vector<4x192xf32>
    %cst_144 = arith.constant 5.000000e-01 : f32
    %249 = vector.broadcast %cst_144 : f32 to vector<4x192xf32>
    %250 = arith.mulf %249, %248 : vector<4x192xf32>
    %251 = math.tanh %250 : vector<4x192xf32>
    %cst_145 = arith.constant 5.000000e-01 : f32
    %252 = vector.broadcast %cst_145 : f32 to vector<4x192xf32>
    %253 = arith.mulf %252, %251 : vector<4x192xf32>
    %cst_146 = arith.constant 5.000000e-01 : f32
    %254 = vector.broadcast %cst_146 : f32 to vector<4x192xf32>
    %255 = arith.addf %253, %254 : vector<4x192xf32>
    %256 = vector.extract_strided_slice %247 {offsets = [0, 192], sizes = [4, 64], strides = [1, 1]} : vector<4x256xf32> to vector<4x64xf32>
    %257 = math.tanh %256 : vector<4x64xf32>
    %258 = vector.extract_strided_slice %255 {offsets = [0, 64], sizes = [4, 64], strides = [1, 1]} : vector<4x192xf32> to vector<4x64xf32>
    %259 = arith.mulf %258, %232 : vector<4x64xf32>
    %260 = vector.extract_strided_slice %255 {offsets = [0, 0], sizes = [4, 64], strides = [1, 1]} : vector<4x192xf32> to vector<4x64xf32>
    %261 = arith.mulf %260, %257 : vector<4x64xf32>
    %262 = arith.addf %259, %261 : vector<4x64xf32>
    %263 = vector.extract_strided_slice %255 {offsets = [0, 128], sizes = [4, 64], strides = [1, 1]} : vector<4x192xf32> to vector<4x64xf32>
    %264 = math.tanh %262 : vector<4x64xf32>
    %265 = arith.mulf %263, %264 : vector<4x64xf32>
    %266 = arith.select %40, %265, %231 : vector<4x64xi1>, vector<4x64xf32>
    %267 = arith.select %40, %262, %232 : vector<4x64xi1>, vector<4x64xf32>
    %268 = vector.extract_strided_slice %265 {offsets = [0, 0], sizes = [1, 32], strides = [1, 1]} : vector<4x64xf32> to vector<1x32xf32>
    %c6_147 = arith.constant 6 : index
    %c0_148 = arith.constant 0 : index
    %269 = vector.load %arg23[%c6_147, %c0_148] : memref<18x64xf32, #tpu.memory_space<vmem>>, vector<1x32xf32>
    tpu.vector_store %arg23[%c6_147, %c0_148], %268 {strides = array<i32>} : memref<18x64xf32, #tpu.memory_space<vmem>>, vector<1x32xf32>,
    %270 = vector.extract_strided_slice %265 {offsets = [2, 32], sizes = [1, 32], strides = [1, 1]} : vector<4x64xf32> to vector<1x32xf32>
    %c3_149 = arith.constant 3 : index
    %c32_150 = arith.constant 32 : index
    %271 = vector.load %arg23[%c3_149, %c32_150] : memref<18x64xf32, #tpu.memory_space<vmem>>, vector<1x32xf32>
    tpu.vector_store %arg23[%c3_149, %c32_150], %270 {strides = array<i32>} : memref<18x64xf32, #tpu.memory_space<vmem>>, vector<1x32xf32>,
    %272 = vector.extract_strided_slice %265 {offsets = [1, 0], sizes = [1, 32], strides = [1, 1]} : vector<4x64xf32> to vector<1x32xf32>
    %c15_151 = arith.constant 15 : index
    %c0_152 = arith.constant 0 : index
    %273 = vector.load %arg23[%c15_151, %c0_152] : memref<18x64xf32, #tpu.memory_space<vmem>>, vector<1x32xf32>
    tpu.vector_store %arg23[%c15_151, %c0_152], %272 {strides = array<i32>} : memref<18x64xf32, #tpu.memory_space<vmem>>, vector<1x32xf32>,
    %274 = vector.extract_strided_slice %265 {offsets = [3, 32], sizes = [1, 32], strides = [1, 1]} : vector<4x64xf32> to vector<1x32xf32>
    %c12_153 = arith.constant 12 : index
    %c32_154 = arith.constant 32 : index
    %275 = vector.load %arg23[%c12_153, %c32_154] : memref<18x64xf32, #tpu.memory_space<vmem>>, vector<1x32xf32>
    tpu.vector_store %arg23[%c12_153, %c32_154], %274 {strides = array<i32>} : memref<18x64xf32, #tpu.memory_space<vmem>>, vector<1x32xf32>,
    %276 = vector.extract_strided_slice %265 {offsets = [0, 0], sizes = [2, 32], strides = [1, 1]} : vector<4x64xf32> to vector<2x32xf32>
    %c10_155 = arith.constant 10 : index
    %c0_156 = arith.constant 0 : index
    %277 = vector.load %arg24[%c10_155, %c0_156] : memref<16x64xf32, #tpu.memory_space<vmem>>, vector<2x32xf32>
    tpu.vector_store %arg24[%c10_155, %c0_156], %276 {strides = array<i32>} : memref<16x64xf32, #tpu.memory_space<vmem>>, vector<2x32xf32>,
    %278 = vector.extract_strided_slice %265 {offsets = [2, 32], sizes = [2, 32], strides = [1, 1]} : vector<4x64xf32> to vector<2x32xf32>
    %c4_157 = arith.constant 4 : index
    %c32_158 = arith.constant 32 : index
    %279 = vector.load %arg24[%c4_157, %c32_158] : memref<16x64xf32, #tpu.memory_space<vmem>>, vector<2x32xf32>
    tpu.vector_store %arg24[%c4_157, %c32_158], %278 {strides = array<i32>} : memref<16x64xf32, #tpu.memory_space<vmem>>, vector<2x32xf32>,
    %c24_159 = arith.constant 24 : index
    %c0_160 = arith.constant 0 : index
    %280 = vector.load %arg22[%c24_159, %c0_160] : memref<32x256xf32, #tpu.memory_space<vmem>>, vector<4x256xf32>
    %cst_161 = arith.constant dense<0.000000e+00> : vector<4x256xf32>
    %281 = tpu.matmul %266, %68, %cst_161 {dimension_numbers = #tpu.dot_dimension_numbers<[1], [0], [0], [1], [0, 0, 1, 1], [], []>} : vector<4x64xf32>, vector<64x256xf32>, vector<4x256xf32> -> vector<4x256xf32>
    %282 = arith.addf %280, %281 : vector<4x256xf32>
    %283 = vector.extract_strided_slice %282 {offsets = [0, 0], sizes = [4, 192], strides = [1, 1]} : vector<4x256xf32> to vector<4x192xf32>
    %cst_162 = arith.constant 5.000000e-01 : f32
    %284 = vector.broadcast %cst_162 : f32 to vector<4x192xf32>
    %285 = arith.mulf %284, %283 : vector<4x192xf32>
    %286 = math.tanh %285 : vector<4x192xf32>
    %cst_163 = arith.constant 5.000000e-01 : f32
    %287 = vector.broadcast %cst_163 : f32 to vector<4x192xf32>
    %288 = arith.mulf %287, %286 : vector<4x192xf32>
    %cst_164 = arith.constant 5.000000e-01 : f32
    %289 = vector.broadcast %cst_164 : f32 to vector<4x192xf32>
    %290 = arith.addf %288, %289 : vector<4x192xf32>
    %291 = vector.extract_strided_slice %282 {offsets = [0, 192], sizes = [4, 64], strides = [1, 1]} : vector<4x256xf32> to vector<4x64xf32>
    %292 = math.tanh %291 : vector<4x64xf32>
    %293 = vector.extract_strided_slice %290 {offsets = [0, 64], sizes = [4, 64], strides = [1, 1]} : vector<4x192xf32> to vector<4x64xf32>
    %294 = arith.mulf %293, %267 : vector<4x64xf32>
    %295 = vector.extract_strided_slice %290 {offsets = [0, 0], sizes = [4, 64], strides = [1, 1]} : vector<4x192xf32> to vector<4x64xf32>
    %296 = arith.mulf %295, %292 : vector<4x64xf32>
    %297 = arith.addf %294, %296 : vector<4x64xf32>
    %298 = vector.extract_strided_slice %290 {offsets = [0, 128], sizes = [4, 64], strides = [1, 1]} : vector<4x192xf32> to vector<4x64xf32>
    %299 = math.tanh %297 : vector<4x64xf32>
    %300 = arith.mulf %298, %299 : vector<4x64xf32>
    %301 = arith.select %43, %300, %266 : vector<4x64xi1>, vector<4x64xf32>
    %302 = arith.select %43, %297, %267 : vector<4x64xi1>, vector<4x64xf32>
    %303 = vector.extract_strided_slice %300 {offsets = [0, 0], sizes = [1, 32], strides = [1, 1]} : vector<4x64xf32> to vector<1x32xf32>
    %c7_165 = arith.constant 7 : index
    %c0_166 = arith.constant 0 : index
    %304 = vector.load %arg23[%c7_165, %c0_166] : memref<18x64xf32, #tpu.memory_space<vmem>>, vector<1x32xf32>
    tpu.vector_store %arg23[%c7_165, %c0_166], %303 {strides = array<i32>} : memref<18x64xf32, #tpu.memory_space<vmem>>, vector<1x32xf32>,
    %305 = vector.extract_strided_slice %300 {offsets = [2, 32], sizes = [1, 32], strides = [1, 1]} : vector<4x64xf32> to vector<1x32xf32>
    %c2_167 = arith.constant 2 : index
    %c32_168 = arith.constant 32 : index
    %306 = vector.load %arg23[%c2_167, %c32_168] : memref<18x64xf32, #tpu.memory_space<vmem>>, vector<1x32xf32>
    tpu.vector_store %arg23[%c2_167, %c32_168], %305 {strides = array<i32>} : memref<18x64xf32, #tpu.memory_space<vmem>>, vector<1x32xf32>,
    %307 = vector.extract_strided_slice %300 {offsets = [1, 0], sizes = [1, 32], strides = [1, 1]} : vector<4x64xf32> to vector<1x32xf32>
    %c16_169 = arith.constant 16 : index
    %c0_170 = arith.constant 0 : index
    %308 = vector.load %arg23[%c16_169, %c0_170] : memref<18x64xf32, #tpu.memory_space<vmem>>, vector<1x32xf32>
    tpu.vector_store %arg23[%c16_169, %c0_170], %307 {strides = array<i32>} : memref<18x64xf32, #tpu.memory_space<vmem>>, vector<1x32xf32>,
    %309 = vector.extract_strided_slice %300 {offsets = [3, 32], sizes = [1, 32], strides = [1, 1]} : vector<4x64xf32> to vector<1x32xf32>
    %c11_171 = arith.constant 11 : index
    %c32_172 = arith.constant 32 : index
    %310 = vector.load %arg23[%c11_171, %c32_172] : memref<18x64xf32, #tpu.memory_space<vmem>>, vector<1x32xf32>
    tpu.vector_store %arg23[%c11_171, %c32_172], %309 {strides = array<i32>} : memref<18x64xf32, #tpu.memory_space<vmem>>, vector<1x32xf32>,
    %311 = vector.extract_strided_slice %300 {offsets = [0, 0], sizes = [2, 32], strides = [1, 1]} : vector<4x64xf32> to vector<2x32xf32>
    %c12_173 = arith.constant 12 : index
    %c0_174 = arith.constant 0 : index
    %312 = vector.load %arg24[%c12_173, %c0_174] : memref<16x64xf32, #tpu.memory_space<vmem>>, vector<2x32xf32>
    tpu.vector_store %arg24[%c12_173, %c0_174], %311 {strides = array<i32>} : memref<16x64xf32, #tpu.memory_space<vmem>>, vector<2x32xf32>,
    %313 = vector.extract_strided_slice %300 {offsets = [2, 32], sizes = [2, 32], strides = [1, 1]} : vector<4x64xf32> to vector<2x32xf32>
    %c2_175 = arith.constant 2 : index
    %c32_176 = arith.constant 32 : index
    %314 = vector.load %arg24[%c2_175, %c32_176] : memref<16x64xf32, #tpu.memory_space<vmem>>, vector<2x32xf32>
    tpu.vector_store %arg24[%c2_175, %c32_176], %313 {strides = array<i32>} : memref<16x64xf32, #tpu.memory_space<vmem>>, vector<2x32xf32>,
    %c28_177 = arith.constant 28 : index
    %c0_178 = arith.constant 0 : index
    %315 = vector.load %arg22[%c28_177, %c0_178] : memref<32x256xf32, #tpu.memory_space<vmem>>, vector<4x256xf32>
    %cst_179 = arith.constant dense<0.000000e+00> : vector<4x256xf32>
    %316 = tpu.matmul %301, %68, %cst_179 {dimension_numbers = #tpu.dot_dimension_numbers<[1], [0], [0], [1], [0, 0, 1, 1], [], []>} : vector<4x64xf32>, vector<64x256xf32>, vector<4x256xf32> -> vector<4x256xf32>
    %317 = arith.addf %315, %316 : vector<4x256xf32>
    %318 = vector.extract_strided_slice %317 {offsets = [0, 0], sizes = [4, 192], strides = [1, 1]} : vector<4x256xf32> to vector<4x192xf32>
    %cst_180 = arith.constant 5.000000e-01 : f32
    %319 = vector.broadcast %cst_180 : f32 to vector<4x192xf32>
    %320 = arith.mulf %319, %318 : vector<4x192xf32>
    %321 = math.tanh %320 : vector<4x192xf32>
    %cst_181 = arith.constant 5.000000e-01 : f32
    %322 = vector.broadcast %cst_181 : f32 to vector<4x192xf32>
    %323 = arith.mulf %322, %321 : vector<4x192xf32>
    %cst_182 = arith.constant 5.000000e-01 : f32
    %324 = vector.broadcast %cst_182 : f32 to vector<4x192xf32>
    %325 = arith.addf %323, %324 : vector<4x192xf32>
    %326 = vector.extract_strided_slice %317 {offsets = [0, 192], sizes = [4, 64], strides = [1, 1]} : vector<4x256xf32> to vector<4x64xf32>
    %327 = math.tanh %326 : vector<4x64xf32>
    %328 = vector.extract_strided_slice %325 {offsets = [0, 64], sizes = [4, 64], strides = [1, 1]} : vector<4x192xf32> to vector<4x64xf32>
    %329 = arith.mulf %328, %302 : vector<4x64xf32>
    %330 = vector.extract_strided_slice %325 {offsets = [0, 0], sizes = [4, 64], strides = [1, 1]} : vector<4x192xf32> to vector<4x64xf32>
    %331 = arith.mulf %330, %327 : vector<4x64xf32>
    %332 = arith.addf %329, %331 : vector<4x64xf32>
    %333 = vector.extract_strided_slice %325 {offsets = [0, 128], sizes = [4, 64], strides = [1, 1]} : vector<4x192xf32> to vector<4x64xf32>
    %334 = math.tanh %332 : vector<4x64xf32>
    %335 = arith.mulf %333, %334 : vector<4x64xf32>
    %336 = arith.select %46, %332, %302 : vector<4x64xi1>, vector<4x64xf32>
    %337 = vector.extract_strided_slice %335 {offsets = [0, 0], sizes = [1, 32], strides = [1, 1]} : vector<4x64xf32> to vector<1x32xf32>
    %c8_183 = arith.constant 8 : index
    %c0_184 = arith.constant 0 : index
    %338 = vector.load %arg23[%c8_183, %c0_184] : memref<18x64xf32, #tpu.memory_space<vmem>>, vector<1x32xf32>
    tpu.vector_store %arg23[%c8_183, %c0_184], %337 {strides = array<i32>} : memref<18x64xf32, #tpu.memory_space<vmem>>, vector<1x32xf32>,
    %339 = vector.extract_strided_slice %335 {offsets = [2, 32], sizes = [1, 32], strides = [1, 1]} : vector<4x64xf32> to vector<1x32xf32>
    %c1_185 = arith.constant 1 : index
    %c32_186 = arith.constant 32 : index
    %340 = vector.load %arg23[%c1_185, %c32_186] : memref<18x64xf32, #tpu.memory_space<vmem>>, vector<1x32xf32>
    tpu.vector_store %arg23[%c1_185, %c32_186], %339 {strides = array<i32>} : memref<18x64xf32, #tpu.memory_space<vmem>>, vector<1x32xf32>,
    %341 = vector.extract_strided_slice %335 {offsets = [1, 0], sizes = [1, 32], strides = [1, 1]} : vector<4x64xf32> to vector<1x32xf32>
    %c17_187 = arith.constant 17 : index
    %c0_188 = arith.constant 0 : index
    %342 = vector.load %arg23[%c17_187, %c0_188] : memref<18x64xf32, #tpu.memory_space<vmem>>, vector<1x32xf32>
    tpu.vector_store %arg23[%c17_187, %c0_188], %341 {strides = array<i32>} : memref<18x64xf32, #tpu.memory_space<vmem>>, vector<1x32xf32>,
    %343 = vector.extract_strided_slice %335 {offsets = [3, 32], sizes = [1, 32], strides = [1, 1]} : vector<4x64xf32> to vector<1x32xf32>
    %c10_189 = arith.constant 10 : index
    %c32_190 = arith.constant 32 : index
    %344 = vector.load %arg23[%c10_189, %c32_190] : memref<18x64xf32, #tpu.memory_space<vmem>>, vector<1x32xf32>
    tpu.vector_store %arg23[%c10_189, %c32_190], %343 {strides = array<i32>} : memref<18x64xf32, #tpu.memory_space<vmem>>, vector<1x32xf32>,
    %345 = vector.extract_strided_slice %335 {offsets = [0, 0], sizes = [2, 32], strides = [1, 1]} : vector<4x64xf32> to vector<2x32xf32>
    %c14_191 = arith.constant 14 : index
    %c0_192 = arith.constant 0 : index
    %346 = vector.load %arg24[%c14_191, %c0_192] : memref<16x64xf32, #tpu.memory_space<vmem>>, vector<2x32xf32>
    tpu.vector_store %arg24[%c14_191, %c0_192], %345 {strides = array<i32>} : memref<16x64xf32, #tpu.memory_space<vmem>>, vector<2x32xf32>,
    %347 = vector.extract_strided_slice %335 {offsets = [2, 32], sizes = [2, 32], strides = [1, 1]} : vector<4x64xf32> to vector<2x32xf32>
    %c0_193 = arith.constant 0 : index
    %c32_194 = arith.constant 32 : index
    %348 = vector.load %arg24[%c0_193, %c32_194] : memref<16x64xf32, #tpu.memory_space<vmem>>, vector<2x32xf32>
    tpu.vector_store %arg24[%c0_193, %c32_194], %347 {strides = array<i32>} : memref<16x64xf32, #tpu.memory_space<vmem>>, vector<2x32xf32>,
    %349 = vector.extract_strided_slice %336 {offsets = [0, 0], sizes = [2, 32], strides = [1, 1]} : vector<4x64xf32> to vector<2x32xf32>
    %350 = vector.extract_strided_slice %336 {offsets = [2, 32], sizes = [2, 32], strides = [1, 1]} : vector<4x64xf32> to vector<2x32xf32>
    %351 = tpu.concatenate %349, %350 in 1 : vector<2x32xf32>, vector<2x32xf32> -> vector<2x64xf32>
    %c0_195 = arith.constant 0 : index
    %c0_196 = arith.constant 0 : index
    %352 = vector.load %arg11[%c0_195, %c0_196] : memref<64x32xf32, #tpu.memory_space<vmem>>, vector<64x32xf32>
    %cst_197 = arith.constant dense<0.000000e+00> : vector<2x32xf32>
    %353 = tpu.matmul %351, %352, %cst_197 {dimension_numbers = #tpu.dot_dimension_numbers<[1], [0], [0], [1], [0, 0, 1, 1], [], []>} : vector<2x64xf32>, vector<64x32xf32>, vector<2x32xf32> -> vector<2x32xf32>
    %c0_198 = arith.constant 0 : index
    %c0_199 = arith.constant 0 : index
    %354 = vector.load %arg12[%c0_198, %c0_199] : memref<1x32xf32, #tpu.memory_space<vmem>>, vector<1x32xf32>
    %355 = vector.broadcast %354 : vector<1x32xf32> to vector<2x32xf32>
    %356 = arith.addf %353, %355 : vector<2x32xf32>
    %357 = math.tanh %356 : vector<2x32xf32>
    %c0_200 = arith.constant 0 : index
    %c0_201 = arith.constant 0 : index
    %358 = vector.load %arg24[%c0_200, %c0_201] : memref<16x64xf32, #tpu.memory_space<vmem>>, vector<16x64xf32>
    %c0_202 = arith.constant 0 : index
    %c0_203 = arith.constant 0 : index
    %359 = vector.load %arg13[%c0_202, %c0_203] : memref<64x128xf32, #tpu.memory_space<vmem>>, vector<64x128xf32>
    %cst_204 = arith.constant dense<0.000000e+00> : vector<16x128xf32>
    %360 = tpu.matmul %358, %359, %cst_204 {dimension_numbers = #tpu.dot_dimension_numbers<[1], [0], [0], [1], [0, 0, 1, 1], [], []>} : vector<16x64xf32>, vector<64x128xf32>, vector<16x128xf32> -> vector<16x128xf32>
    %c0_205 = arith.constant 0 : index
    %c0_206 = arith.constant 0 : index
    %361 = vector.load %arg14[%c0_205, %c0_206] : memref<1x128xf32, #tpu.memory_space<vmem>>, vector<1x128xf32>
    %362 = vector.broadcast %361 : vector<1x128xf32> to vector<16x128xf32>
    %363 = arith.addf %360, %362 : vector<16x128xf32>
    %c0_207 = arith.constant 0 : index
    %c0_208 = arith.constant 0 : index
    %364 = vector.load %arg25[%c0_207, %c0_208] : memref<16x128xf32, #tpu.memory_space<vmem>>, vector<16x128xf32>
    tpu.vector_store %arg25[%c0_207, %c0_208], %363 {strides = array<i32>} : memref<16x128xf32, #tpu.memory_space<vmem>>, vector<16x128xf32>,
    %c0_209 = arith.constant 0 : index
    %c0_210 = arith.constant 0 : index
    %365 = vector.load %arg15[%c0_209, %c0_210] : memref<32x128xf32, #tpu.memory_space<vmem>>, vector<32x128xf32>
    %c0_211 = arith.constant 0 : index
    %c0_212 = arith.constant 0 : index
    %366 = vector.load %arg25[%c0_211, %c0_212] : memref<16x128xf32, #tpu.memory_space<vmem>>, vector<2x128xf32>
    %cst_213 = arith.constant dense<0.000000e+00> : vector<2x128xf32>
    %367 = tpu.matmul %357, %365, %cst_213 {dimension_numbers = #tpu.dot_dimension_numbers<[1], [0], [0], [1], [0, 0, 1, 1], [], []>} : vector<2x32xf32>, vector<32x128xf32>, vector<2x128xf32> -> vector<2x128xf32>
    %368 = arith.addf %366, %367 : vector<2x128xf32>
    %369 = vector.extract_strided_slice %368 {offsets = [0, 0], sizes = [2, 96], strides = [1, 1]} : vector<2x128xf32> to vector<2x96xf32>
    %cst_214 = arith.constant 5.000000e-01 : f32
    %370 = vector.broadcast %cst_214 : f32 to vector<2x96xf32>
    %371 = arith.mulf %370, %369 : vector<2x96xf32>
    %372 = math.tanh %371 : vector<2x96xf32>
    %cst_215 = arith.constant 5.000000e-01 : f32
    %373 = vector.broadcast %cst_215 : f32 to vector<2x96xf32>
    %374 = arith.mulf %373, %372 : vector<2x96xf32>
    %cst_216 = arith.constant 5.000000e-01 : f32
    %375 = vector.broadcast %cst_216 : f32 to vector<2x96xf32>
    %376 = arith.addf %374, %375 : vector<2x96xf32>
    %377 = vector.extract_strided_slice %368 {offsets = [0, 96], sizes = [2, 32], strides = [1, 1]} : vector<2x128xf32> to vector<2x32xf32>
    %378 = math.tanh %377 : vector<2x32xf32>
    %379 = vector.extract_strided_slice %376 {offsets = [0, 32], sizes = [2, 32], strides = [1, 1]} : vector<2x96xf32> to vector<2x32xf32>
    %380 = arith.mulf %379, %356 : vector<2x32xf32>
    %381 = vector.extract_strided_slice %376 {offsets = [0, 0], sizes = [2, 32], strides = [1, 1]} : vector<2x96xf32> to vector<2x32xf32>
    %382 = arith.mulf %381, %378 : vector<2x32xf32>
    %383 = arith.addf %380, %382 : vector<2x32xf32>
    %384 = vector.extract_strided_slice %376 {offsets = [0, 64], sizes = [2, 32], strides = [1, 1]} : vector<2x96xf32> to vector<2x32xf32>
    %385 = math.tanh %383 : vector<2x32xf32>
    %386 = arith.mulf %384, %385 : vector<2x32xf32>
    %387 = arith.select %49, %386, %357 : vector<2x32xi1>, vector<2x32xf32>
    %388 = arith.select %49, %383, %356 : vector<2x32xi1>, vector<2x32xf32>
    %389 = vector.extract_strided_slice %386 {offsets = [0, 0], sizes = [1, 32], strides = [1, 1]} : vector<2x32xf32> to vector<1x32xf32>
    %c0_217 = arith.constant 0 : index
    %c0_218 = arith.constant 0 : index
    %390 = vector.load %arg26[%c0_217, %c0_218] : memref<16x32xf32, #tpu.memory_space<vmem>>, vector<1x32xf32>
    tpu.vector_store %arg26[%c0_217, %c0_218], %389 {strides = array<i32>} : memref<16x32xf32, #tpu.memory_space<vmem>>, vector<1x32xf32>,
    %391 = vector.extract_strided_slice %386 {offsets = [1, 0], sizes = [1, 32], strides = [1, 1]} : vector<2x32xf32> to vector<1x32xf32>
    %c8_219 = arith.constant 8 : index
    %c0_220 = arith.constant 0 : index
    %392 = vector.load %arg26[%c8_219, %c0_220] : memref<16x32xf32, #tpu.memory_space<vmem>>, vector<1x32xf32>
    tpu.vector_store %arg26[%c8_219, %c0_220], %391 {strides = array<i32>} : memref<16x32xf32, #tpu.memory_space<vmem>>, vector<1x32xf32>,
    %c2_221 = arith.constant 2 : index
    %c0_222 = arith.constant 0 : index
    %393 = vector.load %arg25[%c2_221, %c0_222] : memref<16x128xf32, #tpu.memory_space<vmem>>, vector<2x128xf32>
    %cst_223 = arith.constant dense<0.000000e+00> : vector<2x128xf32>
    %394 = tpu.matmul %387, %365, %cst_223 {dimension_numbers = #tpu.dot_dimension_numbers<[1], [0], [0], [1], [0, 0, 1, 1], [], []>} : vector<2x32xf32>, vector<32x128xf32>, vector<2x128xf32> -> vector<2x128xf32>
    %395 = arith.addf %393, %394 : vector<2x128xf32>
    %396 = vector.extract_strided_slice %395 {offsets = [0, 0], sizes = [2, 96], strides = [1, 1]} : vector<2x128xf32> to vector<2x96xf32>
    %cst_224 = arith.constant 5.000000e-01 : f32
    %397 = vector.broadcast %cst_224 : f32 to vector<2x96xf32>
    %398 = arith.mulf %397, %396 : vector<2x96xf32>
    %399 = math.tanh %398 : vector<2x96xf32>
    %cst_225 = arith.constant 5.000000e-01 : f32
    %400 = vector.broadcast %cst_225 : f32 to vector<2x96xf32>
    %401 = arith.mulf %400, %399 : vector<2x96xf32>
    %cst_226 = arith.constant 5.000000e-01 : f32
    %402 = vector.broadcast %cst_226 : f32 to vector<2x96xf32>
    %403 = arith.addf %401, %402 : vector<2x96xf32>
    %404 = vector.extract_strided_slice %395 {offsets = [0, 96], sizes = [2, 32], strides = [1, 1]} : vector<2x128xf32> to vector<2x32xf32>
    %405 = math.tanh %404 : vector<2x32xf32>
    %406 = vector.extract_strided_slice %403 {offsets = [0, 32], sizes = [2, 32], strides = [1, 1]} : vector<2x96xf32> to vector<2x32xf32>
    %407 = arith.mulf %406, %388 : vector<2x32xf32>
    %408 = vector.extract_strided_slice %403 {offsets = [0, 0], sizes = [2, 32], strides = [1, 1]} : vector<2x96xf32> to vector<2x32xf32>
    %409 = arith.mulf %408, %405 : vector<2x32xf32>
    %410 = arith.addf %407, %409 : vector<2x32xf32>
    %411 = vector.extract_strided_slice %403 {offsets = [0, 64], sizes = [2, 32], strides = [1, 1]} : vector<2x96xf32> to vector<2x32xf32>
    %412 = math.tanh %410 : vector<2x32xf32>
    %413 = arith.mulf %411, %412 : vector<2x32xf32>
    %414 = arith.select %52, %413, %387 : vector<2x32xi1>, vector<2x32xf32>
    %415 = arith.select %52, %410, %388 : vector<2x32xi1>, vector<2x32xf32>
    %416 = vector.extract_strided_slice %413 {offsets = [0, 0], sizes = [1, 32], strides = [1, 1]} : vector<2x32xf32> to vector<1x32xf32>
    %c1_227 = arith.constant 1 : index
    %c0_228 = arith.constant 0 : index
    %417 = vector.load %arg26[%c1_227, %c0_228] : memref<16x32xf32, #tpu.memory_space<vmem>>, vector<1x32xf32>
    tpu.vector_store %arg26[%c1_227, %c0_228], %416 {strides = array<i32>} : memref<16x32xf32, #tpu.memory_space<vmem>>, vector<1x32xf32>,
    %418 = vector.extract_strided_slice %413 {offsets = [1, 0], sizes = [1, 32], strides = [1, 1]} : vector<2x32xf32> to vector<1x32xf32>
    %c9_229 = arith.constant 9 : index
    %c0_230 = arith.constant 0 : index
    %419 = vector.load %arg26[%c9_229, %c0_230] : memref<16x32xf32, #tpu.memory_space<vmem>>, vector<1x32xf32>
    tpu.vector_store %arg26[%c9_229, %c0_230], %418 {strides = array<i32>} : memref<16x32xf32, #tpu.memory_space<vmem>>, vector<1x32xf32>,
    %c4_231 = arith.constant 4 : index
    %c0_232 = arith.constant 0 : index
    %420 = vector.load %arg25[%c4_231, %c0_232] : memref<16x128xf32, #tpu.memory_space<vmem>>, vector<2x128xf32>
    %cst_233 = arith.constant dense<0.000000e+00> : vector<2x128xf32>
    %421 = tpu.matmul %414, %365, %cst_233 {dimension_numbers = #tpu.dot_dimension_numbers<[1], [0], [0], [1], [0, 0, 1, 1], [], []>} : vector<2x32xf32>, vector<32x128xf32>, vector<2x128xf32> -> vector<2x128xf32>
    %422 = arith.addf %420, %421 : vector<2x128xf32>
    %423 = vector.extract_strided_slice %422 {offsets = [0, 0], sizes = [2, 96], strides = [1, 1]} : vector<2x128xf32> to vector<2x96xf32>
    %cst_234 = arith.constant 5.000000e-01 : f32
    %424 = vector.broadcast %cst_234 : f32 to vector<2x96xf32>
    %425 = arith.mulf %424, %423 : vector<2x96xf32>
    %426 = math.tanh %425 : vector<2x96xf32>
    %cst_235 = arith.constant 5.000000e-01 : f32
    %427 = vector.broadcast %cst_235 : f32 to vector<2x96xf32>
    %428 = arith.mulf %427, %426 : vector<2x96xf32>
    %cst_236 = arith.constant 5.000000e-01 : f32
    %429 = vector.broadcast %cst_236 : f32 to vector<2x96xf32>
    %430 = arith.addf %428, %429 : vector<2x96xf32>
    %431 = vector.extract_strided_slice %422 {offsets = [0, 96], sizes = [2, 32], strides = [1, 1]} : vector<2x128xf32> to vector<2x32xf32>
    %432 = math.tanh %431 : vector<2x32xf32>
    %433 = vector.extract_strided_slice %430 {offsets = [0, 32], sizes = [2, 32], strides = [1, 1]} : vector<2x96xf32> to vector<2x32xf32>
    %434 = arith.mulf %433, %415 : vector<2x32xf32>
    %435 = vector.extract_strided_slice %430 {offsets = [0, 0], sizes = [2, 32], strides = [1, 1]} : vector<2x96xf32> to vector<2x32xf32>
    %436 = arith.mulf %435, %432 : vector<2x32xf32>
    %437 = arith.addf %434, %436 : vector<2x32xf32>
    %438 = vector.extract_strided_slice %430 {offsets = [0, 64], sizes = [2, 32], strides = [1, 1]} : vector<2x96xf32> to vector<2x32xf32>
    %439 = math.tanh %437 : vector<2x32xf32>
    %440 = arith.mulf %438, %439 : vector<2x32xf32>
    %441 = arith.select %55, %440, %414 : vector<2x32xi1>, vector<2x32xf32>
    %442 = arith.select %55, %437, %415 : vector<2x32xi1>, vector<2x32xf32>
    %443 = vector.extract_strided_slice %440 {offsets = [0, 0], sizes = [1, 32], strides = [1, 1]} : vector<2x32xf32> to vector<1x32xf32>
    %c2_237 = arith.constant 2 : index
    %c0_238 = arith.constant 0 : index
    %444 = vector.load %arg26[%c2_237, %c0_238] : memref<16x32xf32, #tpu.memory_space<vmem>>, vector<1x32xf32>
    tpu.vector_store %arg26[%c2_237, %c0_238], %443 {strides = array<i32>} : memref<16x32xf32, #tpu.memory_space<vmem>>, vector<1x32xf32>,
    %445 = vector.extract_strided_slice %440 {offsets = [1, 0], sizes = [1, 32], strides = [1, 1]} : vector<2x32xf32> to vector<1x32xf32>
    %c10_239 = arith.constant 10 : index
    %c0_240 = arith.constant 0 : index
    %446 = vector.load %arg26[%c10_239, %c0_240] : memref<16x32xf32, #tpu.memory_space<vmem>>, vector<1x32xf32>
    tpu.vector_store %arg26[%c10_239, %c0_240], %445 {strides = array<i32>} : memref<16x32xf32, #tpu.memory_space<vmem>>, vector<1x32xf32>,
    %c6_241 = arith.constant 6 : index
    %c0_242 = arith.constant 0 : index
    %447 = vector.load %arg25[%c6_241, %c0_242] : memref<16x128xf32, #tpu.memory_space<vmem>>, vector<2x128xf32>
    %cst_243 = arith.constant dense<0.000000e+00> : vector<2x128xf32>
    %448 = tpu.matmul %441, %365, %cst_243 {dimension_numbers = #tpu.dot_dimension_numbers<[1], [0], [0], [1], [0, 0, 1, 1], [], []>} : vector<2x32xf32>, vector<32x128xf32>, vector<2x128xf32> -> vector<2x128xf32>
    %449 = arith.addf %447, %448 : vector<2x128xf32>
    %450 = vector.extract_strided_slice %449 {offsets = [0, 0], sizes = [2, 96], strides = [1, 1]} : vector<2x128xf32> to vector<2x96xf32>
    %cst_244 = arith.constant 5.000000e-01 : f32
    %451 = vector.broadcast %cst_244 : f32 to vector<2x96xf32>
    %452 = arith.mulf %451, %450 : vector<2x96xf32>
    %453 = math.tanh %452 : vector<2x96xf32>
    %cst_245 = arith.constant 5.000000e-01 : f32
    %454 = vector.broadcast %cst_245 : f32 to vector<2x96xf32>
    %455 = arith.mulf %454, %453 : vector<2x96xf32>
    %cst_246 = arith.constant 5.000000e-01 : f32
    %456 = vector.broadcast %cst_246 : f32 to vector<2x96xf32>
    %457 = arith.addf %455, %456 : vector<2x96xf32>
    %458 = vector.extract_strided_slice %449 {offsets = [0, 96], sizes = [2, 32], strides = [1, 1]} : vector<2x128xf32> to vector<2x32xf32>
    %459 = math.tanh %458 : vector<2x32xf32>
    %460 = vector.extract_strided_slice %457 {offsets = [0, 32], sizes = [2, 32], strides = [1, 1]} : vector<2x96xf32> to vector<2x32xf32>
    %461 = arith.mulf %460, %442 : vector<2x32xf32>
    %462 = vector.extract_strided_slice %457 {offsets = [0, 0], sizes = [2, 32], strides = [1, 1]} : vector<2x96xf32> to vector<2x32xf32>
    %463 = arith.mulf %462, %459 : vector<2x32xf32>
    %464 = arith.addf %461, %463 : vector<2x32xf32>
    %465 = vector.extract_strided_slice %457 {offsets = [0, 64], sizes = [2, 32], strides = [1, 1]} : vector<2x96xf32> to vector<2x32xf32>
    %466 = math.tanh %464 : vector<2x32xf32>
    %467 = arith.mulf %465, %466 : vector<2x32xf32>
    %468 = arith.select %58, %467, %441 : vector<2x32xi1>, vector<2x32xf32>
    %469 = arith.select %58, %464, %442 : vector<2x32xi1>, vector<2x32xf32>
    %470 = vector.extract_strided_slice %467 {offsets = [0, 0], sizes = [1, 32], strides = [1, 1]} : vector<2x32xf32> to vector<1x32xf32>
    %c3_247 = arith.constant 3 : index
    %c0_248 = arith.constant 0 : index
    %471 = vector.load %arg26[%c3_247, %c0_248] : memref<16x32xf32, #tpu.memory_space<vmem>>, vector<1x32xf32>
    tpu.vector_store %arg26[%c3_247, %c0_248], %470 {strides = array<i32>} : memref<16x32xf32, #tpu.memory_space<vmem>>, vector<1x32xf32>,
    %472 = vector.extract_strided_slice %467 {offsets = [1, 0], sizes = [1, 32], strides = [1, 1]} : vector<2x32xf32> to vector<1x32xf32>
    %c11_249 = arith.constant 11 : index
    %c0_250 = arith.constant 0 : index
    %473 = vector.load %arg26[%c11_249, %c0_250] : memref<16x32xf32, #tpu.memory_space<vmem>>, vector<1x32xf32>
    tpu.vector_store %arg26[%c11_249, %c0_250], %472 {strides = array<i32>} : memref<16x32xf32, #tpu.memory_space<vmem>>, vector<1x32xf32>,
    %c8_251 = arith.constant 8 : index
    %c0_252 = arith.constant 0 : index
    %474 = vector.load %arg25[%c8_251, %c0_252] : memref<16x128xf32, #tpu.memory_space<vmem>>, vector<2x128xf32>
    %cst_253 = arith.constant dense<0.000000e+00> : vector<2x128xf32>
    %475 = tpu.matmul %468, %365, %cst_253 {dimension_numbers = #tpu.dot_dimension_numbers<[1], [0], [0], [1], [0, 0, 1, 1], [], []>} : vector<2x32xf32>, vector<32x128xf32>, vector<2x128xf32> -> vector<2x128xf32>
    %476 = arith.addf %474, %475 : vector<2x128xf32>
    %477 = vector.extract_strided_slice %476 {offsets = [0, 0], sizes = [2, 96], strides = [1, 1]} : vector<2x128xf32> to vector<2x96xf32>
    %cst_254 = arith.constant 5.000000e-01 : f32
    %478 = vector.broadcast %cst_254 : f32 to vector<2x96xf32>
    %479 = arith.mulf %478, %477 : vector<2x96xf32>
    %480 = math.tanh %479 : vector<2x96xf32>
    %cst_255 = arith.constant 5.000000e-01 : f32
    %481 = vector.broadcast %cst_255 : f32 to vector<2x96xf32>
    %482 = arith.mulf %481, %480 : vector<2x96xf32>
    %cst_256 = arith.constant 5.000000e-01 : f32
    %483 = vector.broadcast %cst_256 : f32 to vector<2x96xf32>
    %484 = arith.addf %482, %483 : vector<2x96xf32>
    %485 = vector.extract_strided_slice %476 {offsets = [0, 96], sizes = [2, 32], strides = [1, 1]} : vector<2x128xf32> to vector<2x32xf32>
    %486 = math.tanh %485 : vector<2x32xf32>
    %487 = vector.extract_strided_slice %484 {offsets = [0, 32], sizes = [2, 32], strides = [1, 1]} : vector<2x96xf32> to vector<2x32xf32>
    %488 = arith.mulf %487, %469 : vector<2x32xf32>
    %489 = vector.extract_strided_slice %484 {offsets = [0, 0], sizes = [2, 32], strides = [1, 1]} : vector<2x96xf32> to vector<2x32xf32>
    %490 = arith.mulf %489, %486 : vector<2x32xf32>
    %491 = arith.addf %488, %490 : vector<2x32xf32>
    %492 = vector.extract_strided_slice %484 {offsets = [0, 64], sizes = [2, 32], strides = [1, 1]} : vector<2x96xf32> to vector<2x32xf32>
    %493 = math.tanh %491 : vector<2x32xf32>
    %494 = arith.mulf %492, %493 : vector<2x32xf32>
    %495 = arith.select %61, %494, %468 : vector<2x32xi1>, vector<2x32xf32>
    %496 = arith.select %61, %491, %469 : vector<2x32xi1>, vector<2x32xf32>
    %497 = vector.extract_strided_slice %494 {offsets = [0, 0], sizes = [1, 32], strides = [1, 1]} : vector<2x32xf32> to vector<1x32xf32>
    %c4_257 = arith.constant 4 : index
    %c0_258 = arith.constant 0 : index
    %498 = vector.load %arg26[%c4_257, %c0_258] : memref<16x32xf32, #tpu.memory_space<vmem>>, vector<1x32xf32>
    tpu.vector_store %arg26[%c4_257, %c0_258], %497 {strides = array<i32>} : memref<16x32xf32, #tpu.memory_space<vmem>>, vector<1x32xf32>,
    %499 = vector.extract_strided_slice %494 {offsets = [1, 0], sizes = [1, 32], strides = [1, 1]} : vector<2x32xf32> to vector<1x32xf32>
    %c12_259 = arith.constant 12 : index
    %c0_260 = arith.constant 0 : index
    %500 = vector.load %arg26[%c12_259, %c0_260] : memref<16x32xf32, #tpu.memory_space<vmem>>, vector<1x32xf32>
    tpu.vector_store %arg26[%c12_259, %c0_260], %499 {strides = array<i32>} : memref<16x32xf32, #tpu.memory_space<vmem>>, vector<1x32xf32>,
    %c10_261 = arith.constant 10 : index
    %c0_262 = arith.constant 0 : index
    %501 = vector.load %arg25[%c10_261, %c0_262] : memref<16x128xf32, #tpu.memory_space<vmem>>, vector<2x128xf32>
    %cst_263 = arith.constant dense<0.000000e+00> : vector<2x128xf32>
    %502 = tpu.matmul %495, %365, %cst_263 {dimension_numbers = #tpu.dot_dimension_numbers<[1], [0], [0], [1], [0, 0, 1, 1], [], []>} : vector<2x32xf32>, vector<32x128xf32>, vector<2x128xf32> -> vector<2x128xf32>
    %503 = arith.addf %501, %502 : vector<2x128xf32>
    %504 = vector.extract_strided_slice %503 {offsets = [0, 0], sizes = [2, 96], strides = [1, 1]} : vector<2x128xf32> to vector<2x96xf32>
    %cst_264 = arith.constant 5.000000e-01 : f32
    %505 = vector.broadcast %cst_264 : f32 to vector<2x96xf32>
    %506 = arith.mulf %505, %504 : vector<2x96xf32>
    %507 = math.tanh %506 : vector<2x96xf32>
    %cst_265 = arith.constant 5.000000e-01 : f32
    %508 = vector.broadcast %cst_265 : f32 to vector<2x96xf32>
    %509 = arith.mulf %508, %507 : vector<2x96xf32>
    %cst_266 = arith.constant 5.000000e-01 : f32
    %510 = vector.broadcast %cst_266 : f32 to vector<2x96xf32>
    %511 = arith.addf %509, %510 : vector<2x96xf32>
    %512 = vector.extract_strided_slice %503 {offsets = [0, 96], sizes = [2, 32], strides = [1, 1]} : vector<2x128xf32> to vector<2x32xf32>
    %513 = math.tanh %512 : vector<2x32xf32>
    %514 = vector.extract_strided_slice %511 {offsets = [0, 32], sizes = [2, 32], strides = [1, 1]} : vector<2x96xf32> to vector<2x32xf32>
    %515 = arith.mulf %514, %496 : vector<2x32xf32>
    %516 = vector.extract_strided_slice %511 {offsets = [0, 0], sizes = [2, 32], strides = [1, 1]} : vector<2x96xf32> to vector<2x32xf32>
    %517 = arith.mulf %516, %513 : vector<2x32xf32>
    %518 = arith.addf %515, %517 : vector<2x32xf32>
    %519 = vector.extract_strided_slice %511 {offsets = [0, 64], sizes = [2, 32], strides = [1, 1]} : vector<2x96xf32> to vector<2x32xf32>
    %520 = math.tanh %518 : vector<2x32xf32>
    %521 = arith.mulf %519, %520 : vector<2x32xf32>
    %522 = arith.select %64, %521, %495 : vector<2x32xi1>, vector<2x32xf32>
    %523 = arith.select %64, %518, %496 : vector<2x32xi1>, vector<2x32xf32>
    %524 = vector.extract_strided_slice %521 {offsets = [0, 0], sizes = [1, 32], strides = [1, 1]} : vector<2x32xf32> to vector<1x32xf32>
    %c5_267 = arith.constant 5 : index
    %c0_268 = arith.constant 0 : index
    %525 = vector.load %arg26[%c5_267, %c0_268] : memref<16x32xf32, #tpu.memory_space<vmem>>, vector<1x32xf32>
    tpu.vector_store %arg26[%c5_267, %c0_268], %524 {strides = array<i32>} : memref<16x32xf32, #tpu.memory_space<vmem>>, vector<1x32xf32>,
    %526 = vector.extract_strided_slice %521 {offsets = [1, 0], sizes = [1, 32], strides = [1, 1]} : vector<2x32xf32> to vector<1x32xf32>
    %c13_269 = arith.constant 13 : index
    %c0_270 = arith.constant 0 : index
    %527 = vector.load %arg26[%c13_269, %c0_270] : memref<16x32xf32, #tpu.memory_space<vmem>>, vector<1x32xf32>
    tpu.vector_store %arg26[%c13_269, %c0_270], %526 {strides = array<i32>} : memref<16x32xf32, #tpu.memory_space<vmem>>, vector<1x32xf32>,
    %c12_271 = arith.constant 12 : index
    %c0_272 = arith.constant 0 : index
    %528 = vector.load %arg25[%c12_271, %c0_272] : memref<16x128xf32, #tpu.memory_space<vmem>>, vector<2x128xf32>
    %cst_273 = arith.constant dense<0.000000e+00> : vector<2x128xf32>
    %529 = tpu.matmul %522, %365, %cst_273 {dimension_numbers = #tpu.dot_dimension_numbers<[1], [0], [0], [1], [0, 0, 1, 1], [], []>} : vector<2x32xf32>, vector<32x128xf32>, vector<2x128xf32> -> vector<2x128xf32>
    %530 = arith.addf %528, %529 : vector<2x128xf32>
    %531 = vector.extract_strided_slice %530 {offsets = [0, 0], sizes = [2, 96], strides = [1, 1]} : vector<2x128xf32> to vector<2x96xf32>
    %cst_274 = arith.constant 5.000000e-01 : f32
    %532 = vector.broadcast %cst_274 : f32 to vector<2x96xf32>
    %533 = arith.mulf %532, %531 : vector<2x96xf32>
    %534 = math.tanh %533 : vector<2x96xf32>
    %cst_275 = arith.constant 5.000000e-01 : f32
    %535 = vector.broadcast %cst_275 : f32 to vector<2x96xf32>
    %536 = arith.mulf %535, %534 : vector<2x96xf32>
    %cst_276 = arith.constant 5.000000e-01 : f32
    %537 = vector.broadcast %cst_276 : f32 to vector<2x96xf32>
    %538 = arith.addf %536, %537 : vector<2x96xf32>
    %539 = vector.extract_strided_slice %530 {offsets = [0, 96], sizes = [2, 32], strides = [1, 1]} : vector<2x128xf32> to vector<2x32xf32>
    %540 = math.tanh %539 : vector<2x32xf32>
    %541 = vector.extract_strided_slice %538 {offsets = [0, 32], sizes = [2, 32], strides = [1, 1]} : vector<2x96xf32> to vector<2x32xf32>
    %542 = arith.mulf %541, %523 : vector<2x32xf32>
    %543 = vector.extract_strided_slice %538 {offsets = [0, 0], sizes = [2, 32], strides = [1, 1]} : vector<2x96xf32> to vector<2x32xf32>
    %544 = arith.mulf %543, %540 : vector<2x32xf32>
    %545 = arith.addf %542, %544 : vector<2x32xf32>
    %546 = vector.extract_strided_slice %538 {offsets = [0, 64], sizes = [2, 32], strides = [1, 1]} : vector<2x96xf32> to vector<2x32xf32>
    %547 = math.tanh %545 : vector<2x32xf32>
    %548 = arith.mulf %546, %547 : vector<2x32xf32>
    %549 = arith.select %67, %548, %522 : vector<2x32xi1>, vector<2x32xf32>
    %550 = arith.select %67, %545, %523 : vector<2x32xi1>, vector<2x32xf32>
    %551 = vector.extract_strided_slice %548 {offsets = [0, 0], sizes = [1, 32], strides = [1, 1]} : vector<2x32xf32> to vector<1x32xf32>
    %c6_277 = arith.constant 6 : index
    %c0_278 = arith.constant 0 : index
    %552 = vector.load %arg26[%c6_277, %c0_278] : memref<16x32xf32, #tpu.memory_space<vmem>>, vector<1x32xf32>
    tpu.vector_store %arg26[%c6_277, %c0_278], %551 {strides = array<i32>} : memref<16x32xf32, #tpu.memory_space<vmem>>, vector<1x32xf32>,
    %553 = vector.extract_strided_slice %548 {offsets = [1, 0], sizes = [1, 32], strides = [1, 1]} : vector<2x32xf32> to vector<1x32xf32>
    %c14_279 = arith.constant 14 : index
    %c0_280 = arith.constant 0 : index
    %554 = vector.load %arg26[%c14_279, %c0_280] : memref<16x32xf32, #tpu.memory_space<vmem>>, vector<1x32xf32>
    tpu.vector_store %arg26[%c14_279, %c0_280], %553 {strides = array<i32>} : memref<16x32xf32, #tpu.memory_space<vmem>>, vector<1x32xf32>,
    %c14_281 = arith.constant 14 : index
    %c0_282 = arith.constant 0 : index
    %555 = vector.load %arg25[%c14_281, %c0_282] : memref<16x128xf32, #tpu.memory_space<vmem>>, vector<2x128xf32>
    %cst_283 = arith.constant dense<0.000000e+00> : vector<2x128xf32>
    %556 = tpu.matmul %549, %365, %cst_283 {dimension_numbers = #tpu.dot_dimension_numbers<[1], [0], [0], [1], [0, 0, 1, 1], [], []>} : vector<2x32xf32>, vector<32x128xf32>, vector<2x128xf32> -> vector<2x128xf32>
    %557 = arith.addf %555, %556 : vector<2x128xf32>
    %558 = vector.extract_strided_slice %557 {offsets = [0, 0], sizes = [2, 96], strides = [1, 1]} : vector<2x128xf32> to vector<2x96xf32>
    %cst_284 = arith.constant 5.000000e-01 : f32
    %559 = vector.broadcast %cst_284 : f32 to vector<2x96xf32>
    %560 = arith.mulf %559, %558 : vector<2x96xf32>
    %561 = math.tanh %560 : vector<2x96xf32>
    %cst_285 = arith.constant 5.000000e-01 : f32
    %562 = vector.broadcast %cst_285 : f32 to vector<2x96xf32>
    %563 = arith.mulf %562, %561 : vector<2x96xf32>
    %cst_286 = arith.constant 5.000000e-01 : f32
    %564 = vector.broadcast %cst_286 : f32 to vector<2x96xf32>
    %565 = arith.addf %563, %564 : vector<2x96xf32>
    %566 = vector.extract_strided_slice %557 {offsets = [0, 96], sizes = [2, 32], strides = [1, 1]} : vector<2x128xf32> to vector<2x32xf32>
    %567 = math.tanh %566 : vector<2x32xf32>
    %568 = vector.extract_strided_slice %565 {offsets = [0, 32], sizes = [2, 32], strides = [1, 1]} : vector<2x96xf32> to vector<2x32xf32>
    %569 = arith.mulf %568, %550 : vector<2x32xf32>
    %570 = vector.extract_strided_slice %565 {offsets = [0, 0], sizes = [2, 32], strides = [1, 1]} : vector<2x96xf32> to vector<2x32xf32>
    %571 = arith.mulf %570, %567 : vector<2x32xf32>
    %572 = arith.addf %569, %571 : vector<2x32xf32>
    %573 = vector.extract_strided_slice %565 {offsets = [0, 64], sizes = [2, 32], strides = [1, 1]} : vector<2x96xf32> to vector<2x32xf32>
    %574 = math.tanh %572 : vector<2x32xf32>
    %575 = arith.mulf %573, %574 : vector<2x32xf32>
    %576 = vector.extract_strided_slice %575 {offsets = [0, 0], sizes = [1, 32], strides = [1, 1]} : vector<2x32xf32> to vector<1x32xf32>
    %c7_287 = arith.constant 7 : index
    %c0_288 = arith.constant 0 : index
    %577 = vector.load %arg26[%c7_287, %c0_288] : memref<16x32xf32, #tpu.memory_space<vmem>>, vector<1x32xf32>
    tpu.vector_store %arg26[%c7_287, %c0_288], %576 {strides = array<i32>} : memref<16x32xf32, #tpu.memory_space<vmem>>, vector<1x32xf32>,
    %578 = vector.extract_strided_slice %575 {offsets = [1, 0], sizes = [1, 32], strides = [1, 1]} : vector<2x32xf32> to vector<1x32xf32>
    %c15_289 = arith.constant 15 : index
    %c0_290 = arith.constant 0 : index
    %579 = vector.load %arg26[%c15_289, %c0_290] : memref<16x32xf32, #tpu.memory_space<vmem>>, vector<1x32xf32>
    tpu.vector_store %arg26[%c15_289, %c0_290], %578 {strides = array<i32>} : memref<16x32xf32, #tpu.memory_space<vmem>>, vector<1x32xf32>,
    %c0_291 = arith.constant 0 : index
    %c0_292 = arith.constant 0 : index
    %580 = vector.load %arg16[%c0_291, %c0_292] : memref<64x198xf32, #tpu.memory_space<vmem>>, vector<64x198xf32>
    %c0_293 = arith.constant 0 : index
    %c0_294 = arith.constant 0 : index
    %581 = vector.load %arg17[%c0_293, %c0_294] : memref<1x198xf32, #tpu.memory_space<vmem>>, vector<1x198xf32>
    %c0_295 = arith.constant 0 : index
    %c0_296 = arith.constant 0 : index
    %582 = vector.load %arg23[%c0_295, %c0_296] : memref<18x64xf32, #tpu.memory_space<vmem>>, vector<9x64xf32>
    %cst_297 = arith.constant dense<0.000000e+00> : vector<9x198xf32>
    %583 = tpu.matmul %582, %580, %cst_297 {dimension_numbers = #tpu.dot_dimension_numbers<[1], [0], [0], [1], [0, 0, 1, 1], [], []>} : vector<9x64xf32>, vector<64x198xf32>, vector<9x198xf32> -> vector<9x198xf32>
    %584 = vector.broadcast %581 : vector<1x198xf32> to vector<9x198xf32>
    %585 = arith.addf %583, %584 : vector<9x198xf32>
    %cst_298 = arith.constant 0.000000e+00 : f32
    %586 = vector.broadcast %cst_298 : f32 to vector<9x198xf32>
    %587 = arith.cmpf ogt, %585, %586 : vector<9x198xf32>
    %cst_299 = arith.constant 0.000000e+00 : f32
    %588 = vector.broadcast %cst_299 : f32 to vector<9x198xf32>
    %589 = arith.minimumf %585, %588 : vector<9x198xf32>
    %590 = math.exp %589 : vector<9x198xf32>
    %cst_300 = arith.constant 1.000000e+00 : f32
    %591 = vector.broadcast %cst_300 : f32 to vector<9x198xf32>
    %592 = arith.subf %590, %591 : vector<9x198xf32>
    %593 = arith.select %587, %585, %592 : vector<9x198xi1>, vector<9x198xf32>
    %c9_301 = arith.constant 9 : index
    %c0_302 = arith.constant 0 : index
    %594 = vector.load %arg23[%c9_301, %c0_302] : memref<18x64xf32, #tpu.memory_space<vmem>>, vector<9x64xf32>
    %cst_303 = arith.constant dense<0.000000e+00> : vector<9x198xf32>
    %595 = tpu.matmul %594, %580, %cst_303 {dimension_numbers = #tpu.dot_dimension_numbers<[1], [0], [0], [1], [0, 0, 1, 1], [], []>} : vector<9x64xf32>, vector<64x198xf32>, vector<9x198xf32> -> vector<9x198xf32>
    %596 = vector.broadcast %581 : vector<1x198xf32> to vector<9x198xf32>
    %597 = arith.addf %595, %596 : vector<9x198xf32>
    %cst_304 = arith.constant 0.000000e+00 : f32
    %598 = vector.broadcast %cst_304 : f32 to vector<9x198xf32>
    %599 = arith.cmpf ogt, %597, %598 : vector<9x198xf32>
    %cst_305 = arith.constant 0.000000e+00 : f32
    %600 = vector.broadcast %cst_305 : f32 to vector<9x198xf32>
    %601 = arith.minimumf %597, %600 : vector<9x198xf32>
    %602 = math.exp %601 : vector<9x198xf32>
    %cst_306 = arith.constant 1.000000e+00 : f32
    %603 = vector.broadcast %cst_306 : f32 to vector<9x198xf32>
    %604 = arith.subf %602, %603 : vector<9x198xf32>
    %605 = arith.select %599, %597, %604 : vector<9x198xi1>, vector<9x198xf32>
    %c0_307 = arith.constant 0 : index
    %c0_308 = arith.constant 0 : index
    %606 = vector.load %arg26[%c0_307, %c0_308] : memref<16x32xf32, #tpu.memory_space<vmem>>, vector<16x32xf32>
    %c0_309 = arith.constant 0 : index
    %c0_310 = arith.constant 0 : index
    %607 = vector.load %arg18[%c0_309, %c0_310] : memref<32x150xf32, #tpu.memory_space<vmem>>, vector<32x150xf32>
    %cst_311 = arith.constant dense<0.000000e+00> : vector<16x150xf32>
    %608 = tpu.matmul %606, %607, %cst_311 {dimension_numbers = #tpu.dot_dimension_numbers<[1], [0], [0], [1], [0, 0, 1, 1], [], []>} : vector<16x32xf32>, vector<32x150xf32>, vector<16x150xf32> -> vector<16x150xf32>
    %c0_312 = arith.constant 0 : index
    %c0_313 = arith.constant 0 : index
    %609 = vector.load %arg19[%c0_312, %c0_313] : memref<1x150xf32, #tpu.memory_space<vmem>>, vector<1x150xf32>
    %610 = vector.broadcast %609 : vector<1x150xf32> to vector<16x150xf32>
    %611 = arith.addf %608, %610 : vector<16x150xf32>
    %cst_314 = arith.constant 0.000000e+00 : f32
    %612 = vector.broadcast %cst_314 : f32 to vector<16x150xf32>
    %613 = arith.cmpf ogt, %611, %612 : vector<16x150xf32>
    %cst_315 = arith.constant 0.000000e+00 : f32
    %614 = vector.broadcast %cst_315 : f32 to vector<16x150xf32>
    %615 = arith.minimumf %611, %614 : vector<16x150xf32>
    %616 = math.exp %615 : vector<16x150xf32>
    %cst_316 = arith.constant 1.000000e+00 : f32
    %617 = vector.broadcast %cst_316 : f32 to vector<16x150xf32>
    %618 = arith.subf %616, %617 : vector<16x150xf32>
    %619 = arith.select %613, %611, %618 : vector<16x150xi1>, vector<16x150xf32>
    %c0_317 = arith.constant 0 : index
    %c0_318 = arith.constant 0 : index
    %620 = vector.load %arg20[%c0_317, %c0_318] : memref<25x1089xf32, #tpu.memory_space<vmem>>, vector<25x1089xf32>
    %cst_319 = arith.constant 0.000000e+00 : f32
    %621 = vector.broadcast %cst_319 : f32 to vector<9x33xf32>
    %622 = vector.extract_strided_slice %620 {offsets = [0, 0], sizes = [25, 33], strides = [1, 1]} : vector<25x1089xf32> to vector<25x33xf32>
    %623 = vector.extract_strided_slice %619 {offsets = [0, 0], sizes = [16, 25], strides = [1, 1]} : vector<16x150xf32> to vector<16x25xf32>
    %cst_320 = arith.constant dense<0.000000e+00> : vector<16x33xf32>
    %624 = tpu.matmul %623, %622, %cst_320 {dimension_numbers = #tpu.dot_dimension_numbers<[1], [0], [0], [1], [0, 0, 1, 1], [], []>} : vector<16x25xf32>, vector<25x33xf32>, vector<16x33xf32> -> vector<16x33xf32>
    %625 = vector.extract_strided_slice %593 {offsets = [0, 0], sizes = [9, 33], strides = [1, 1]} : vector<9x198xf32> to vector<9x33xf32>
    %626 = vector.extract_strided_slice %624 {offsets = [0, 0], sizes = [8, 33], strides = [1, 1]} : vector<16x33xf32> to vector<8x33xf32>
    "tpu.trace_start"() <{level = 10 : i32, message = "tj,ej->te"}> : () -> ()
    %cst_321 = arith.constant dense<0.000000e+00> : vector<8x9xf32>
    %627 = tpu.matmul %626, %625, %cst_321 {dimension_numbers = #tpu.dot_dimension_numbers<[1], [1], [0], [0], [0, 0, 1, 0], [], []>} : vector<8x33xf32>, vector<9x33xf32>, vector<8x9xf32> -> vector<8x9xf32>
    "tpu.trace_stop"() : () -> ()
    %628 = vector.extract_strided_slice %605 {offsets = [0, 0], sizes = [9, 33], strides = [1, 1]} : vector<9x198xf32> to vector<9x33xf32>
    %629 = vector.extract_strided_slice %624 {offsets = [8, 0], sizes = [8, 33], strides = [1, 1]} : vector<16x33xf32> to vector<8x33xf32>
    "tpu.trace_start"() <{level = 10 : i32, message = "tj,ej->te"}> : () -> ()
    %cst_322 = arith.constant dense<0.000000e+00> : vector<8x9xf32>
    %630 = tpu.matmul %629, %628, %cst_322 {dimension_numbers = #tpu.dot_dimension_numbers<[1], [1], [0], [0], [0, 0, 1, 0], [], []>} : vector<8x33xf32>, vector<9x33xf32>, vector<8x9xf32> -> vector<8x9xf32>
    "tpu.trace_stop"() : () -> ()
    %631 = vector.extract_strided_slice %620 {offsets = [0, 33], sizes = [25, 165], strides = [1, 1]} : vector<25x1089xf32> to vector<25x165xf32>
    %632 = vector.extract_strided_slice %619 {offsets = [0, 25], sizes = [16, 25], strides = [1, 1]} : vector<16x150xf32> to vector<16x25xf32>
    %cst_323 = arith.constant dense<0.000000e+00> : vector<16x165xf32>
    %633 = tpu.matmul %632, %631, %cst_323 {dimension_numbers = #tpu.dot_dimension_numbers<[1], [0], [0], [1], [0, 0, 1, 1], [], []>} : vector<16x25xf32>, vector<25x165xf32>, vector<16x165xf32> -> vector<16x165xf32>
    %634 = vector.extract_strided_slice %593 {offsets = [0, 33], sizes = [9, 33], strides = [1, 1]} : vector<9x198xf32> to vector<9x33xf32>
    %635 = tpu.concatenate %634, %621, %621, %621, %621 in 1 : vector<9x33xf32>, vector<9x33xf32>, vector<9x33xf32>, vector<9x33xf32>, vector<9x33xf32> -> vector<9x165xf32>
    %636 = tpu.concatenate %621, %634, %621, %621, %621 in 1 : vector<9x33xf32>, vector<9x33xf32>, vector<9x33xf32>, vector<9x33xf32>, vector<9x33xf32> -> vector<9x165xf32>
    %637 = tpu.concatenate %621, %621, %634, %621, %621 in 1 : vector<9x33xf32>, vector<9x33xf32>, vector<9x33xf32>, vector<9x33xf32>, vector<9x33xf32> -> vector<9x165xf32>
    %638 = tpu.concatenate %621, %621, %621, %634, %621 in 1 : vector<9x33xf32>, vector<9x33xf32>, vector<9x33xf32>, vector<9x33xf32>, vector<9x33xf32> -> vector<9x165xf32>
    %639 = tpu.concatenate %621, %621, %621, %621, %634 in 1 : vector<9x33xf32>, vector<9x33xf32>, vector<9x33xf32>, vector<9x33xf32>, vector<9x33xf32> -> vector<9x165xf32>
    %640 = tpu.concatenate %635, %636, %637, %638, %639 in 0 : vector<9x165xf32>, vector<9x165xf32>, vector<9x165xf32>, vector<9x165xf32>, vector<9x165xf32> -> vector<45x165xf32>
    %641 = vector.extract_strided_slice %633 {offsets = [0, 0], sizes = [8, 165], strides = [1, 1]} : vector<16x165xf32> to vector<8x165xf32>
    "tpu.trace_start"() <{level = 10 : i32, message = "tj,ej->te"}> : () -> ()
    %cst_324 = arith.constant dense<0.000000e+00> : vector<8x45xf32>
    %642 = tpu.matmul %641, %640, %cst_324 {dimension_numbers = #tpu.dot_dimension_numbers<[1], [1], [0], [0], [0, 0, 1, 0], [], []>} : vector<8x165xf32>, vector<45x165xf32>, vector<8x45xf32> -> vector<8x45xf32>
    "tpu.trace_stop"() : () -> ()
    %643 = vector.extract_strided_slice %605 {offsets = [0, 33], sizes = [9, 33], strides = [1, 1]} : vector<9x198xf32> to vector<9x33xf32>
    %644 = tpu.concatenate %643, %621, %621, %621, %621 in 1 : vector<9x33xf32>, vector<9x33xf32>, vector<9x33xf32>, vector<9x33xf32>, vector<9x33xf32> -> vector<9x165xf32>
    %645 = tpu.concatenate %621, %643, %621, %621, %621 in 1 : vector<9x33xf32>, vector<9x33xf32>, vector<9x33xf32>, vector<9x33xf32>, vector<9x33xf32> -> vector<9x165xf32>
    %646 = tpu.concatenate %621, %621, %643, %621, %621 in 1 : vector<9x33xf32>, vector<9x33xf32>, vector<9x33xf32>, vector<9x33xf32>, vector<9x33xf32> -> vector<9x165xf32>
    %647 = tpu.concatenate %621, %621, %621, %643, %621 in 1 : vector<9x33xf32>, vector<9x33xf32>, vector<9x33xf32>, vector<9x33xf32>, vector<9x33xf32> -> vector<9x165xf32>
    %648 = tpu.concatenate %621, %621, %621, %621, %643 in 1 : vector<9x33xf32>, vector<9x33xf32>, vector<9x33xf32>, vector<9x33xf32>, vector<9x33xf32> -> vector<9x165xf32>
    %649 = tpu.concatenate %644, %645, %646, %647, %648 in 0 : vector<9x165xf32>, vector<9x165xf32>, vector<9x165xf32>, vector<9x165xf32>, vector<9x165xf32> -> vector<45x165xf32>
    %650 = vector.extract_strided_slice %633 {offsets = [8, 0], sizes = [8, 165], strides = [1, 1]} : vector<16x165xf32> to vector<8x165xf32>
    "tpu.trace_start"() <{level = 10 : i32, message = "tj,ej->te"}> : () -> ()
    %cst_325 = arith.constant dense<0.000000e+00> : vector<8x45xf32>
    %651 = tpu.matmul %650, %649, %cst_325 {dimension_numbers = #tpu.dot_dimension_numbers<[1], [1], [0], [0], [0, 0, 1, 0], [], []>} : vector<8x165xf32>, vector<45x165xf32>, vector<8x45xf32> -> vector<8x45xf32>
    "tpu.trace_stop"() : () -> ()
    %652 = vector.extract_strided_slice %620 {offsets = [0, 198], sizes = [25, 99], strides = [1, 1]} : vector<25x1089xf32> to vector<25x99xf32>
    %653 = vector.extract_strided_slice %619 {offsets = [0, 50], sizes = [16, 25], strides = [1, 1]} : vector<16x150xf32> to vector<16x25xf32>
    %cst_326 = arith.constant dense<0.000000e+00> : vector<16x99xf32>
    %654 = tpu.matmul %653, %652, %cst_326 {dimension_numbers = #tpu.dot_dimension_numbers<[1], [0], [0], [1], [0, 0, 1, 1], [], []>} : vector<16x25xf32>, vector<25x99xf32>, vector<16x99xf32> -> vector<16x99xf32>
    %655 = vector.extract_strided_slice %593 {offsets = [0, 66], sizes = [9, 33], strides = [1, 1]} : vector<9x198xf32> to vector<9x33xf32>
    %656 = tpu.concatenate %655, %621, %621 in 1 : vector<9x33xf32>, vector<9x33xf32>, vector<9x33xf32> -> vector<9x99xf32>
    %657 = tpu.concatenate %621, %655, %621 in 1 : vector<9x33xf32>, vector<9x33xf32>, vector<9x33xf32> -> vector<9x99xf32>
    %658 = tpu.concatenate %621, %621, %655 in 1 : vector<9x33xf32>, vector<9x33xf32>, vector<9x33xf32> -> vector<9x99xf32>
    %659 = tpu.concatenate %656, %657, %658 in 0 : vector<9x99xf32>, vector<9x99xf32>, vector<9x99xf32> -> vector<27x99xf32>
    %660 = vector.extract_strided_slice %654 {offsets = [0, 0], sizes = [8, 99], strides = [1, 1]} : vector<16x99xf32> to vector<8x99xf32>
    "tpu.trace_start"() <{level = 10 : i32, message = "tj,ej->te"}> : () -> ()
    %cst_327 = arith.constant dense<0.000000e+00> : vector<8x27xf32>
    %661 = tpu.matmul %660, %659, %cst_327 {dimension_numbers = #tpu.dot_dimension_numbers<[1], [1], [0], [0], [0, 0, 1, 0], [], []>} : vector<8x99xf32>, vector<27x99xf32>, vector<8x27xf32> -> vector<8x27xf32>
    "tpu.trace_stop"() : () -> ()
    %662 = vector.extract_strided_slice %605 {offsets = [0, 66], sizes = [9, 33], strides = [1, 1]} : vector<9x198xf32> to vector<9x33xf32>
    %663 = tpu.concatenate %662, %621, %621 in 1 : vector<9x33xf32>, vector<9x33xf32>, vector<9x33xf32> -> vector<9x99xf32>
    %664 = tpu.concatenate %621, %662, %621 in 1 : vector<9x33xf32>, vector<9x33xf32>, vector<9x33xf32> -> vector<9x99xf32>
    %665 = tpu.concatenate %621, %621, %662 in 1 : vector<9x33xf32>, vector<9x33xf32>, vector<9x33xf32> -> vector<9x99xf32>
    %666 = tpu.concatenate %663, %664, %665 in 0 : vector<9x99xf32>, vector<9x99xf32>, vector<9x99xf32> -> vector<27x99xf32>
    %667 = vector.extract_strided_slice %654 {offsets = [8, 0], sizes = [8, 99], strides = [1, 1]} : vector<16x99xf32> to vector<8x99xf32>
    "tpu.trace_start"() <{level = 10 : i32, message = "tj,ej->te"}> : () -> ()
    %cst_328 = arith.constant dense<0.000000e+00> : vector<8x27xf32>
    %668 = tpu.matmul %667, %666, %cst_328 {dimension_numbers = #tpu.dot_dimension_numbers<[1], [1], [0], [0], [0, 0, 1, 0], [], []>} : vector<8x99xf32>, vector<27x99xf32>, vector<8x27xf32> -> vector<8x27xf32>
    "tpu.trace_stop"() : () -> ()
    %669 = vector.extract_strided_slice %620 {offsets = [0, 297], sizes = [25, 132], strides = [1, 1]} : vector<25x1089xf32> to vector<25x132xf32>
    %670 = vector.extract_strided_slice %619 {offsets = [0, 75], sizes = [16, 25], strides = [1, 1]} : vector<16x150xf32> to vector<16x25xf32>
    %cst_329 = arith.constant dense<0.000000e+00> : vector<16x132xf32>
    %671 = tpu.matmul %670, %669, %cst_329 {dimension_numbers = #tpu.dot_dimension_numbers<[1], [0], [0], [1], [0, 0, 1, 1], [], []>} : vector<16x25xf32>, vector<25x132xf32>, vector<16x132xf32> -> vector<16x132xf32>
    %672 = vector.extract_strided_slice %593 {offsets = [0, 99], sizes = [9, 33], strides = [1, 1]} : vector<9x198xf32> to vector<9x33xf32>
    %673 = tpu.concatenate %672, %621, %621, %621 in 1 : vector<9x33xf32>, vector<9x33xf32>, vector<9x33xf32>, vector<9x33xf32> -> vector<9x132xf32>
    %674 = tpu.concatenate %621, %672, %621, %621 in 1 : vector<9x33xf32>, vector<9x33xf32>, vector<9x33xf32>, vector<9x33xf32> -> vector<9x132xf32>
    %675 = tpu.concatenate %621, %621, %672, %621 in 1 : vector<9x33xf32>, vector<9x33xf32>, vector<9x33xf32>, vector<9x33xf32> -> vector<9x132xf32>
    %676 = tpu.concatenate %621, %621, %621, %672 in 1 : vector<9x33xf32>, vector<9x33xf32>, vector<9x33xf32>, vector<9x33xf32> -> vector<9x132xf32>
    %677 = tpu.concatenate %673, %674, %675, %676 in 0 : vector<9x132xf32>, vector<9x132xf32>, vector<9x132xf32>, vector<9x132xf32> -> vector<36x132xf32>
    %678 = vector.extract_strided_slice %671 {offsets = [0, 0], sizes = [8, 132], strides = [1, 1]} : vector<16x132xf32> to vector<8x132xf32>
    "tpu.trace_start"() <{level = 10 : i32, message = "tj,ej->te"}> : () -> ()
    %cst_330 = arith.constant dense<0.000000e+00> : vector<8x36xf32>
    %679 = tpu.matmul %678, %677, %cst_330 {dimension_numbers = #tpu.dot_dimension_numbers<[1], [1], [0], [0], [0, 0, 1, 0], [], []>} : vector<8x132xf32>, vector<36x132xf32>, vector<8x36xf32> -> vector<8x36xf32>
    "tpu.trace_stop"() : () -> ()
    %680 = vector.extract_strided_slice %605 {offsets = [0, 99], sizes = [9, 33], strides = [1, 1]} : vector<9x198xf32> to vector<9x33xf32>
    %681 = tpu.concatenate %680, %621, %621, %621 in 1 : vector<9x33xf32>, vector<9x33xf32>, vector<9x33xf32>, vector<9x33xf32> -> vector<9x132xf32>
    %682 = tpu.concatenate %621, %680, %621, %621 in 1 : vector<9x33xf32>, vector<9x33xf32>, vector<9x33xf32>, vector<9x33xf32> -> vector<9x132xf32>
    %683 = tpu.concatenate %621, %621, %680, %621 in 1 : vector<9x33xf32>, vector<9x33xf32>, vector<9x33xf32>, vector<9x33xf32> -> vector<9x132xf32>
    %684 = tpu.concatenate %621, %621, %621, %680 in 1 : vector<9x33xf32>, vector<9x33xf32>, vector<9x33xf32>, vector<9x33xf32> -> vector<9x132xf32>
    %685 = tpu.concatenate %681, %682, %683, %684 in 0 : vector<9x132xf32>, vector<9x132xf32>, vector<9x132xf32>, vector<9x132xf32> -> vector<36x132xf32>
    %686 = vector.extract_strided_slice %671 {offsets = [8, 0], sizes = [8, 132], strides = [1, 1]} : vector<16x132xf32> to vector<8x132xf32>
    "tpu.trace_start"() <{level = 10 : i32, message = "tj,ej->te"}> : () -> ()
    %cst_331 = arith.constant dense<0.000000e+00> : vector<8x36xf32>
    %687 = tpu.matmul %686, %685, %cst_331 {dimension_numbers = #tpu.dot_dimension_numbers<[1], [1], [0], [0], [0, 0, 1, 0], [], []>} : vector<8x132xf32>, vector<36x132xf32>, vector<8x36xf32> -> vector<8x36xf32>
    "tpu.trace_stop"() : () -> ()
    %688 = vector.extract_strided_slice %620 {offsets = [0, 429], sizes = [25, 396], strides = [1, 1]} : vector<25x1089xf32> to vector<25x396xf32>
    %689 = vector.extract_strided_slice %619 {offsets = [0, 100], sizes = [16, 25], strides = [1, 1]} : vector<16x150xf32> to vector<16x25xf32>
    %cst_332 = arith.constant dense<0.000000e+00> : vector<16x396xf32>
    %690 = tpu.matmul %689, %688, %cst_332 {dimension_numbers = #tpu.dot_dimension_numbers<[1], [0], [0], [1], [0, 0, 1, 1], [], []>} : vector<16x25xf32>, vector<25x396xf32>, vector<16x396xf32> -> vector<16x396xf32>
    %691 = vector.extract_strided_slice %593 {offsets = [0, 132], sizes = [9, 33], strides = [1, 1]} : vector<9x198xf32> to vector<9x33xf32>
    %692 = tpu.concatenate %691, %621, %621, %621, %621, %621, %621, %621, %621, %621, %621, %621 in 1 : vector<9x33xf32>, vector<9x33xf32>, vector<9x33xf32>, vector<9x33xf32>, vector<9x33xf32>, vector<9x33xf32>, vector<9x33xf32>, vector<9x33xf32>, vector<9x33xf32>, vector<9x33xf32>, vector<9x33xf32>, vector<9x33xf32> -> vector<9x396xf32>
    %693 = tpu.concatenate %621, %691, %621, %621, %621, %621, %621, %621, %621, %621, %621, %621 in 1 : vector<9x33xf32>, vector<9x33xf32>, vector<9x33xf32>, vector<9x33xf32>, vector<9x33xf32>, vector<9x33xf32>, vector<9x33xf32>, vector<9x33xf32>, vector<9x33xf32>, vector<9x33xf32>, vector<9x33xf32>, vector<9x33xf32> -> vector<9x396xf32>
    %694 = tpu.concatenate %621, %621, %691, %621, %621, %621, %621, %621, %621, %621, %621, %621 in 1 : vector<9x33xf32>, vector<9x33xf32>, vector<9x33xf32>, vector<9x33xf32>, vector<9x33xf32>, vector<9x33xf32>, vector<9x33xf32>, vector<9x33xf32>, vector<9x33xf32>, vector<9x33xf32>, vector<9x33xf32>, vector<9x33xf32> -> vector<9x396xf32>
    %695 = tpu.concatenate %621, %621, %621, %691, %621, %621, %621, %621, %621, %621, %621, %621 in 1 : vector<9x33xf32>, vector<9x33xf32>, vector<9x33xf32>, vector<9x33xf32>, vector<9x33xf32>, vector<9x33xf32>, vector<9x33xf32>, vector<9x33xf32>, vector<9x33xf32>, vector<9x33xf32>, vector<9x33xf32>, vector<9x33xf32> -> vector<9x396xf32>
    %696 = tpu.concatenate %621, %621, %621, %621, %691, %621, %621, %621, %621, %621, %621, %621 in 1 : vector<9x33xf32>, vector<9x33xf32>, vector<9x33xf32>, vector<9x33xf32>, vector<9x33xf32>, vector<9x33xf32>, vector<9x33xf32>, vector<9x33xf32>, vector<9x33xf32>, vector<9x33xf32>, vector<9x33xf32>, vector<9x33xf32> -> vector<9x396xf32>
    %697 = tpu.concatenate %621, %621, %621, %621, %621, %691, %621, %621, %621, %621, %621, %621 in 1 : vector<9x33xf32>, vector<9x33xf32>, vector<9x33xf32>, vector<9x33xf32>, vector<9x33xf32>, vector<9x33xf32>, vector<9x33xf32>, vector<9x33xf32>, vector<9x33xf32>, vector<9x33xf32>, vector<9x33xf32>, vector<9x33xf32> -> vector<9x396xf32>
    %698 = tpu.concatenate %621, %621, %621, %621, %621, %621, %691, %621, %621, %621, %621, %621 in 1 : vector<9x33xf32>, vector<9x33xf32>, vector<9x33xf32>, vector<9x33xf32>, vector<9x33xf32>, vector<9x33xf32>, vector<9x33xf32>, vector<9x33xf32>, vector<9x33xf32>, vector<9x33xf32>, vector<9x33xf32>, vector<9x33xf32> -> vector<9x396xf32>
    %699 = tpu.concatenate %621, %621, %621, %621, %621, %621, %621, %691, %621, %621, %621, %621 in 1 : vector<9x33xf32>, vector<9x33xf32>, vector<9x33xf32>, vector<9x33xf32>, vector<9x33xf32>, vector<9x33xf32>, vector<9x33xf32>, vector<9x33xf32>, vector<9x33xf32>, vector<9x33xf32>, vector<9x33xf32>, vector<9x33xf32> -> vector<9x396xf32>
    %700 = tpu.concatenate %621, %621, %621, %621, %621, %621, %621, %621, %691, %621, %621, %621 in 1 : vector<9x33xf32>, vector<9x33xf32>, vector<9x33xf32>, vector<9x33xf32>, vector<9x33xf32>, vector<9x33xf32>, vector<9x33xf32>, vector<9x33xf32>, vector<9x33xf32>, vector<9x33xf32>, vector<9x33xf32>, vector<9x33xf32> -> vector<9x396xf32>
    %701 = tpu.concatenate %621, %621, %621, %621, %621, %621, %621, %621, %621, %691, %621, %621 in 1 : vector<9x33xf32>, vector<9x33xf32>, vector<9x33xf32>, vector<9x33xf32>, vector<9x33xf32>, vector<9x33xf32>, vector<9x33xf32>, vector<9x33xf32>, vector<9x33xf32>, vector<9x33xf32>, vector<9x33xf32>, vector<9x33xf32> -> vector<9x396xf32>
    %702 = tpu.concatenate %621, %621, %621, %621, %621, %621, %621, %621, %621, %621, %691, %621 in 1 : vector<9x33xf32>, vector<9x33xf32>, vector<9x33xf32>, vector<9x33xf32>, vector<9x33xf32>, vector<9x33xf32>, vector<9x33xf32>, vector<9x33xf32>, vector<9x33xf32>, vector<9x33xf32>, vector<9x33xf32>, vector<9x33xf32> -> vector<9x396xf32>
    %703 = tpu.concatenate %621, %621, %621, %621, %621, %621, %621, %621, %621, %621, %621, %691 in 1 : vector<9x33xf32>, vector<9x33xf32>, vector<9x33xf32>, vector<9x33xf32>, vector<9x33xf32>, vector<9x33xf32>, vector<9x33xf32>, vector<9x33xf32>, vector<9x33xf32>, vector<9x33xf32>, vector<9x33xf32>, vector<9x33xf32> -> vector<9x396xf32>
    %704 = tpu.concatenate %692, %693, %694, %695, %696, %697, %698, %699, %700, %701, %702, %703 in 0 : vector<9x396xf32>, vector<9x396xf32>, vector<9x396xf32>, vector<9x396xf32>, vector<9x396xf32>, vector<9x396xf32>, vector<9x396xf32>, vector<9x396xf32>, vector<9x396xf32>, vector<9x396xf32>, vector<9x396xf32>, vector<9x396xf32> -> vector<108x396xf32>
    %705 = vector.extract_strided_slice %690 {offsets = [0, 0], sizes = [8, 396], strides = [1, 1]} : vector<16x396xf32> to vector<8x396xf32>
    "tpu.trace_start"() <{level = 10 : i32, message = "tj,ej->te"}> : () -> ()
    %cst_333 = arith.constant dense<0.000000e+00> : vector<8x108xf32>
    %706 = tpu.matmul %705, %704, %cst_333 {dimension_numbers = #tpu.dot_dimension_numbers<[1], [1], [0], [0], [0, 0, 1, 0], [], []>} : vector<8x396xf32>, vector<108x396xf32>, vector<8x108xf32> -> vector<8x108xf32>
    "tpu.trace_stop"() : () -> ()
    %707 = vector.extract_strided_slice %605 {offsets = [0, 132], sizes = [9, 33], strides = [1, 1]} : vector<9x198xf32> to vector<9x33xf32>
    %708 = tpu.concatenate %707, %621, %621, %621, %621, %621, %621, %621, %621, %621, %621, %621 in 1 : vector<9x33xf32>, vector<9x33xf32>, vector<9x33xf32>, vector<9x33xf32>, vector<9x33xf32>, vector<9x33xf32>, vector<9x33xf32>, vector<9x33xf32>, vector<9x33xf32>, vector<9x33xf32>, vector<9x33xf32>, vector<9x33xf32> -> vector<9x396xf32>
    %709 = tpu.concatenate %621, %707, %621, %621, %621, %621, %621, %621, %621, %621, %621, %621 in 1 : vector<9x33xf32>, vector<9x33xf32>, vector<9x33xf32>, vector<9x33xf32>, vector<9x33xf32>, vector<9x33xf32>, vector<9x33xf32>, vector<9x33xf32>, vector<9x33xf32>, vector<9x33xf32>, vector<9x33xf32>, vector<9x33xf32> -> vector<9x396xf32>
    %710 = tpu.concatenate %621, %621, %707, %621, %621, %621, %621, %621, %621, %621, %621, %621 in 1 : vector<9x33xf32>, vector<9x33xf32>, vector<9x33xf32>, vector<9x33xf32>, vector<9x33xf32>, vector<9x33xf32>, vector<9x33xf32>, vector<9x33xf32>, vector<9x33xf32>, vector<9x33xf32>, vector<9x33xf32>, vector<9x33xf32> -> vector<9x396xf32>
    %711 = tpu.concatenate %621, %621, %621, %707, %621, %621, %621, %621, %621, %621, %621, %621 in 1 : vector<9x33xf32>, vector<9x33xf32>, vector<9x33xf32>, vector<9x33xf32>, vector<9x33xf32>, vector<9x33xf32>, vector<9x33xf32>, vector<9x33xf32>, vector<9x33xf32>, vector<9x33xf32>, vector<9x33xf32>, vector<9x33xf32> -> vector<9x396xf32>
    %712 = tpu.concatenate %621, %621, %621, %621, %707, %621, %621, %621, %621, %621, %621, %621 in 1 : vector<9x33xf32>, vector<9x33xf32>, vector<9x33xf32>, vector<9x33xf32>, vector<9x33xf32>, vector<9x33xf32>, vector<9x33xf32>, vector<9x33xf32>, vector<9x33xf32>, vector<9x33xf32>, vector<9x33xf32>, vector<9x33xf32> -> vector<9x396xf32>
    %713 = tpu.concatenate %621, %621, %621, %621, %621, %707, %621, %621, %621, %621, %621, %621 in 1 : vector<9x33xf32>, vector<9x33xf32>, vector<9x33xf32>, vector<9x33xf32>, vector<9x33xf32>, vector<9x33xf32>, vector<9x33xf32>, vector<9x33xf32>, vector<9x33xf32>, vector<9x33xf32>, vector<9x33xf32>, vector<9x33xf32> -> vector<9x396xf32>
    %714 = tpu.concatenate %621, %621, %621, %621, %621, %621, %707, %621, %621, %621, %621, %621 in 1 : vector<9x33xf32>, vector<9x33xf32>, vector<9x33xf32>, vector<9x33xf32>, vector<9x33xf32>, vector<9x33xf32>, vector<9x33xf32>, vector<9x33xf32>, vector<9x33xf32>, vector<9x33xf32>, vector<9x33xf32>, vector<9x33xf32> -> vector<9x396xf32>
    %715 = tpu.concatenate %621, %621, %621, %621, %621, %621, %621, %707, %621, %621, %621, %621 in 1 : vector<9x33xf32>, vector<9x33xf32>, vector<9x33xf32>, vector<9x33xf32>, vector<9x33xf32>, vector<9x33xf32>, vector<9x33xf32>, vector<9x33xf32>, vector<9x33xf32>, vector<9x33xf32>, vector<9x33xf32>, vector<9x33xf32> -> vector<9x396xf32>
    %716 = tpu.concatenate %621, %621, %621, %621, %621, %621, %621, %621, %707, %621, %621, %621 in 1 : vector<9x33xf32>, vector<9x33xf32>, vector<9x33xf32>, vector<9x33xf32>, vector<9x33xf32>, vector<9x33xf32>, vector<9x33xf32>, vector<9x33xf32>, vector<9x33xf32>, vector<9x33xf32>, vector<9x33xf32>, vector<9x33xf32> -> vector<9x396xf32>
    %717 = tpu.concatenate %621, %621, %621, %621, %621, %621, %621, %621, %621, %707, %621, %621 in 1 : vector<9x33xf32>, vector<9x33xf32>, vector<9x33xf32>, vector<9x33xf32>, vector<9x33xf32>, vector<9x33xf32>, vector<9x33xf32>, vector<9x33xf32>, vector<9x33xf32>, vector<9x33xf32>, vector<9x33xf32>, vector<9x33xf32> -> vector<9x396xf32>
    %718 = tpu.concatenate %621, %621, %621, %621, %621, %621, %621, %621, %621, %621, %707, %621 in 1 : vector<9x33xf32>, vector<9x33xf32>, vector<9x33xf32>, vector<9x33xf32>, vector<9x33xf32>, vector<9x33xf32>, vector<9x33xf32>, vector<9x33xf32>, vector<9x33xf32>, vector<9x33xf32>, vector<9x33xf32>, vector<9x33xf32> -> vector<9x396xf32>
    %719 = tpu.concatenate %621, %621, %621, %621, %621, %621, %621, %621, %621, %621, %621, %707 in 1 : vector<9x33xf32>, vector<9x33xf32>, vector<9x33xf32>, vector<9x33xf32>, vector<9x33xf32>, vector<9x33xf32>, vector<9x33xf32>, vector<9x33xf32>, vector<9x33xf32>, vector<9x33xf32>, vector<9x33xf32>, vector<9x33xf32> -> vector<9x396xf32>
    %720 = tpu.concatenate %708, %709, %710, %711, %712, %713, %714, %715, %716, %717, %718, %719 in 0 : vector<9x396xf32>, vector<9x396xf32>, vector<9x396xf32>, vector<9x396xf32>, vector<9x396xf32>, vector<9x396xf32>, vector<9x396xf32>, vector<9x396xf32>, vector<9x396xf32>, vector<9x396xf32>, vector<9x396xf32>, vector<9x396xf32> -> vector<108x396xf32>
    %721 = vector.extract_strided_slice %690 {offsets = [8, 0], sizes = [8, 396], strides = [1, 1]} : vector<16x396xf32> to vector<8x396xf32>
    "tpu.trace_start"() <{level = 10 : i32, message = "tj,ej->te"}> : () -> ()
    %cst_334 = arith.constant dense<0.000000e+00> : vector<8x108xf32>
    %722 = tpu.matmul %721, %720, %cst_334 {dimension_numbers = #tpu.dot_dimension_numbers<[1], [1], [0], [0], [0, 0, 1, 0], [], []>} : vector<8x396xf32>, vector<108x396xf32>, vector<8x108xf32> -> vector<8x108xf32>
    "tpu.trace_stop"() : () -> ()
    %723 = vector.extract_strided_slice %620 {offsets = [0, 825], sizes = [25, 264], strides = [1, 1]} : vector<25x1089xf32> to vector<25x264xf32>
    %724 = vector.extract_strided_slice %619 {offsets = [0, 125], sizes = [16, 25], strides = [1, 1]} : vector<16x150xf32> to vector<16x25xf32>
    %cst_335 = arith.constant dense<0.000000e+00> : vector<16x264xf32>
    %725 = tpu.matmul %724, %723, %cst_335 {dimension_numbers = #tpu.dot_dimension_numbers<[1], [0], [0], [1], [0, 0, 1, 1], [], []>} : vector<16x25xf32>, vector<25x264xf32>, vector<16x264xf32> -> vector<16x264xf32>
    %726 = vector.extract_strided_slice %593 {offsets = [0, 165], sizes = [9, 33], strides = [1, 1]} : vector<9x198xf32> to vector<9x33xf32>
    %727 = tpu.concatenate %726, %621, %621, %621, %621, %621, %621, %621 in 1 : vector<9x33xf32>, vector<9x33xf32>, vector<9x33xf32>, vector<9x33xf32>, vector<9x33xf32>, vector<9x33xf32>, vector<9x33xf32>, vector<9x33xf32> -> vector<9x264xf32>
    %728 = tpu.concatenate %621, %726, %621, %621, %621, %621, %621, %621 in 1 : vector<9x33xf32>, vector<9x33xf32>, vector<9x33xf32>, vector<9x33xf32>, vector<9x33xf32>, vector<9x33xf32>, vector<9x33xf32>, vector<9x33xf32> -> vector<9x264xf32>
    %729 = tpu.concatenate %621, %621, %726, %621, %621, %621, %621, %621 in 1 : vector<9x33xf32>, vector<9x33xf32>, vector<9x33xf32>, vector<9x33xf32>, vector<9x33xf32>, vector<9x33xf32>, vector<9x33xf32>, vector<9x33xf32> -> vector<9x264xf32>
    %730 = tpu.concatenate %621, %621, %621, %726, %621, %621, %621, %621 in 1 : vector<9x33xf32>, vector<9x33xf32>, vector<9x33xf32>, vector<9x33xf32>, vector<9x33xf32>, vector<9x33xf32>, vector<9x33xf32>, vector<9x33xf32> -> vector<9x264xf32>
    %731 = tpu.concatenate %621, %621, %621, %621, %726, %621, %621, %621 in 1 : vector<9x33xf32>, vector<9x33xf32>, vector<9x33xf32>, vector<9x33xf32>, vector<9x33xf32>, vector<9x33xf32>, vector<9x33xf32>, vector<9x33xf32> -> vector<9x264xf32>
    %732 = tpu.concatenate %621, %621, %621, %621, %621, %726, %621, %621 in 1 : vector<9x33xf32>, vector<9x33xf32>, vector<9x33xf32>, vector<9x33xf32>, vector<9x33xf32>, vector<9x33xf32>, vector<9x33xf32>, vector<9x33xf32> -> vector<9x264xf32>
    %733 = tpu.concatenate %621, %621, %621, %621, %621, %621, %726, %621 in 1 : vector<9x33xf32>, vector<9x33xf32>, vector<9x33xf32>, vector<9x33xf32>, vector<9x33xf32>, vector<9x33xf32>, vector<9x33xf32>, vector<9x33xf32> -> vector<9x264xf32>
    %734 = tpu.concatenate %621, %621, %621, %621, %621, %621, %621, %726 in 1 : vector<9x33xf32>, vector<9x33xf32>, vector<9x33xf32>, vector<9x33xf32>, vector<9x33xf32>, vector<9x33xf32>, vector<9x33xf32>, vector<9x33xf32> -> vector<9x264xf32>
    %735 = tpu.concatenate %727, %728, %729, %730, %731, %732, %733, %734 in 0 : vector<9x264xf32>, vector<9x264xf32>, vector<9x264xf32>, vector<9x264xf32>, vector<9x264xf32>, vector<9x264xf32>, vector<9x264xf32>, vector<9x264xf32> -> vector<72x264xf32>
    %736 = vector.extract_strided_slice %725 {offsets = [0, 0], sizes = [8, 264], strides = [1, 1]} : vector<16x264xf32> to vector<8x264xf32>
    "tpu.trace_start"() <{level = 10 : i32, message = "tj,ej->te"}> : () -> ()
    %cst_336 = arith.constant dense<0.000000e+00> : vector<8x72xf32>
    %737 = tpu.matmul %736, %735, %cst_336 {dimension_numbers = #tpu.dot_dimension_numbers<[1], [1], [0], [0], [0, 0, 1, 0], [], []>} : vector<8x264xf32>, vector<72x264xf32>, vector<8x72xf32> -> vector<8x72xf32>
    "tpu.trace_stop"() : () -> ()
    %738 = vector.extract_strided_slice %605 {offsets = [0, 165], sizes = [9, 33], strides = [1, 1]} : vector<9x198xf32> to vector<9x33xf32>
    %739 = tpu.concatenate %738, %621, %621, %621, %621, %621, %621, %621 in 1 : vector<9x33xf32>, vector<9x33xf32>, vector<9x33xf32>, vector<9x33xf32>, vector<9x33xf32>, vector<9x33xf32>, vector<9x33xf32>, vector<9x33xf32> -> vector<9x264xf32>
    %740 = tpu.concatenate %621, %738, %621, %621, %621, %621, %621, %621 in 1 : vector<9x33xf32>, vector<9x33xf32>, vector<9x33xf32>, vector<9x33xf32>, vector<9x33xf32>, vector<9x33xf32>, vector<9x33xf32>, vector<9x33xf32> -> vector<9x264xf32>
    %741 = tpu.concatenate %621, %621, %738, %621, %621, %621, %621, %621 in 1 : vector<9x33xf32>, vector<9x33xf32>, vector<9x33xf32>, vector<9x33xf32>, vector<9x33xf32>, vector<9x33xf32>, vector<9x33xf32>, vector<9x33xf32> -> vector<9x264xf32>
    %742 = tpu.concatenate %621, %621, %621, %738, %621, %621, %621, %621 in 1 : vector<9x33xf32>, vector<9x33xf32>, vector<9x33xf32>, vector<9x33xf32>, vector<9x33xf32>, vector<9x33xf32>, vector<9x33xf32>, vector<9x33xf32> -> vector<9x264xf32>
    %743 = tpu.concatenate %621, %621, %621, %621, %738, %621, %621, %621 in 1 : vector<9x33xf32>, vector<9x33xf32>, vector<9x33xf32>, vector<9x33xf32>, vector<9x33xf32>, vector<9x33xf32>, vector<9x33xf32>, vector<9x33xf32> -> vector<9x264xf32>
    %744 = tpu.concatenate %621, %621, %621, %621, %621, %738, %621, %621 in 1 : vector<9x33xf32>, vector<9x33xf32>, vector<9x33xf32>, vector<9x33xf32>, vector<9x33xf32>, vector<9x33xf32>, vector<9x33xf32>, vector<9x33xf32> -> vector<9x264xf32>
    %745 = tpu.concatenate %621, %621, %621, %621, %621, %621, %738, %621 in 1 : vector<9x33xf32>, vector<9x33xf32>, vector<9x33xf32>, vector<9x33xf32>, vector<9x33xf32>, vector<9x33xf32>, vector<9x33xf32>, vector<9x33xf32> -> vector<9x264xf32>
    %746 = tpu.concatenate %621, %621, %621, %621, %621, %621, %621, %738 in 1 : vector<9x33xf32>, vector<9x33xf32>, vector<9x33xf32>, vector<9x33xf32>, vector<9x33xf32>, vector<9x33xf32>, vector<9x33xf32>, vector<9x33xf32> -> vector<9x264xf32>
    %747 = tpu.concatenate %739, %740, %741, %742, %743, %744, %745, %746 in 0 : vector<9x264xf32>, vector<9x264xf32>, vector<9x264xf32>, vector<9x264xf32>, vector<9x264xf32>, vector<9x264xf32>, vector<9x264xf32>, vector<9x264xf32> -> vector<72x264xf32>
    %748 = vector.extract_strided_slice %725 {offsets = [8, 0], sizes = [8, 264], strides = [1, 1]} : vector<16x264xf32> to vector<8x264xf32>
    "tpu.trace_start"() <{level = 10 : i32, message = "tj,ej->te"}> : () -> ()
    %cst_337 = arith.constant dense<0.000000e+00> : vector<8x72xf32>
    %749 = tpu.matmul %748, %747, %cst_337 {dimension_numbers = #tpu.dot_dimension_numbers<[1], [1], [0], [0], [0, 0, 1, 0], [], []>} : vector<8x264xf32>, vector<72x264xf32>, vector<8x72xf32> -> vector<8x72xf32>
    "tpu.trace_stop"() : () -> ()
    %750 = tpu.concatenate %627, %642, %661, %679, %706, %737 in 1 : vector<8x9xf32>, vector<8x45xf32>, vector<8x27xf32>, vector<8x36xf32>, vector<8x108xf32>, vector<8x72xf32> -> vector<8x297xf32>
    %751 = tpu.concatenate %630, %651, %668, %687, %722, %749 in 1 : vector<8x9xf32>, vector<8x45xf32>, vector<8x27xf32>, vector<8x36xf32>, vector<8x108xf32>, vector<8x72xf32> -> vector<8x297xf32>
    %752 = tpu.concatenate %750, %751 in 0 : vector<8x297xf32>, vector<8x297xf32> -> vector<16x297xf32>
    %c0_338 = arith.constant 0 : index
    %c0_339 = arith.constant 0 : index
    %753 = vector.load %arg5[%c0_338, %c0_339] : memref<16x297xf32, #tpu.memory_space<vmem>>, vector<16x297xf32>
    %754 = arith.addf %752, %753 : vector<16x297xf32>
    %c0_340 = arith.constant 0 : index
    %c0_341 = arith.constant 0 : index
    %755 = vector.load %arg21[%c0_340, %c0_341] : memref<16x297xf32, #tpu.memory_space<vmem>>, vector<16x297xf32>
    tpu.vector_store %arg21[%c0_340, %c0_341], %754 {strides = array<i32>} : memref<16x297xf32, #tpu.memory_space<vmem>>, vector<16x297xf32>,
    return
  }
}

</mosaic_0001>

<llo_original>
// kernel: tiger_forward.1
$region0: #{tiger_forward.1}
  #allocation0 [shape = 'u32[]', space=smem, size = 0x4, offset = 0x4, fixed_abs, tag = 'smem constant byte address 0x4 - core index']
  #allocation1 [shape = 'u32[144,128]{1,0:T(1,128)}', space=vmem, size = 0x12000, scoped, tag = 'internal scratch']
  #allocation2 [shape = 'f32[32,256]{1,0:T(8,128)}', space=vmem, size = 0x8000, scoped, tag = 'scratch operand']
  #allocation3 [shape = 'f32[18,64]{1,0:T(8,128)}', space=vmem, size = 0x3000, scoped, tag = 'scratch operand']
  #allocation4 [shape = 'f32[16,64]{1,0:T(8,128)}', space=vmem, size = 0x2000, scoped, tag = 'scratch operand']
  #allocation5 [shape = 'f32[16,128]{1,0:T(8,128)}', space=vmem, size = 0x2000, scoped, tag = 'scratch operand']
  #allocation6 [shape = 'f32[16,32]{1,0:T(8,128)}', space=vmem, size = 0x2000, scoped, tag = 'scratch operand']
  %s0 = inlined_call_operand.vmem [shape: f32[32,32], index: 0, kind: input, shape index: {}]
  %s1 = inlined_call_operand.vmem [shape: f32[20,32], index: 1, kind: input, shape index: {}]
  %s2 = inlined_call_operand.vmem [shape: f32[32,20], index: 2, kind: input, shape index: {}]
  %s3 = inlined_call_operand.vmem [shape: f32[32,64], index: 3, kind: input, shape index: {}]
  %s4 = inlined_call_operand.vmem [shape: f32[16,32], index: 4, kind: input, shape index: {}]
  %s5 = inlined_call_operand.vmem [shape: f32[16,297], index: 5, kind: input, shape index: {}]
  %s6 = inlined_call_operand.vmem [shape: f32[64,256], index: 6, kind: input, shape index: {}]
  %s7 = inlined_call_operand.vmem [shape: f32[1,256], index: 7, kind: input, shape index: {}]
  %s8 = inlined_call_operand.vmem [shape: f32[64,256], index: 8, kind: input, shape index: {}]
  %s9 = inlined_call_operand.vmem [shape: f32[4,64], index: 9, kind: input, shape index: {}]
  %s10 = inlined_call_operand.vmem [shape: f32[4,64], index: 10, kind: input, shape index: {}]
  %s11 = inlined_call_operand.vmem [shape: f32[64,32], index: 11, kind: input, shape index: {}]
  %s12 = inlined_call_operand.vmem [shape: f32[1,32], index: 12, kind: input, shape index: {}]
  %s13 = inlined_call_operand.vmem [shape: f32[64,128], index: 13, kind: input, shape index: {}]
  %s14 = inlined_call_operand.vmem [shape: f32[1,128], index: 14, kind: input, shape index: {}]
  %s15 = inlined_call_operand.vmem [shape: f32[32,128], index: 15, kind: input, shape index: {}]
  %s16 = inlined_call_operand.vmem [shape: f32[64,198], index: 16, kind: input, shape index: {}]
  %s17 = inlined_call_operand.vmem [shape: f32[1,198], index: 17, kind: input, shape index: {}]
  %s18 = inlined_call_operand.vmem [shape: f32[32,150], index: 18, kind: input, shape index: {}]
  %s19 = inlined_call_operand.vmem [shape: f32[1,150], index: 19, kind: input, shape index: {}]
  %s20 = inlined_call_operand.vmem [shape: f32[25,1089], index: 20, kind: input, shape index: {}]
  %s21 = inlined_call_operand.vmem [shape: f32[16,297], index: 21, kind: output, shape index: {}]
  %s22 = sld [smem:[#allocation0]]
  $region94: #{tiger_forward.1} parent=0
    _
  %s24 = ssub.s32 1, %s22
  %s25 = scalar_select 0, %s24, %s22
  // Predicated region
  $region2: #{tiger_forward.1} parent=0 // pred_check
    _
  $region3: #{tiger_forward.1} parent=0 // pred_check_branch
    %27 = sbr.rel (0) target = $region5
  $region4: #{tiger_forward.1} parent=0 // pred_region
    _
  $region5: #{tiger_forward.1} parent=0 // pred_fallthru
    _
  // Predicated region
  $region6: #{tiger_forward.1} parent=0 // pred_check
    _
  $region7: #{tiger_forward.1} parent=0 // pred_check_branch
    %29 = sbr.rel (0) target = $region9
  $region8: #{tiger_forward.1} parent=0 // pred_region
    _
  $region9: #{tiger_forward.1} parent=0 // pred_fallthru
    _
  // Predicated region
  $region10: #{tiger_forward.1} parent=0 // pred_check
    _
  $region11: #{tiger_forward.1} parent=0 // pred_check_branch
    %31 = sbr.rel (0) target = $region13
  $region12: #{tiger_forward.1} parent=0 // pred_region
    _
  $region13: #{tiger_forward.1} parent=0 // pred_fallthru
    _
  // Predicated region
  $region14: #{tiger_forward.1} parent=0 // pred_check
    _
  $region15: #{tiger_forward.1} parent=0 // pred_check_branch
    %33 = sbr.rel (0) target = $region17
  $region16: #{tiger_forward.1} parent=0 // pred_region
    _
  $region17: #{tiger_forward.1} parent=0 // pred_fallthru
    _
  // Predicated region
  $region18: #{tiger_forward.1} parent=0 // pred_check
    _
  $region19: #{tiger_forward.1} parent=0 // pred_check_branch
    %35 = sbr.rel (0) target = $region21
  $region20: #{tiger_forward.1} parent=0 // pred_region
    _
  $region21: #{tiger_forward.1} parent=0 // pred_fallthru
    _
  // Predicated region
  $region22: #{tiger_forward.1} parent=0 // pred_check
    _
  $region23: #{tiger_forward.1} parent=0 // pred_check_branch
    %37 = sbr.rel (0) target = $region25
  $region24: #{tiger_forward.1} parent=0 // pred_region
    _
  $region25: #{tiger_forward.1} parent=0 // pred_fallthru
    _
  // Predicated region
  $region26: #{tiger_forward.1} parent=0 // pred_check
    _
  $region27: #{tiger_forward.1} parent=0 // pred_check_branch
    %39 = sbr.rel (0) target = $region29
  $region28: #{tiger_forward.1} parent=0 // pred_region
    _
  $region29: #{tiger_forward.1} parent=0 // pred_fallthru
    _
  // Predicated region
  $region30: #{tiger_forward.1} parent=0 // pred_check
    _
  $region31: #{tiger_forward.1} parent=0 // pred_check_branch
    %41 = sbr.rel (0) target = $region33
  $region32: #{tiger_forward.1} parent=0 // pred_region
    _
  $region33: #{tiger_forward.1} parent=0 // pred_fallthru
    _
  // Predicated region
  $region34: #{tiger_forward.1} parent=0 // pred_check
    _
  $region35: #{tiger_forward.1} parent=0 // pred_check_branch
    %43 = sbr.rel (0) target = $region37
  $region36: #{tiger_forward.1} parent=0 // pred_region
    _
  $region37: #{tiger_forward.1} parent=0 // pred_fallthru
    _
  // Predicated region
  $region38: #{tiger_forward.1} parent=0 // pred_check
    _
  $region39: #{tiger_forward.1} parent=0 // pred_check_branch
    %45 = sbr.rel (0) target = $region41
  $region40: #{tiger_forward.1} parent=0 // pred_region
    _
  $region41: #{tiger_forward.1} parent=0 // pred_fallthru
    _
  // Predicated region
  $region42: #{tiger_forward.1} parent=0 // pred_check
    _
  $region43: #{tiger_forward.1} parent=0 // pred_check_branch
    %47 = sbr.rel (0) target = $region45
  $region44: #{tiger_forward.1} parent=0 // pred_region
    _
  $region45: #{tiger_forward.1} parent=0 // pred_fallthru
    _
  // Predicated region
  $region46: #{tiger_forward.1} parent=0 // pred_check
    _
  $region47: #{tiger_forward.1} parent=0 // pred_check_branch
    %49 = sbr.rel (0) target = $region49
  $region48: #{tiger_forward.1} parent=0 // pred_region
    _
  $region49: #{tiger_forward.1} parent=0 // pred_fallthru
    _
  // Predicated region
  $region50: #{tiger_forward.1} parent=0 // pred_check
    _
  $region51: #{tiger_forward.1} parent=0 // pred_check_branch
    %51 = sbr.rel (0) target = $region53
  $region52: #{tiger_forward.1} parent=0 // pred_region
    _
  $region53: #{tiger_forward.1} parent=0 // pred_fallthru
    _
  // Predicated region
  $region54: #{tiger_forward.1} parent=0 // pred_check
    _
  $region55: #{tiger_forward.1} parent=0 // pred_check_branch
    %53 = sbr.rel (0) target = $region57
  $region56: #{tiger_forward.1} parent=0 // pred_region
    _
  $region57: #{tiger_forward.1} parent=0 // pred_fallthru
    _
  // Predicated region
  $region58: #{tiger_forward.1} parent=0 // pred_check
    _
  $region59: #{tiger_forward.1} parent=0 // pred_check_branch
    %55 = sbr.rel (0) target = $region61
  $region60: #{tiger_forward.1} parent=0 // pred_region
    _
  $region61: #{tiger_forward.1} parent=0 // pred_fallthru
    _
  // Predicated region
  $region62: #{tiger_forward.1} parent=0 // pred_check
    _
  $region63: #{tiger_forward.1} parent=0 // pred_check_branch
    %57 = sbr.rel (0) target = $region65
  $region64: #{tiger_forward.1} parent=0 // pred_region
    _
  $region65: #{tiger_forward.1} parent=0 // pred_fallthru
    _
  // Predicated region
  $region66: #{tiger_forward.1} parent=0 // pred_check
    _
  $region67: #{tiger_forward.1} parent=0 // pred_check_branch
    %59 = sbr.rel (0) target = $region69
  $region68: #{tiger_forward.1} parent=0 // pred_region
    _
  $region69: #{tiger_forward.1} parent=0 // pred_fallthru
    _
  // Predicated region
  $region70: #{tiger_forward.1} parent=0 // pred_check
    _
  $region71: #{tiger_forward.1} parent=0 // pred_check_branch
    %61 = sbr.rel (0) target = $region73
  $region72: #{tiger_forward.1} parent=0 // pred_region
    _
  $region73: #{tiger_forward.1} parent=0 // pred_fallthru
    _
  // Predicated region
  $region74: #{tiger_forward.1} parent=0 // pred_check
    _
  $region75: #{tiger_forward.1} parent=0 // pred_check_branch
    %63 = sbr.rel (0) target = $region77
  $region76: #{tiger_forward.1} parent=0 // pred_region
    _
  $region77: #{tiger_forward.1} parent=0 // pred_fallthru
    _
  // Predicated region
  $region78: #{tiger_forward.1} parent=0 // pred_check
    _
  $region79: #{tiger_forward.1} parent=0 // pred_check_branch
    %65 = sbr.rel (0) target = $region81
  $region80: #{tiger_forward.1} parent=0 // pred_region
    _
  $region81: #{tiger_forward.1} parent=0 // pred_fallthru
    _
  // Predicated region
  $region82: #{tiger_forward.1} parent=0 // pred_check
    _
  $region83: #{tiger_forward.1} parent=0 // pred_check_branch
    %67 = sbr.rel (0) target = $region85
  $region84: #{tiger_forward.1} parent=0 // pred_region
    _
  $region85: #{tiger_forward.1} parent=0 // pred_fallthru
    _
  %v68 = vld [vmem:[%s6] sm:$0xff]
  %v69 = vld [vmem:[%s6 + $0x8] sm:$0xff]
  %v70 = vld [vmem:[%s6 + $0x10] sm:$0xff]
  %v71 = vld [vmem:[%s6 + $0x18] sm:$0xff]
  %v72 = vld [vmem:[%s6 + $0x20] sm:$0xff]
  %v73 = vld [vmem:[%s6 + $0x28] sm:$0xff]
  %v74 = vld [vmem:[%s6 + $0x30] sm:$0xff]
  %v75 = vld [vmem:[%s6 + $0x38] sm:$0xff]
  %v76 = vld [vmem:[%s6 + $0x40] sm:$0xff]
  %v77 = vld [vmem:[%s6 + $0x48] sm:$0xff]
  %v78 = vld [vmem:[%s6 + $0x50] sm:$0xff]
  %v79 = vld [vmem:[%s6 + $0x58] sm:$0xff]
  %v80 = vld [vmem:[%s6 + $0x60] sm:$0xff]
  %v81 = vld [vmem:[%s6 + $0x68] sm:$0xff]
  %v82 = vld [vmem:[%s6 + $0x70] sm:$0xff]
  %v83 = vld [vmem:[%s6 + $0x78] sm:$0xff]
  %v84 = vld [vmem:[%s1] sm:$0xff]
  %v85 = vld [vmem:[%s1 + $0x8] sm:$0xff]
  %v86 = vld [vmem:[%s1 + $0x10] sm:$0xf]
  %vm87 = vcmask 261120
  %v89 = vsel %vm87, %v84, 0
  %v92 = vsel %vm87, %v85, 0
  %v95 = vsel %vm87, %v86, 0
  %97 = vmatprep.subr.mxu0 %v77
  %98 = vmatpush1.msra.mxu0 %v76
  %99 = vmatprep.subr.mxu0 %v79
  %100 = vmatpush1.msra.mxu0 %v78
  %101 = vmatprep.subr.mxu0 %v81
  %102 = vmatpush1.msra.mxu0 %v80
  %103 = vmatprep.subr.mxu0 %v83
  %104 = vmatpush1.msra.mxu0 %v82
  %105 = vmatprep.subr.mxu0 0.0
  %106 = vmatpush1.msra.mxu0 0.0
  %107 = vmatprep.subr.mxu0 0.0
  %108 = vmatpush1.msra.mxu0 0.0
  %109 = vmatprep.subr.mxu0 0.0
  %110 = vmatpush1.msra.mxu0 0.0
  %111 = vmatprep.subr.mxu0 0.0
  %112 = vmatpush1.msra.mxu0 0.0
  %113 = vmatprep.subr.mxu0 0.0
  %114 = vmatpush1.msra.mxu0 0.0
  %115 = vmatprep.subr.mxu0 0.0
  %116 = vmatpush1.msra.mxu0 0.0
  %117 = vmatprep.subr.mxu0 0.0
  %118 = vmatpush1.msra.mxu0 0.0
  %119 = vmatprep.subr.mxu0 0.0
  %120 = vmatpush1.msra.mxu0 0.0
  %121 = vmatprep.subr.mxu0 0.0
  %122 = vmatpush1.msra.mxu0 0.0
  %123 = vmatprep.subr.mxu0 0.0
  %124 = vmatpush1.msra.mxu0 0.0
  %125 = vmatprep.subr.mxu0 0.0
  %126 = vmatpush1.msra.mxu0 0.0
  %127 = vmatprep.subr.mxu0 0.0
  %128 = vmatpush1.msra.mxu0 0.0
  %129 = vmatprep.subr.mxu0 0.0
  %130 = vmatpush1.msra.mxu0 0.0
  %131 = vmatprep.subr.mxu0 0.0
  %132 = vmatpush1.msra.mxu0 0.0
  %133 = vmatprep.subr.mxu0 0.0
  %134 = vmatpush1.msra.mxu0 0.0
  %135 = vmatprep.subr.mxu0 0.0
  %136 = vmatpush1.msra.mxu0 0.0
  %137 = vmatprep.subr.mxu0 0.0
  %138 = vmatpush1.msra.mxu0 0.0
  %139 = vmatprep.subr.mxu0 0.0
  %140 = vmatpush1.msra.mxu0 0.0
  %141 = vmatprep.subr.mxu0 0.0
  %142 = vmatpush1.msra.mxu0 0.0
  %143 = vmatprep.subr.mxu0 0.0
  %144 = vmatpush1.msra.mxu0 0.0
  %145 = vmatprep.subr.mxu0 0.0
  %146 = vmatpush1.msra.mxu0 0.0
  %147 = vmatprep.subr.mxu0 0.0
  %148 = vmatpush1.msra.mxu0 0.0
  %149 = vmatprep.subr.mxu0 0.0
  %150 = vmatpush1.msra.mxu0 0.0
  %151 = vmatprep.subr.mxu0 0.0
  %152 = vmatpush1.msra.mxu0 0.0
  %153 = vmatprep.subr.mxu0 0.0
  %154 = vmatpush1.msra.mxu0 0.0
  %155 = vmatprep.subr.mxu0 0.0
  %156 = vmatpush1.msra.mxu0 0.0
  %157 = vmatprep.subr.mxu0 0.0
  %158 = vmatpush1.msra.mxu0 0.0
  %159 = vmatprep.subr.mxu0 0.0
  %160 = vmatpush1.msra.mxu0 0.0
  %161 = vmatprep.mubr.f32.mxu0 0.0
  %162 = vmatmul.mubr.f32.gmra.mrb[0].mxu0 %v89
  %v163 = vpop.f32.mrb[0].mxu0
  %v164 = vadd.f32 0.0, %v163
  %v165 = vpop.f32.mrb[0].mxu0
  %v166 = vadd.f32 0.0, %v165
  %167 = vmatprep.mubr.f32.mxu0 0.0
  %168 = vmatmul.mubr.f32.gmra.mrb[0].mxu0 %v92
  %v169 = vpop.f32.mrb[0].mxu0
  %v170 = vadd.f32 0.0, %v169
  %v171 = vpop.f32.mrb[0].mxu0
  %v172 = vadd.f32 0.0, %v171
  %173 = vmatprep.mubr.f32.mxu0 0.0
  %174 = vmatmul.mubr.f32.gmra.mrb[0].mxu0 %v95
  %v175 = vpop.f32.mrb[0].mxu0
  %v176 = vadd.f32 0.0, %v175
  %v177 = vpop.f32.mrb[0].mxu0
  %v178 = vadd.f32 0.0, %v177
  %179 = vdwg.mxu0
  %v180 = vld [vmem:[%s0] sm:$0xff]
  %v181 = vld [vmem:[%s0 + $0x8] sm:$0xff]
  %v182 = vld [vmem:[%s0 + $0x10] sm:$0xff]
  %v183 = vld [vmem:[%s0 + $0x18] sm:$0xff]
  %v184 = vld [vmem:[%s2] sm:$0xff]
  %v185 = vld [vmem:[%s2 + $0x8] sm:$0xff]
  %v186 = vld [vmem:[%s2 + $0x10] sm:$0xff]
  %v187 = vld [vmem:[%s2 + $0x18] sm:$0xff]
  %vm188 = vcmask 162816
  %v190 = vsel %vm188, %v184, 0
  %v193 = vsel %vm188, %v185, 0
  %v196 = vsel %vm188, %v186, 0
  %v199 = vsel %vm188, %v187, 0
  %vm201 = vcmask 1043456
  %v203 = vsel %vm201, %v176, 0
  %v206 = vsel %vm201, %v178, 0
  %208 = vmatprep.subr.mxu0 %v166
  %209 = vmatpush1.msra.mxu0 %v164
  %210 = vmatprep.subr.mxu0 %v172
  %211 = vmatpush1.msra.mxu0 %v170
  %212 = vmatprep.subr.mxu0 %v206
  %213 = vmatpush1.msra.mxu0 %v203
  %214 = vmatprep.subr.mxu0 0.0
  %215 = vmatpush1.msra.mxu0 0.0
  %216 = vmatprep.subr.mxu0 0.0
  %217 = vmatpush1.msra.mxu0 0.0
  %218 = vmatprep.subr.mxu0 0.0
  %219 = vmatpush1.msra.mxu0 0.0
  %220 = vmatprep.subr.mxu0 0.0
  %221 = vmatpush1.msra.mxu0 0.0
  %222 = vmatprep.subr.mxu0 0.0
  %223 = vmatpush1.msra.mxu0 0.0
  %224 = vmatprep.subr.mxu0 0.0
  %225 = vmatpush1.msra.mxu0 0.0
  %226 = vmatprep.subr.mxu0 0.0
  %227 = vmatpush1.msra.mxu0 0.0
  %228 = vmatprep.subr.mxu0 0.0
  %229 = vmatpush1.msra.mxu0 0.0
  %230 = vmatprep.subr.mxu0 0.0
  %231 = vmatpush1.msra.mxu0 0.0
  %232 = vmatprep.subr.mxu0 0.0
  %233 = vmatpush1.msra.mxu0 0.0
  %234 = vmatprep.subr.mxu0 0.0
  %235 = vmatpush1.msra.mxu0 0.0
  %236 = vmatprep.subr.mxu0 0.0
  %237 = vmatpush1.msra.mxu0 0.0
  %238 = vmatprep.subr.mxu0 0.0
  %239 = vmatpush1.msra.mxu0 0.0
  %240 = vmatprep.subr.mxu0 0.0
  %241 = vmatpush1.msra.mxu0 0.0
  %242 = vmatprep.subr.mxu0 0.0
  %243 = vmatpush1.msra.mxu0 0.0
  %244 = vmatprep.subr.mxu0 0.0
  %245 = vmatpush1.msra.mxu0 0.0
  %246 = vmatprep.subr.mxu0 0.0
  %247 = vmatpush1.msra.mxu0 0.0
  %248 = vmatprep.subr.mxu0 0.0
  %249 = vmatpush1.msra.mxu0 0.0
  %250 = vmatprep.subr.mxu0 0.0
  %251 = vmatpush1.msra.mxu0 0.0
  %252 = vmatprep.subr.mxu0 0.0
  %253 = vmatpush1.msra.mxu0 0.0
  %254 = vmatprep.subr.mxu0 0.0
  %255 = vmatpush1.msra.mxu0 0.0
  %256 = vmatprep.subr.mxu0 0.0
  %257 = vmatpush1.msra.mxu0 0.0
  %258 = vmatprep.subr.mxu0 0.0
  %259 = vmatpush1.msra.mxu0 0.0
  %260 = vmatprep.subr.mxu0 0.0
  %261 = vmatpush1.msra.mxu0 0.0
  %262 = vmatprep.subr.mxu0 0.0
  %263 = vmatpush1.msra.mxu0 0.0
  %264 = vmatprep.subr.mxu0 0.0
  %265 = vmatpush1.msra.mxu0 0.0
  %266 = vmatprep.subr.mxu0 0.0
  %267 = vmatpush1.msra.mxu0 0.0
  %268 = vmatprep.subr.mxu0 0.0
  %269 = vmatpush1.msra.mxu0 0.0
  %270 = vmatprep.subr.mxu0 0.0
  %271 = vmatpush1.msra.mxu0 0.0
  %272 = vmatprep.mubr.f32.mxu0 0.0
  %273 = vmatmul.mubr.f32.gmra.mrb[0].mxu0 %v190
  %v274 = vpop.f32.mrb[0].mxu0
  %v275 = vadd.f32 0.0, %v274
  %v276 = vpop.f32.mrb[0].mxu0
  %v277 = vadd.f32 0.0, %v276
  %278 = vmatprep.mubr.f32.mxu0 0.0
  %279 = vmatmul.mubr.f32.gmra.mrb[0].mxu0 %v193
  %v280 = vpop.f32.mrb[0].mxu0
  %v281 = vadd.f32 0.0, %v280
  %v282 = vpop.f32.mrb[0].mxu0
  %v283 = vadd.f32 0.0, %v282
  %284 = vmatprep.mubr.f32.mxu0 0.0
  %285 = vmatmul.mubr.f32.gmra.mrb[0].mxu0 %v196
  %v286 = vpop.f32.mrb[0].mxu0
  %v287 = vadd.f32 0.0, %v286
  %v288 = vpop.f32.mrb[0].mxu0
  %v289 = vadd.f32 0.0, %v288
  %290 = vmatprep.mubr.f32.mxu0 0.0
  %291 = vmatmul.mubr.f32.gmra.mrb[0].mxu0 %v199
  %v292 = vpop.f32.mrb[0].mxu0
  %v293 = vadd.f32 0.0, %v292
  %v294 = vpop.f32.mrb[0].mxu0
  %v295 = vadd.f32 0.0, %v294
  %296 = vdwg.mxu0
  %v298 = vsel %vm87, %v180, 0
  %v301 = vsel %vm87, %v181, 0
  %v304 = vsel %vm87, %v182, 0
  %v307 = vsel %vm87, %v183, 0
  %309 = vmatprep.subr.mxu0 %v69
  %310 = vmatpush1.msra.mxu0 %v68
  %311 = vmatprep.subr.mxu0 %v71
  %312 = vmatpush1.msra.mxu0 %v70
  %313 = vmatprep.subr.mxu0 %v73
  %314 = vmatpush1.msra.mxu0 %v72
  %315 = vmatprep.subr.mxu0 %v75
  %316 = vmatpush1.msra.mxu0 %v74
  %317 = vmatprep.subr.mxu0 0.0
  %318 = vmatpush1.msra.mxu0 0.0
  %319 = vmatprep.subr.mxu0 0.0
  %320 = vmatpush1.msra.mxu0 0.0
  %321 = vmatprep.subr.mxu0 0.0
  %322 = vmatpush1.msra.mxu0 0.0
  %323 = vmatprep.subr.mxu0 0.0
  %324 = vmatpush1.msra.mxu0 0.0
  %325 = vmatprep.subr.mxu0 0.0
  %326 = vmatpush1.msra.mxu0 0.0
  %327 = vmatprep.subr.mxu0 0.0
  %328 = vmatpush1.msra.mxu0 0.0
  %329 = vmatprep.subr.mxu0 0.0
  %330 = vmatpush1.msra.mxu0 0.0
  %331 = vmatprep.subr.mxu0 0.0
  %332 = vmatpush1.msra.mxu0 0.0
  %333 = vmatprep.subr.mxu0 0.0
  %334 = vmatpush1.msra.mxu0 0.0
  %335 = vmatprep.subr.mxu0 0.0
  %336 = vmatpush1.msra.mxu0 0.0
  %337 = vmatprep.subr.mxu0 0.0
  %338 = vmatpush1.msra.mxu0 0.0
  %339 = vmatprep.subr.mxu0 0.0
  %340 = vmatpush1.msra.mxu0 0.0
  %341 = vmatprep.subr.mxu0 0.0
  %342 = vmatpush1.msra.mxu0 0.0
  %343 = vmatprep.subr.mxu0 0.0
  %344 = vmatpush1.msra.mxu0 0.0
  %345 = vmatprep.subr.mxu0 0.0
  %346 = vmatpush1.msra.mxu0 0.0
  %347 = vmatprep.subr.mxu0 0.0
  %348 = vmatpush1.msra.mxu0 0.0
  %349 = vmatprep.subr.mxu0 0.0
  %350 = vmatpush1.msra.mxu0 0.0
  %351 = vmatprep.subr.mxu0 0.0
  %352 = vmatpush1.msra.mxu0 0.0
  %353 = vmatprep.subr.mxu0 0.0
  %354 = vmatpush1.msra.mxu0 0.0
  %355 = vmatprep.subr.mxu0 0.0
  %356 = vmatpush1.msra.mxu0 0.0
  %357 = vmatprep.subr.mxu0 0.0
  %358 = vmatpush1.msra.mxu0 0.0
  %359 = vmatprep.subr.mxu0 0.0
  %360 = vmatpush1.msra.mxu0 0.0
  %361 = vmatprep.subr.mxu0 0.0
  %362 = vmatpush1.msra.mxu0 0.0
  %363 = vmatprep.subr.mxu0 0.0
  %364 = vmatpush1.msra.mxu0 0.0
  %365 = vmatprep.subr.mxu0 0.0
  %366 = vmatpush1.msra.mxu0 0.0
  %367 = vmatprep.subr.mxu0 0.0
  %368 = vmatpush1.msra.mxu0 0.0
  %369 = vmatprep.subr.mxu0 0.0
  %370 = vmatpush1.msra.mxu0 0.0
  %371 = vmatprep.subr.mxu0 0.0
  %372 = vmatpush1.msra.mxu0 0.0
  %373 = vmatprep.mubr.f32.mxu0 0.0
  %374 = vmatmul.mubr.f32.gmra.mrb[0].mxu0 %v298
  %v375 = vpop.f32.mrb[0].mxu0
  %v376 = vadd.f32 %v275, %v375
  %v377 = vpop.f32.mrb[0].mxu0
  %v378 = vadd.f32 %v277, %v377
  %379 = vmatprep.mubr.f32.mxu0 0.0
  %380 = vmatmul.mubr.f32.gmra.mrb[0].mxu0 %v301
  %v381 = vpop.f32.mrb[0].mxu0
  %v382 = vadd.f32 %v281, %v381
  %v383 = vpop.f32.mrb[0].mxu0
  %v384 = vadd.f32 %v283, %v383
  %385 = vmatprep.mubr.f32.mxu0 0.0
  %386 = vmatmul.mubr.f32.gmra.mrb[0].mxu0 %v304
  %v387 = vpop.f32.mrb[0].mxu0
  %v388 = vadd.f32 %v287, %v387
  %v389 = vpop.f32.mrb[0].mxu0
  %v390 = vadd.f32 %v289, %v389
  %391 = vmatprep.mubr.f32.mxu0 0.0
  %392 = vmatmul.mubr.f32.gmra.mrb[0].mxu0 %v307
  %v393 = vpop.f32.mrb[0].mxu0
  %v394 = vadd.f32 %v293, %v393
  %v395 = vpop.f32.mrb[0].mxu0
  %v396 = vadd.f32 %v295, %v395
  %397 = vdwg.mxu0
  %v398 = vld [vmem:[%s7] sm:$0x3]
  %v400 = vlaneseq
  %v401 = vshrl.u32 %v400, 7
  %v402 = vsub.s32 0, %v401
  %v403 = vrot.slane %v398, %v402
  %v404 = vlaneseq
  %v405 = vshrl.u32 %v404, 7
  %v406 = vsub.s32 1, %v405
  %v407 = vrot.slane %v398, %v406
  %v410 = vadd.f32 %v376, %v403
  %v411 = vadd.f32 %v378, %v407
  %v412 = vadd.f32 %v382, %v403
  %v413 = vadd.f32 %v384, %v407
  %v414 = vadd.f32 %v388, %v403
  %v415 = vadd.f32 %v390, %v407
  %v416 = vadd.f32 %v394, %v403
  %v417 = vadd.f32 %v396, %v407
  %418 = vst [vmem:[#allocation2] sm:$0xff] %v410
  %419 = vst [vmem:[#allocation2 + $0x8] sm:$0xff] %v411
  %420 = vst [vmem:[#allocation2 + $0x10] sm:$0xff] %v412
  %421 = vst [vmem:[#allocation2 + $0x18] sm:$0xff] %v413
  %422 = vst [vmem:[#allocation2 + $0x20] sm:$0xff] %v414
  %423 = vst [vmem:[#allocation2 + $0x28] sm:$0xff] %v415
  %424 = vst [vmem:[#allocation2 + $0x30] sm:$0xff] %v416
  %425 = vst [vmem:[#allocation2 + $0x38] sm:$0xff] %v417
  %v426 = vld [vmem:[%s9] sm:$0xf]
  %vm427 = vcmask 253952
  %428 = vst.msk [vmem:[#allocation3] sm:$0x1] %vm427, %v426
  %vm429 = vcmask 518402
  %430 = vst.msk [vmem:[#allocation3 - $0x2] sm:$0x4] %vm429, %v426
  %vm431 = vcmask 254977
  %432 = vst.msk [vmem:[#allocation3 + $0x8] sm:$0x2] %vm431, %v426
  %vm433 = vcmask 519427
  %434 = vst.msk [vmem:[#allocation3 + $0x6] sm:$0x8] %vm433, %v426
  %v435 = vld [vmem:[%s3] sm:$0xf]
  %vm436 = vcmp.ne.f32.partialorder %v435, 0.0
  %v437 = vld [vmem:[%s3 + $0x4] sm:$0xf]
  %vm438 = vcmp.ne.f32.partialorder %v437, 0.0
  %v439 = vld [vmem:[%s3 + $0x8] sm:$0xf]
  %vm440 = vcmp.ne.f32.partialorder %v439, 0.0
  %v441 = vld [vmem:[%s3 + $0xc] sm:$0xf]
  %vm442 = vcmp.ne.f32.partialorder %v441, 0.0
  %v443 = vld [vmem:[%s3 + $0x10] sm:$0xf]
  %vm444 = vcmp.ne.f32.partialorder %v443, 0.0
  %v445 = vld [vmem:[%s3 + $0x14] sm:$0xf]
  %vm446 = vcmp.ne.f32.partialorder %v445, 0.0
  %v447 = vld [vmem:[%s3 + $0x18] sm:$0xf]
  %vm448 = vcmp.ne.f32.partialorder %v447, 0.0
  %v449 = vld [vmem:[%s3 + $0x1c] sm:$0xf]
  %vm450 = vcmp.ne.f32.partialorder %v449, 0.0
  %v451 = vld [vmem:[%s4] sm:$0x3]
  %vm452 = vcmp.ne.f32.partialorder %v451, 0.0
  %v453 = vld [vmem:[%s4 + $0x2] sm:$0x3]
  %vm454 = vcmp.ne.f32.partialorder %v453, 0.0
  %v455 = vld [vmem:[%s4 + $0x4] sm:$0x3]
  %vm456 = vcmp.ne.f32.partialorder %v455, 0.0
  %v457 = vld [vmem:[%s4 + $0x6] sm:$0x3]
  %vm458 = vcmp.ne.f32.partialorder %v457, 0.0
  %v459 = vld [vmem:[%s4 + $0x8] sm:$0x3]
  %vm460 = vcmp.ne.f32.partialorder %v459, 0.0
  %v461 = vld [vmem:[%s4 + $0xa] sm:$0x3]
  %vm462 = vcmp.ne.f32.partialorder %v461, 0.0
  %v463 = vld [vmem:[%s4 + $0xc] sm:$0x3]
  %vm464 = vcmp.ne.f32.partialorder %v463, 0.0
  %v465 = vld [vmem:[%s8] sm:$0xff]
  %v466 = vld [vmem:[%s8 + $0x8] sm:$0xff]
  %v467 = vld [vmem:[%s8 + $0x10] sm:$0xff]
  %v468 = vld [vmem:[%s8 + $0x18] sm:$0xff]
  %v469 = vld [vmem:[%s8 + $0x20] sm:$0xff]
  %v470 = vld [vmem:[%s8 + $0x28] sm:$0xff]
  %v471 = vld [vmem:[%s8 + $0x30] sm:$0xff]
  %v472 = vld [vmem:[%s8 + $0x38] sm:$0xff]
  %v473 = vld [vmem:[%s8 + $0x40] sm:$0xff]
  %v474 = vld [vmem:[%s8 + $0x48] sm:$0xff]
  %v475 = vld [vmem:[%s8 + $0x50] sm:$0xff]
  %v476 = vld [vmem:[%s8 + $0x58] sm:$0xff]
  %v477 = vld [vmem:[%s8 + $0x60] sm:$0xff]
  %v478 = vld [vmem:[%s8 + $0x68] sm:$0xff]
  %v479 = vld [vmem:[%s8 + $0x70] sm:$0xff]
  %v480 = vld [vmem:[%s8 + $0x78] sm:$0xff]
  %v481 = vld [vmem:[%s10] sm:$0xf]
  %v482 = vld [vmem:[#allocation2] sm:$0xf]
  %v483 = vld [vmem:[#allocation2 + $0x8] sm:$0xf]
  %vm484 = vcmask 523264
  %v486 = vsel %vm484, %v426, 0
  %488 = vmatprep.subr.mxu0 %v466
  %489 = vmatpush1.msra.mxu0 %v465
  %490 = vmatprep.subr.mxu0 %v468
  %491 = vmatpush1.msra.mxu0 %v467
  %492 = vmatprep.subr.mxu0 %v470
  %493 = vmatpush1.msra.mxu0 %v469
  %494 = vmatprep.subr.mxu0 %v472
  %495 = vmatpush1.msra.mxu0 %v471
  %496 = vmatprep.subr.mxu0 %v474
  %497 = vmatpush1.msra.mxu0 %v473
  %498 = vmatprep.subr.mxu0 %v476
  %499 = vmatpush1.msra.mxu0 %v475
  %500 = vmatprep.subr.mxu0 %v478
  %501 = vmatpush1.msra.mxu0 %v477
  %502 = vmatprep.subr.mxu0 %v480
  %503 = vmatpush1.msra.mxu0 %v479
  %504 = vmatprep.subr.mxu0 0.0
  %505 = vmatpush1.msra.mxu0 0.0
  %506 = vmatprep.subr.mxu0 0.0
  %507 = vmatpush1.msra.mxu0 0.0
  %508 = vmatprep.subr.mxu0 0.0
  %509 = vmatpush1.msra.mxu0 0.0
  %510 = vmatprep.subr.mxu0 0.0
  %511 = vmatpush1.msra.mxu0 0.0
  %512 = vmatprep.subr.mxu0 0.0
  %513 = vmatpush1.msra.mxu0 0.0
  %514 = vmatprep.subr.mxu0 0.0
  %515 = vmatpush1.msra.mxu0 0.0
  %516 = vmatprep.subr.mxu0 0.0
  %517 = vmatpush1.msra.mxu0 0.0
  %518 = vmatprep.subr.mxu0 0.0
  %519 = vmatpush1.msra.mxu0 0.0
  %520 = vmatprep.subr.mxu0 0.0
  %521 = vmatpush1.msra.mxu0 0.0
  %522 = vmatprep.subr.mxu0 0.0
  %523 = vmatpush1.msra.mxu0 0.0
  %524 = vmatprep.subr.mxu0 0.0
  %525 = vmatpush1.msra.mxu0 0.0
  %526 = vmatprep.subr.mxu0 0.0
  %527 = vmatpush1.msra.mxu0 0.0
  %528 = vmatprep.subr.mxu0 0.0
  %529 = vmatpush1.msra.mxu0 0.0
  %530 = vmatprep.subr.mxu0 0.0
  %531 = vmatpush1.msra.mxu0 0.0
  %532 = vmatprep.subr.mxu0 0.0
  %533 = vmatpush1.msra.mxu0 0.0
  %534 = vmatprep.subr.mxu0 0.0
  %535 = vmatpush1.msra.mxu0 0.0
  %536 = vmatprep.subr.mxu0 0.0
  %537 = vmatpush1.msra.mxu0 0.0
  %538 = vmatprep.subr.mxu0 0.0
  %539 = vmatpush1.msra.mxu0 0.0
  %540 = vmatprep.subr.mxu0 0.0
  %541 = vmatpush1.msra.mxu0 0.0
  %542 = vmatprep.subr.mxu0 0.0
  %543 = vmatpush1.msra.mxu0 0.0
  %544 = vmatprep.subr.mxu0 0.0
  %545 = vmatpush1.msra.mxu0 0.0
  %546 = vmatprep.subr.mxu0 0.0
  %547 = vmatpush1.msra.mxu0 0.0
  %548 = vmatprep.subr.mxu0 0.0
  %549 = vmatpush1.msra.mxu0 0.0
  %550 = vmatprep.subr.mxu0 0.0
  %551 = vmatpush1.msra.mxu0 0.0
  %552 = vmatprep.mubr.f32.mxu0 0.0
  %553 = vmatmul.mubr.f32.gmra.mrb[0].mxu0 %v486
  %v554 = vpop.f32.mrb[0].mxu0
  %v555 = vadd.f32 0.0, %v554
  %v556 = vpop.f32.mrb[0].mxu0
  %v557 = vadd.f32 0.0, %v556
  %558 = vdwg.mxu0
  %v559 = vadd.f32 %v482, %v555
  %v560 = vadd.f32 %v483, %v557
  %v561 = vmul.f32 %v559, 0.5
  %v562 = vmul.f32 %v560, 0.5
  %v563 = vtanh.pop %v561
  %v564 = vtanh.pop %v562
  %v565 = vmul.f32 %v563, 0.5
  %v566 = vmul.f32 %v564, 0.5
  %v567 = vadd.f32 %v565, 0.5
  %v568 = vadd.f32 %v566, 0.5
  %v569 = vtanh.pop %v560
  %571 = vrot.lane.b32.xlu0 %v481, 64
  %v572 = vpop.permute.xlu0 %571
  %v574 = vmul.f32 %v567, %v572
  %576 = vrot.lane.b32.xlu0 %v569, 64
  %v577 = vpop.permute.xlu0 %576
  %v579 = vmul.f32 %v567, %v577
  %581 = vrot.lane.b32.xlu0 %v579, 64
  %v582 = vpop.permute.xlu0 %581
  %v584 = vadd.f32 %v574, %v582
  %v585 = vtanh.pop %v584
  %587 = vrot.lane.b32.xlu0 %v585, 64
  %v588 = vpop.permute.xlu0 %587
  %v590 = vmul.f32 %v568, %v588
  %v591 = vsel %vm436, %v590, %v426
  %593 = vrot.lane.b32.xlu0 %v584, 64
  %v594 = vpop.permute.xlu0 %593
  %v596 = vsel %vm436, %v594, %v481
  %597 = vst.msk [vmem:[#allocation3 + $0x1] sm:$0x1] %vm427, %v590
  %598 = vst.msk [vmem:[#allocation3 + $0x6] sm:$0x4] %vm429, %v590
  %599 = vst.msk [vmem:[#allocation3 + $0x9] sm:$0x2] %vm431, %v590
  %600 = vst.msk [vmem:[#allocation3 + $0xe] sm:$0x8] %vm433, %v590
  %vm601 = vcmask 254976
  %602 = vst.msk [vmem:[#allocation4] sm:$0x3] %vm601, %v590
  %vm603 = vcmask 519426
  %604 = vst.msk [vmem:[#allocation4 + $0xc] sm:$0xc] %vm603, %v590
  %v605 = vld [vmem:[#allocation2] sm:$0xf0]
  %v606 = vld [vmem:[#allocation2 + $0x8] sm:$0xf0]
  %v608 = vsel %vm484, %v591, 0
  %610 = vmatprep.subr.mxu0 %v466
  %611 = vmatpush1.msra.mxu0 %v465
  %612 = vmatprep.subr.mxu0 %v468
  %613 = vmatpush1.msra.mxu0 %v467
  %614 = vmatprep.subr.mxu0 %v470
  %615 = vmatpush1.msra.mxu0 %v469
  %616 = vmatprep.subr.mxu0 %v472
  %617 = vmatpush1.msra.mxu0 %v471
  %618 = vmatprep.subr.mxu0 %v474
  %619 = vmatpush1.msra.mxu0 %v473
  %620 = vmatprep.subr.mxu0 %v476
  %621 = vmatpush1.msra.mxu0 %v475
  %622 = vmatprep.subr.mxu0 %v478
  %623 = vmatpush1.msra.mxu0 %v477
  %624 = vmatprep.subr.mxu0 %v480
  %625 = vmatpush1.msra.mxu0 %v479
  %626 = vmatprep.subr.mxu0 0.0
  %627 = vmatpush1.msra.mxu0 0.0
  %628 = vmatprep.subr.mxu0 0.0
  %629 = vmatpush1.msra.mxu0 0.0
  %630 = vmatprep.subr.mxu0 0.0
  %631 = vmatpush1.msra.mxu0 0.0
  %632 = vmatprep.subr.mxu0 0.0
  %633 = vmatpush1.msra.mxu0 0.0
  %634 = vmatprep.subr.mxu0 0.0
  %635 = vmatpush1.msra.mxu0 0.0
  %636 = vmatprep.subr.mxu0 0.0
  %637 = vmatpush1.msra.mxu0 0.0
  %638 = vmatprep.subr.mxu0 0.0
  %639 = vmatpush1.msra.mxu0 0.0
  %640 = vmatprep.subr.mxu0 0.0
  %641 = vmatpush1.msra.mxu0 0.0
  %642 = vmatprep.subr.mxu0 0.0
  %643 = vmatpush1.msra.mxu0 0.0
  %644 = vmatprep.subr.mxu0 0.0
  %645 = vmatpush1.msra.mxu0 0.0
  %646 = vmatprep.subr.mxu0 0.0
  %647 = vmatpush1.msra.mxu0 0.0
  %648 = vmatprep.subr.mxu0 0.0
  %649 = vmatpush1.msra.mxu0 0.0
  %650 = vmatprep.subr.mxu0 0.0
  %651 = vmatpush1.msra.mxu0 0.0
  %652 = vmatprep.subr.mxu0 0.0
  %653 = vmatpush1.msra.mxu0 0.0
  %654 = vmatprep.subr.mxu0 0.0
  %655 = vmatpush1.msra.mxu0 0.0
  %656 = vmatprep.subr.mxu0 0.0
  %657 = vmatpush1.msra.mxu0 0.0
  %658 = vmatprep.subr.mxu0 0.0
  %659 = vmatpush1.msra.mxu0 0.0
  %660 = vmatprep.subr.mxu0 0.0
  %661 = vmatpush1.msra.mxu0 0.0
  %662 = vmatprep.subr.mxu0 0.0
  %663 = vmatpush1.msra.mxu0 0.0
  %664 = vmatprep.subr.mxu0 0.0
  %665 = vmatpush1.msra.mxu0 0.0
  %666 = vmatprep.subr.mxu0 0.0
  %667 = vmatpush1.msra.mxu0 0.0
  %668 = vmatprep.subr.mxu0 0.0
  %669 = vmatpush1.msra.mxu0 0.0
  %670 = vmatprep.subr.mxu0 0.0
  %671 = vmatpush1.msra.mxu0 0.0
  %672 = vmatprep.subr.mxu0 0.0
  %673 = vmatpush1.msra.mxu0 0.0
  %674 = vmatprep.mubr.f32.mxu0 0.0
  %675 = vmatmul.mubr.f32.gmra.mrb[0].mxu0 %v608
  %v676 = vpop.f32.mrb[0].mxu0
  %v677 = vadd.f32 0.0, %v676
  %v678 = vpop.f32.mrb[0].mxu0
  %v679 = vadd.f32 0.0, %v678
  %680 = vdwg.mxu0
  %v683 = vrot.slane %v677, 4
  %v684 = vrot.slane %v679, 4
  %v687 = vadd.f32 %v605, %v683
  %v688 = vadd.f32 %v606, %v684
  %v689 = vmul.f32 %v687, 0.5
  %v690 = vmul.f32 %v688, 0.5
  %v691 = vtanh.pop %v689
  %v692 = vtanh.pop %v690
  %v693 = vmul.f32 %v691, 0.5
  %v694 = vmul.f32 %v692, 0.5
  %v695 = vadd.f32 %v693, 0.5
  %v696 = vadd.f32 %v694, 0.5
  %v697 = vtanh.pop %v688
  %v699 = vrot.slane %v596, 4
  %700 = vrot.lane.b32.xlu0 %v699, 64
  %v701 = vpop.permute.xlu0 %700
  %v703 = vmul.f32 %v695, %v701
  %705 = vrot.lane.b32.xlu0 %v697, 64
  %v706 = vpop.permute.xlu0 %705
  %v708 = vmul.f32 %v695, %v706
  %710 = vrot.lane.b32.xlu0 %v708, 64
  %v711 = vpop.permute.xlu0 %710
  %v713 = vadd.f32 %v703, %v711
  %v714 = vtanh.pop %v713
  %716 = vrot.lane.b32.xlu0 %v714, 64
  %v717 = vpop.permute.xlu0 %716
  %v719 = vmul.f32 %v696, %v717
  %v721 = vrot.slane %v719, 4
  %v723 = vsel %vm438, %v721, %v591
  %v725 = vrot.slane %v713, 4
  %726 = vrot.lane.b32.xlu0 %v725, 64
  %v727 = vpop.permute.xlu0 %726
  %v729 = vsel %vm438, %v727, %v596
  %vm730 = vcmask 258052
  %731 = vst.msk [vmem:[#allocation3 - $0x2] sm:$0x10] %vm730, %v719
  %vm732 = vcmask 522502
  %733 = vst.msk [vmem:[#allocation3 + $0x1] sm:$0x40] %vm732, %v719
  %vm734 = vcmask 259077
  %735 = vst.msk [vmem:[#allocation3 + $0x6] sm:$0x20] %vm734, %v719
  %vm736 = vcmask 523527
  %737 = vst.msk [vmem:[#allocation3 + $0x9] sm:$0x80] %vm736, %v719
  %vm738 = vcmask 259076
  %739 = vst.msk [vmem:[#allocation4 - $0x2] sm:$0x30] %vm738, %v719
  %vm740 = vcmask 523526
  %741 = vst.msk [vmem:[#allocation4 + $0x6] sm:$0xc0] %vm740, %v719
  %v742 = vld [vmem:[#allocation2 + $0x10] sm:$0xf]
  %v743 = vld [vmem:[#allocation2 + $0x18] sm:$0xf]
  %v745 = vsel %vm484, %v723, 0
  %747 = vmatprep.subr.mxu0 %v466
  %748 = vmatpush1.msra.mxu0 %v465
  %749 = vmatprep.subr.mxu0 %v468
  %750 = vmatpush1.msra.mxu0 %v467
  %751 = vmatprep.subr.mxu0 %v470
  %752 = vmatpush1.msra.mxu0 %v469
  %753 = vmatprep.subr.mxu0 %v472
  %754 = vmatpush1.msra.mxu0 %v471
  %755 = vmatprep.subr.mxu0 %v474
  %756 = vmatpush1.msra.mxu0 %v473
  %757 = vmatprep.subr.mxu0 %v476
  %758 = vmatpush1.msra.mxu0 %v475
  %759 = vmatprep.subr.mxu0 %v478
  %760 = vmatpush1.msra.mxu0 %v477
  %761 = vmatprep.subr.mxu0 %v480
  %762 = vmatpush1.msra.mxu0 %v479
  %763 = vmatprep.subr.mxu0 0.0
  %764 = vmatpush1.msra.mxu0 0.0
  %765 = vmatprep.subr.mxu0 0.0
  %766 = vmatpush1.msra.mxu0 0.0
  %767 = vmatprep.subr.mxu0 0.0
  %768 = vmatpush1.msra.mxu0 0.0
  %769 = vmatprep.subr.mxu0 0.0
  %770 = vmatpush1.msra.mxu0 0.0
  %771 = vmatprep.subr.mxu0 0.0
  %772 = vmatpush1.msra.mxu0 0.0
  %773 = vmatprep.subr.mxu0 0.0
  %774 = vmatpush1.msra.mxu0 0.0
  %775 = vmatprep.subr.mxu0 0.0
  %776 = vmatpush1.msra.mxu0 0.0
  %777 = vmatprep.subr.mxu0 0.0
  %778 = vmatpush1.msra.mxu0 0.0
  %779 = vmatprep.subr.mxu0 0.0
  %780 = vmatpush1.msra.mxu0 0.0
  %781 = vmatprep.subr.mxu0 0.0
  %782 = vmatpush1.msra.mxu0 0.0
  %783 = vmatprep.subr.mxu0 0.0
  %784 = vmatpush1.msra.mxu0 0.0
  %785 = vmatprep.subr.mxu0 0.0
  %786 = vmatpush1.msra.mxu0 0.0
  %787 = vmatprep.subr.mxu0 0.0
  %788 = vmatpush1.msra.mxu0 0.0
  %789 = vmatprep.subr.mxu0 0.0
  %790 = vmatpush1.msra.mxu0 0.0
  %791 = vmatprep.subr.mxu0 0.0
  %792 = vmatpush1.msra.mxu0 0.0
  %793 = vmatprep.subr.mxu0 0.0
  %794 = vmatpush1.msra.mxu0 0.0
  %795 = vmatprep.subr.mxu0 0.0
  %796 = vmatpush1.msra.mxu0 0.0
  %797 = vmatprep.subr.mxu0 0.0
  %798 = vmatpush1.msra.mxu0 0.0
  %799 = vmatprep.subr.mxu0 0.0
  %800 = vmatpush1.msra.mxu0 0.0
  %801 = vmatprep.subr.mxu0 0.0
  %802 = vmatpush1.msra.mxu0 0.0
  %803 = vmatprep.subr.mxu0 0.0
  %804 = vmatpush1.msra.mxu0 0.0
  %805 = vmatprep.subr.mxu0 0.0
  %806 = vmatpush1.msra.mxu0 0.0
  %807 = vmatprep.subr.mxu0 0.0
  %808 = vmatpush1.msra.mxu0 0.0
  %809 = vmatprep.subr.mxu0 0.0
  %810 = vmatpush1.msra.mxu0 0.0
  %811 = vmatprep.mubr.f32.mxu0 0.0
  %812 = vmatmul.mubr.f32.gmra.mrb[0].mxu0 %v745
  %v813 = vpop.f32.mrb[0].mxu0
  %v814 = vadd.f32 0.0, %v813
  %v815 = vpop.f32.mrb[0].mxu0
  %v816 = vadd.f32 0.0, %v815
  %817 = vdwg.mxu0
  %v818 = vadd.f32 %v742, %v814
  %v819 = vadd.f32 %v743, %v816
  %v820 = vmul.f32 %v818, 0.5
  %v821 = vmul.f32 %v819, 0.5
  %v822 = vtanh.pop %v820
  %v823 = vtanh.pop %v821
  %v824 = vmul.f32 %v822, 0.5
  %v825 = vmul.f32 %v823, 0.5
  %v826 = vadd.f32 %v824, 0.5
  %v827 = vadd.f32 %v825, 0.5
  %v828 = vtanh.pop %v819
  %830 = vrot.lane.b32.xlu0 %v729, 64
  %v831 = vpop.permute.xlu0 %830
  %v833 = vmul.f32 %v826, %v831
  %835 = vrot.lane.b32.xlu0 %v828, 64
  %v836 = vpop.permute.xlu0 %835
  %v838 = vmul.f32 %v826, %v836
  %840 = vrot.lane.b32.xlu0 %v838, 64
  %v841 = vpop.permute.xlu0 %840
  %v843 = vadd.f32 %v833, %v841
  %v844 = vtanh.pop %v843
  %846 = vrot.lane.b32.xlu0 %v844, 64
  %v847 = vpop.permute.xlu0 %846
  %v849 = vmul.f32 %v827, %v847
  %v850 = vsel %vm440, %v849, %v723
  %852 = vrot.lane.b32.xlu0 %v843, 64
  %v853 = vpop.permute.xlu0 %852
  %v855 = vsel %vm440, %v853, %v729
  %856 = vst.msk [vmem:[#allocation3 + $0x3] sm:$0x1] %vm427, %v849
  %857 = vst.msk [vmem:[#allocation3 + $0x4] sm:$0x4] %vm429, %v849
  %858 = vst.msk [vmem:[#allocation3 + $0xb] sm:$0x2] %vm431, %v849
  %859 = vst.msk [vmem:[#allocation3 + $0xc] sm:$0x8] %vm433, %v849
  %860 = vst.msk [vmem:[#allocation4 + $0x4] sm:$0x3] %vm601, %v849
  %861 = vst.msk [vmem:[#allocation4 + $0x8] sm:$0xc] %vm603, %v849
  %v862 = vld [vmem:[#allocation2 + $0x10] sm:$0xf0]
  %v863 = vld [vmem:[#allocation2 + $0x18] sm:$0xf0]
  %v865 = vsel %vm484, %v850, 0
  %867 = vmatprep.subr.mxu0 %v466
  %868 = vmatpush1.msra.mxu0 %v465
  %869 = vmatprep.subr.mxu0 %v468
  %870 = vmatpush1.msra.mxu0 %v467
  %871 = vmatprep.subr.mxu0 %v470
  %872 = vmatpush1.msra.mxu0 %v469
  %873 = vmatprep.subr.mxu0 %v472
  %874 = vmatpush1.msra.mxu0 %v471
  %875 = vmatprep.subr.mxu0 %v474
  %876 = vmatpush1.msra.mxu0 %v473
  %877 = vmatprep.subr.mxu0 %v476
  %878 = vmatpush1.msra.mxu0 %v475
  %879 = vmatprep.subr.mxu0 %v478
  %880 = vmatpush1.msra.mxu0 %v477
  %881 = vmatprep.subr.mxu0 %v480
  %882 = vmatpush1.msra.mxu0 %v479
  %883 = vmatprep.subr.mxu0 0.0
  %884 = vmatpush1.msra.mxu0 0.0
  %885 = vmatprep.subr.mxu0 0.0
  %886 = vmatpush1.msra.mxu0 0.0
  %887 = vmatprep.subr.mxu0 0.0
  %888 = vmatpush1.msra.mxu0 0.0
  %889 = vmatprep.subr.mxu0 0.0
  %890 = vmatpush1.msra.mxu0 0.0
  %891 = vmatprep.subr.mxu0 0.0
  %892 = vmatpush1.msra.mxu0 0.0
  %893 = vmatprep.subr.mxu0 0.0
  %894 = vmatpush1.msra.mxu0 0.0
  %895 = vmatprep.subr.mxu0 0.0
  %896 = vmatpush1.msra.mxu0 0.0
  %897 = vmatprep.subr.mxu0 0.0
  %898 = vmatpush1.msra.mxu0 0.0
  %899 = vmatprep.subr.mxu0 0.0
  %900 = vmatpush1.msra.mxu0 0.0
  %901 = vmatprep.subr.mxu0 0.0
  %902 = vmatpush1.msra.mxu0 0.0
  %903 = vmatprep.subr.mxu0 0.0
  %904 = vmatpush1.msra.mxu0 0.0
  %905 = vmatprep.subr.mxu0 0.0
  %906 = vmatpush1.msra.mxu0 0.0
  %907 = vmatprep.subr.mxu0 0.0
  %908 = vmatpush1.msra.mxu0 0.0
  %909 = vmatprep.subr.mxu0 0.0
  %910 = vmatpush1.msra.mxu0 0.0
  %911 = vmatprep.subr.mxu0 0.0
  %912 = vmatpush1.msra.mxu0 0.0
  %913 = vmatprep.subr.mxu0 0.0
  %914 = vmatpush1.msra.mxu0 0.0
  %915 = vmatprep.subr.mxu0 0.0
  %916 = vmatpush1.msra.mxu0 0.0
  %917 = vmatprep.subr.mxu0 0.0
  %918 = vmatpush1.msra.mxu0 0.0
  %919 = vmatprep.subr.mxu0 0.0
  %920 = vmatpush1.msra.mxu0 0.0
  %921 = vmatprep.subr.mxu0 0.0
  %922 = vmatpush1.msra.mxu0 0.0
  %923 = vmatprep.subr.mxu0 0.0
  %924 = vmatpush1.msra.mxu0 0.0
  %925 = vmatprep.subr.mxu0 0.0
  %926 = vmatpush1.msra.mxu0 0.0
  %927 = vmatprep.subr.mxu0 0.0
  %928 = vmatpush1.msra.mxu0 0.0
  %929 = vmatprep.subr.mxu0 0.0
  %930 = vmatpush1.msra.mxu0 0.0
  %931 = vmatprep.mubr.f32.mxu0 0.0
  %932 = vmatmul.mubr.f32.gmra.mrb[0].mxu0 %v865
  %v933 = vpop.f32.mrb[0].mxu0
  %v934 = vadd.f32 0.0, %v933
  %v935 = vpop.f32.mrb[0].mxu0
  %v936 = vadd.f32 0.0, %v935
  %937 = vdwg.mxu0
  %v940 = vrot.slane %v934, 4
  %v941 = vrot.slane %v936, 4
  %v944 = vadd.f32 %v862, %v940
  %v945 = vadd.f32 %v863, %v941
  %v946 = vmul.f32 %v944, 0.5
  %v947 = vmul.f32 %v945, 0.5
  %v948 = vtanh.pop %v946
  %v949 = vtanh.pop %v947
  %v950 = vmul.f32 %v948, 0.5
  %v951 = vmul.f32 %v949, 0.5
  %v952 = vadd.f32 %v950, 0.5
  %v953 = vadd.f32 %v951, 0.5
  %v954 = vtanh.pop %v945
  %v956 = vrot.slane %v855, 4
  %957 = vrot.lane.b32.xlu0 %v956, 64
  %v958 = vpop.permute.xlu0 %957
  %v960 = vmul.f32 %v952, %v958
  %962 = vrot.lane.b32.xlu0 %v954, 64
  %v963 = vpop.permute.xlu0 %962
  %v965 = vmul.f32 %v952, %v963
  %967 = vrot.lane.b32.xlu0 %v965, 64
  %v968 = vpop.permute.xlu0 %967
  %v970 = vadd.f32 %v960, %v968
  %v971 = vtanh.pop %v970
  %973 = vrot.lane.b32.xlu0 %v971, 64
  %v974 = vpop.permute.xlu0 %973
  %v976 = vmul.f32 %v953, %v974
  %v978 = vrot.slane %v976, 4
  %v980 = vsel %vm442, %v978, %v850
  %v982 = vrot.slane %v970, 4
  %983 = vrot.lane.b32.xlu0 %v982, 64
  %v984 = vpop.permute.xlu0 %983
  %v986 = vsel %vm442, %v984, %v855
  %987 = vst.msk [vmem:[#allocation3] sm:$0x10] %vm730, %v976
  %988 = vst.msk [vmem:[#allocation3 - $0x1] sm:$0x40] %vm732, %v976
  %989 = vst.msk [vmem:[#allocation3 + $0x8] sm:$0x20] %vm734, %v976
  %990 = vst.msk [vmem:[#allocation3 + $0x7] sm:$0x80] %vm736, %v976
  %991 = vst.msk [vmem:[#allocation4 + $0x2] sm:$0x30] %vm738, %v976
  %992 = vst.msk [vmem:[#allocation4 + $0x2] sm:$0xc0] %vm740, %v976
  %v993 = vld [vmem:[#allocation2 + $0x20] sm:$0xf]
  %v994 = vld [vmem:[#allocation2 + $0x28] sm:$0xf]
  %v996 = vsel %vm484, %v980, 0
  %998 = vmatprep.subr.mxu0 %v466
  %999 = vmatpush1.msra.mxu0 %v465
  %1000 = vmatprep.subr.mxu0 %v468
  %1001 = vmatpush1.msra.mxu0 %v467
  %1002 = vmatprep.subr.mxu0 %v470
  %1003 = vmatpush1.msra.mxu0 %v469
  %1004 = vmatprep.subr.mxu0 %v472
  %1005 = vmatpush1.msra.mxu0 %v471
  %1006 = vmatprep.subr.mxu0 %v474
  %1007 = vmatpush1.msra.mxu0 %v473
  %1008 = vmatprep.subr.mxu0 %v476
  %1009 = vmatpush1.msra.mxu0 %v475
  %1010 = vmatprep.subr.mxu0 %v478
  %1011 = vmatpush1.msra.mxu0 %v477
  %1012 = vmatprep.subr.mxu0 %v480
  %1013 = vmatpush1.msra.mxu0 %v479
  %1014 = vmatprep.subr.mxu0 0.0
  %1015 = vmatpush1.msra.mxu0 0.0
  %1016 = vmatprep.subr.mxu0 0.0
  %1017 = vmatpush1.msra.mxu0 0.0
  %1018 = vmatprep.subr.mxu0 0.0
  %1019 = vmatpush1.msra.mxu0 0.0
  %1020 = vmatprep.subr.mxu0 0.0
  %1021 = vmatpush1.msra.mxu0 0.0
  %1022 = vmatprep.subr.mxu0 0.0
  %1023 = vmatpush1.msra.mxu0 0.0
  %1024 = vmatprep.subr.mxu0 0.0
  %1025 = vmatpush1.msra.mxu0 0.0
  %1026 = vmatprep.subr.mxu0 0.0
  %1027 = vmatpush1.msra.mxu0 0.0
  %1028 = vmatprep.subr.mxu0 0.0
  %1029 = vmatpush1.msra.mxu0 0.0
  %1030 = vmatprep.subr.mxu0 0.0
  %1031 = vmatpush1.msra.mxu0 0.0
  %1032 = vmatprep.subr.mxu0 0.0
  %1033 = vmatpush1.msra.mxu0 0.0
  %1034 = vmatprep.subr.mxu0 0.0
  %1035 = vmatpush1.msra.mxu0 0.0
  %1036 = vmatprep.subr.mxu0 0.0
  %1037 = vmatpush1.msra.mxu0 0.0
  %1038 = vmatprep.subr.mxu0 0.0
  %1039 = vmatpush1.msra.mxu0 0.0
  %1040 = vmatprep.subr.mxu0 0.0
  %1041 = vmatpush1.msra.mxu0 0.0
  %1042 = vmatprep.subr.mxu0 0.0
  %1043 = vmatpush1.msra.mxu0 0.0
  %1044 = vmatprep.subr.mxu0 0.0
  %1045 = vmatpush1.msra.mxu0 0.0
  %1046 = vmatprep.subr.mxu0 0.0
  %1047 = vmatpush1.msra.mxu0 0.0
  %1048 = vmatprep.subr.mxu0 0.0
  %1049 = vmatpush1.msra.mxu0 0.0
  %1050 = vmatprep.subr.mxu0 0.0
  %1051 = vmatpush1.msra.mxu0 0.0
  %1052 = vmatprep.subr.mxu0 0.0
  %1053 = vmatpush1.msra.mxu0 0.0
  %1054 = vmatprep.subr.mxu0 0.0
  %1055 = vmatpush1.msra.mxu0 0.0
  %1056 = vmatprep.subr.mxu0 0.0
  %1057 = vmatpush1.msra.mxu0 0.0
  %1058 = vmatprep.subr.mxu0 0.0
  %1059 = vmatpush1.msra.mxu0 0.0
  %1060 = vmatprep.subr.mxu0 0.0
  %1061 = vmatpush1.msra.mxu0 0.0
  %1062 = vmatprep.mubr.f32.mxu0 0.0
  %1063 = vmatmul.mubr.f32.gmra.mrb[0].mxu0 %v996
  %v1064 = vpop.f32.mrb[0].mxu0
  %v1065 = vadd.f32 0.0, %v1064
  %v1066 = vpop.f32.mrb[0].mxu0
  %v1067 = vadd.f32 0.0, %v1066
  %1068 = vdwg.mxu0
  %v1069 = vadd.f32 %v993, %v1065
  %v1070 = vadd.f32 %v994, %v1067
  %v1071 = vmul.f32 %v1069, 0.5
  %v1072 = vmul.f32 %v1070, 0.5
  %v1073 = vtanh.pop %v1071
  %v1074 = vtanh.pop %v1072
  %v1075 = vmul.f32 %v1073, 0.5
  %v1076 = vmul.f32 %v1074, 0.5
  %v1077 = vadd.f32 %v1075, 0.5
  %v1078 = vadd.f32 %v1076, 0.5
  %v1079 = vtanh.pop %v1070
  %1081 = vrot.lane.b32.xlu0 %v986, 64
  %v1082 = vpop.permute.xlu0 %1081
  %v1084 = vmul.f32 %v1077, %v1082
  %1086 = vrot.lane.b32.xlu0 %v1079, 64
  %v1087 = vpop.permute.xlu0 %1086
  %v1089 = vmul.f32 %v1077, %v1087
  %1091 = vrot.lane.b32.xlu0 %v1089, 64
  %v1092 = vpop.permute.xlu0 %1091
  %v1094 = vadd.f32 %v1084, %v1092
  %v1095 = vtanh.pop %v1094
  %1097 = vrot.lane.b32.xlu0 %v1095, 64
  %v1098 = vpop.permute.xlu0 %1097
  %v1100 = vmul.f32 %v1078, %v1098
  %v1101 = vsel %vm444, %v1100, %v980
  %1103 = vrot.lane.b32.xlu0 %v1094, 64
  %v1104 = vpop.permute.xlu0 %1103
  %v1106 = vsel %vm444, %v1104, %v986
  %1107 = vst.msk [vmem:[#allocation3 + $0x5] sm:$0x1] %vm427, %v1100
  %1108 = vst.msk [vmem:[#allocation3 + $0x2] sm:$0x4] %vm429, %v1100
  %1109 = vst.msk [vmem:[#allocation3 + $0xd] sm:$0x2] %vm431, %v1100
  %1110 = vst.msk [vmem:[#allocation3 + $0xa] sm:$0x8] %vm433, %v1100
  %1111 = vst.msk [vmem:[#allocation4 + $0x8] sm:$0x3] %vm601, %v1100
  %1112 = vst.msk [vmem:[#allocation4 + $0x4] sm:$0xc] %vm603, %v1100
  %v1113 = vld [vmem:[#allocation2 + $0x20] sm:$0xf0]
  %v1114 = vld [vmem:[#allocation2 + $0x28] sm:$0xf0]
  %v1116 = vsel %vm484, %v1101, 0
  %1118 = vmatprep.subr.mxu0 %v466
  %1119 = vmatpush1.msra.mxu0 %v465
  %1120 = vmatprep.subr.mxu0 %v468
  %1121 = vmatpush1.msra.mxu0 %v467
  %1122 = vmatprep.subr.mxu0 %v470
  %1123 = vmatpush1.msra.mxu0 %v469
  %1124 = vmatprep.subr.mxu0 %v472
  %1125 = vmatpush1.msra.mxu0 %v471
  %1126 = vmatprep.subr.mxu0 %v474
  %1127 = vmatpush1.msra.mxu0 %v473
  %1128 = vmatprep.subr.mxu0 %v476
  %1129 = vmatpush1.msra.mxu0 %v475
  %1130 = vmatprep.subr.mxu0 %v478
  %1131 = vmatpush1.msra.mxu0 %v477
  %1132 = vmatprep.subr.mxu0 %v480
  %1133 = vmatpush1.msra.mxu0 %v479
  %1134 = vmatprep.subr.mxu0 0.0
  %1135 = vmatpush1.msra.mxu0 0.0
  %1136 = vmatprep.subr.mxu0 0.0
  %1137 = vmatpush1.msra.mxu0 0.0
  %1138 = vmatprep.subr.mxu0 0.0
  %1139 = vmatpush1.msra.mxu0 0.0
  %1140 = vmatprep.subr.mxu0 0.0
  %1141 = vmatpush1.msra.mxu0 0.0
  %1142 = vmatprep.subr.mxu0 0.0
  %1143 = vmatpush1.msra.mxu0 0.0
  %1144 = vmatprep.subr.mxu0 0.0
  %1145 = vmatpush1.msra.mxu0 0.0
  %1146 = vmatprep.subr.mxu0 0.0
  %1147 = vmatpush1.msra.mxu0 0.0
  %1148 = vmatprep.subr.mxu0 0.0
  %1149 = vmatpush1.msra.mxu0 0.0
  %1150 = vmatprep.subr.mxu0 0.0
  %1151 = vmatpush1.msra.mxu0 0.0
  %1152 = vmatprep.subr.mxu0 0.0
  %1153 = vmatpush1.msra.mxu0 0.0
  %1154 = vmatprep.subr.mxu0 0.0
  %1155 = vmatpush1.msra.mxu0 0.0
  %1156 = vmatprep.subr.mxu0 0.0
  %1157 = vmatpush1.msra.mxu0 0.0
  %1158 = vmatprep.subr.mxu0 0.0
  %1159 = vmatpush1.msra.mxu0 0.0
  %1160 = vmatprep.subr.mxu0 0.0
  %1161 = vmatpush1.msra.mxu0 0.0
  %1162 = vmatprep.subr.mxu0 0.0
  %1163 = vmatpush1.msra.mxu0 0.0
  %1164 = vmatprep.subr.mxu0 0.0
  %1165 = vmatpush1.msra.mxu0 0.0
  %1166 = vmatprep.subr.mxu0 0.0
  %1167 = vmatpush1.msra.mxu0 0.0
  %1168 = vmatprep.subr.mxu0 0.0
  %1169 = vmatpush1.msra.mxu0 0.0
  %1170 = vmatprep.subr.mxu0 0.0
  %1171 = vmatpush1.msra.mxu0 0.0
  %1172 = vmatprep.subr.mxu0 0.0
  %1173 = vmatpush1.msra.mxu0 0.0
  %1174 = vmatprep.subr.mxu0 0.0
  %1175 = vmatpush1.msra.mxu0 0.0
  %1176 = vmatprep.subr.mxu0 0.0
  %1177 = vmatpush1.msra.mxu0 0.0
  %1178 = vmatprep.subr.mxu0 0.0
  %1179 = vmatpush1.msra.mxu0 0.0
  %1180 = vmatprep.subr.mxu0 0.0
  %1181 = vmatpush1.msra.mxu0 0.0
  %1182 = vmatprep.mubr.f32.mxu0 0.0
  %1183 = vmatmul.mubr.f32.gmra.mrb[0].mxu0 %v1116
  %v1184 = vpop.f32.mrb[0].mxu0
  %v1185 = vadd.f32 0.0, %v1184
  %v1186 = vpop.f32.mrb[0].mxu0
  %v1187 = vadd.f32 0.0, %v1186
  %1188 = vdwg.mxu0
  %v1191 = vrot.slane %v1185, 4
  %v1192 = vrot.slane %v1187, 4
  %v1195 = vadd.f32 %v1113, %v1191
  %v1196 = vadd.f32 %v1114, %v1192
  %v1197 = vmul.f32 %v1195, 0.5
  %v1198 = vmul.f32 %v1196, 0.5
  %v1199 = vtanh.pop %v1197
  %v1200 = vtanh.pop %v1198
  %v1201 = vmul.f32 %v1199, 0.5
  %v1202 = vmul.f32 %v1200, 0.5
  %v1203 = vadd.f32 %v1201, 0.5
  %v1204 = vadd.f32 %v1202, 0.5
  %v1205 = vtanh.pop %v1196
  %v1207 = vrot.slane %v1106, 4
  %1208 = vrot.lane.b32.xlu0 %v1207, 64
  %v1209 = vpop.permute.xlu0 %1208
  %v1211 = vmul.f32 %v1203, %v1209
  %1213 = vrot.lane.b32.xlu0 %v1205, 64
  %v1214 = vpop.permute.xlu0 %1213
  %v1216 = vmul.f32 %v1203, %v1214
  %1218 = vrot.lane.b32.xlu0 %v1216, 64
  %v1219 = vpop.permute.xlu0 %1218
  %v1221 = vadd.f32 %v1211, %v1219
  %v1222 = vtanh.pop %v1221
  %1224 = vrot.lane.b32.xlu0 %v1222, 64
  %v1225 = vpop.permute.xlu0 %1224
  %v1227 = vmul.f32 %v1204, %v1225
  %v1229 = vrot.slane %v1227, 4
  %v1231 = vsel %vm446, %v1229, %v1101
  %v1233 = vrot.slane %v1221, 4
  %1234 = vrot.lane.b32.xlu0 %v1233, 64
  %v1235 = vpop.permute.xlu0 %1234
  %v1237 = vsel %vm446, %v1235, %v1106
  %1238 = vst.msk [vmem:[#allocation3 + $0x2] sm:$0x10] %vm730, %v1227
  %1239 = vst.msk [vmem:[#allocation3 - $0x3] sm:$0x40] %vm732, %v1227
  %1240 = vst.msk [vmem:[#allocation3 + $0xa] sm:$0x20] %vm734, %v1227
  %1241 = vst.msk [vmem:[#allocation3 + $0x5] sm:$0x80] %vm736, %v1227
  %1242 = vst.msk [vmem:[#allocation4 + $0x6] sm:$0x30] %vm738, %v1227
  %1243 = vst.msk [vmem:[#allocation4 - $0x2] sm:$0xc0] %vm740, %v1227
  %v1244 = vld [vmem:[#allocation2 + $0x30] sm:$0xf]
  %v1245 = vld [vmem:[#allocation2 + $0x38] sm:$0xf]
  %v1247 = vsel %vm484, %v1231, 0
  %1249 = vmatprep.subr.mxu0 %v466
  %1250 = vmatpush1.msra.mxu0 %v465
  %1251 = vmatprep.subr.mxu0 %v468
  %1252 = vmatpush1.msra.mxu0 %v467
  %1253 = vmatprep.subr.mxu0 %v470
  %1254 = vmatpush1.msra.mxu0 %v469
  %1255 = vmatprep.subr.mxu0 %v472
  %1256 = vmatpush1.msra.mxu0 %v471
  %1257 = vmatprep.subr.mxu0 %v474
  %1258 = vmatpush1.msra.mxu0 %v473
  %1259 = vmatprep.subr.mxu0 %v476
  %1260 = vmatpush1.msra.mxu0 %v475
  %1261 = vmatprep.subr.mxu0 %v478
  %1262 = vmatpush1.msra.mxu0 %v477
  %1263 = vmatprep.subr.mxu0 %v480
  %1264 = vmatpush1.msra.mxu0 %v479
  %1265 = vmatprep.subr.mxu0 0.0
  %1266 = vmatpush1.msra.mxu0 0.0
  %1267 = vmatprep.subr.mxu0 0.0
  %1268 = vmatpush1.msra.mxu0 0.0
  %1269 = vmatprep.subr.mxu0 0.0
  %1270 = vmatpush1.msra.mxu0 0.0
  %1271 = vmatprep.subr.mxu0 0.0
  %1272 = vmatpush1.msra.mxu0 0.0
  %1273 = vmatprep.subr.mxu0 0.0
  %1274 = vmatpush1.msra.mxu0 0.0
  %1275 = vmatprep.subr.mxu0 0.0
  %1276 = vmatpush1.msra.mxu0 0.0
  %1277 = vmatprep.subr.mxu0 0.0
  %1278 = vmatpush1.msra.mxu0 0.0
  %1279 = vmatprep.subr.mxu0 0.0
  %1280 = vmatpush1.msra.mxu0 0.0
  %1281 = vmatprep.subr.mxu0 0.0
  %1282 = vmatpush1.msra.mxu0 0.0
  %1283 = vmatprep.subr.mxu0 0.0
  %1284 = vmatpush1.msra.mxu0 0.0
  %1285 = vmatprep.subr.mxu0 0.0
  %1286 = vmatpush1.msra.mxu0 0.0
  %1287 = vmatprep.subr.mxu0 0.0
  %1288 = vmatpush1.msra.mxu0 0.0
  %1289 = vmatprep.subr.mxu0 0.0
  %1290 = vmatpush1.msra.mxu0 0.0
  %1291 = vmatprep.subr.mxu0 0.0
  %1292 = vmatpush1.msra.mxu0 0.0
  %1293 = vmatprep.subr.mxu0 0.0
  %1294 = vmatpush1.msra.mxu0 0.0
  %1295 = vmatprep.subr.mxu0 0.0
  %1296 = vmatpush1.msra.mxu0 0.0
  %1297 = vmatprep.subr.mxu0 0.0
  %1298 = vmatpush1.msra.mxu0 0.0
  %1299 = vmatprep.subr.mxu0 0.0
  %1300 = vmatpush1.msra.mxu0 0.0
  %1301 = vmatprep.subr.mxu0 0.0
  %1302 = vmatpush1.msra.mxu0 0.0
  %1303 = vmatprep.subr.mxu0 0.0
  %1304 = vmatpush1.msra.mxu0 0.0
  %1305 = vmatprep.subr.mxu0 0.0
  %1306 = vmatpush1.msra.mxu0 0.0
  %1307 = vmatprep.subr.mxu0 0.0
  %1308 = vmatpush1.msra.mxu0 0.0
  %1309 = vmatprep.subr.mxu0 0.0
  %1310 = vmatpush1.msra.mxu0 0.0
  %1311 = vmatprep.subr.mxu0 0.0
  %1312 = vmatpush1.msra.mxu0 0.0
  %1313 = vmatprep.mubr.f32.mxu0 0.0
  %1314 = vmatmul.mubr.f32.gmra.mrb[0].mxu0 %v1247
  %v1315 = vpop.f32.mrb[0].mxu0
  %v1316 = vadd.f32 0.0, %v1315
  %v1317 = vpop.f32.mrb[0].mxu0
  %v1318 = vadd.f32 0.0, %v1317
  %1319 = vdwg.mxu0
  %v1320 = vadd.f32 %v1244, %v1316
  %v1321 = vadd.f32 %v1245, %v1318
  %v1322 = vmul.f32 %v1320, 0.5
  %v1323 = vmul.f32 %v1321, 0.5
  %v1324 = vtanh.pop %v1322
  %v1325 = vtanh.pop %v1323
  %v1326 = vmul.f32 %v1324, 0.5
  %v1327 = vmul.f32 %v1325, 0.5
  %v1328 = vadd.f32 %v1326, 0.5
  %v1329 = vadd.f32 %v1327, 0.5
  %v1330 = vtanh.pop %v1321
  %1332 = vrot.lane.b32.xlu0 %v1237, 64
  %v1333 = vpop.permute.xlu0 %1332
  %v1335 = vmul.f32 %v1328, %v1333
  %1337 = vrot.lane.b32.xlu0 %v1330, 64
  %v1338 = vpop.permute.xlu0 %1337
  %v1340 = vmul.f32 %v1328, %v1338
  %1342 = vrot.lane.b32.xlu0 %v1340, 64
  %v1343 = vpop.permute.xlu0 %1342
  %v1345 = vadd.f32 %v1335, %v1343
  %v1346 = vtanh.pop %v1345
  %1348 = vrot.lane.b32.xlu0 %v1346, 64
  %v1349 = vpop.permute.xlu0 %1348
  %v1351 = vmul.f32 %v1329, %v1349
  %v1352 = vsel %vm448, %v1351, %v1231
  %1354 = vrot.lane.b32.xlu0 %v1345, 64
  %v1355 = vpop.permute.xlu0 %1354
  %v1357 = vsel %vm448, %v1355, %v1237
  %1358 = vst.msk [vmem:[#allocation3 + $0x7] sm:$0x1] %vm427, %v1351
  %1359 = vst.msk [vmem:[#allocation3] sm:$0x4] %vm429, %v1351
  %1360 = vst.msk [vmem:[#allocation3 + $0xf] sm:$0x2] %vm431, %v1351
  %1361 = vst.msk [vmem:[#allocation3 + $0x8] sm:$0x8] %vm433, %v1351
  %1362 = vst.msk [vmem:[#allocation4 + $0xc] sm:$0x3] %vm601, %v1351
  %1363 = vst.msk [vmem:[#allocation4] sm:$0xc] %vm603, %v1351
  %v1364 = vld [vmem:[#allocation2 + $0x30] sm:$0xf0]
  %v1365 = vld [vmem:[#allocation2 + $0x38] sm:$0xf0]
  %v1367 = vsel %vm484, %v1352, 0
  %1369 = vmatprep.subr.mxu0 %v466
  %1370 = vmatpush1.msra.mxu0 %v465
  %1371 = vmatprep.subr.mxu0 %v468
  %1372 = vmatpush1.msra.mxu0 %v467
  %1373 = vmatprep.subr.mxu0 %v470
  %1374 = vmatpush1.msra.mxu0 %v469
  %1375 = vmatprep.subr.mxu0 %v472
  %1376 = vmatpush1.msra.mxu0 %v471
  %1377 = vmatprep.subr.mxu0 %v474
  %1378 = vmatpush1.msra.mxu0 %v473
  %1379 = vmatprep.subr.mxu0 %v476
  %1380 = vmatpush1.msra.mxu0 %v475
  %1381 = vmatprep.subr.mxu0 %v478
  %1382 = vmatpush1.msra.mxu0 %v477
  %1383 = vmatprep.subr.mxu0 %v480
  %1384 = vmatpush1.msra.mxu0 %v479
  %1385 = vmatprep.subr.mxu0 0.0
  %1386 = vmatpush1.msra.mxu0 0.0
  %1387 = vmatprep.subr.mxu0 0.0
  %1388 = vmatpush1.msra.mxu0 0.0
  %1389 = vmatprep.subr.mxu0 0.0
  %1390 = vmatpush1.msra.mxu0 0.0
  %1391 = vmatprep.subr.mxu0 0.0
  %1392 = vmatpush1.msra.mxu0 0.0
  %1393 = vmatprep.subr.mxu0 0.0
  %1394 = vmatpush1.msra.mxu0 0.0
  %1395 = vmatprep.subr.mxu0 0.0
  %1396 = vmatpush1.msra.mxu0 0.0
  %1397 = vmatprep.subr.mxu0 0.0
  %1398 = vmatpush1.msra.mxu0 0.0
  %1399 = vmatprep.subr.mxu0 0.0
  %1400 = vmatpush1.msra.mxu0 0.0
  %1401 = vmatprep.subr.mxu0 0.0
  %1402 = vmatpush1.msra.mxu0 0.0
  %1403 = vmatprep.subr.mxu0 0.0
  %1404 = vmatpush1.msra.mxu0 0.0
  %1405 = vmatprep.subr.mxu0 0.0
  %1406 = vmatpush1.msra.mxu0 0.0
  %1407 = vmatprep.subr.mxu0 0.0
  %1408 = vmatpush1.msra.mxu0 0.0
  %1409 = vmatprep.subr.mxu0 0.0
  %1410 = vmatpush1.msra.mxu0 0.0
  %1411 = vmatprep.subr.mxu0 0.0
  %1412 = vmatpush1.msra.mxu0 0.0
  %1413 = vmatprep.subr.mxu0 0.0
  %1414 = vmatpush1.msra.mxu0 0.0
  %1415 = vmatprep.subr.mxu0 0.0
  %1416 = vmatpush1.msra.mxu0 0.0
  %1417 = vmatprep.subr.mxu0 0.0
  %1418 = vmatpush1.msra.mxu0 0.0
  %1419 = vmatprep.subr.mxu0 0.0
  %1420 = vmatpush1.msra.mxu0 0.0
  %1421 = vmatprep.subr.mxu0 0.0
  %1422 = vmatpush1.msra.mxu0 0.0
  %1423 = vmatprep.subr.mxu0 0.0
  %1424 = vmatpush1.msra.mxu0 0.0
  %1425 = vmatprep.subr.mxu0 0.0
  %1426 = vmatpush1.msra.mxu0 0.0
  %1427 = vmatprep.subr.mxu0 0.0
  %1428 = vmatpush1.msra.mxu0 0.0
  %1429 = vmatprep.subr.mxu0 0.0
  %1430 = vmatpush1.msra.mxu0 0.0
  %1431 = vmatprep.subr.mxu0 0.0
  %1432 = vmatpush1.msra.mxu0 0.0
  %1433 = vmatprep.mubr.f32.mxu0 0.0
  %1434 = vmatmul.mubr.f32.gmra.mrb[0].mxu0 %v1367
  %v1435 = vpop.f32.mrb[0].mxu0
  %v1436 = vadd.f32 0.0, %v1435
  %v1437 = vpop.f32.mrb[0].mxu0
  %v1438 = vadd.f32 0.0, %v1437
  %1439 = vdwg.mxu0
  %v1442 = vrot.slane %v1436, 4
  %v1443 = vrot.slane %v1438, 4
  %v1446 = vadd.f32 %v1364, %v1442
  %v1447 = vadd.f32 %v1365, %v1443
  %v1448 = vmul.f32 %v1446, 0.5
  %v1449 = vmul.f32 %v1447, 0.5
  %v1450 = vtanh.pop %v1448
  %v1451 = vtanh.pop %v1449
  %v1452 = vmul.f32 %v1450, 0.5
  %v1453 = vmul.f32 %v1451, 0.5
  %v1454 = vadd.f32 %v1452, 0.5
  %v1455 = vadd.f32 %v1453, 0.5
  %v1456 = vtanh.pop %v1447
  %v1458 = vrot.slane %v1357, 4
  %1459 = vrot.lane.b32.xlu0 %v1458, 64
  %v1460 = vpop.permute.xlu0 %1459
  %v1462 = vmul.f32 %v1454, %v1460
  %1464 = vrot.lane.b32.xlu0 %v1456, 64
  %v1465 = vpop.permute.xlu0 %1464
  %v1467 = vmul.f32 %v1454, %v1465
  %1469 = vrot.lane.b32.xlu0 %v1467, 64
  %v1470 = vpop.permute.xlu0 %1469
  %v1472 = vadd.f32 %v1462, %v1470
  %v1473 = vtanh.pop %v1472
  %1475 = vrot.lane.b32.xlu0 %v1473, 64
  %v1476 = vpop.permute.xlu0 %1475
  %v1478 = vmul.f32 %v1455, %v1476
  %v1480 = vrot.slane %v1472, 4
  %1481 = vrot.lane.b32.xlu0 %v1480, 64
  %v1482 = vpop.permute.xlu0 %1481
  %v1484 = vsel %vm450, %v1482, %v1357
  %1485 = vst.msk [vmem:[#allocation3 + $0x4] sm:$0x10] %vm730, %v1478
  %1486 = vst.msk [vmem:[#allocation3 - $0x5] sm:$0x40] %vm732, %v1478
  %1487 = vst.msk [vmem:[#allocation3 + $0xc] sm:$0x20] %vm734, %v1478
  %1488 = vst.msk [vmem:[#allocation3 + $0x3] sm:$0x80] %vm736, %v1478
  %1489 = vst.msk [vmem:[#allocation4 + $0xa] sm:$0x30] %vm738, %v1478
  %1490 = vst.msk [vmem:[#allocation4 - $0x6] sm:$0xc0] %vm740, %v1478
  %v1492 = vrot.slane %v1484, 2
  %v1494 = vsel %vm87, %v1484, %v1492
  %v1495 = vld [vmem:[%s11] sm:$0xff]
  %v1496 = vld [vmem:[%s11 + $0x8] sm:$0xff]
  %v1497 = vld [vmem:[%s11 + $0x10] sm:$0xff]
  %v1498 = vld [vmem:[%s11 + $0x18] sm:$0xff]
  %v1499 = vld [vmem:[%s11 + $0x20] sm:$0xff]
  %v1500 = vld [vmem:[%s11 + $0x28] sm:$0xff]
  %v1501 = vld [vmem:[%s11 + $0x30] sm:$0xff]
  %v1502 = vld [vmem:[%s11 + $0x38] sm:$0xff]
  %v1503 = vld [vmem:[%s12] sm:$0x1]
  %v1505 = vlaneseq
  %v1506 = vshrl.u32 %v1505, 7
  %v1507 = vsub.s32 0, %v1506
  %v1508 = vrot.slane %v1503, %v1507
  %v1511 = vsel %vm484, %v1494, 0
  %1513 = vmatprep.subr.mxu0 0.0
  %1514 = vmatpush1.msra.mxu0 %v1495
  %1515 = vmatprep.subr.mxu0 0.0
  %1516 = vmatpush1.msra.mxu0 %v1496
  %1517 = vmatprep.subr.mxu0 0.0
  %1518 = vmatpush1.msra.mxu0 %v1497
  %1519 = vmatprep.subr.mxu0 0.0
  %1520 = vmatpush1.msra.mxu0 %v1498
  %1521 = vmatprep.subr.mxu0 0.0
  %1522 = vmatpush1.msra.mxu0 %v1499
  %1523 = vmatprep.subr.mxu0 0.0
  %1524 = vmatpush1.msra.mxu0 %v1500
  %1525 = vmatprep.subr.mxu0 0.0
  %1526 = vmatpush1.msra.mxu0 %v1501
  %1527 = vmatprep.subr.mxu0 0.0
  %1528 = vmatpush1.msra.mxu0 %v1502
  %1529 = vmatprep.subr.mxu0 0.0
  %1530 = vmatpush1.msra.mxu0 0.0
  %1531 = vmatprep.subr.mxu0 0.0
  %1532 = vmatpush1.msra.mxu0 0.0
  %1533 = vmatprep.subr.mxu0 0.0
  %1534 = vmatpush1.msra.mxu0 0.0
  %1535 = vmatprep.subr.mxu0 0.0
  %1536 = vmatpush1.msra.mxu0 0.0
  %1537 = vmatprep.subr.mxu0 0.0
  %1538 = vmatpush1.msra.mxu0 0.0
  %1539 = vmatprep.subr.mxu0 0.0
  %1540 = vmatpush1.msra.mxu0 0.0
  %1541 = vmatprep.subr.mxu0 0.0
  %1542 = vmatpush1.msra.mxu0 0.0
  %1543 = vmatprep.subr.mxu0 0.0
  %1544 = vmatpush1.msra.mxu0 0.0
  %1545 = vmatprep.subr.mxu0 0.0
  %1546 = vmatpush1.msra.mxu0 0.0
  %1547 = vmatprep.subr.mxu0 0.0
  %1548 = vmatpush1.msra.mxu0 0.0
  %1549 = vmatprep.subr.mxu0 0.0
  %1550 = vmatpush1.msra.mxu0 0.0
  %1551 = vmatprep.subr.mxu0 0.0
  %1552 = vmatpush1.msra.mxu0 0.0
  %1553 = vmatprep.subr.mxu0 0.0
  %1554 = vmatpush1.msra.mxu0 0.0
  %1555 = vmatprep.subr.mxu0 0.0
  %1556 = vmatpush1.msra.mxu0 0.0
  %1557 = vmatprep.subr.mxu0 0.0
  %1558 = vmatpush1.msra.mxu0 0.0
  %1559 = vmatprep.subr.mxu0 0.0
  %1560 = vmatpush1.msra.mxu0 0.0
  %1561 = vmatprep.subr.mxu0 0.0
  %1562 = vmatpush1.msra.mxu0 0.0
  %1563 = vmatprep.subr.mxu0 0.0
  %1564 = vmatpush1.msra.mxu0 0.0
  %1565 = vmatprep.subr.mxu0 0.0
  %1566 = vmatpush1.msra.mxu0 0.0
  %1567 = vmatprep.subr.mxu0 0.0
  %1568 = vmatpush1.msra.mxu0 0.0
  %1569 = vmatprep.subr.mxu0 0.0
  %1570 = vmatpush1.msra.mxu0 0.0
  %1571 = vmatprep.subr.mxu0 0.0
  %1572 = vmatpush1.msra.mxu0 0.0
  %1573 = vmatprep.subr.mxu0 0.0
  %1574 = vmatpush1.msra.mxu0 0.0
  %1575 = vmatprep.subr.mxu0 0.0
  %1576 = vmatpush1.msra.mxu0 0.0
  %1577 = vmatprep.mubr.f32.mxu0 0.0
  %1578 = vmatmul.mubr.f32.gmra.mrb[0].mxu0 %v1511
  %v1579 = vpop.f32.mrb[0].mxu0
  %v1580 = vadd.f32 %v1508, %v1579
  %v1581 = vpop.f32.mrb[0].mxu0
  %1582 = vdwg.mxu0
  %v1583 = vtanh.pop %v1580
  %v1584 = vld [vmem:[#allocation4] sm:$0xff]
  %v1585 = vld [vmem:[#allocation4 + $0x8] sm:$0xff]
  %v1586 = vld [vmem:[%s13] sm:$0xff]
  %v1587 = vld [vmem:[%s13 + $0x8] sm:$0xff]
  %v1588 = vld [vmem:[%s13 + $0x10] sm:$0xff]
  %v1589 = vld [vmem:[%s13 + $0x18] sm:$0xff]
  %v1590 = vld [vmem:[%s13 + $0x20] sm:$0xff]
  %v1591 = vld [vmem:[%s13 + $0x28] sm:$0xff]
  %v1592 = vld [vmem:[%s13 + $0x30] sm:$0xff]
  %v1593 = vld [vmem:[%s13 + $0x38] sm:$0xff]
  %v1594 = vld [vmem:[%s14] sm:$0x1]
  %v1596 = vlaneseq
  %v1597 = vshrl.u32 %v1596, 7
  %v1598 = vsub.s32 0, %v1597
  %v1599 = vrot.slane %v1594, %v1598
  %v1602 = vsel %vm484, %v1584, 0
  %v1605 = vsel %vm484, %v1585, 0
  %1607 = vmatprep.subr.mxu0 0.0
  %1608 = vmatpush1.msra.mxu0 %v1586
  %1609 = vmatprep.subr.mxu0 0.0
  %1610 = vmatpush1.msra.mxu0 %v1587
  %1611 = vmatprep.subr.mxu0 0.0
  %1612 = vmatpush1.msra.mxu0 %v1588
  %1613 = vmatprep.subr.mxu0 0.0
  %1614 = vmatpush1.msra.mxu0 %v1589
  %1615 = vmatprep.subr.mxu0 0.0
  %1616 = vmatpush1.msra.mxu0 %v1590
  %1617 = vmatprep.subr.mxu0 0.0
  %1618 = vmatpush1.msra.mxu0 %v1591
  %1619 = vmatprep.subr.mxu0 0.0
  %1620 = vmatpush1.msra.mxu0 %v1592
  %1621 = vmatprep.subr.mxu0 0.0
  %1622 = vmatpush1.msra.mxu0 %v1593
  %1623 = vmatprep.subr.mxu0 0.0
  %1624 = vmatpush1.msra.mxu0 0.0
  %1625 = vmatprep.subr.mxu0 0.0
  %1626 = vmatpush1.msra.mxu0 0.0
  %1627 = vmatprep.subr.mxu0 0.0
  %1628 = vmatpush1.msra.mxu0 0.0
  %1629 = vmatprep.subr.mxu0 0.0
  %1630 = vmatpush1.msra.mxu0 0.0
  %1631 = vmatprep.subr.mxu0 0.0
  %1632 = vmatpush1.msra.mxu0 0.0
  %1633 = vmatprep.subr.mxu0 0.0
  %1634 = vmatpush1.msra.mxu0 0.0
  %1635 = vmatprep.subr.mxu0 0.0
  %1636 = vmatpush1.msra.mxu0 0.0
  %1637 = vmatprep.subr.mxu0 0.0
  %1638 = vmatpush1.msra.mxu0 0.0
  %1639 = vmatprep.subr.mxu0 0.0
  %1640 = vmatpush1.msra.mxu0 0.0
  %1641 = vmatprep.subr.mxu0 0.0
  %1642 = vmatpush1.msra.mxu0 0.0
  %1643 = vmatprep.subr.mxu0 0.0
  %1644 = vmatpush1.msra.mxu0 0.0
  %1645 = vmatprep.subr.mxu0 0.0
  %1646 = vmatpush1.msra.mxu0 0.0
  %1647 = vmatprep.subr.mxu0 0.0
  %1648 = vmatpush1.msra.mxu0 0.0
  %1649 = vmatprep.subr.mxu0 0.0
  %1650 = vmatpush1.msra.mxu0 0.0
  %1651 = vmatprep.subr.mxu0 0.0
  %1652 = vmatpush1.msra.mxu0 0.0
  %1653 = vmatprep.subr.mxu0 0.0
  %1654 = vmatpush1.msra.mxu0 0.0
  %1655 = vmatprep.subr.mxu0 0.0
  %1656 = vmatpush1.msra.mxu0 0.0
  %1657 = vmatprep.subr.mxu0 0.0
  %1658 = vmatpush1.msra.mxu0 0.0
  %1659 = vmatprep.subr.mxu0 0.0
  %1660 = vmatpush1.msra.mxu0 0.0
  %1661 = vmatprep.subr.mxu0 0.0
  %1662 = vmatpush1.msra.mxu0 0.0
  %1663 = vmatprep.subr.mxu0 0.0
  %1664 = vmatpush1.msra.mxu0 0.0
  %1665 = vmatprep.subr.mxu0 0.0
  %1666 = vmatpush1.msra.mxu0 0.0
  %1667 = vmatprep.subr.mxu0 0.0
  %1668 = vmatpush1.msra.mxu0 0.0
  %1669 = vmatprep.subr.mxu0 0.0
  %1670 = vmatpush1.msra.mxu0 0.0
  %1671 = vmatprep.mubr.f32.mxu0 0.0
  %1672 = vmatmul.mubr.f32.gmra.mrb[0].mxu0 %v1602
  %v1673 = vpop.f32.mrb[0].mxu0
  %v1674 = vadd.f32 %v1599, %v1673
  %v1675 = vpop.f32.mrb[0].mxu0
  %1676 = vmatprep.mubr.f32.mxu0 0.0
  %1677 = vmatmul.mubr.f32.gmra.mrb[0].mxu0 %v1605
  %v1678 = vpop.f32.mrb[0].mxu0
  %v1679 = vadd.f32 %v1599, %v1678
  %v1680 = vpop.f32.mrb[0].mxu0
  %1681 = vdwg.mxu0
  %1682 = vst [vmem:[#allocation5] sm:$0xff] %v1674
  %1683 = vst [vmem:[#allocation5 + $0x8] sm:$0xff] %v1679
  %v1684 = vld [vmem:[%s15] sm:$0xff]
  %v1685 = vld [vmem:[%s15 + $0x8] sm:$0xff]
  %v1686 = vld [vmem:[%s15 + $0x10] sm:$0xff]
  %v1687 = vld [vmem:[%s15 + $0x18] sm:$0xff]
  %v1688 = vld [vmem:[#allocation5] sm:$0x3]
  %v1690 = vsel %vm87, %v1583, 0
  %1692 = vmatprep.subr.mxu0 0.0
  %1693 = vmatpush1.msra.mxu0 %v1684
  %1694 = vmatprep.subr.mxu0 0.0
  %1695 = vmatpush1.msra.mxu0 %v1685
  %1696 = vmatprep.subr.mxu0 0.0
  %1697 = vmatpush1.msra.mxu0 %v1686
  %1698 = vmatprep.subr.mxu0 0.0
  %1699 = vmatpush1.msra.mxu0 %v1687
  %1700 = vmatprep.subr.mxu0 0.0
  %1701 = vmatpush1.msra.mxu0 0.0
  %1702 = vmatprep.subr.mxu0 0.0
  %1703 = vmatpush1.msra.mxu0 0.0
  %1704 = vmatprep.subr.mxu0 0.0
  %1705 = vmatpush1.msra.mxu0 0.0
  %1706 = vmatprep.subr.mxu0 0.0
  %1707 = vmatpush1.msra.mxu0 0.0
  %1708 = vmatprep.subr.mxu0 0.0
  %1709 = vmatpush1.msra.mxu0 0.0
  %1710 = vmatprep.subr.mxu0 0.0
  %1711 = vmatpush1.msra.mxu0 0.0
  %1712 = vmatprep.subr.mxu0 0.0
  %1713 = vmatpush1.msra.mxu0 0.0
  %1714 = vmatprep.subr.mxu0 0.0
  %1715 = vmatpush1.msra.mxu0 0.0
  %1716 = vmatprep.subr.mxu0 0.0
  %1717 = vmatpush1.msra.mxu0 0.0
  %1718 = vmatprep.subr.mxu0 0.0
  %1719 = vmatpush1.msra.mxu0 0.0
  %1720 = vmatprep.subr.mxu0 0.0
  %1721 = vmatpush1.msra.mxu0 0.0
  %1722 = vmatprep.subr.mxu0 0.0
  %1723 = vmatpush1.msra.mxu0 0.0
  %1724 = vmatprep.subr.mxu0 0.0
  %1725 = vmatpush1.msra.mxu0 0.0
  %1726 = vmatprep.subr.mxu0 0.0
  %1727 = vmatpush1.msra.mxu0 0.0
  %1728 = vmatprep.subr.mxu0 0.0
  %1729 = vmatpush1.msra.mxu0 0.0
  %1730 = vmatprep.subr.mxu0 0.0
  %1731 = vmatpush1.msra.mxu0 0.0
  %1732 = vmatprep.subr.mxu0 0.0
  %1733 = vmatpush1.msra.mxu0 0.0
  %1734 = vmatprep.subr.mxu0 0.0
  %1735 = vmatpush1.msra.mxu0 0.0
  %1736 = vmatprep.subr.mxu0 0.0
  %1737 = vmatpush1.msra.mxu0 0.0
  %1738 = vmatprep.subr.mxu0 0.0
  %1739 = vmatpush1.msra.mxu0 0.0
  %1740 = vmatprep.subr.mxu0 0.0
  %1741 = vmatpush1.msra.mxu0 0.0
  %1742 = vmatprep.subr.mxu0 0.0
  %1743 = vmatpush1.msra.mxu0 0.0
  %1744 = vmatprep.subr.mxu0 0.0
  %1745 = vmatpush1.msra.mxu0 0.0
  %1746 = vmatprep.subr.mxu0 0.0
  %1747 = vmatpush1.msra.mxu0 0.0
  %1748 = vmatprep.subr.mxu0 0.0
  %1749 = vmatpush1.msra.mxu0 0.0
  %1750 = vmatprep.subr.mxu0 0.0
  %1751 = vmatpush1.msra.mxu0 0.0
  %1752 = vmatprep.subr.mxu0 0.0
  %1753 = vmatpush1.msra.mxu0 0.0
  %1754 = vmatprep.subr.mxu0 0.0
  %1755 = vmatpush1.msra.mxu0 0.0
  %1756 = vmatprep.mubr.f32.mxu0 0.0
  %1757 = vmatmul.mubr.f32.gmra.mrb[0].mxu0 %v1690
  %v1758 = vpop.f32.mrb[0].mxu0
  %v1759 = vadd.f32 0.0, %v1758
  %v1760 = vpop.f32.mrb[0].mxu0
  %1761 = vdwg.mxu0
  %v1762 = vadd.f32 %v1688, %v1759
  %v1763 = vmul.f32 %v1762, 0.5
  %v1764 = vtanh.pop %v1763
  %v1765 = vmul.f32 %v1764, 0.5
  %v1766 = vadd.f32 %v1765, 0.5
  %v1767 = vtanh.pop %v1762
  %1769 = vrot.lane.b32.xlu0 %v1580, 32
  %v1770 = vpop.permute.xlu0 %1769
  %v1772 = vmul.f32 %v1766, %v1770
  %1774 = vrot.lane.b32.xlu0 %v1767, 32
  %v1775 = vpop.permute.xlu0 %1774
  %v1777 = vmul.f32 %v1766, %v1775
  %1779 = vrot.lane.b32.xlu0 %v1777, 32
  %v1780 = vpop.permute.xlu0 %1779
  %v1782 = vadd.f32 %v1772, %v1780
  %v1783 = vtanh.pop %v1782
  %1785 = vrot.lane.b32.xlu0 %v1783, 32
  %v1786 = vpop.permute.xlu0 %1785
  %v1788 = vmul.f32 %v1766, %v1786
  %1790 = vrot.lane.b32.xlu0 %v1788, 64
  %v1791 = vpop.permute.xlu0 %1790
  %v1793 = vsel %vm452, %v1791, %v1583
  %1795 = vrot.lane.b32.xlu0 %v1782, 96
  %v1796 = vpop.permute.xlu0 %1795
  %v1798 = vsel %vm452, %v1796, %v1580
  %1799 = vst.msk [vmem:[#allocation6] sm:$0x1] %vm427, %v1791
  %1800 = vst.msk [vmem:[#allocation6 + $0x7] sm:$0x2] %vm431, %v1791
  %v1801 = vld [vmem:[#allocation5 + $0x2] sm:$0x3]
  %v1803 = vsel %vm87, %v1793, 0
  %1805 = vmatprep.subr.mxu0 0.0
  %1806 = vmatpush1.msra.mxu0 %v1684
  %1807 = vmatprep.subr.mxu0 0.0
  %1808 = vmatpush1.msra.mxu0 %v1685
  %1809 = vmatprep.subr.mxu0 0.0
  %1810 = vmatpush1.msra.mxu0 %v1686
  %1811 = vmatprep.subr.mxu0 0.0
  %1812 = vmatpush1.msra.mxu0 %v1687
  %1813 = vmatprep.subr.mxu0 0.0
  %1814 = vmatpush1.msra.mxu0 0.0
  %1815 = vmatprep.subr.mxu0 0.0
  %1816 = vmatpush1.msra.mxu0 0.0
  %1817 = vmatprep.subr.mxu0 0.0
  %1818 = vmatpush1.msra.mxu0 0.0
  %1819 = vmatprep.subr.mxu0 0.0
  %1820 = vmatpush1.msra.mxu0 0.0
  %1821 = vmatprep.subr.mxu0 0.0
  %1822 = vmatpush1.msra.mxu0 0.0
  %1823 = vmatprep.subr.mxu0 0.0
  %1824 = vmatpush1.msra.mxu0 0.0
  %1825 = vmatprep.subr.mxu0 0.0
  %1826 = vmatpush1.msra.mxu0 0.0
  %1827 = vmatprep.subr.mxu0 0.0
  %1828 = vmatpush1.msra.mxu0 0.0
  %1829 = vmatprep.subr.mxu0 0.0
  %1830 = vmatpush1.msra.mxu0 0.0
  %1831 = vmatprep.subr.mxu0 0.0
  %1832 = vmatpush1.msra.mxu0 0.0
  %1833 = vmatprep.subr.mxu0 0.0
  %1834 = vmatpush1.msra.mxu0 0.0
  %1835 = vmatprep.subr.mxu0 0.0
  %1836 = vmatpush1.msra.mxu0 0.0
  %1837 = vmatprep.subr.mxu0 0.0
  %1838 = vmatpush1.msra.mxu0 0.0
  %1839 = vmatprep.subr.mxu0 0.0
  %1840 = vmatpush1.msra.mxu0 0.0
  %1841 = vmatprep.subr.mxu0 0.0
  %1842 = vmatpush1.msra.mxu0 0.0
  %1843 = vmatprep.subr.mxu0 0.0
  %1844 = vmatpush1.msra.mxu0 0.0
  %1845 = vmatprep.subr.mxu0 0.0
  %1846 = vmatpush1.msra.mxu0 0.0
  %1847 = vmatprep.subr.mxu0 0.0
  %1848 = vmatpush1.msra.mxu0 0.0
  %1849 = vmatprep.subr.mxu0 0.0
  %1850 = vmatpush1.msra.mxu0 0.0
  %1851 = vmatprep.subr.mxu0 0.0
  %1852 = vmatpush1.msra.mxu0 0.0
  %1853 = vmatprep.subr.mxu0 0.0
  %1854 = vmatpush1.msra.mxu0 0.0
  %1855 = vmatprep.subr.mxu0 0.0
  %1856 = vmatpush1.msra.mxu0 0.0
  %1857 = vmatprep.subr.mxu0 0.0
  %1858 = vmatpush1.msra.mxu0 0.0
  %1859 = vmatprep.subr.mxu0 0.0
  %1860 = vmatpush1.msra.mxu0 0.0
  %1861 = vmatprep.subr.mxu0 0.0
  %1862 = vmatpush1.msra.mxu0 0.0
  %1863 = vmatprep.subr.mxu0 0.0
  %1864 = vmatpush1.msra.mxu0 0.0
  %1865 = vmatprep.subr.mxu0 0.0
  %1866 = vmatpush1.msra.mxu0 0.0
  %1867 = vmatprep.subr.mxu0 0.0
  %1868 = vmatpush1.msra.mxu0 0.0
  %1869 = vmatprep.mubr.f32.mxu0 0.0
  %1870 = vmatmul.mubr.f32.gmra.mrb[0].mxu0 %v1803
  %v1871 = vpop.f32.mrb[0].mxu0
  %v1872 = vadd.f32 0.0, %v1871
  %v1873 = vpop.f32.mrb[0].mxu0
  %1874 = vdwg.mxu0
  %v1875 = vadd.f32 %v1801, %v1872
  %v1876 = vmul.f32 %v1875, 0.5
  %v1877 = vtanh.pop %v1876
  %v1878 = vmul.f32 %v1877, 0.5
  %v1879 = vadd.f32 %v1878, 0.5
  %v1880 = vtanh.pop %v1875
  %1882 = vrot.lane.b32.xlu0 %v1798, 32
  %v1883 = vpop.permute.xlu0 %1882
  %v1885 = vmul.f32 %v1879, %v1883
  %1887 = vrot.lane.b32.xlu0 %v1880, 32
  %v1888 = vpop.permute.xlu0 %1887
  %v1890 = vmul.f32 %v1879, %v1888
  %1892 = vrot.lane.b32.xlu0 %v1890, 32
  %v1893 = vpop.permute.xlu0 %1892
  %v1895 = vadd.f32 %v1885, %v1893
  %v1896 = vtanh.pop %v1895
  %1898 = vrot.lane.b32.xlu0 %v1896, 32
  %v1899 = vpop.permute.xlu0 %1898
  %v1901 = vmul.f32 %v1879, %v1899
  %1903 = vrot.lane.b32.xlu0 %v1901, 64
  %v1904 = vpop.permute.xlu0 %1903
  %v1906 = vsel %vm454, %v1904, %v1793
  %1908 = vrot.lane.b32.xlu0 %v1895, 96
  %v1909 = vpop.permute.xlu0 %1908
  %v1911 = vsel %vm454, %v1909, %v1798
  %1912 = vst.msk [vmem:[#allocation6 + $0x1] sm:$0x1] %vm427, %v1904
  %1913 = vst.msk [vmem:[#allocation6 + $0x8] sm:$0x2] %vm431, %v1904
  %v1914 = vld [vmem:[#allocation5 + $0x4] sm:$0x3]
  %v1916 = vsel %vm87, %v1906, 0
  %1918 = vmatprep.subr.mxu0 0.0
  %1919 = vmatpush1.msra.mxu0 %v1684
  %1920 = vmatprep.subr.mxu0 0.0
  %1921 = vmatpush1.msra.mxu0 %v1685
  %1922 = vmatprep.subr.mxu0 0.0
  %1923 = vmatpush1.msra.mxu0 %v1686
  %1924 = vmatprep.subr.mxu0 0.0
  %1925 = vmatpush1.msra.mxu0 %v1687
  %1926 = vmatprep.subr.mxu0 0.0
  %1927 = vmatpush1.msra.mxu0 0.0
  %1928 = vmatprep.subr.mxu0 0.0
  %1929 = vmatpush1.msra.mxu0 0.0
  %1930 = vmatprep.subr.mxu0 0.0
  %1931 = vmatpush1.msra.mxu0 0.0
  %1932 = vmatprep.subr.mxu0 0.0
  %1933 = vmatpush1.msra.mxu0 0.0
  %1934 = vmatprep.subr.mxu0 0.0
  %1935 = vmatpush1.msra.mxu0 0.0
  %1936 = vmatprep.subr.mxu0 0.0
  %1937 = vmatpush1.msra.mxu0 0.0
  %1938 = vmatprep.subr.mxu0 0.0
  %1939 = vmatpush1.msra.mxu0 0.0
  %1940 = vmatprep.subr.mxu0 0.0
  %1941 = vmatpush1.msra.mxu0 0.0
  %1942 = vmatprep.subr.mxu0 0.0
  %1943 = vmatpush1.msra.mxu0 0.0
  %1944 = vmatprep.subr.mxu0 0.0
  %1945 = vmatpush1.msra.mxu0 0.0
  %1946 = vmatprep.subr.mxu0 0.0
  %1947 = vmatpush1.msra.mxu0 0.0
  %1948 = vmatprep.subr.mxu0 0.0
  %1949 = vmatpush1.msra.mxu0 0.0
  %1950 = vmatprep.subr.mxu0 0.0
  %1951 = vmatpush1.msra.mxu0 0.0
  %1952 = vmatprep.subr.mxu0 0.0
  %1953 = vmatpush1.msra.mxu0 0.0
  %1954 = vmatprep.subr.mxu0 0.0
  %1955 = vmatpush1.msra.mxu0 0.0
  %1956 = vmatprep.subr.mxu0 0.0
  %1957 = vmatpush1.msra.mxu0 0.0
  %1958 = vmatprep.subr.mxu0 0.0
  %1959 = vmatpush1.msra.mxu0 0.0
  %1960 = vmatprep.subr.mxu0 0.0
  %1961 = vmatpush1.msra.mxu0 0.0
  %1962 = vmatprep.subr.mxu0 0.0
  %1963 = vmatpush1.msra.mxu0 0.0
  %1964 = vmatprep.subr.mxu0 0.0
  %1965 = vmatpush1.msra.mxu0 0.0
  %1966 = vmatprep.subr.mxu0 0.0
  %1967 = vmatpush1.msra.mxu0 0.0
  %1968 = vmatprep.subr.mxu0 0.0
  %1969 = vmatpush1.msra.mxu0 0.0
  %1970 = vmatprep.subr.mxu0 0.0
  %1971 = vmatpush1.msra.mxu0 0.0
  %1972 = vmatprep.subr.mxu0 0.0
  %1973 = vmatpush1.msra.mxu0 0.0
  %1974 = vmatprep.subr.mxu0 0.0
  %1975 = vmatpush1.msra.mxu0 0.0
  %1976 = vmatprep.subr.mxu0 0.0
  %1977 = vmatpush1.msra.mxu0 0.0
  %1978 = vmatprep.subr.mxu0 0.0
  %1979 = vmatpush1.msra.mxu0 0.0
  %1980 = vmatprep.subr.mxu0 0.0
  %1981 = vmatpush1.msra.mxu0 0.0
  %1982 = vmatprep.mubr.f32.mxu0 0.0
  %1983 = vmatmul.mubr.f32.gmra.mrb[0].mxu0 %v1916
  %v1984 = vpop.f32.mrb[0].mxu0
  %v1985 = vadd.f32 0.0, %v1984
  %v1986 = vpop.f32.mrb[0].mxu0
  %1987 = vdwg.mxu0
  %v1988 = vadd.f32 %v1914, %v1985
  %v1989 = vmul.f32 %v1988, 0.5
  %v1990 = vtanh.pop %v1989
  %v1991 = vmul.f32 %v1990, 0.5
  %v1992 = vadd.f32 %v1991, 0.5
  %v1993 = vtanh.pop %v1988
  %1995 = vrot.lane.b32.xlu0 %v1911, 32
  %v1996 = vpop.permute.xlu0 %1995
  %v1998 = vmul.f32 %v1992, %v1996
  %2000 = vrot.lane.b32.xlu0 %v1993, 32
  %v2001 = vpop.permute.xlu0 %2000
  %v2003 = vmul.f32 %v1992, %v2001
  %2005 = vrot.lane.b32.xlu0 %v2003, 32
  %v2006 = vpop.permute.xlu0 %2005
  %v2008 = vadd.f32 %v1998, %v2006
  %v2009 = vtanh.pop %v2008
  %2011 = vrot.lane.b32.xlu0 %v2009, 32
  %v2012 = vpop.permute.xlu0 %2011
  %v2014 = vmul.f32 %v1992, %v2012
  %2016 = vrot.lane.b32.xlu0 %v2014, 64
  %v2017 = vpop.permute.xlu0 %2016
  %v2019 = vsel %vm456, %v2017, %v1906
  %2021 = vrot.lane.b32.xlu0 %v2008, 96
  %v2022 = vpop.permute.xlu0 %2021
  %v2024 = vsel %vm456, %v2022, %v1911
  %2025 = vst.msk [vmem:[#allocation6 + $0x2] sm:$0x1] %vm427, %v2017
  %2026 = vst.msk [vmem:[#allocation6 + $0x9] sm:$0x2] %vm431, %v2017
  %v2027 = vld [vmem:[#allocation5 + $0x6] sm:$0x3]
  %v2029 = vsel %vm87, %v2019, 0
  %2031 = vmatprep.subr.mxu0 0.0
  %2032 = vmatpush1.msra.mxu0 %v1684
  %2033 = vmatprep.subr.mxu0 0.0
  %2034 = vmatpush1.msra.mxu0 %v1685
  %2035 = vmatprep.subr.mxu0 0.0
  %2036 = vmatpush1.msra.mxu0 %v1686
  %2037 = vmatprep.subr.mxu0 0.0
  %2038 = vmatpush1.msra.mxu0 %v1687
  %2039 = vmatprep.subr.mxu0 0.0
  %2040 = vmatpush1.msra.mxu0 0.0
  %2041 = vmatprep.subr.mxu0 0.0
  %2042 = vmatpush1.msra.mxu0 0.0
  %2043 = vmatprep.subr.mxu0 0.0
  %2044 = vmatpush1.msra.mxu0 0.0
  %2045 = vmatprep.subr.mxu0 0.0
  %2046 = vmatpush1.msra.mxu0 0.0
  %2047 = vmatprep.subr.mxu0 0.0
  %2048 = vmatpush1.msra.mxu0 0.0
  %2049 = vmatprep.subr.mxu0 0.0
  %2050 = vmatpush1.msra.mxu0 0.0
  %2051 = vmatprep.subr.mxu0 0.0
  %2052 = vmatpush1.msra.mxu0 0.0
  %2053 = vmatprep.subr.mxu0 0.0
  %2054 = vmatpush1.msra.mxu0 0.0
  %2055 = vmatprep.subr.mxu0 0.0
  %2056 = vmatpush1.msra.mxu0 0.0
  %2057 = vmatprep.subr.mxu0 0.0
  %2058 = vmatpush1.msra.mxu0 0.0
  %2059 = vmatprep.subr.mxu0 0.0
  %2060 = vmatpush1.msra.mxu0 0.0
  %2061 = vmatprep.subr.mxu0 0.0
  %2062 = vmatpush1.msra.mxu0 0.0
  %2063 = vmatprep.subr.mxu0 0.0
  %2064 = vmatpush1.msra.mxu0 0.0
  %2065 = vmatprep.subr.mxu0 0.0
  %2066 = vmatpush1.msra.mxu0 0.0
  %2067 = vmatprep.subr.mxu0 0.0
  %2068 = vmatpush1.msra.mxu0 0.0
  %2069 = vmatprep.subr.mxu0 0.0
  %2070 = vmatpush1.msra.mxu0 0.0
  %2071 = vmatprep.subr.mxu0 0.0
  %2072 = vmatpush1.msra.mxu0 0.0
  %2073 = vmatprep.subr.mxu0 0.0
  %2074 = vmatpush1.msra.mxu0 0.0
  %2075 = vmatprep.subr.mxu0 0.0
  %2076 = vmatpush1.msra.mxu0 0.0
  %2077 = vmatprep.subr.mxu0 0.0
  %2078 = vmatpush1.msra.mxu0 0.0
  %2079 = vmatprep.subr.mxu0 0.0
  %2080 = vmatpush1.msra.mxu0 0.0
  %2081 = vmatprep.subr.mxu0 0.0
  %2082 = vmatpush1.msra.mxu0 0.0
  %2083 = vmatprep.subr.mxu0 0.0
  %2084 = vmatpush1.msra.mxu0 0.0
  %2085 = vmatprep.subr.mxu0 0.0
  %2086 = vmatpush1.msra.mxu0 0.0
  %2087 = vmatprep.subr.mxu0 0.0
  %2088 = vmatpush1.msra.mxu0 0.0
  %2089 = vmatprep.subr.mxu0 0.0
  %2090 = vmatpush1.msra.mxu0 0.0
  %2091 = vmatprep.subr.mxu0 0.0
  %2092 = vmatpush1.msra.mxu0 0.0
  %2093 = vmatprep.subr.mxu0 0.0
  %2094 = vmatpush1.msra.mxu0 0.0
  %2095 = vmatprep.mubr.f32.mxu0 0.0
  %2096 = vmatmul.mubr.f32.gmra.mrb[0].mxu0 %v2029
  %v2097 = vpop.f32.mrb[0].mxu0
  %v2098 = vadd.f32 0.0, %v2097
  %v2099 = vpop.f32.mrb[0].mxu0
  %2100 = vdwg.mxu0
  %v2101 = vadd.f32 %v2027, %v2098
  %v2102 = vmul.f32 %v2101, 0.5
  %v2103 = vtanh.pop %v2102
  %v2104 = vmul.f32 %v2103, 0.5
  %v2105 = vadd.f32 %v2104, 0.5
  %v2106 = vtanh.pop %v2101
  %2108 = vrot.lane.b32.xlu0 %v2024, 32
  %v2109 = vpop.permute.xlu0 %2108
  %v2111 = vmul.f32 %v2105, %v2109
  %2113 = vrot.lane.b32.xlu0 %v2106, 32
  %v2114 = vpop.permute.xlu0 %2113
  %v2116 = vmul.f32 %v2105, %v2114
  %2118 = vrot.lane.b32.xlu0 %v2116, 32
  %v2119 = vpop.permute.xlu0 %2118
  %v2121 = vadd.f32 %v2111, %v2119
  %v2122 = vtanh.pop %v2121
  %2124 = vrot.lane.b32.xlu0 %v2122, 32
  %v2125 = vpop.permute.xlu0 %2124
  %v2127 = vmul.f32 %v2105, %v2125
  %2129 = vrot.lane.b32.xlu0 %v2127, 64
  %v2130 = vpop.permute.xlu0 %2129
  %v2132 = vsel %vm458, %v2130, %v2019
  %2134 = vrot.lane.b32.xlu0 %v2121, 96
  %v2135 = vpop.permute.xlu0 %2134
  %v2137 = vsel %vm458, %v2135, %v2024
  %2138 = vst.msk [vmem:[#allocation6 + $0x3] sm:$0x1] %vm427, %v2130
  %2139 = vst.msk [vmem:[#allocation6 + $0xa] sm:$0x2] %vm431, %v2130
  %v2140 = vld [vmem:[#allocation5 + $0x8] sm:$0x3]
  %v2142 = vsel %vm87, %v2132, 0
  %2144 = vmatprep.subr.mxu0 0.0
  %2145 = vmatpush1.msra.mxu0 %v1684
  %2146 = vmatprep.subr.mxu0 0.0
  %2147 = vmatpush1.msra.mxu0 %v1685
  %2148 = vmatprep.subr.mxu0 0.0
  %2149 = vmatpush1.msra.mxu0 %v1686
  %2150 = vmatprep.subr.mxu0 0.0
  %2151 = vmatpush1.msra.mxu0 %v1687
  %2152 = vmatprep.subr.mxu0 0.0
  %2153 = vmatpush1.msra.mxu0 0.0
  %2154 = vmatprep.subr.mxu0 0.0
  %2155 = vmatpush1.msra.mxu0 0.0
  %2156 = vmatprep.subr.mxu0 0.0
  %2157 = vmatpush1.msra.mxu0 0.0
  %2158 = vmatprep.subr.mxu0 0.0
  %2159 = vmatpush1.msra.mxu0 0.0
  %2160 = vmatprep.subr.mxu0 0.0
  %2161 = vmatpush1.msra.mxu0 0.0
  %2162 = vmatprep.subr.mxu0 0.0
  %2163 = vmatpush1.msra.mxu0 0.0
  %2164 = vmatprep.subr.mxu0 0.0
  %2165 = vmatpush1.msra.mxu0 0.0
  %2166 = vmatprep.subr.mxu0 0.0
  %2167 = vmatpush1.msra.mxu0 0.0
  %2168 = vmatprep.subr.mxu0 0.0
  %2169 = vmatpush1.msra.mxu0 0.0
  %2170 = vmatprep.subr.mxu0 0.0
  %2171 = vmatpush1.msra.mxu0 0.0
  %2172 = vmatprep.subr.mxu0 0.0
  %2173 = vmatpush1.msra.mxu0 0.0
  %2174 = vmatprep.subr.mxu0 0.0
  %2175 = vmatpush1.msra.mxu0 0.0
  %2176 = vmatprep.subr.mxu0 0.0
  %2177 = vmatpush1.msra.mxu0 0.0
  %2178 = vmatprep.subr.mxu0 0.0
  %2179 = vmatpush1.msra.mxu0 0.0
  %2180 = vmatprep.subr.mxu0 0.0
  %2181 = vmatpush1.msra.mxu0 0.0
  %2182 = vmatprep.subr.mxu0 0.0
  %2183 = vmatpush1.msra.mxu0 0.0
  %2184 = vmatprep.subr.mxu0 0.0
  %2185 = vmatpush1.msra.mxu0 0.0
  %2186 = vmatprep.subr.mxu0 0.0
  %2187 = vmatpush1.msra.mxu0 0.0
  %2188 = vmatprep.subr.mxu0 0.0
  %2189 = vmatpush1.msra.mxu0 0.0
  %2190 = vmatprep.subr.mxu0 0.0
  %2191 = vmatpush1.msra.mxu0 0.0
  %2192 = vmatprep.subr.mxu0 0.0
  %2193 = vmatpush1.msra.mxu0 0.0
  %2194 = vmatprep.subr.mxu0 0.0
  %2195 = vmatpush1.msra.mxu0 0.0
  %2196 = vmatprep.subr.mxu0 0.0
  %2197 = vmatpush1.msra.mxu0 0.0
  %2198 = vmatprep.subr.mxu0 0.0
  %2199 = vmatpush1.msra.mxu0 0.0
  %2200 = vmatprep.subr.mxu0 0.0
  %2201 = vmatpush1.msra.mxu0 0.0
  %2202 = vmatprep.subr.mxu0 0.0
  %2203 = vmatpush1.msra.mxu0 0.0
  %2204 = vmatprep.subr.mxu0 0.0
  %2205 = vmatpush1.msra.mxu0 0.0
  %2206 = vmatprep.subr.mxu0 0.0
  %2207 = vmatpush1.msra.mxu0 0.0
  %2208 = vmatprep.mubr.f32.mxu0 0.0
  %2209 = vmatmul.mubr.f32.gmra.mrb[0].mxu0 %v2142
  %v2210 = vpop.f32.mrb[0].mxu0
  %v2211 = vadd.f32 0.0, %v2210
  %v2212 = vpop.f32.mrb[0].mxu0
  %2213 = vdwg.mxu0
  %v2214 = vadd.f32 %v2140, %v2211
  %v2215 = vmul.f32 %v2214, 0.5
  %v2216 = vtanh.pop %v2215
  %v2217 = vmul.f32 %v2216, 0.5
  %v2218 = vadd.f32 %v2217, 0.5
  %v2219 = vtanh.pop %v2214
  %2221 = vrot.lane.b32.xlu0 %v2137, 32
  %v2222 = vpop.permute.xlu0 %2221
  %v2224 = vmul.f32 %v2218, %v2222
  %2226 = vrot.lane.b32.xlu0 %v2219, 32
  %v2227 = vpop.permute.xlu0 %2226
  %v2229 = vmul.f32 %v2218, %v2227
  %2231 = vrot.lane.b32.xlu0 %v2229, 32
  %v2232 = vpop.permute.xlu0 %2231
  %v2234 = vadd.f32 %v2224, %v2232
  %v2235 = vtanh.pop %v2234
  %2237 = vrot.lane.b32.xlu0 %v2235, 32
  %v2238 = vpop.permute.xlu0 %2237
  %v2240 = vmul.f32 %v2218, %v2238
  %2242 = vrot.lane.b32.xlu0 %v2240, 64
  %v2243 = vpop.permute.xlu0 %2242
  %v2245 = vsel %vm460, %v2243, %v2132
  %2247 = vrot.lane.b32.xlu0 %v2234, 96
  %v2248 = vpop.permute.xlu0 %2247
  %v2250 = vsel %vm460, %v2248, %v2137
  %2251 = vst.msk [vmem:[#allocation6 + $0x4] sm:$0x1] %vm427, %v2243
  %2252 = vst.msk [vmem:[#allocation6 + $0xb] sm:$0x2] %vm431, %v2243
  %v2253 = vld [vmem:[#allocation5 + $0xa] sm:$0x3]
  %v2255 = vsel %vm87, %v2245, 0
  %2257 = vmatprep.subr.mxu0 0.0
  %2258 = vmatpush1.msra.mxu0 %v1684
  %2259 = vmatprep.subr.mxu0 0.0
  %2260 = vmatpush1.msra.mxu0 %v1685
  %2261 = vmatprep.subr.mxu0 0.0
  %2262 = vmatpush1.msra.mxu0 %v1686
  %2263 = vmatprep.subr.mxu0 0.0
  %2264 = vmatpush1.msra.mxu0 %v1687
  %2265 = vmatprep.subr.mxu0 0.0
  %2266 = vmatpush1.msra.mxu0 0.0
  %2267 = vmatprep.subr.mxu0 0.0
  %2268 = vmatpush1.msra.mxu0 0.0
  %2269 = vmatprep.subr.mxu0 0.0
  %2270 = vmatpush1.msra.mxu0 0.0
  %2271 = vmatprep.subr.mxu0 0.0
  %2272 = vmatpush1.msra.mxu0 0.0
  %2273 = vmatprep.subr.mxu0 0.0
  %2274 = vmatpush1.msra.mxu0 0.0
  %2275 = vmatprep.subr.mxu0 0.0
  %2276 = vmatpush1.msra.mxu0 0.0
  %2277 = vmatprep.subr.mxu0 0.0
  %2278 = vmatpush1.msra.mxu0 0.0
  %2279 = vmatprep.subr.mxu0 0.0
  %2280 = vmatpush1.msra.mxu0 0.0
  %2281 = vmatprep.subr.mxu0 0.0
  %2282 = vmatpush1.msra.mxu0 0.0
  %2283 = vmatprep.subr.mxu0 0.0
  %2284 = vmatpush1.msra.mxu0 0.0
  %2285 = vmatprep.subr.mxu0 0.0
  %2286 = vmatpush1.msra.mxu0 0.0
  %2287 = vmatprep.subr.mxu0 0.0
  %2288 = vmatpush1.msra.mxu0 0.0
  %2289 = vmatprep.subr.mxu0 0.0
  %2290 = vmatpush1.msra.mxu0 0.0
  %2291 = vmatprep.subr.mxu0 0.0
  %2292 = vmatpush1.msra.mxu0 0.0
  %2293 = vmatprep.subr.mxu0 0.0
  %2294 = vmatpush1.msra.mxu0 0.0
  %2295 = vmatprep.subr.mxu0 0.0
  %2296 = vmatpush1.msra.mxu0 0.0
  %2297 = vmatprep.subr.mxu0 0.0
  %2298 = vmatpush1.msra.mxu0 0.0
  %2299 = vmatprep.subr.mxu0 0.0
  %2300 = vmatpush1.msra.mxu0 0.0
  %2301 = vmatprep.subr.mxu0 0.0
  %2302 = vmatpush1.msra.mxu0 0.0
  %2303 = vmatprep.subr.mxu0 0.0
  %2304 = vmatpush1.msra.mxu0 0.0
  %2305 = vmatprep.subr.mxu0 0.0
  %2306 = vmatpush1.msra.mxu0 0.0
  %2307 = vmatprep.subr.mxu0 0.0
  %2308 = vmatpush1.msra.mxu0 0.0
  %2309 = vmatprep.subr.mxu0 0.0
  %2310 = vmatpush1.msra.mxu0 0.0
  %2311 = vmatprep.subr.mxu0 0.0
  %2312 = vmatpush1.msra.mxu0 0.0
  %2313 = vmatprep.subr.mxu0 0.0
  %2314 = vmatpush1.msra.mxu0 0.0
  %2315 = vmatprep.subr.mxu0 0.0
  %2316 = vmatpush1.msra.mxu0 0.0
  %2317 = vmatprep.subr.mxu0 0.0
  %2318 = vmatpush1.msra.mxu0 0.0
  %2319 = vmatprep.subr.mxu0 0.0
  %2320 = vmatpush1.msra.mxu0 0.0
  %2321 = vmatprep.mubr.f32.mxu0 0.0
  %2322 = vmatmul.mubr.f32.gmra.mrb[0].mxu0 %v2255
  %v2323 = vpop.f32.mrb[0].mxu0
  %v2324 = vadd.f32 0.0, %v2323
  %v2325 = vpop.f32.mrb[0].mxu0
  %2326 = vdwg.mxu0
  %v2327 = vadd.f32 %v2253, %v2324
  %v2328 = vmul.f32 %v2327, 0.5
  %v2329 = vtanh.pop %v2328
  %v2330 = vmul.f32 %v2329, 0.5
  %v2331 = vadd.f32 %v2330, 0.5
  %v2332 = vtanh.pop %v2327
  %2334 = vrot.lane.b32.xlu0 %v2250, 32
  %v2335 = vpop.permute.xlu0 %2334
  %v2337 = vmul.f32 %v2331, %v2335
  %2339 = vrot.lane.b32.xlu0 %v2332, 32
  %v2340 = vpop.permute.xlu0 %2339
  %v2342 = vmul.f32 %v2331, %v2340
  %2344 = vrot.lane.b32.xlu0 %v2342, 32
  %v2345 = vpop.permute.xlu0 %2344
  %v2347 = vadd.f32 %v2337, %v2345
  %v2348 = vtanh.pop %v2347
  %2350 = vrot.lane.b32.xlu0 %v2348, 32
  %v2351 = vpop.permute.xlu0 %2350
  %v2353 = vmul.f32 %v2331, %v2351
  %2355 = vrot.lane.b32.xlu0 %v2353, 64
  %v2356 = vpop.permute.xlu0 %2355
  %v2358 = vsel %vm462, %v2356, %v2245
  %2360 = vrot.lane.b32.xlu0 %v2347, 96
  %v2361 = vpop.permute.xlu0 %2360
  %v2363 = vsel %vm462, %v2361, %v2250
  %2364 = vst.msk [vmem:[#allocation6 + $0x5] sm:$0x1] %vm427, %v2356
  %2365 = vst.msk [vmem:[#allocation6 + $0xc] sm:$0x2] %vm431, %v2356
  %v2366 = vld [vmem:[#allocation5 + $0xc] sm:$0x3]
  %v2368 = vsel %vm87, %v2358, 0
  %2370 = vmatprep.subr.mxu0 0.0
  %2371 = vmatpush1.msra.mxu0 %v1684
  %2372 = vmatprep.subr.mxu0 0.0
  %2373 = vmatpush1.msra.mxu0 %v1685
  %2374 = vmatprep.subr.mxu0 0.0
  %2375 = vmatpush1.msra.mxu0 %v1686
  %2376 = vmatprep.subr.mxu0 0.0
  %2377 = vmatpush1.msra.mxu0 %v1687
  %2378 = vmatprep.subr.mxu0 0.0
  %2379 = vmatpush1.msra.mxu0 0.0
  %2380 = vmatprep.subr.mxu0 0.0
  %2381 = vmatpush1.msra.mxu0 0.0
  %2382 = vmatprep.subr.mxu0 0.0
  %2383 = vmatpush1.msra.mxu0 0.0
  %2384 = vmatprep.subr.mxu0 0.0
  %2385 = vmatpush1.msra.mxu0 0.0
  %2386 = vmatprep.subr.mxu0 0.0
  %2387 = vmatpush1.msra.mxu0 0.0
  %2388 = vmatprep.subr.mxu0 0.0
  %2389 = vmatpush1.msra.mxu0 0.0
  %2390 = vmatprep.subr.mxu0 0.0
  %2391 = vmatpush1.msra.mxu0 0.0
  %2392 = vmatprep.subr.mxu0 0.0
  %2393 = vmatpush1.msra.mxu0 0.0
  %2394 = vmatprep.subr.mxu0 0.0
  %2395 = vmatpush1.msra.mxu0 0.0
  %2396 = vmatprep.subr.mxu0 0.0
  %2397 = vmatpush1.msra.mxu0 0.0
  %2398 = vmatprep.subr.mxu0 0.0
  %2399 = vmatpush1.msra.mxu0 0.0
  %2400 = vmatprep.subr.mxu0 0.0
  %2401 = vmatpush1.msra.mxu0 0.0
  %2402 = vmatprep.subr.mxu0 0.0
  %2403 = vmatpush1.msra.mxu0 0.0
  %2404 = vmatprep.subr.mxu0 0.0
  %2405 = vmatpush1.msra.mxu0 0.0
  %2406 = vmatprep.subr.mxu0 0.0
  %2407 = vmatpush1.msra.mxu0 0.0
  %2408 = vmatprep.subr.mxu0 0.0
  %2409 = vmatpush1.msra.mxu0 0.0
  %2410 = vmatprep.subr.mxu0 0.0
  %2411 = vmatpush1.msra.mxu0 0.0
  %2412 = vmatprep.subr.mxu0 0.0
  %2413 = vmatpush1.msra.mxu0 0.0
  %2414 = vmatprep.subr.mxu0 0.0
  %2415 = vmatpush1.msra.mxu0 0.0
  %2416 = vmatprep.subr.mxu0 0.0
  %2417 = vmatpush1.msra.mxu0 0.0
  %2418 = vmatprep.subr.mxu0 0.0
  %2419 = vmatpush1.msra.mxu0 0.0
  %2420 = vmatprep.subr.mxu0 0.0
  %2421 = vmatpush1.msra.mxu0 0.0
  %2422 = vmatprep.subr.mxu0 0.0
  %2423 = vmatpush1.msra.mxu0 0.0
  %2424 = vmatprep.subr.mxu0 0.0
  %2425 = vmatpush1.msra.mxu0 0.0
  %2426 = vmatprep.subr.mxu0 0.0
  %2427 = vmatpush1.msra.mxu0 0.0
  %2428 = vmatprep.subr.mxu0 0.0
  %2429 = vmatpush1.msra.mxu0 0.0
  %2430 = vmatprep.subr.mxu0 0.0
  %2431 = vmatpush1.msra.mxu0 0.0
  %2432 = vmatprep.subr.mxu0 0.0
  %2433 = vmatpush1.msra.mxu0 0.0
  %2434 = vmatprep.mubr.f32.mxu0 0.0
  %2435 = vmatmul.mubr.f32.gmra.mrb[0].mxu0 %v2368
  %v2436 = vpop.f32.mrb[0].mxu0
  %v2437 = vadd.f32 0.0, %v2436
  %v2438 = vpop.f32.mrb[0].mxu0
  %2439 = vdwg.mxu0
  %v2440 = vadd.f32 %v2366, %v2437
  %v2441 = vmul.f32 %v2440, 0.5
  %v2442 = vtanh.pop %v2441
  %v2443 = vmul.f32 %v2442, 0.5
  %v2444 = vadd.f32 %v2443, 0.5
  %v2445 = vtanh.pop %v2440
  %2447 = vrot.lane.b32.xlu0 %v2363, 32
  %v2448 = vpop.permute.xlu0 %2447
  %v2450 = vmul.f32 %v2444, %v2448
  %2452 = vrot.lane.b32.xlu0 %v2445, 32
  %v2453 = vpop.permute.xlu0 %2452
  %v2455 = vmul.f32 %v2444, %v2453
  %2457 = vrot.lane.b32.xlu0 %v2455, 32
  %v2458 = vpop.permute.xlu0 %2457
  %v2460 = vadd.f32 %v2450, %v2458
  %v2461 = vtanh.pop %v2460
  %2463 = vrot.lane.b32.xlu0 %v2461, 32
  %v2464 = vpop.permute.xlu0 %2463
  %v2466 = vmul.f32 %v2444, %v2464
  %2468 = vrot.lane.b32.xlu0 %v2466, 64
  %v2469 = vpop.permute.xlu0 %2468
  %v2471 = vsel %vm464, %v2469, %v2358
  %2473 = vrot.lane.b32.xlu0 %v2460, 96
  %v2474 = vpop.permute.xlu0 %2473
  %v2476 = vsel %vm464, %v2474, %v2363
  %2477 = vst.msk [vmem:[#allocation6 + $0x6] sm:$0x1] %vm427, %v2469
  %2478 = vst.msk [vmem:[#allocation6 + $0xd] sm:$0x2] %vm431, %v2469
  %v2479 = vld [vmem:[#allocation5 + $0xe] sm:$0x3]
  %v2481 = vsel %vm87, %v2471, 0
  %2483 = vmatprep.subr.mxu0 0.0
  %2484 = vmatpush1.msra.mxu0 %v1684
  %2485 = vmatprep.subr.mxu0 0.0
  %2486 = vmatpush1.msra.mxu0 %v1685
  %2487 = vmatprep.subr.mxu0 0.0
  %2488 = vmatpush1.msra.mxu0 %v1686
  %2489 = vmatprep.subr.mxu0 0.0
  %2490 = vmatpush1.msra.mxu0 %v1687
  %2491 = vmatprep.subr.mxu0 0.0
  %2492 = vmatpush1.msra.mxu0 0.0
  %2493 = vmatprep.subr.mxu0 0.0
  %2494 = vmatpush1.msra.mxu0 0.0
  %2495 = vmatprep.subr.mxu0 0.0
  %2496 = vmatpush1.msra.mxu0 0.0
  %2497 = vmatprep.subr.mxu0 0.0
  %2498 = vmatpush1.msra.mxu0 0.0
  %2499 = vmatprep.subr.mxu0 0.0
  %2500 = vmatpush1.msra.mxu0 0.0
  %2501 = vmatprep.subr.mxu0 0.0
  %2502 = vmatpush1.msra.mxu0 0.0
  %2503 = vmatprep.subr.mxu0 0.0
  %2504 = vmatpush1.msra.mxu0 0.0
  %2505 = vmatprep.subr.mxu0 0.0
  %2506 = vmatpush1.msra.mxu0 0.0
  %2507 = vmatprep.subr.mxu0 0.0
  %2508 = vmatpush1.msra.mxu0 0.0
  %2509 = vmatprep.subr.mxu0 0.0
  %2510 = vmatpush1.msra.mxu0 0.0
  %2511 = vmatprep.subr.mxu0 0.0
  %2512 = vmatpush1.msra.mxu0 0.0
  %2513 = vmatprep.subr.mxu0 0.0
  %2514 = vmatpush1.msra.mxu0 0.0
  %2515 = vmatprep.subr.mxu0 0.0
  %2516 = vmatpush1.msra.mxu0 0.0
  %2517 = vmatprep.subr.mxu0 0.0
  %2518 = vmatpush1.msra.mxu0 0.0
  %2519 = vmatprep.subr.mxu0 0.0
  %2520 = vmatpush1.msra.mxu0 0.0
  %2521 = vmatprep.subr.mxu0 0.0
  %2522 = vmatpush1.msra.mxu0 0.0
  %2523 = vmatprep.subr.mxu0 0.0
  %2524 = vmatpush1.msra.mxu0 0.0
  %2525 = vmatprep.subr.mxu0 0.0
  %2526 = vmatpush1.msra.mxu0 0.0
  %2527 = vmatprep.subr.mxu0 0.0
  %2528 = vmatpush1.msra.mxu0 0.0
  %2529 = vmatprep.subr.mxu0 0.0
  %2530 = vmatpush1.msra.mxu0 0.0
  %2531 = vmatprep.subr.mxu0 0.0
  %2532 = vmatpush1.msra.mxu0 0.0
  %2533 = vmatprep.subr.mxu0 0.0
  %2534 = vmatpush1.msra.mxu0 0.0
  %2535 = vmatprep.subr.mxu0 0.0
  %2536 = vmatpush1.msra.mxu0 0.0
  %2537 = vmatprep.subr.mxu0 0.0
  %2538 = vmatpush1.msra.mxu0 0.0
  %2539 = vmatprep.subr.mxu0 0.0
  %2540 = vmatpush1.msra.mxu0 0.0
  %2541 = vmatprep.subr.mxu0 0.0
  %2542 = vmatpush1.msra.mxu0 0.0
  %2543 = vmatprep.subr.mxu0 0.0
  %2544 = vmatpush1.msra.mxu0 0.0
  %2545 = vmatprep.subr.mxu0 0.0
  %2546 = vmatpush1.msra.mxu0 0.0
  %2547 = vmatprep.mubr.f32.mxu0 0.0
  %2548 = vmatmul.mubr.f32.gmra.mrb[0].mxu0 %v2481
  %v2549 = vpop.f32.mrb[0].mxu0
  %v2550 = vadd.f32 0.0, %v2549
  %v2551 = vpop.f32.mrb[0].mxu0
  %2552 = vdwg.mxu0
  %v2553 = vadd.f32 %v2479, %v2550
  %v2554 = vmul.f32 %v2553, 0.5
  %v2555 = vtanh.pop %v2554
  %v2556 = vmul.f32 %v2555, 0.5
  %v2557 = vadd.f32 %v2556, 0.5
  %v2558 = vtanh.pop %v2553
  %2560 = vrot.lane.b32.xlu0 %v2476, 32
  %v2561 = vpop.permute.xlu0 %2560
  %v2563 = vmul.f32 %v2557, %v2561
  %2565 = vrot.lane.b32.xlu0 %v2558, 32
  %v2566 = vpop.permute.xlu0 %2565
  %v2568 = vmul.f32 %v2557, %v2566
  %2570 = vrot.lane.b32.xlu0 %v2568, 32
  %v2571 = vpop.permute.xlu0 %2570
  %v2573 = vadd.f32 %v2563, %v2571
  %v2574 = vtanh.pop %v2573
  %2576 = vrot.lane.b32.xlu0 %v2574, 32
  %v2577 = vpop.permute.xlu0 %2576
  %v2579 = vmul.f32 %v2557, %v2577
  %2581 = vrot.lane.b32.xlu0 %v2579, 64
  %v2582 = vpop.permute.xlu0 %2581
  %2584 = vst.msk [vmem:[#allocation6 + $0x7] sm:$0x1] %vm427, %v2582
  %2585 = vst.msk [vmem:[#allocation6 + $0xe] sm:$0x2] %vm431, %v2582
  %v2586 = vld [vmem:[%s16] sm:$0xff]
  %v2587 = vld [vmem:[%s16 + $0x8] sm:$0xff]
  %v2588 = vld [vmem:[%s16 + $0x10] sm:$0xff]
  %v2589 = vld [vmem:[%s16 + $0x18] sm:$0xff]
  %v2590 = vld [vmem:[%s16 + $0x20] sm:$0xff]
  %v2591 = vld [vmem:[%s16 + $0x28] sm:$0xff]
  %v2592 = vld [vmem:[%s16 + $0x30] sm:$0xff]
  %v2593 = vld [vmem:[%s16 + $0x38] sm:$0xff]
  %v2594 = vld [vmem:[%s16 + $0x40] sm:$0xff]
  %v2595 = vld [vmem:[%s16 + $0x48] sm:$0xff]
  %v2596 = vld [vmem:[%s16 + $0x50] sm:$0xff]
  %v2597 = vld [vmem:[%s16 + $0x58] sm:$0xff]
  %v2598 = vld [vmem:[%s16 + $0x60] sm:$0xff]
  %v2599 = vld [vmem:[%s16 + $0x68] sm:$0xff]
  %v2600 = vld [vmem:[%s16 + $0x70] sm:$0xff]
  %v2601 = vld [vmem:[%s16 + $0x78] sm:$0xff]
  %v2602 = vld [vmem:[%s17] sm:$0x3]
  %v2603 = vld [vmem:[#allocation3] sm:$0xff]
  %v2604 = vld [vmem:[#allocation3 + $0x8] sm:$0x1]
  %v2606 = vlaneseq
  %v2607 = vshrl.u32 %v2606, 7
  %v2608 = vsub.s32 0, %v2607
  %v2609 = vrot.slane %v2602, %v2608
  %v2610 = vlaneseq
  %v2611 = vshrl.u32 %v2610, 7
  %v2612 = vsub.s32 1, %v2611
  %v2613 = vrot.slane %v2602, %v2612
  %v2617 = vsel %vm484, %v2603, 0
  %v2620 = vsel %vm484, %v2604, 0
  %2622 = vmatprep.subr.mxu0 %v2587
  %2623 = vmatpush1.msra.mxu0 %v2586
  %2624 = vmatprep.subr.mxu0 %v2589
  %2625 = vmatpush1.msra.mxu0 %v2588
  %2626 = vmatprep.subr.mxu0 %v2591
  %2627 = vmatpush1.msra.mxu0 %v2590
  %2628 = vmatprep.subr.mxu0 %v2593
  %2629 = vmatpush1.msra.mxu0 %v2592
  %2630 = vmatprep.subr.mxu0 %v2595
  %2631 = vmatpush1.msra.mxu0 %v2594
  %2632 = vmatprep.subr.mxu0 %v2597
  %2633 = vmatpush1.msra.mxu0 %v2596
  %2634 = vmatprep.subr.mxu0 %v2599
  %2635 = vmatpush1.msra.mxu0 %v2598
  %2636 = vmatprep.subr.mxu0 %v2601
  %2637 = vmatpush1.msra.mxu0 %v2600
  %2638 = vmatprep.subr.mxu0 0.0
  %2639 = vmatpush1.msra.mxu0 0.0
  %2640 = vmatprep.subr.mxu0 0.0
  %2641 = vmatpush1.msra.mxu0 0.0
  %2642 = vmatprep.subr.mxu0 0.0
  %2643 = vmatpush1.msra.mxu0 0.0
  %2644 = vmatprep.subr.mxu0 0.0
  %2645 = vmatpush1.msra.mxu0 0.0
  %2646 = vmatprep.subr.mxu0 0.0
  %2647 = vmatpush1.msra.mxu0 0.0
  %2648 = vmatprep.subr.mxu0 0.0
  %2649 = vmatpush1.msra.mxu0 0.0
  %2650 = vmatprep.subr.mxu0 0.0
  %2651 = vmatpush1.msra.mxu0 0.0
  %2652 = vmatprep.subr.mxu0 0.0
  %2653 = vmatpush1.msra.mxu0 0.0
  %2654 = vmatprep.subr.mxu0 0.0
  %2655 = vmatpush1.msra.mxu0 0.0
  %2656 = vmatprep.subr.mxu0 0.0
  %2657 = vmatpush1.msra.mxu0 0.0
  %2658 = vmatprep.subr.mxu0 0.0
  %2659 = vmatpush1.msra.mxu0 0.0
  %2660 = vmatprep.subr.mxu0 0.0
  %2661 = vmatpush1.msra.mxu0 0.0
  %2662 = vmatprep.subr.mxu0 0.0
  %2663 = vmatpush1.msra.mxu0 0.0
  %2664 = vmatprep.subr.mxu0 0.0
  %2665 = vmatpush1.msra.mxu0 0.0
  %2666 = vmatprep.subr.mxu0 0.0
  %2667 = vmatpush1.msra.mxu0 0.0
  %2668 = vmatprep.subr.mxu0 0.0
  %2669 = vmatpush1.msra.mxu0 0.0
  %2670 = vmatprep.subr.mxu0 0.0
  %2671 = vmatpush1.msra.mxu0 0.0
  %2672 = vmatprep.subr.mxu0 0.0
  %2673 = vmatpush1.msra.mxu0 0.0
  %2674 = vmatprep.subr.mxu0 0.0
  %2675 = vmatpush1.msra.mxu0 0.0
  %2676 = vmatprep.subr.mxu0 0.0
  %2677 = vmatpush1.msra.mxu0 0.0
  %2678 = vmatprep.subr.mxu0 0.0
  %2679 = vmatpush1.msra.mxu0 0.0
  %2680 = vmatprep.subr.mxu0 0.0
  %2681 = vmatpush1.msra.mxu0 0.0
  %2682 = vmatprep.subr.mxu0 0.0
  %2683 = vmatpush1.msra.mxu0 0.0
  %2684 = vmatprep.subr.mxu0 0.0
  %2685 = vmatpush1.msra.mxu0 0.0
  %2686 = vmatprep.mubr.f32.mxu0 0.0
  %2687 = vmatmul.mubr.f32.gmra.mrb[0].mxu0 %v2617
  %v2688 = vpop.f32.mrb[0].mxu0
  %v2689 = vadd.f32 %v2609, %v2688
  %v2690 = vpop.f32.mrb[0].mxu0
  %v2691 = vadd.f32 %v2613, %v2690
  %2692 = vmatprep.mubr.f32.mxu0 0.0
  %2693 = vmatmul.mubr.f32.gmra.mrb[0].mxu0 %v2620
  %v2694 = vpop.f32.mrb[0].mxu0
  %v2695 = vadd.f32 %v2609, %v2694
  %v2696 = vpop.f32.mrb[0].mxu0
  %v2697 = vadd.f32 %v2613, %v2696
  %2698 = vdwg.mxu0
  %vm2699 = vcmp.gt.f32.partialorder %v2689, 0.0
  %vm2700 = vcmp.gt.f32.partialorder %v2691, 0.0
  %vm2701 = vcmp.gt.f32.partialorder %v2695, 0.0
  %vm2702 = vcmp.gt.f32.partialorder %v2697, 0.0
  %v2703 = vmin.f32 %v2689, 0.0
  %v2704 = vmin.f32 %v2691, 0.0
  %v2705 = vmin.f32 %v2695, 0.0
  %v2706 = vmin.f32 %v2697, 0.0
  %v2707 = vmul.f32 %v2703, 1.442695
  %v2708 = vpow.pop %v2707
  %v2709 = vmul.f32 %v2704, 1.442695
  %v2710 = vpow.pop %v2709
  %v2711 = vmul.f32 %v2705, 1.442695
  %v2712 = vpow.pop %v2711
  %v2713 = vmul.f32 %v2706, 1.442695
  %v2714 = vpow.pop %v2713
  %v2715 = vsub.f32 %v2708, 1.0
  %v2716 = vsub.f32 %v2710, 1.0
  %v2717 = vsub.f32 %v2712, 1.0
  %v2718 = vsub.f32 %v2714, 1.0
  %v2719 = vsel %vm2699, %v2689, %v2715
  %v2720 = vsel %vm2700, %v2691, %v2716
  %v2721 = vsel %vm2701, %v2695, %v2717
  %v2722 = vsel %vm2702, %v2697, %v2718
  %v2723 = vld [vmem:[#allocation3 + $0x9] sm:$0xff]
  %v2724 = vld [vmem:[#allocation3 + $0x11] sm:$0x1]
  %v2726 = vsel %vm484, %v2723, 0
  %v2729 = vsel %vm484, %v2724, 0
  %2731 = vmatprep.subr.mxu0 %v2587
  %2732 = vmatpush1.msra.mxu0 %v2586
  %2733 = vmatprep.subr.mxu0 %v2589
  %2734 = vmatpush1.msra.mxu0 %v2588
  %2735 = vmatprep.subr.mxu0 %v2591
  %2736 = vmatpush1.msra.mxu0 %v2590
  %2737 = vmatprep.subr.mxu0 %v2593
  %2738 = vmatpush1.msra.mxu0 %v2592
  %2739 = vmatprep.subr.mxu0 %v2595
  %2740 = vmatpush1.msra.mxu0 %v2594
  %2741 = vmatprep.subr.mxu0 %v2597
  %2742 = vmatpush1.msra.mxu0 %v2596
  %2743 = vmatprep.subr.mxu0 %v2599
  %2744 = vmatpush1.msra.mxu0 %v2598
  %2745 = vmatprep.subr.mxu0 %v2601
  %2746 = vmatpush1.msra.mxu0 %v2600
  %2747 = vmatprep.subr.mxu0 0.0
  %2748 = vmatpush1.msra.mxu0 0.0
  %2749 = vmatprep.subr.mxu0 0.0
  %2750 = vmatpush1.msra.mxu0 0.0
  %2751 = vmatprep.subr.mxu0 0.0
  %2752 = vmatpush1.msra.mxu0 0.0
  %2753 = vmatprep.subr.mxu0 0.0
  %2754 = vmatpush1.msra.mxu0 0.0
  %2755 = vmatprep.subr.mxu0 0.0
  %2756 = vmatpush1.msra.mxu0 0.0
  %2757 = vmatprep.subr.mxu0 0.0
  %2758 = vmatpush1.msra.mxu0 0.0
  %2759 = vmatprep.subr.mxu0 0.0
  %2760 = vmatpush1.msra.mxu0 0.0
  %2761 = vmatprep.subr.mxu0 0.0
  %2762 = vmatpush1.msra.mxu0 0.0
  %2763 = vmatprep.subr.mxu0 0.0
  %2764 = vmatpush1.msra.mxu0 0.0
  %2765 = vmatprep.subr.mxu0 0.0
  %2766 = vmatpush1.msra.mxu0 0.0
  %2767 = vmatprep.subr.mxu0 0.0
  %2768 = vmatpush1.msra.mxu0 0.0
  %2769 = vmatprep.subr.mxu0 0.0
  %2770 = vmatpush1.msra.mxu0 0.0
  %2771 = vmatprep.subr.mxu0 0.0
  %2772 = vmatpush1.msra.mxu0 0.0
  %2773 = vmatprep.subr.mxu0 0.0
  %2774 = vmatpush1.msra.mxu0 0.0
  %2775 = vmatprep.subr.mxu0 0.0
  %2776 = vmatpush1.msra.mxu0 0.0
  %2777 = vmatprep.subr.mxu0 0.0
  %2778 = vmatpush1.msra.mxu0 0.0
  %2779 = vmatprep.subr.mxu0 0.0
  %2780 = vmatpush1.msra.mxu0 0.0
  %2781 = vmatprep.subr.mxu0 0.0
  %2782 = vmatpush1.msra.mxu0 0.0
  %2783 = vmatprep.subr.mxu0 0.0
  %2784 = vmatpush1.msra.mxu0 0.0
  %2785 = vmatprep.subr.mxu0 0.0
  %2786 = vmatpush1.msra.mxu0 0.0
  %2787 = vmatprep.subr.mxu0 0.0
  %2788 = vmatpush1.msra.mxu0 0.0
  %2789 = vmatprep.subr.mxu0 0.0
  %2790 = vmatpush1.msra.mxu0 0.0
  %2791 = vmatprep.subr.mxu0 0.0
  %2792 = vmatpush1.msra.mxu0 0.0
  %2793 = vmatprep.subr.mxu0 0.0
  %2794 = vmatpush1.msra.mxu0 0.0
  %2795 = vmatprep.mubr.f32.mxu0 0.0
  %2796 = vmatmul.mubr.f32.gmra.mrb[0].mxu0 %v2726
  %v2797 = vpop.f32.mrb[0].mxu0
  %v2798 = vadd.f32 %v2609, %v2797
  %v2799 = vpop.f32.mrb[0].mxu0
  %v2800 = vadd.f32 %v2613, %v2799
  %2801 = vmatprep.mubr.f32.mxu0 0.0
  %2802 = vmatmul.mubr.f32.gmra.mrb[0].mxu0 %v2729
  %v2803 = vpop.f32.mrb[0].mxu0
  %v2804 = vadd.f32 %v2609, %v2803
  %v2805 = vpop.f32.mrb[0].mxu0
  %v2806 = vadd.f32 %v2613, %v2805
  %2807 = vdwg.mxu0
  %vm2808 = vcmp.gt.f32.partialorder %v2798, 0.0
  %vm2809 = vcmp.gt.f32.partialorder %v2800, 0.0
  %vm2810 = vcmp.gt.f32.partialorder %v2804, 0.0
  %vm2811 = vcmp.gt.f32.partialorder %v2806, 0.0
  %v2812 = vmin.f32 %v2798, 0.0
  %v2813 = vmin.f32 %v2800, 0.0
  %v2814 = vmin.f32 %v2804, 0.0
  %v2815 = vmin.f32 %v2806, 0.0
  %v2816 = vmul.f32 %v2812, 1.442695
  %v2817 = vpow.pop %v2816
  %v2818 = vmul.f32 %v2813, 1.442695
  %v2819 = vpow.pop %v2818
  %v2820 = vmul.f32 %v2814, 1.442695
  %v2821 = vpow.pop %v2820
  %v2822 = vmul.f32 %v2815, 1.442695
  %v2823 = vpow.pop %v2822
  %v2824 = vsub.f32 %v2817, 1.0
  %v2825 = vsub.f32 %v2819, 1.0
  %v2826 = vsub.f32 %v2821, 1.0
  %v2827 = vsub.f32 %v2823, 1.0
  %v2828 = vsel %vm2808, %v2798, %v2824
  %v2829 = vsel %vm2809, %v2800, %v2825
  %v2830 = vsel %vm2810, %v2804, %v2826
  %v2831 = vsel %vm2811, %v2806, %v2827
  %v2832 = vld [vmem:[#allocation6] sm:$0xff]
  %v2833 = vld [vmem:[#allocation6 + $0x8] sm:$0xff]
  %v2834 = vld [vmem:[%s18] sm:$0xff]
  %v2835 = vld [vmem:[%s18 + $0x8] sm:$0xff]
  %v2836 = vld [vmem:[%s18 + $0x10] sm:$0xff]
  %v2837 = vld [vmem:[%s18 + $0x18] sm:$0xff]
  %v2838 = vld [vmem:[%s18 + $0x20] sm:$0xff]
  %v2839 = vld [vmem:[%s18 + $0x28] sm:$0xff]
  %v2840 = vld [vmem:[%s18 + $0x30] sm:$0xff]
  %v2841 = vld [vmem:[%s18 + $0x38] sm:$0xff]
  %v2842 = vld [vmem:[%s19] sm:$0x3]
  %v2844 = vlaneseq
  %v2845 = vshrl.u32 %v2844, 7
  %v2846 = vsub.s32 0, %v2845
  %v2847 = vrot.slane %v2842, %v2846
  %v2848 = vlaneseq
  %v2849 = vshrl.u32 %v2848, 7
  %v2850 = vsub.s32 1, %v2849
  %v2851 = vrot.slane %v2842, %v2850
  %v2855 = vsel %vm87, %v2832, 0
  %v2858 = vsel %vm87, %v2833, 0
  %2860 = vmatprep.subr.mxu0 %v2835
  %2861 = vmatpush1.msra.mxu0 %v2834
  %2862 = vmatprep.subr.mxu0 %v2837
  %2863 = vmatpush1.msra.mxu0 %v2836
  %2864 = vmatprep.subr.mxu0 %v2839
  %2865 = vmatpush1.msra.mxu0 %v2838
  %2866 = vmatprep.subr.mxu0 %v2841
  %2867 = vmatpush1.msra.mxu0 %v2840
  %2868 = vmatprep.subr.mxu0 0.0
  %2869 = vmatpush1.msra.mxu0 0.0
  %2870 = vmatprep.subr.mxu0 0.0
  %2871 = vmatpush1.msra.mxu0 0.0
  %2872 = vmatprep.subr.mxu0 0.0
  %2873 = vmatpush1.msra.mxu0 0.0
  %2874 = vmatprep.subr.mxu0 0.0
  %2875 = vmatpush1.msra.mxu0 0.0
  %2876 = vmatprep.subr.mxu0 0.0
  %2877 = vmatpush1.msra.mxu0 0.0
  %2878 = vmatprep.subr.mxu0 0.0
  %2879 = vmatpush1.msra.mxu0 0.0
  %2880 = vmatprep.subr.mxu0 0.0
  %2881 = vmatpush1.msra.mxu0 0.0
  %2882 = vmatprep.subr.mxu0 0.0
  %2883 = vmatpush1.msra.mxu0 0.0
  %2884 = vmatprep.subr.mxu0 0.0
  %2885 = vmatpush1.msra.mxu0 0.0
  %2886 = vmatprep.subr.mxu0 0.0
  %2887 = vmatpush1.msra.mxu0 0.0
  %2888 = vmatprep.subr.mxu0 0.0
  %2889 = vmatpush1.msra.mxu0 0.0
  %2890 = vmatprep.subr.mxu0 0.0
  %2891 = vmatpush1.msra.mxu0 0.0
  %2892 = vmatprep.subr.mxu0 0.0
  %2893 = vmatpush1.msra.mxu0 0.0
  %2894 = vmatprep.subr.mxu0 0.0
  %2895 = vmatpush1.msra.mxu0 0.0
  %2896 = vmatprep.subr.mxu0 0.0
  %2897 = vmatpush1.msra.mxu0 0.0
  %2898 = vmatprep.subr.mxu0 0.0
  %2899 = vmatpush1.msra.mxu0 0.0
  %2900 = vmatprep.subr.mxu0 0.0
  %2901 = vmatpush1.msra.mxu0 0.0
  %2902 = vmatprep.subr.mxu0 0.0
  %2903 = vmatpush1.msra.mxu0 0.0
  %2904 = vmatprep.subr.mxu0 0.0
  %2905 = vmatpush1.msra.mxu0 0.0
  %2906 = vmatprep.subr.mxu0 0.0
  %2907 = vmatpush1.msra.mxu0 0.0
  %2908 = vmatprep.subr.mxu0 0.0
  %2909 = vmatpush1.msra.mxu0 0.0
  %2910 = vmatprep.subr.mxu0 0.0
  %2911 = vmatpush1.msra.mxu0 0.0
  %2912 = vmatprep.subr.mxu0 0.0
  %2913 = vmatpush1.msra.mxu0 0.0
  %2914 = vmatprep.subr.mxu0 0.0
  %2915 = vmatpush1.msra.mxu0 0.0
  %2916 = vmatprep.subr.mxu0 0.0
  %2917 = vmatpush1.msra.mxu0 0.0
  %2918 = vmatprep.subr.mxu0 0.0
  %2919 = vmatpush1.msra.mxu0 0.0
  %2920 = vmatprep.subr.mxu0 0.0
  %2921 = vmatpush1.msra.mxu0 0.0
  %2922 = vmatprep.subr.mxu0 0.0
  %2923 = vmatpush1.msra.mxu0 0.0
  %2924 = vmatprep.mubr.f32.mxu0 0.0
  %2925 = vmatmul.mubr.f32.gmra.mrb[0].mxu0 %v2855
  %v2926 = vpop.f32.mrb[0].mxu0
  %v2927 = vadd.f32 %v2847, %v2926
  %v2928 = vpop.f32.mrb[0].mxu0
  %v2929 = vadd.f32 %v2851, %v2928
  %2930 = vmatprep.mubr.f32.mxu0 0.0
  %2931 = vmatmul.mubr.f32.gmra.mrb[0].mxu0 %v2858
  %v2932 = vpop.f32.mrb[0].mxu0
  %v2933 = vadd.f32 %v2847, %v2932
  %v2934 = vpop.f32.mrb[0].mxu0
  %v2935 = vadd.f32 %v2851, %v2934
  %2936 = vdwg.mxu0
  %vm2937 = vcmp.gt.f32.partialorder %v2927, 0.0
  %vm2938 = vcmp.gt.f32.partialorder %v2929, 0.0
  %vm2939 = vcmp.gt.f32.partialorder %v2933, 0.0
  %vm2940 = vcmp.gt.f32.partialorder %v2935, 0.0
  %v2941 = vmin.f32 %v2927, 0.0
  %v2942 = vmin.f32 %v2929, 0.0
  %v2943 = vmin.f32 %v2933, 0.0
  %v2944 = vmin.f32 %v2935, 0.0
  %v2945 = vmul.f32 %v2941, 1.442695
  %v2946 = vpow.pop %v2945
  %v2947 = vmul.f32 %v2942, 1.442695
  %v2948 = vpow.pop %v2947
  %v2949 = vmul.f32 %v2943, 1.442695
  %v2950 = vpow.pop %v2949
  %v2951 = vmul.f32 %v2944, 1.442695
  %v2952 = vpow.pop %v2951
  %v2953 = vsub.f32 %v2946, 1.0
  %v2954 = vsub.f32 %v2948, 1.0
  %v2955 = vsub.f32 %v2950, 1.0
  %v2956 = vsub.f32 %v2952, 1.0
  %v2957 = vsel %vm2937, %v2927, %v2953
  %v2958 = vsel %vm2938, %v2929, %v2954
  %v2959 = vsel %vm2939, %v2933, %v2955
  %v2960 = vsel %vm2940, %v2935, %v2956
  %v2961 = vld [vmem:[%s20] sm:$0xff]
  %v2962 = vld [vmem:[%s20 + $0x8] sm:$0xff]
  %v2963 = vld [vmem:[%s20 + $0x10] sm:$0xff]
  %v2964 = vld [vmem:[%s20 + $0x18] sm:$0xff]
  %v2965 = vld [vmem:[%s20 + $0x20] sm:$0xff]
  %v2966 = vld [vmem:[%s20 + $0x28] sm:$0xff]
  %v2967 = vld [vmem:[%s20 + $0x30] sm:$0xff]
  %v2968 = vld [vmem:[%s20 + $0x38] sm:$0xff]
  %v2969 = vld [vmem:[%s20 + $0x40] sm:$0xff]
  %v2970 = vld [vmem:[%s20 + $0x48] sm:$0xff]
  %v2971 = vld [vmem:[%s20 + $0x50] sm:$0xff]
  %v2972 = vld [vmem:[%s20 + $0x58] sm:$0xff]
  %v2973 = vld [vmem:[%s20 + $0x60] sm:$0xff]
  %v2974 = vld [vmem:[%s20 + $0x68] sm:$0xff]
  %v2975 = vld [vmem:[%s20 + $0x70] sm:$0xff]
  %v2976 = vld [vmem:[%s20 + $0x78] sm:$0xff]
  %v2977 = vld [vmem:[%s20 + $0x80] sm:$0xff]
  %v2978 = vld [vmem:[%s20 + $0x88] sm:$0xff]
  %v2979 = vld [vmem:[%s20 + $0x90] sm:$0xff]
  %v2980 = vld [vmem:[%s20 + $0x98] sm:$0xff]
  %v2981 = vld [vmem:[%s20 + $0xa0] sm:$0xff]
  %v2982 = vld [vmem:[%s20 + $0xa8] sm:$0xff]
  %v2983 = vld [vmem:[%s20 + $0xb0] sm:$0xff]
  %v2984 = vld [vmem:[%s20 + $0xb8] sm:$0xff]
  %v2985 = vld [vmem:[%s20 + $0xc0] sm:$0xff]
  %v2986 = vld [vmem:[%s20 + $0xc8] sm:$0xff]
  %v2987 = vld [vmem:[%s20 + $0xd0] sm:$0xff]
  %v2988 = vld [vmem:[%s20 + $0xd8] sm:$0x1]
  %v2989 = vld [vmem:[%s20 + $0xe0] sm:$0x1]
  %v2990 = vld [vmem:[%s20 + $0xe8] sm:$0x1]
  %v2991 = vld [vmem:[%s20 + $0xf0] sm:$0x1]
  %v2992 = vld [vmem:[%s20 + $0xf8] sm:$0x1]
  %v2993 = vld [vmem:[%s20 + $0x100] sm:$0x1]
  %v2994 = vld [vmem:[%s20 + $0x108] sm:$0x1]
  %v2995 = vld [vmem:[%s20 + $0x110] sm:$0x1]
  %v2996 = vld [vmem:[%s20 + $0x118] sm:$0x1]
  %vm2997 = vcmask 203776
  %v2999 = vsel %vm2997, %v2957, 0
  %v3002 = vsel %vm2997, %v2959, 0
  %vm3004 = vcmask 1040384
  %v3006 = vsel %vm3004, %v2988, 0
  %3008 = vmatprep.subr.mxu0 0.0
  %3009 = vmatpush1.msra.mxu0 %v2961
  %3010 = vmatprep.subr.mxu0 0.0
  %3011 = vmatpush1.msra.mxu0 %v2970
  %3012 = vmatprep.subr.mxu0 0.0
  %3013 = vmatpush1.msra.mxu0 %v2979
  %3014 = vmatprep.subr.mxu0 0.0
  %3015 = vmatpush1.msra.mxu0 %v3006
  %3016 = vmatprep.subr.mxu0 0.0
  %3017 = vmatpush1.msra.mxu0 0.0
  %3018 = vmatprep.subr.mxu0 0.0
  %3019 = vmatpush1.msra.mxu0 0.0
  %3020 = vmatprep.subr.mxu0 0.0
  %3021 = vmatpush1.msra.mxu0 0.0
  %3022 = vmatprep.subr.mxu0 0.0
  %3023 = vmatpush1.msra.mxu0 0.0
  %3024 = vmatprep.subr.mxu0 0.0
  %3025 = vmatpush1.msra.mxu0 0.0
  %3026 = vmatprep.subr.mxu0 0.0
  %3027 = vmatpush1.msra.mxu0 0.0
  %3028 = vmatprep.subr.mxu0 0.0
  %3029 = vmatpush1.msra.mxu0 0.0
  %3030 = vmatprep.subr.mxu0 0.0
  %3031 = vmatpush1.msra.mxu0 0.0
  %3032 = vmatprep.subr.mxu0 0.0
  %3033 = vmatpush1.msra.mxu0 0.0
  %3034 = vmatprep.subr.mxu0 0.0
  %3035 = vmatpush1.msra.mxu0 0.0
  %3036 = vmatprep.subr.mxu0 0.0
  %3037 = vmatpush1.msra.mxu0 0.0
  %3038 = vmatprep.subr.mxu0 0.0
  %3039 = vmatpush1.msra.mxu0 0.0
  %3040 = vmatprep.subr.mxu0 0.0
  %3041 = vmatpush1.msra.mxu0 0.0
  %3042 = vmatprep.subr.mxu0 0.0
  %3043 = vmatpush1.msra.mxu0 0.0
  %3044 = vmatprep.subr.mxu0 0.0
  %3045 = vmatpush1.msra.mxu0 0.0
  %3046 = vmatprep.subr.mxu0 0.0
  %3047 = vmatpush1.msra.mxu0 0.0
  %3048 = vmatprep.subr.mxu0 0.0
  %3049 = vmatpush1.msra.mxu0 0.0
  %3050 = vmatprep.subr.mxu0 0.0
  %3051 = vmatpush1.msra.mxu0 0.0
  %3052 = vmatprep.subr.mxu0 0.0
  %3053 = vmatpush1.msra.mxu0 0.0
  %3054 = vmatprep.subr.mxu0 0.0
  %3055 = vmatpush1.msra.mxu0 0.0
  %3056 = vmatprep.subr.mxu0 0.0
  %3057 = vmatpush1.msra.mxu0 0.0
  %3058 = vmatprep.subr.mxu0 0.0
  %3059 = vmatpush1.msra.mxu0 0.0
  %3060 = vmatprep.subr.mxu0 0.0
  %3061 = vmatpush1.msra.mxu0 0.0
  %3062 = vmatprep.subr.mxu0 0.0
  %3063 = vmatpush1.msra.mxu0 0.0
  %3064 = vmatprep.subr.mxu0 0.0
  %3065 = vmatpush1.msra.mxu0 0.0
  %3066 = vmatprep.subr.mxu0 0.0
  %3067 = vmatpush1.msra.mxu0 0.0
  %3068 = vmatprep.subr.mxu0 0.0
  %3069 = vmatpush1.msra.mxu0 0.0
  %3070 = vmatprep.subr.mxu0 0.0
  %3071 = vmatpush1.msra.mxu0 0.0
  %3072 = vmatprep.mubr.f32.mxu0 0.0
  %3073 = vmatmul.mubr.f32.gmra.mrb[0].mxu0 %v2999
  %v3074 = vpop.f32.mrb[0].mxu0
  %v3075 = vadd.f32 0.0, %v3074
  %v3076 = vpop.f32.mrb[0].mxu0
  %3077 = vmatprep.mubr.f32.mxu0 0.0
  %3078 = vmatmul.mubr.f32.gmra.mrb[0].mxu0 %v3002
  %v3079 = vpop.f32.mrb[0].mxu0
  %v3080 = vadd.f32 0.0, %v3079
  %v3081 = vpop.f32.mrb[0].mxu0
  %3082 = vdwg.mxu0
  %vm3083 = vcmask 269312
  %v3085 = vsel %vm3083, %v3075, 0
  %v3088 = vsel %vm3083, %v2719, 0
  %v3091 = vsel %vm3083, %v2721, 0
  %3093 = vmatprep.subr.mxu0 0.0
  %3094 = vmatpush1.xpose.msra.mxu0 %v3088
  %3095 = vmatprep.subr.mxu0 0.0
  %3096 = vmatpush1.xpose.msra.mxu0 %v3091
  %3097 = vmatprep.subr.mxu0 0.0
  %3098 = vmatpush1.xpose.msra.mxu0 0.0
  %3099 = vmatprep.subr.mxu0 0.0
  %3100 = vmatpush1.xpose.msra.mxu0 0.0
  %3101 = vmatprep.subr.mxu0 0.0
  %3102 = vmatpush1.xpose.msra.mxu0 0.0
  %3103 = vmatprep.subr.mxu0 0.0
  %3104 = vmatpush1.xpose.msra.mxu0 0.0
  %3105 = vmatprep.subr.mxu0 0.0
  %3106 = vmatpush1.xpose.msra.mxu0 0.0
  %3107 = vmatprep.subr.mxu0 0.0
  %3108 = vmatpush1.xpose.msra.mxu0 0.0
  %3109 = vmatprep.subr.mxu0 0.0
  %3110 = vmatpush1.xpose.msra.mxu0 0.0
  %3111 = vmatprep.subr.mxu0 0.0
  %3112 = vmatpush1.xpose.msra.mxu0 0.0
  %3113 = vmatprep.subr.mxu0 0.0
  %3114 = vmatpush1.xpose.msra.mxu0 0.0
  %3115 = vmatprep.subr.mxu0 0.0
  %3116 = vmatpush1.xpose.msra.mxu0 0.0
  %3117 = vmatprep.subr.mxu0 0.0
  %3118 = vmatpush1.xpose.msra.mxu0 0.0
  %3119 = vmatprep.subr.mxu0 0.0
  %3120 = vmatpush1.xpose.msra.mxu0 0.0
  %3121 = vmatprep.subr.mxu0 0.0
  %3122 = vmatpush1.xpose.msra.mxu0 0.0
  %3123 = vmatprep.subr.mxu0 0.0
  %3124 = vmatpush1.xpose.msra.mxu0 0.0
  %3125 = vmatprep.subr.mxu0 0.0
  %3126 = vmatpush1.xpose.msra.mxu0 0.0
  %3127 = vmatprep.subr.mxu0 0.0
  %3128 = vmatpush1.xpose.msra.mxu0 0.0
  %3129 = vmatprep.subr.mxu0 0.0
  %3130 = vmatpush1.xpose.msra.mxu0 0.0
  %3131 = vmatprep.subr.mxu0 0.0
  %3132 = vmatpush1.xpose.msra.mxu0 0.0
  %3133 = vmatprep.subr.mxu0 0.0
  %3134 = vmatpush1.xpose.msra.mxu0 0.0
  %3135 = vmatprep.subr.mxu0 0.0
  %3136 = vmatpush1.xpose.msra.mxu0 0.0
  %3137 = vmatprep.subr.mxu0 0.0
  %3138 = vmatpush1.xpose.msra.mxu0 0.0
  %3139 = vmatprep.subr.mxu0 0.0
  %3140 = vmatpush1.xpose.msra.mxu0 0.0
  %3141 = vmatprep.subr.mxu0 0.0
  %3142 = vmatpush1.xpose.msra.mxu0 0.0
  %3143 = vmatprep.subr.mxu0 0.0
  %3144 = vmatpush1.xpose.msra.mxu0 0.0
  %3145 = vmatprep.subr.mxu0 0.0
  %3146 = vmatpush1.xpose.msra.mxu0 0.0
  %3147 = vmatprep.subr.mxu0 0.0
  %3148 = vmatpush1.xpose.msra.mxu0 0.0
  %3149 = vmatprep.subr.mxu0 0.0
  %3150 = vmatpush1.xpose.msra.mxu0 0.0
  %3151 = vmatprep.subr.mxu0 0.0
  %3152 = vmatpush1.xpose.msra.mxu0 0.0
  %3153 = vmatprep.subr.mxu0 0.0
  %3154 = vmatpush1.xpose.msra.mxu0 0.0
  %3155 = vmatprep.subr.mxu0 0.0
  %3156 = vmatpush1.xpose.msra.mxu0 0.0
  %3157 = vmatprep.mubr.f32.mxu0 0.0
  %3158 = vmatmul.mubr.f32.gmra.mrb[0].mxu0 %v3085
  %v3159 = vpop.f32.mrb[0].mxu0
  %v3160 = vadd.f32 0.0, %v3159
  %v3161 = vpop.f32.mrb[0].mxu0
  %3162 = vdwg.mxu0
  %v3164 = vsel %vm3083, %v3080, 0
  %v3167 = vsel %vm3083, %v2828, 0
  %v3170 = vsel %vm3083, %v2830, 0
  %3172 = vmatprep.subr.mxu0 0.0
  %3173 = vmatpush1.xpose.msra.mxu0 %v3167
  %3174 = vmatprep.subr.mxu0 0.0
  %3175 = vmatpush1.xpose.msra.mxu0 %v3170
  %3176 = vmatprep.subr.mxu0 0.0
  %3177 = vmatpush1.xpose.msra.mxu0 0.0
  %3178 = vmatprep.subr.mxu0 0.0
  %3179 = vmatpush1.xpose.msra.mxu0 0.0
  %3180 = vmatprep.subr.mxu0 0.0
  %3181 = vmatpush1.xpose.msra.mxu0 0.0
  %3182 = vmatprep.subr.mxu0 0.0
  %3183 = vmatpush1.xpose.msra.mxu0 0.0
  %3184 = vmatprep.subr.mxu0 0.0
  %3185 = vmatpush1.xpose.msra.mxu0 0.0
  %3186 = vmatprep.subr.mxu0 0.0
  %3187 = vmatpush1.xpose.msra.mxu0 0.0
  %3188 = vmatprep.subr.mxu0 0.0
  %3189 = vmatpush1.xpose.msra.mxu0 0.0
  %3190 = vmatprep.subr.mxu0 0.0
  %3191 = vmatpush1.xpose.msra.mxu0 0.0
  %3192 = vmatprep.subr.mxu0 0.0
  %3193 = vmatpush1.xpose.msra.mxu0 0.0
  %3194 = vmatprep.subr.mxu0 0.0
  %3195 = vmatpush1.xpose.msra.mxu0 0.0
  %3196 = vmatprep.subr.mxu0 0.0
  %3197 = vmatpush1.xpose.msra.mxu0 0.0
  %3198 = vmatprep.subr.mxu0 0.0
  %3199 = vmatpush1.xpose.msra.mxu0 0.0
  %3200 = vmatprep.subr.mxu0 0.0
  %3201 = vmatpush1.xpose.msra.mxu0 0.0
  %3202 = vmatprep.subr.mxu0 0.0
  %3203 = vmatpush1.xpose.msra.mxu0 0.0
  %3204 = vmatprep.subr.mxu0 0.0
  %3205 = vmatpush1.xpose.msra.mxu0 0.0
  %3206 = vmatprep.subr.mxu0 0.0
  %3207 = vmatpush1.xpose.msra.mxu0 0.0
  %3208 = vmatprep.subr.mxu0 0.0
  %3209 = vmatpush1.xpose.msra.mxu0 0.0
  %3210 = vmatprep.subr.mxu0 0.0
  %3211 = vmatpush1.xpose.msra.mxu0 0.0
  %3212 = vmatprep.subr.mxu0 0.0
  %3213 = vmatpush1.xpose.msra.mxu0 0.0
  %3214 = vmatprep.subr.mxu0 0.0
  %3215 = vmatpush1.xpose.msra.mxu0 0.0
  %3216 = vmatprep.subr.mxu0 0.0
  %3217 = vmatpush1.xpose.msra.mxu0 0.0
  %3218 = vmatprep.subr.mxu0 0.0
  %3219 = vmatpush1.xpose.msra.mxu0 0.0
  %3220 = vmatprep.subr.mxu0 0.0
  %3221 = vmatpush1.xpose.msra.mxu0 0.0
  %3222 = vmatprep.subr.mxu0 0.0
  %3223 = vmatpush1.xpose.msra.mxu0 0.0
  %3224 = vmatprep.subr.mxu0 0.0
  %3225 = vmatpush1.xpose.msra.mxu0 0.0
  %3226 = vmatprep.subr.mxu0 0.0
  %3227 = vmatpush1.xpose.msra.mxu0 0.0
  %3228 = vmatprep.subr.mxu0 0.0
  %3229 = vmatpush1.xpose.msra.mxu0 0.0
  %3230 = vmatprep.subr.mxu0 0.0
  %3231 = vmatpush1.xpose.msra.mxu0 0.0
  %3232 = vmatprep.subr.mxu0 0.0
  %3233 = vmatpush1.xpose.msra.mxu0 0.0
  %3234 = vmatprep.subr.mxu0 0.0
  %3235 = vmatpush1.xpose.msra.mxu0 0.0
  %3236 = vmatprep.mubr.f32.mxu0 0.0
  %3237 = vmatmul.mubr.f32.gmra.mrb[0].mxu0 %v3164
  %v3238 = vpop.f32.mrb[0].mxu0
  %v3239 = vadd.f32 0.0, %v3238
  %v3240 = vpop.f32.mrb[0].mxu0
  %3241 = vdwg.mxu0
  %3242 = vrot.lane.b32.xlu0 %v2957, 103
  %v3243 = vpop.permute.xlu0 %3242
  %3244 = vrot.lane.b32.xlu0 %v2959, 103
  %v3245 = vpop.permute.xlu0 %3244
  %3253 = vrot.lane.b32.xlu0 %v2961, 95
  %v3254 = vpop.permute.xlu0 %3253
  %3255 = vrot.lane.b32.xlu0 %v2962, 95
  %v3256 = vpop.permute.xlu0 %3255
  %3257 = vrot.lane.b32.xlu0 %v2970, 95
  %v3258 = vpop.permute.xlu0 %3257
  %3259 = vrot.lane.b32.xlu0 %v2971, 95
  %v3260 = vpop.permute.xlu0 %3259
  %3261 = vrot.lane.b32.xlu0 %v2979, 95
  %v3262 = vpop.permute.xlu0 %3261
  %3263 = vrot.lane.b32.xlu0 %v2980, 95
  %v3264 = vpop.permute.xlu0 %3263
  %3265 = vrot.lane.b32.xlu0 %v2988, 95
  %v3266 = vpop.permute.xlu0 %3265
  %3267 = vrot.lane.b32.xlu0 %v2989, 95
  %v3268 = vpop.permute.xlu0 %3267
  %vm3269 = vcmask 777216
  %v3270 = vsel %vm3269, %v3254, %v3256
  %v3271 = vsel %vm3269, %v3258, %v3260
  %v3272 = vsel %vm3269, %v3262, %v3264
  %v3273 = vsel %vm3269, %v3266, %v3268
  %v3280 = vsel %vm2997, %v3243, 0
  %v3282 = vsel %vm2997, %v3245, 0
  %v3284 = vsel %vm3004, %v3273, 0
  %v3286 = vsel %vm3004, %v3268, 0
  %3288 = vmatprep.subr.mxu0 %v3256
  %3289 = vmatpush1.msra.mxu0 %v3270
  %3290 = vmatprep.subr.mxu0 %v3260
  %3291 = vmatpush1.msra.mxu0 %v3271
  %3292 = vmatprep.subr.mxu0 %v3264
  %3293 = vmatpush1.msra.mxu0 %v3272
  %3294 = vmatprep.subr.mxu0 %v3286
  %3295 = vmatpush1.msra.mxu0 %v3284
  %3296 = vmatprep.subr.mxu0 0.0
  %3297 = vmatpush1.msra.mxu0 0.0
  %3298 = vmatprep.subr.mxu0 0.0
  %3299 = vmatpush1.msra.mxu0 0.0
  %3300 = vmatprep.subr.mxu0 0.0
  %3301 = vmatpush1.msra.mxu0 0.0
  %3302 = vmatprep.subr.mxu0 0.0
  %3303 = vmatpush1.msra.mxu0 0.0
  %3304 = vmatprep.subr.mxu0 0.0
  %3305 = vmatpush1.msra.mxu0 0.0
  %3306 = vmatprep.subr.mxu0 0.0
  %3307 = vmatpush1.msra.mxu0 0.0
  %3308 = vmatprep.subr.mxu0 0.0
  %3309 = vmatpush1.msra.mxu0 0.0
  %3310 = vmatprep.subr.mxu0 0.0
  %3311 = vmatpush1.msra.mxu0 0.0
  %3312 = vmatprep.subr.mxu0 0.0
  %3313 = vmatpush1.msra.mxu0 0.0
  %3314 = vmatprep.subr.mxu0 0.0
  %3315 = vmatpush1.msra.mxu0 0.0
  %3316 = vmatprep.subr.mxu0 0.0
  %3317 = vmatpush1.msra.mxu0 0.0
  %3318 = vmatprep.subr.mxu0 0.0
  %3319 = vmatpush1.msra.mxu0 0.0
  %3320 = vmatprep.subr.mxu0 0.0
  %3321 = vmatpush1.msra.mxu0 0.0
  %3322 = vmatprep.subr.mxu0 0.0
  %3323 = vmatpush1.msra.mxu0 0.0
  %3324 = vmatprep.subr.mxu0 0.0
  %3325 = vmatpush1.msra.mxu0 0.0
  %3326 = vmatprep.subr.mxu0 0.0
  %3327 = vmatpush1.msra.mxu0 0.0
  %3328 = vmatprep.subr.mxu0 0.0
  %3329 = vmatpush1.msra.mxu0 0.0
  %3330 = vmatprep.subr.mxu0 0.0
  %3331 = vmatpush1.msra.mxu0 0.0
  %3332 = vmatprep.subr.mxu0 0.0
  %3333 = vmatpush1.msra.mxu0 0.0
  %3334 = vmatprep.subr.mxu0 0.0
  %3335 = vmatpush1.msra.mxu0 0.0
  %3336 = vmatprep.subr.mxu0 0.0
  %3337 = vmatpush1.msra.mxu0 0.0
  %3338 = vmatprep.subr.mxu0 0.0
  %3339 = vmatpush1.msra.mxu0 0.0
  %3340 = vmatprep.subr.mxu0 0.0
  %3341 = vmatpush1.msra.mxu0 0.0
  %3342 = vmatprep.subr.mxu0 0.0
  %3343 = vmatpush1.msra.mxu0 0.0
  %3344 = vmatprep.subr.mxu0 0.0
  %3345 = vmatpush1.msra.mxu0 0.0
  %3346 = vmatprep.subr.mxu0 0.0
  %3347 = vmatpush1.msra.mxu0 0.0
  %3348 = vmatprep.subr.mxu0 0.0
  %3349 = vmatpush1.msra.mxu0 0.0
  %3350 = vmatprep.subr.mxu0 0.0
  %3351 = vmatpush1.msra.mxu0 0.0
  %3352 = vmatprep.mubr.f32.mxu0 0.0
  %3353 = vmatmul.mubr.f32.gmra.mrb[0].mxu0 %v3280
  %v3354 = vpop.f32.mrb[0].mxu0
  %v3355 = vadd.f32 0.0, %v3354
  %v3356 = vpop.f32.mrb[0].mxu0
  %v3357 = vadd.f32 0.0, %v3356
  %3358 = vmatprep.mubr.f32.mxu0 0.0
  %3359 = vmatmul.mubr.f32.gmra.mrb[0].mxu0 %v3282
  %v3360 = vpop.f32.mrb[0].mxu0
  %v3361 = vadd.f32 0.0, %v3360
  %v3362 = vpop.f32.mrb[0].mxu0
  %v3363 = vadd.f32 0.0, %v3362
  %3364 = vdwg.mxu0
  %3365 = vrot.lane.b32.xlu0 %v2719, 95
  %v3366 = vpop.permute.xlu0 %3365
  %3367 = vrot.lane.b32.xlu0 %v2721, 95
  %v3368 = vpop.permute.xlu0 %3367
  %v3371 = vsel %vm3083, %v3366, 0.0
  %v3372 = vsel %vm3083, %v3368, 0.0
  %vm3373 = vcmask 539648
  %v3374 = vsel %vm3373, %v3371, 0.0
  %v3375 = vsel %vm3373, %v3372, 0.0
  %vm3376 = vcmask 809984
  %v3377 = vsel %vm3376, %v3374, 0.0
  %v3378 = vsel %vm3376, %v3375, 0.0
  %v3379 = vsel %vm3083, 0.0, %v2719
  %v3380 = vsel %vm3083, 0.0, %v2721
  %v3381 = vsel %vm3373, %v3379, 0.0
  %v3382 = vsel %vm3373, %v3380, 0.0
  %v3383 = vsel %vm3376, %v3381, 0.0
  %v3384 = vsel %vm3376, %v3382, 0.0
  %3385 = vrot.lane.b32.xlu0 %v2719, 33
  %v3386 = vpop.permute.xlu0 %3385
  %3387 = vrot.lane.b32.xlu0 %v2721, 33
  %v3388 = vpop.permute.xlu0 %3387
  %v3391 = vsel %vm3373, 0.0, %v3386
  %v3392 = vsel %vm3373, 0.0, %v3388
  %v3393 = vsel %vm3376, %v3391, 0.0
  %v3394 = vsel %vm3376, %v3392, 0.0
  %3395 = vrot.lane.b32.xlu0 %v2719, 66
  %v3396 = vpop.permute.xlu0 %3395
  %3397 = vrot.lane.b32.xlu0 %v2721, 66
  %v3398 = vpop.permute.xlu0 %3397
  %v3401 = vsel %vm3376, 0.0, %v3396
  %v3402 = vsel %vm3376, 0.0, %v3398
  %vm3403 = vcmask 31744
  %v3404 = vsel %vm3403, %v3396, 0.0
  %v3405 = vsel %vm3403, %v3398, 0.0
  %3406 = vrot.lane.b32.xlu0 %v2719, 99
  %v3407 = vpop.permute.xlu0 %3406
  %3408 = vrot.lane.b32.xlu0 %v2721, 99
  %v3409 = vpop.permute.xlu0 %3408
  %v3412 = vsel %vm3403, 0.0, %v3407
  %v3413 = vsel %vm3403, 0.0, %v3409
  %v3417 = vrot.slane %v3383, 7
  %v3418 = vrot.slane 0.0, 7
  %v3419 = vrot.slane %v3384, 7
  %v3420 = vsel %vm3004, %v3417, %v3419
  %v3421 = vsel %vm3004, %v3418, %v3418
  %vm3428 = vcmask 1041408
  %v3429 = vrot.slane %v3393, 6
  %v3430 = vrot.slane 0.0, 6
  %v3431 = vrot.slane %v3394, 6
  %v3432 = vsel %vm3428, %v3429, %v3431
  %v3433 = vsel %vm3428, %v3430, %v3430
  %vm3442 = vcmask 1042432
  %v3443 = vrot.slane %v3401, 5
  %v3444 = vrot.slane %v3404, 5
  %v3445 = vrot.slane %v3402, 5
  %v3446 = vsel %vm3442, %v3443, %v3445
  %v3447 = vrot.slane %v3405, 5
  %v3448 = vsel %vm3442, %v3444, %v3447
  %v3455 = vrot.slane 0.0, 4
  %v3456 = vrot.slane %v3412, 4
  %v3457 = vsel %vm201, %v3455, %v3455
  %v3458 = vrot.slane %v3413, 4
  %v3459 = vsel %vm201, %v3456, %v3458
  %v3463 = vsel %vm3004, %v3378, %v3417
  %v3464 = vsel %vm3004, 0.0, %v3418
  %v3465 = vsel %vm3428, %v3420, %v3429
  %v3466 = vsel %vm3428, %v3421, %v3430
  %v3467 = vsel %vm3442, %v3432, %v3443
  %v3468 = vsel %vm3442, %v3433, %v3444
  %v3469 = vsel %vm201, %v3446, %v3455
  %v3470 = vsel %vm201, %v3448, %v3456
  %vm3471 = vcmask 302080
  %v3473 = vsel %vm3471, %v3357, 0
  %v3475 = vsel %vm3471, 0.0, 0
  %v3478 = vsel %vm3471, %v3464, 0
  %v3481 = vsel %vm3471, %v3466, 0
  %v3484 = vsel %vm3471, %v3468, 0
  %v3487 = vsel %vm3471, %v3470, 0
  %v3489 = vsel %vm3471, %v3459, 0
  %3491 = vmatprep.subr.mxu0 %v3475
  %3492 = vmatpush1.xpose.msra.mxu0 %v3377
  %3493 = vmatprep.subr.mxu0 %v3478
  %3494 = vmatpush1.xpose.msra.mxu0 %v3463
  %3495 = vmatprep.subr.mxu0 %v3481
  %3496 = vmatpush1.xpose.msra.mxu0 %v3465
  %3497 = vmatprep.subr.mxu0 %v3484
  %3498 = vmatpush1.xpose.msra.mxu0 %v3467
  %3499 = vmatprep.subr.mxu0 %v3487
  %3500 = vmatpush1.xpose.msra.mxu0 %v3469
  %3501 = vmatprep.subr.mxu0 %v3489
  %3502 = vmatpush1.xpose.msra.mxu0 %v3457
  %3503 = vmatprep.subr.mxu0 0.0
  %3504 = vmatpush1.xpose.msra.mxu0 0.0
  %3505 = vmatprep.subr.mxu0 0.0
  %3506 = vmatpush1.xpose.msra.mxu0 0.0
  %3507 = vmatprep.subr.mxu0 0.0
  %3508 = vmatpush1.xpose.msra.mxu0 0.0
  %3509 = vmatprep.subr.mxu0 0.0
  %3510 = vmatpush1.xpose.msra.mxu0 0.0
  %3511 = vmatprep.subr.mxu0 0.0
  %3512 = vmatpush1.xpose.msra.mxu0 0.0
  %3513 = vmatprep.subr.mxu0 0.0
  %3514 = vmatpush1.xpose.msra.mxu0 0.0
  %3515 = vmatprep.subr.mxu0 0.0
  %3516 = vmatpush1.xpose.msra.mxu0 0.0
  %3517 = vmatprep.subr.mxu0 0.0
  %3518 = vmatpush1.xpose.msra.mxu0 0.0
  %3519 = vmatprep.subr.mxu0 0.0
  %3520 = vmatpush1.xpose.msra.mxu0 0.0
  %3521 = vmatprep.subr.mxu0 0.0
  %3522 = vmatpush1.xpose.msra.mxu0 0.0
  %3523 = vmatprep.subr.mxu0 0.0
  %3524 = vmatpush1.xpose.msra.mxu0 0.0
  %3525 = vmatprep.subr.mxu0 0.0
  %3526 = vmatpush1.xpose.msra.mxu0 0.0
  %3527 = vmatprep.subr.mxu0 0.0
  %3528 = vmatpush1.xpose.msra.mxu0 0.0
  %3529 = vmatprep.subr.mxu0 0.0
  %3530 = vmatpush1.xpose.msra.mxu0 0.0
  %3531 = vmatprep.subr.mxu0 0.0
  %3532 = vmatpush1.xpose.msra.mxu0 0.0
  %3533 = vmatprep.subr.mxu0 0.0
  %3534 = vmatpush1.xpose.msra.mxu0 0.0
  %3535 = vmatprep.subr.mxu0 0.0
  %3536 = vmatpush1.xpose.msra.mxu0 0.0
  %3537 = vmatprep.subr.mxu0 0.0
  %3538 = vmatpush1.xpose.msra.mxu0 0.0
  %3539 = vmatprep.subr.mxu0 0.0
  %3540 = vmatpush1.xpose.msra.mxu0 0.0
  %3541 = vmatprep.subr.mxu0 0.0
  %3542 = vmatpush1.xpose.msra.mxu0 0.0
  %3543 = vmatprep.subr.mxu0 0.0
  %3544 = vmatpush1.xpose.msra.mxu0 0.0
  %3545 = vmatprep.subr.mxu0 0.0
  %3546 = vmatpush1.xpose.msra.mxu0 0.0
  %3547 = vmatprep.subr.mxu0 0.0
  %3548 = vmatpush1.xpose.msra.mxu0 0.0
  %3549 = vmatprep.subr.mxu0 0.0
  %3550 = vmatpush1.xpose.msra.mxu0 0.0
  %3551 = vmatprep.subr.mxu0 0.0
  %3552 = vmatpush1.xpose.msra.mxu0 0.0
  %3553 = vmatprep.subr.mxu0 0.0
  %3554 = vmatpush1.xpose.msra.mxu0 0.0
  %3555 = vmatprep.mubr.f32.mxu0 %v3473
  %3556 = vmatmul.mubr.f32.gmra.mrb[0].mxu0 %v3355
  %v3557 = vpop.f32.mrb[0].mxu0
  %v3558 = vadd.f32 0.0, %v3557
  %v3559 = vpop.f32.mrb[0].mxu0
  %3560 = vdwg.mxu0
  %3561 = vrot.lane.b32.xlu0 %v2828, 95
  %v3562 = vpop.permute.xlu0 %3561
  %3563 = vrot.lane.b32.xlu0 %v2830, 95
  %v3564 = vpop.permute.xlu0 %3563
  %v3567 = vsel %vm3083, %v3562, 0.0
  %v3568 = vsel %vm3083, %v3564, 0.0
  %v3569 = vsel %vm3373, %v3567, 0.0
  %v3570 = vsel %vm3373, %v3568, 0.0
  %v3571 = vsel %vm3376, %v3569, 0.0
  %v3572 = vsel %vm3376, %v3570, 0.0
  %v3573 = vsel %vm3083, 0.0, %v2828
  %v3574 = vsel %vm3083, 0.0, %v2830
  %v3575 = vsel %vm3373, %v3573, 0.0
  %v3576 = vsel %vm3373, %v3574, 0.0
  %v3577 = vsel %vm3376, %v3575, 0.0
  %v3578 = vsel %vm3376, %v3576, 0.0
  %3579 = vrot.lane.b32.xlu0 %v2828, 33
  %v3580 = vpop.permute.xlu0 %3579
  %3581 = vrot.lane.b32.xlu0 %v2830, 33
  %v3582 = vpop.permute.xlu0 %3581
  %v3585 = vsel %vm3373, 0.0, %v3580
  %v3586 = vsel %vm3373, 0.0, %v3582
  %v3587 = vsel %vm3376, %v3585, 0.0
  %v3588 = vsel %vm3376, %v3586, 0.0
  %3589 = vrot.lane.b32.xlu0 %v2828, 66
  %v3590 = vpop.permute.xlu0 %3589
  %3591 = vrot.lane.b32.xlu0 %v2830, 66
  %v3592 = vpop.permute.xlu0 %3591
  %v3595 = vsel %vm3376, 0.0, %v3590
  %v3596 = vsel %vm3376, 0.0, %v3592
  %v3597 = vsel %vm3403, %v3590, 0.0
  %v3598 = vsel %vm3403, %v3592, 0.0
  %3599 = vrot.lane.b32.xlu0 %v2828, 99
  %v3600 = vpop.permute.xlu0 %3599
  %3601 = vrot.lane.b32.xlu0 %v2830, 99
  %v3602 = vpop.permute.xlu0 %3601
  %v3605 = vsel %vm3403, 0.0, %v3600
  %v3606 = vsel %vm3403, 0.0, %v3602
  %v3609 = vrot.slane %v3577, 7
  %v3610 = vrot.slane %v3578, 7
  %v3611 = vsel %vm3004, %v3609, %v3610
  %v3616 = vrot.slane %v3587, 6
  %v3617 = vrot.slane %v3588, 6
  %v3618 = vsel %vm3428, %v3616, %v3617
  %v3625 = vrot.slane %v3595, 5
  %v3626 = vrot.slane %v3597, 5
  %v3627 = vrot.slane %v3596, 5
  %v3628 = vsel %vm3442, %v3625, %v3627
  %v3629 = vrot.slane %v3598, 5
  %v3630 = vsel %vm3442, %v3626, %v3629
  %v3637 = vrot.slane %v3605, 4
  %v3638 = vrot.slane %v3606, 4
  %v3639 = vsel %vm201, %v3637, %v3638
  %v3641 = vsel %vm3004, %v3572, %v3609
  %v3642 = vsel %vm3428, %v3611, %v3616
  %v3643 = vsel %vm3442, %v3618, %v3625
  %v3644 = vsel %vm3442, %v3433, %v3626
  %v3645 = vsel %vm201, %v3628, %v3455
  %v3646 = vsel %vm201, %v3630, %v3637
  %v3648 = vsel %vm3471, %v3363, 0
  %v3651 = vsel %vm3471, %v3644, 0
  %v3654 = vsel %vm3471, %v3646, 0
  %v3656 = vsel %vm3471, %v3639, 0
  %3658 = vmatprep.subr.mxu0 %v3475
  %3659 = vmatpush1.xpose.msra.mxu0 %v3571
  %3660 = vmatprep.subr.mxu0 %v3478
  %3661 = vmatpush1.xpose.msra.mxu0 %v3641
  %3662 = vmatprep.subr.mxu0 %v3481
  %3663 = vmatpush1.xpose.msra.mxu0 %v3642
  %3664 = vmatprep.subr.mxu0 %v3651
  %3665 = vmatpush1.xpose.msra.mxu0 %v3643
  %3666 = vmatprep.subr.mxu0 %v3654
  %3667 = vmatpush1.xpose.msra.mxu0 %v3645
  %3668 = vmatprep.subr.mxu0 %v3656
  %3669 = vmatpush1.xpose.msra.mxu0 %v3457
  %3670 = vmatprep.subr.mxu0 0.0
  %3671 = vmatpush1.xpose.msra.mxu0 0.0
  %3672 = vmatprep.subr.mxu0 0.0
  %3673 = vmatpush1.xpose.msra.mxu0 0.0
  %3674 = vmatprep.subr.mxu0 0.0
  %3675 = vmatpush1.xpose.msra.mxu0 0.0
  %3676 = vmatprep.subr.mxu0 0.0
  %3677 = vmatpush1.xpose.msra.mxu0 0.0
  %3678 = vmatprep.subr.mxu0 0.0
  %3679 = vmatpush1.xpose.msra.mxu0 0.0
  %3680 = vmatprep.subr.mxu0 0.0
  %3681 = vmatpush1.xpose.msra.mxu0 0.0
  %3682 = vmatprep.subr.mxu0 0.0
  %3683 = vmatpush1.xpose.msra.mxu0 0.0
  %3684 = vmatprep.subr.mxu0 0.0
  %3685 = vmatpush1.xpose.msra.mxu0 0.0
  %3686 = vmatprep.subr.mxu0 0.0
  %3687 = vmatpush1.xpose.msra.mxu0 0.0
  %3688 = vmatprep.subr.mxu0 0.0
  %3689 = vmatpush1.xpose.msra.mxu0 0.0
  %3690 = vmatprep.subr.mxu0 0.0
  %3691 = vmatpush1.xpose.msra.mxu0 0.0
  %3692 = vmatprep.subr.mxu0 0.0
  %3693 = vmatpush1.xpose.msra.mxu0 0.0
  %3694 = vmatprep.subr.mxu0 0.0
  %3695 = vmatpush1.xpose.msra.mxu0 0.0
  %3696 = vmatprep.subr.mxu0 0.0
  %3697 = vmatpush1.xpose.msra.mxu0 0.0
  %3698 = vmatprep.subr.mxu0 0.0
  %3699 = vmatpush1.xpose.msra.mxu0 0.0
  %3700 = vmatprep.subr.mxu0 0.0
  %3701 = vmatpush1.xpose.msra.mxu0 0.0
  %3702 = vmatprep.subr.mxu0 0.0
  %3703 = vmatpush1.xpose.msra.mxu0 0.0
  %3704 = vmatprep.subr.mxu0 0.0
  %3705 = vmatpush1.xpose.msra.mxu0 0.0
  %3706 = vmatprep.subr.mxu0 0.0
  %3707 = vmatpush1.xpose.msra.mxu0 0.0
  %3708 = vmatprep.subr.mxu0 0.0
  %3709 = vmatpush1.xpose.msra.mxu0 0.0
  %3710 = vmatprep.subr.mxu0 0.0
  %3711 = vmatpush1.xpose.msra.mxu0 0.0
  %3712 = vmatprep.subr.mxu0 0.0
  %3713 = vmatpush1.xpose.msra.mxu0 0.0
  %3714 = vmatprep.subr.mxu0 0.0
  %3715 = vmatpush1.xpose.msra.mxu0 0.0
  %3716 = vmatprep.subr.mxu0 0.0
  %3717 = vmatpush1.xpose.msra.mxu0 0.0
  %3718 = vmatprep.subr.mxu0 0.0
  %3719 = vmatpush1.xpose.msra.mxu0 0.0
  %3720 = vmatprep.subr.mxu0 0.0
  %3721 = vmatpush1.xpose.msra.mxu0 0.0
  %3722 = vmatprep.mubr.f32.mxu0 %v3648
  %3723 = vmatmul.mubr.f32.gmra.mrb[0].mxu0 %v3361
  %v3724 = vpop.f32.mrb[0].mxu0
  %v3725 = vadd.f32 0.0, %v3724
  %v3726 = vpop.f32.mrb[0].mxu0
  %3727 = vdwg.mxu0
  %3728 = vrot.lane.b32.xlu0 %v2957, 78
  %v3729 = vpop.permute.xlu0 %3728
  %3730 = vrot.lane.b32.xlu0 %v2959, 78
  %v3731 = vpop.permute.xlu0 %3730
  %3736 = vrot.lane.b32.xlu0 %v2962, 58
  %v3737 = vpop.permute.xlu0 %3736
  %3738 = vrot.lane.b32.xlu0 %v2963, 58
  %v3739 = vpop.permute.xlu0 %3738
  %3740 = vrot.lane.b32.xlu0 %v2971, 58
  %v3741 = vpop.permute.xlu0 %3740
  %3742 = vrot.lane.b32.xlu0 %v2972, 58
  %v3743 = vpop.permute.xlu0 %3742
  %3744 = vrot.lane.b32.xlu0 %v2980, 58
  %v3745 = vpop.permute.xlu0 %3744
  %3746 = vrot.lane.b32.xlu0 %v2981, 58
  %v3747 = vpop.permute.xlu0 %3746
  %3748 = vrot.lane.b32.xlu0 %v2989, 58
  %v3749 = vpop.permute.xlu0 %3748
  %3750 = vrot.lane.b32.xlu0 %v2990, 58
  %v3751 = vpop.permute.xlu0 %3750
  %vm3752 = vcmask 474112
  %v3753 = vsel %vm3752, %v3737, %v3739
  %v3754 = vsel %vm3752, %v3741, %v3743
  %v3755 = vsel %vm3752, %v3745, %v3747
  %v3756 = vsel %vm3752, %v3749, %v3751
  %v3760 = vsel %vm2997, %v3729, 0
  %v3762 = vsel %vm2997, %v3731, 0
  %v3764 = vsel %vm3004, %v3756, 0
  %3766 = vmatprep.subr.mxu0 0.0
  %3767 = vmatpush1.msra.mxu0 %v3753
  %3768 = vmatprep.subr.mxu0 0.0
  %3769 = vmatpush1.msra.mxu0 %v3754
  %3770 = vmatprep.subr.mxu0 0.0
  %3771 = vmatpush1.msra.mxu0 %v3755
  %3772 = vmatprep.subr.mxu0 0.0
  %3773 = vmatpush1.msra.mxu0 %v3764
  %3774 = vmatprep.subr.mxu0 0.0
  %3775 = vmatpush1.msra.mxu0 0.0
  %3776 = vmatprep.subr.mxu0 0.0
  %3777 = vmatpush1.msra.mxu0 0.0
  %3778 = vmatprep.subr.mxu0 0.0
  %3779 = vmatpush1.msra.mxu0 0.0
  %3780 = vmatprep.subr.mxu0 0.0
  %3781 = vmatpush1.msra.mxu0 0.0
  %3782 = vmatprep.subr.mxu0 0.0
  %3783 = vmatpush1.msra.mxu0 0.0
  %3784 = vmatprep.subr.mxu0 0.0
  %3785 = vmatpush1.msra.mxu0 0.0
  %3786 = vmatprep.subr.mxu0 0.0
  %3787 = vmatpush1.msra.mxu0 0.0
  %3788 = vmatprep.subr.mxu0 0.0
  %3789 = vmatpush1.msra.mxu0 0.0
  %3790 = vmatprep.subr.mxu0 0.0
  %3791 = vmatpush1.msra.mxu0 0.0
  %3792 = vmatprep.subr.mxu0 0.0
  %3793 = vmatpush1.msra.mxu0 0.0
  %3794 = vmatprep.subr.mxu0 0.0
  %3795 = vmatpush1.msra.mxu0 0.0
  %3796 = vmatprep.subr.mxu0 0.0
  %3797 = vmatpush1.msra.mxu0 0.0
  %3798 = vmatprep.subr.mxu0 0.0
  %3799 = vmatpush1.msra.mxu0 0.0
  %3800 = vmatprep.subr.mxu0 0.0
  %3801 = vmatpush1.msra.mxu0 0.0
  %3802 = vmatprep.subr.mxu0 0.0
  %3803 = vmatpush1.msra.mxu0 0.0
  %3804 = vmatprep.subr.mxu0 0.0
  %3805 = vmatpush1.msra.mxu0 0.0
  %3806 = vmatprep.subr.mxu0 0.0
  %3807 = vmatpush1.msra.mxu0 0.0
  %3808 = vmatprep.subr.mxu0 0.0
  %3809 = vmatpush1.msra.mxu0 0.0
  %3810 = vmatprep.subr.mxu0 0.0
  %3811 = vmatpush1.msra.mxu0 0.0
  %3812 = vmatprep.subr.mxu0 0.0
  %3813 = vmatpush1.msra.mxu0 0.0
  %3814 = vmatprep.subr.mxu0 0.0
  %3815 = vmatpush1.msra.mxu0 0.0
  %3816 = vmatprep.subr.mxu0 0.0
  %3817 = vmatpush1.msra.mxu0 0.0
  %3818 = vmatprep.subr.mxu0 0.0
  %3819 = vmatpush1.msra.mxu0 0.0
  %3820 = vmatprep.subr.mxu0 0.0
  %3821 = vmatpush1.msra.mxu0 0.0
  %3822 = vmatprep.subr.mxu0 0.0
  %3823 = vmatpush1.msra.mxu0 0.0
  %3824 = vmatprep.subr.mxu0 0.0
  %3825 = vmatpush1.msra.mxu0 0.0
  %3826 = vmatprep.subr.mxu0 0.0
  %3827 = vmatpush1.msra.mxu0 0.0
  %3828 = vmatprep.subr.mxu0 0.0
  %3829 = vmatpush1.msra.mxu0 0.0
  %3830 = vmatprep.mubr.f32.mxu0 0.0
  %3831 = vmatmul.mubr.f32.gmra.mrb[0].mxu0 %v3760
  %v3832 = vpop.f32.mrb[0].mxu0
  %v3833 = vadd.f32 0.0, %v3832
  %v3834 = vpop.f32.mrb[0].mxu0
  %3835 = vmatprep.mubr.f32.mxu0 0.0
  %3836 = vmatmul.mubr.f32.gmra.mrb[0].mxu0 %v3762
  %v3837 = vpop.f32.mrb[0].mxu0
  %v3838 = vadd.f32 0.0, %v3837
  %v3839 = vpop.f32.mrb[0].mxu0
  %3840 = vdwg.mxu0
  %3841 = vrot.lane.b32.xlu0 %v2719, 62
  %v3842 = vpop.permute.xlu0 %3841
  %3843 = vrot.lane.b32.xlu0 %v2721, 62
  %v3844 = vpop.permute.xlu0 %3843
  %v3847 = vsel %vm3083, %v3842, 0.0
  %v3848 = vsel %vm3083, %v3844, 0.0
  %v3849 = vsel %vm3373, %v3847, 0.0
  %v3850 = vsel %vm3373, %v3848, 0.0
  %v3851 = vsel %vm3083, 0.0, %v3366
  %v3852 = vsel %vm3083, 0.0, %v3368
  %v3853 = vsel %vm3373, %v3851, 0.0
  %v3854 = vsel %vm3373, %v3852, 0.0
  %v3855 = vsel %vm3373, 0.0, %v2719
  %v3856 = vsel %vm3373, 0.0, %v2721
  %v3859 = vrot.slane %v3853, 7
  %v3860 = vrot.slane %v3854, 7
  %v3861 = vsel %vm3004, %v3859, %v3860
  %v3866 = vrot.slane %v3855, 6
  %v3867 = vrot.slane %v3856, 6
  %v3868 = vsel %vm3428, %v3866, %v3867
  %v3870 = vsel %vm3004, %v3850, %v3859
  %v3871 = vsel %vm3428, %v3861, %v3866
  %v3873 = vsel %vm3376, %v3833, 0
  %v3876 = vsel %vm3376, %v3849, 0
  %v3879 = vsel %vm3376, %v3870, 0
  %v3882 = vsel %vm3376, %v3871, 0
  %v3884 = vsel %vm3376, %v3868, 0
  %3886 = vmatprep.subr.mxu0 0.0
  %3887 = vmatpush1.xpose.msra.mxu0 %v3876
  %3888 = vmatprep.subr.mxu0 0.0
  %3889 = vmatpush1.xpose.msra.mxu0 %v3879
  %3890 = vmatprep.subr.mxu0 0.0
  %3891 = vmatpush1.xpose.msra.mxu0 %v3882
  %3892 = vmatprep.subr.mxu0 0.0
  %3893 = vmatpush1.xpose.msra.mxu0 %v3884
  %3894 = vmatprep.subr.mxu0 0.0
  %3895 = vmatpush1.xpose.msra.mxu0 0.0
  %3896 = vmatprep.subr.mxu0 0.0
  %3897 = vmatpush1.xpose.msra.mxu0 0.0
  %3898 = vmatprep.subr.mxu0 0.0
  %3899 = vmatpush1.xpose.msra.mxu0 0.0
  %3900 = vmatprep.subr.mxu0 0.0
  %3901 = vmatpush1.xpose.msra.mxu0 0.0
  %3902 = vmatprep.subr.mxu0 0.0
  %3903 = vmatpush1.xpose.msra.mxu0 0.0
  %3904 = vmatprep.subr.mxu0 0.0
  %3905 = vmatpush1.xpose.msra.mxu0 0.0
  %3906 = vmatprep.subr.mxu0 0.0
  %3907 = vmatpush1.xpose.msra.mxu0 0.0
  %3908 = vmatprep.subr.mxu0 0.0
  %3909 = vmatpush1.xpose.msra.mxu0 0.0
  %3910 = vmatprep.subr.mxu0 0.0
  %3911 = vmatpush1.xpose.msra.mxu0 0.0
  %3912 = vmatprep.subr.mxu0 0.0
  %3913 = vmatpush1.xpose.msra.mxu0 0.0
  %3914 = vmatprep.subr.mxu0 0.0
  %3915 = vmatpush1.xpose.msra.mxu0 0.0
  %3916 = vmatprep.subr.mxu0 0.0
  %3917 = vmatpush1.xpose.msra.mxu0 0.0
  %3918 = vmatprep.subr.mxu0 0.0
  %3919 = vmatpush1.xpose.msra.mxu0 0.0
  %3920 = vmatprep.subr.mxu0 0.0
  %3921 = vmatpush1.xpose.msra.mxu0 0.0
  %3922 = vmatprep.subr.mxu0 0.0
  %3923 = vmatpush1.xpose.msra.mxu0 0.0
  %3924 = vmatprep.subr.mxu0 0.0
  %3925 = vmatpush1.xpose.msra.mxu0 0.0
  %3926 = vmatprep.subr.mxu0 0.0
  %3927 = vmatpush1.xpose.msra.mxu0 0.0
  %3928 = vmatprep.subr.mxu0 0.0
  %3929 = vmatpush1.xpose.msra.mxu0 0.0
  %3930 = vmatprep.subr.mxu0 0.0
  %3931 = vmatpush1.xpose.msra.mxu0 0.0
  %3932 = vmatprep.subr.mxu0 0.0
  %3933 = vmatpush1.xpose.msra.mxu0 0.0
  %3934 = vmatprep.subr.mxu0 0.0
  %3935 = vmatpush1.xpose.msra.mxu0 0.0
  %3936 = vmatprep.subr.mxu0 0.0
  %3937 = vmatpush1.xpose.msra.mxu0 0.0
  %3938 = vmatprep.subr.mxu0 0.0
  %3939 = vmatpush1.xpose.msra.mxu0 0.0
  %3940 = vmatprep.subr.mxu0 0.0
  %3941 = vmatpush1.xpose.msra.mxu0 0.0
  %3942 = vmatprep.subr.mxu0 0.0
  %3943 = vmatpush1.xpose.msra.mxu0 0.0
  %3944 = vmatprep.subr.mxu0 0.0
  %3945 = vmatpush1.xpose.msra.mxu0 0.0
  %3946 = vmatprep.subr.mxu0 0.0
  %3947 = vmatpush1.xpose.msra.mxu0 0.0
  %3948 = vmatprep.subr.mxu0 0.0
  %3949 = vmatpush1.xpose.msra.mxu0 0.0
  %3950 = vmatprep.mubr.f32.mxu0 0.0
  %3951 = vmatmul.mubr.f32.gmra.mrb[0].mxu0 %v3873
  %v3952 = vpop.f32.mrb[0].mxu0
  %v3953 = vadd.f32 0.0, %v3952
  %v3954 = vpop.f32.mrb[0].mxu0
  %3955 = vdwg.mxu0
  %3956 = vrot.lane.b32.xlu0 %v2828, 62
  %v3957 = vpop.permute.xlu0 %3956
  %3958 = vrot.lane.b32.xlu0 %v2830, 62
  %v3959 = vpop.permute.xlu0 %3958
  %v3962 = vsel %vm3083, %v3957, 0.0
  %v3963 = vsel %vm3083, %v3959, 0.0
  %v3964 = vsel %vm3373, %v3962, 0.0
  %v3965 = vsel %vm3373, %v3963, 0.0
  %v3966 = vsel %vm3083, 0.0, %v3562
  %v3967 = vsel %vm3083, 0.0, %v3564
  %v3968 = vsel %vm3373, %v3966, 0.0
  %v3969 = vsel %vm3373, %v3967, 0.0
  %v3970 = vsel %vm3373, 0.0, %v2828
  %v3971 = vsel %vm3373, 0.0, %v2830
  %v3974 = vrot.slane %v3968, 7
  %v3975 = vrot.slane %v3969, 7
  %v3976 = vsel %vm3004, %v3974, %v3975
  %v3981 = vrot.slane %v3970, 6
  %v3982 = vrot.slane %v3971, 6
  %v3983 = vsel %vm3428, %v3981, %v3982
  %v3985 = vsel %vm3004, %v3965, %v3974
  %v3986 = vsel %vm3428, %v3976, %v3981
  %v3988 = vsel %vm3376, %v3838, 0
  %v3991 = vsel %vm3376, %v3964, 0
  %v3994 = vsel %vm3376, %v3985, 0
  %v3997 = vsel %vm3376, %v3986, 0
  %v3999 = vsel %vm3376, %v3983, 0
  %4001 = vmatprep.subr.mxu0 0.0
  %4002 = vmatpush1.xpose.msra.mxu0 %v3991
  %4003 = vmatprep.subr.mxu0 0.0
  %4004 = vmatpush1.xpose.msra.mxu0 %v3994
  %4005 = vmatprep.subr.mxu0 0.0
  %4006 = vmatpush1.xpose.msra.mxu0 %v3997
  %4007 = vmatprep.subr.mxu0 0.0
  %4008 = vmatpush1.xpose.msra.mxu0 %v3999
  %4009 = vmatprep.subr.mxu0 0.0
  %4010 = vmatpush1.xpose.msra.mxu0 0.0
  %4011 = vmatprep.subr.mxu0 0.0
  %4012 = vmatpush1.xpose.msra.mxu0 0.0
  %4013 = vmatprep.subr.mxu0 0.0
  %4014 = vmatpush1.xpose.msra.mxu0 0.0
  %4015 = vmatprep.subr.mxu0 0.0
  %4016 = vmatpush1.xpose.msra.mxu0 0.0
  %4017 = vmatprep.subr.mxu0 0.0
  %4018 = vmatpush1.xpose.msra.mxu0 0.0
  %4019 = vmatprep.subr.mxu0 0.0
  %4020 = vmatpush1.xpose.msra.mxu0 0.0
  %4021 = vmatprep.subr.mxu0 0.0
  %4022 = vmatpush1.xpose.msra.mxu0 0.0
  %4023 = vmatprep.subr.mxu0 0.0
  %4024 = vmatpush1.xpose.msra.mxu0 0.0
  %4025 = vmatprep.subr.mxu0 0.0
  %4026 = vmatpush1.xpose.msra.mxu0 0.0
  %4027 = vmatprep.subr.mxu0 0.0
  %4028 = vmatpush1.xpose.msra.mxu0 0.0
  %4029 = vmatprep.subr.mxu0 0.0
  %4030 = vmatpush1.xpose.msra.mxu0 0.0
  %4031 = vmatprep.subr.mxu0 0.0
  %4032 = vmatpush1.xpose.msra.mxu0 0.0
  %4033 = vmatprep.subr.mxu0 0.0
  %4034 = vmatpush1.xpose.msra.mxu0 0.0
  %4035 = vmatprep.subr.mxu0 0.0
  %4036 = vmatpush1.xpose.msra.mxu0 0.0
  %4037 = vmatprep.subr.mxu0 0.0
  %4038 = vmatpush1.xpose.msra.mxu0 0.0
  %4039 = vmatprep.subr.mxu0 0.0
  %4040 = vmatpush1.xpose.msra.mxu0 0.0
  %4041 = vmatprep.subr.mxu0 0.0
  %4042 = vmatpush1.xpose.msra.mxu0 0.0
  %4043 = vmatprep.subr.mxu0 0.0
  %4044 = vmatpush1.xpose.msra.mxu0 0.0
  %4045 = vmatprep.subr.mxu0 0.0
  %4046 = vmatpush1.xpose.msra.mxu0 0.0
  %4047 = vmatprep.subr.mxu0 0.0
  %4048 = vmatpush1.xpose.msra.mxu0 0.0
  %4049 = vmatprep.subr.mxu0 0.0
  %4050 = vmatpush1.xpose.msra.mxu0 0.0
  %4051 = vmatprep.subr.mxu0 0.0
  %4052 = vmatpush1.xpose.msra.mxu0 0.0
  %4053 = vmatprep.subr.mxu0 0.0
  %4054 = vmatpush1.xpose.msra.mxu0 0.0
  %4055 = vmatprep.subr.mxu0 0.0
  %4056 = vmatpush1.xpose.msra.mxu0 0.0
  %4057 = vmatprep.subr.mxu0 0.0
  %4058 = vmatpush1.xpose.msra.mxu0 0.0
  %4059 = vmatprep.subr.mxu0 0.0
  %4060 = vmatpush1.xpose.msra.mxu0 0.0
  %4061 = vmatprep.subr.mxu0 0.0
  %4062 = vmatpush1.xpose.msra.mxu0 0.0
  %4063 = vmatprep.subr.mxu0 0.0
  %4064 = vmatpush1.xpose.msra.mxu0 0.0
  %4065 = vmatprep.mubr.f32.mxu0 0.0
  %4066 = vmatmul.mubr.f32.gmra.mrb[0].mxu0 %v3988
  %v4067 = vpop.f32.mrb[0].mxu0
  %v4068 = vadd.f32 0.0, %v4067
  %v4069 = vpop.f32.mrb[0].mxu0
  %4070 = vdwg.mxu0
  %4071 = vrot.lane.b32.xlu0 %v2957, 53
  %v4072 = vpop.permute.xlu0 %4071
  %4073 = vrot.lane.b32.xlu0 %v2959, 53
  %v4074 = vpop.permute.xlu0 %4073
  %4079 = vrot.lane.b32.xlu0 %v2963, 87
  %v4080 = vpop.permute.xlu0 %4079
  %4081 = vrot.lane.b32.xlu0 %v2964, 87
  %v4082 = vpop.permute.xlu0 %4081
  %4083 = vrot.lane.b32.xlu0 %v2972, 87
  %v4084 = vpop.permute.xlu0 %4083
  %4085 = vrot.lane.b32.xlu0 %v2973, 87
  %v4086 = vpop.permute.xlu0 %4085
  %4087 = vrot.lane.b32.xlu0 %v2981, 87
  %v4088 = vpop.permute.xlu0 %4087
  %4089 = vrot.lane.b32.xlu0 %v2982, 87
  %v4090 = vpop.permute.xlu0 %4089
  %4091 = vrot.lane.b32.xlu0 %v2990, 87
  %v4092 = vpop.permute.xlu0 %4091
  %4093 = vrot.lane.b32.xlu0 %v2991, 87
  %v4094 = vpop.permute.xlu0 %4093
  %vm4095 = vcmask 711680
  %v4096 = vsel %vm4095, %v4080, %v4082
  %v4097 = vsel %vm4095, %v4084, %v4086
  %v4098 = vsel %vm4095, %v4088, %v4090
  %v4099 = vsel %vm4095, %v4092, %v4094
  %v4106 = vsel %vm2997, %v4072, 0
  %v4108 = vsel %vm2997, %v4074, 0
  %v4110 = vsel %vm3004, %v4099, 0
  %v4112 = vsel %vm3004, %v4094, 0
  %4114 = vmatprep.subr.mxu0 %v4082
  %4115 = vmatpush1.msra.mxu0 %v4096
  %4116 = vmatprep.subr.mxu0 %v4086
  %4117 = vmatpush1.msra.mxu0 %v4097
  %4118 = vmatprep.subr.mxu0 %v4090
  %4119 = vmatpush1.msra.mxu0 %v4098
  %4120 = vmatprep.subr.mxu0 %v4112
  %4121 = vmatpush1.msra.mxu0 %v4110
  %4122 = vmatprep.subr.mxu0 0.0
  %4123 = vmatpush1.msra.mxu0 0.0
  %4124 = vmatprep.subr.mxu0 0.0
  %4125 = vmatpush1.msra.mxu0 0.0
  %4126 = vmatprep.subr.mxu0 0.0
  %4127 = vmatpush1.msra.mxu0 0.0
  %4128 = vmatprep.subr.mxu0 0.0
  %4129 = vmatpush1.msra.mxu0 0.0
  %4130 = vmatprep.subr.mxu0 0.0
  %4131 = vmatpush1.msra.mxu0 0.0
  %4132 = vmatprep.subr.mxu0 0.0
  %4133 = vmatpush1.msra.mxu0 0.0
  %4134 = vmatprep.subr.mxu0 0.0
  %4135 = vmatpush1.msra.mxu0 0.0
  %4136 = vmatprep.subr.mxu0 0.0
  %4137 = vmatpush1.msra.mxu0 0.0
  %4138 = vmatprep.subr.mxu0 0.0
  %4139 = vmatpush1.msra.mxu0 0.0
  %4140 = vmatprep.subr.mxu0 0.0
  %4141 = vmatpush1.msra.mxu0 0.0
  %4142 = vmatprep.subr.mxu0 0.0
  %4143 = vmatpush1.msra.mxu0 0.0
  %4144 = vmatprep.subr.mxu0 0.0
  %4145 = vmatpush1.msra.mxu0 0.0
  %4146 = vmatprep.subr.mxu0 0.0
  %4147 = vmatpush1.msra.mxu0 0.0
  %4148 = vmatprep.subr.mxu0 0.0
  %4149 = vmatpush1.msra.mxu0 0.0
  %4150 = vmatprep.subr.mxu0 0.0
  %4151 = vmatpush1.msra.mxu0 0.0
  %4152 = vmatprep.subr.mxu0 0.0
  %4153 = vmatpush1.msra.mxu0 0.0
  %4154 = vmatprep.subr.mxu0 0.0
  %4155 = vmatpush1.msra.mxu0 0.0
  %4156 = vmatprep.subr.mxu0 0.0
  %4157 = vmatpush1.msra.mxu0 0.0
  %4158 = vmatprep.subr.mxu0 0.0
  %4159 = vmatpush1.msra.mxu0 0.0
  %4160 = vmatprep.subr.mxu0 0.0
  %4161 = vmatpush1.msra.mxu0 0.0
  %4162 = vmatprep.subr.mxu0 0.0
  %4163 = vmatpush1.msra.mxu0 0.0
  %4164 = vmatprep.subr.mxu0 0.0
  %4165 = vmatpush1.msra.mxu0 0.0
  %4166 = vmatprep.subr.mxu0 0.0
  %4167 = vmatpush1.msra.mxu0 0.0
  %4168 = vmatprep.subr.mxu0 0.0
  %4169 = vmatpush1.msra.mxu0 0.0
  %4170 = vmatprep.subr.mxu0 0.0
  %4171 = vmatpush1.msra.mxu0 0.0
  %4172 = vmatprep.subr.mxu0 0.0
  %4173 = vmatpush1.msra.mxu0 0.0
  %4174 = vmatprep.subr.mxu0 0.0
  %4175 = vmatpush1.msra.mxu0 0.0
  %4176 = vmatprep.subr.mxu0 0.0
  %4177 = vmatpush1.msra.mxu0 0.0
  %4178 = vmatprep.mubr.f32.mxu0 0.0
  %4179 = vmatmul.mubr.f32.gmra.mrb[0].mxu0 %v4106
  %v4180 = vpop.f32.mrb[0].mxu0
  %v4181 = vadd.f32 0.0, %v4180
  %v4182 = vpop.f32.mrb[0].mxu0
  %v4183 = vadd.f32 0.0, %v4182
  %4184 = vmatprep.mubr.f32.mxu0 0.0
  %4185 = vmatmul.mubr.f32.gmra.mrb[0].mxu0 %v4108
  %v4186 = vpop.f32.mrb[0].mxu0
  %v4187 = vadd.f32 0.0, %v4186
  %v4188 = vpop.f32.mrb[0].mxu0
  %v4189 = vadd.f32 0.0, %v4188
  %4190 = vdwg.mxu0
  %4193 = vrot.lane.b32.xlu0 %v2719, 29
  %v4194 = vpop.permute.xlu0 %4193
  %4195 = vrot.lane.b32.xlu0 %v2720, 29
  %v4196 = vpop.permute.xlu0 %4195
  %4197 = vrot.lane.b32.xlu0 %v2721, 29
  %v4198 = vpop.permute.xlu0 %4197
  %4199 = vrot.lane.b32.xlu0 %v2722, 29
  %v4200 = vpop.permute.xlu0 %4199
  %vm4201 = vcmask 236544
  %v4202 = vsel %vm4201, %v4194, %v4196
  %v4203 = vsel %vm4201, %v4198, %v4200
  %v4206 = vsel %vm3083, %v4202, 0.0
  %v4207 = vsel %vm3083, %v4203, 0.0
  %v4208 = vsel %vm3373, %v4206, 0.0
  %v4209 = vsel %vm3373, %v4207, 0.0
  %v4210 = vsel %vm3376, %v4208, 0.0
  %v4211 = vsel %vm3376, %v4209, 0.0
  %4212 = vrot.lane.b32.xlu0 %v2720, 62
  %v4213 = vpop.permute.xlu0 %4212
  %4214 = vrot.lane.b32.xlu0 %v2722, 62
  %v4215 = vpop.permute.xlu0 %4214
  %vm4216 = vcmask 506880
  %v4217 = vsel %vm4216, %v3842, %v4213
  %v4218 = vsel %vm4216, %v3844, %v4215
  %v4221 = vsel %vm3083, 0.0, %v4217
  %v4222 = vsel %vm3083, 0.0, %v4218
  %v4223 = vsel %vm3373, %v4221, 0.0
  %v4224 = vsel %vm3373, %v4222, 0.0
  %v4225 = vsel %vm3376, %v4223, 0.0
  %v4226 = vsel %vm3376, %v4224, 0.0
  %4227 = vrot.lane.b32.xlu0 %v2720, 95
  %v4228 = vpop.permute.xlu0 %4227
  %4229 = vrot.lane.b32.xlu0 %v2722, 95
  %v4230 = vpop.permute.xlu0 %4229
  %v4231 = vsel %vm3269, %v3366, %v4228
  %v4232 = vsel %vm3269, %v3368, %v4230
  %v4235 = vsel %vm3373, 0.0, %v4231
  %v4236 = vsel %vm3373, 0.0, %v4232
  %v4237 = vsel %vm3376, %v4235, 0.0
  %v4238 = vsel %vm3376, %v4236, 0.0
  %v4239 = vsel %vm3376, 0.0, %v2719
  %v4240 = vsel %vm3376, 0.0, %v2721
  %v4243 = vrot.slane %v4225, 7
  %v4244 = vrot.slane %v4226, 7
  %v4245 = vsel %vm3004, %v4243, %v4244
  %v4250 = vrot.slane %v4237, 6
  %v4251 = vrot.slane %v4238, 6
  %v4252 = vsel %vm3428, %v4250, %v4251
  %v4257 = vrot.slane %v4239, 5
  %v4258 = vrot.slane %v2720, 5
  %v4259 = vrot.slane %v4240, 5
  %v4260 = vsel %vm3442, %v4257, %v4259
  %v4261 = vrot.slane %v2722, 5
  %v4262 = vsel %vm3442, %v4258, %v4261
  %v4266 = vsel %vm3004, %v4211, %v4243
  %v4267 = vsel %vm3428, %v4245, %v4250
  %v4268 = vsel %vm3442, %v4252, %v4257
  %v4269 = vsel %vm3442, %v3433, %v4258
  %v4271 = vsel %vm3403, %v4183, 0
  %v4273 = vsel %vm3403, 0.0, 0
  %v4275 = vsel %vm3403, %v3464, 0
  %v4277 = vsel %vm3403, %v3466, 0
  %v4280 = vsel %vm3403, %v4269, 0
  %v4282 = vsel %vm3403, %v4262, 0
  %4284 = vmatprep.subr.mxu0 %v4273
  %4285 = vmatpush1.xpose.msra.mxu0 %v4210
  %4286 = vmatprep.subr.mxu0 %v4275
  %4287 = vmatpush1.xpose.msra.mxu0 %v4266
  %4288 = vmatprep.subr.mxu0 %v4277
  %4289 = vmatpush1.xpose.msra.mxu0 %v4267
  %4290 = vmatprep.subr.mxu0 %v4280
  %4291 = vmatpush1.xpose.msra.mxu0 %v4268
  %4292 = vmatprep.subr.mxu0 %v4282
  %4293 = vmatpush1.xpose.msra.mxu0 %v4260
  %4294 = vmatprep.subr.mxu0 0.0
  %4295 = vmatpush1.xpose.msra.mxu0 0.0
  %4296 = vmatprep.subr.mxu0 0.0
  %4297 = vmatpush1.xpose.msra.mxu0 0.0
  %4298 = vmatprep.subr.mxu0 0.0
  %4299 = vmatpush1.xpose.msra.mxu0 0.0
  %4300 = vmatprep.subr.mxu0 0.0
  %4301 = vmatpush1.xpose.msra.mxu0 0.0
  %4302 = vmatprep.subr.mxu0 0.0
  %4303 = vmatpush1.xpose.msra.mxu0 0.0
  %4304 = vmatprep.subr.mxu0 0.0
  %4305 = vmatpush1.xpose.msra.mxu0 0.0
  %4306 = vmatprep.subr.mxu0 0.0
  %4307 = vmatpush1.xpose.msra.mxu0 0.0
  %4308 = vmatprep.subr.mxu0 0.0
  %4309 = vmatpush1.xpose.msra.mxu0 0.0
  %4310 = vmatprep.subr.mxu0 0.0
  %4311 = vmatpush1.xpose.msra.mxu0 0.0
  %4312 = vmatprep.subr.mxu0 0.0
  %4313 = vmatpush1.xpose.msra.mxu0 0.0
  %4314 = vmatprep.subr.mxu0 0.0
  %4315 = vmatpush1.xpose.msra.mxu0 0.0
  %4316 = vmatprep.subr.mxu0 0.0
  %4317 = vmatpush1.xpose.msra.mxu0 0.0
  %4318 = vmatprep.subr.mxu0 0.0
  %4319 = vmatpush1.xpose.msra.mxu0 0.0
  %4320 = vmatprep.subr.mxu0 0.0
  %4321 = vmatpush1.xpose.msra.mxu0 0.0
  %4322 = vmatprep.subr.mxu0 0.0
  %4323 = vmatpush1.xpose.msra.mxu0 0.0
  %4324 = vmatprep.subr.mxu0 0.0
  %4325 = vmatpush1.xpose.msra.mxu0 0.0
  %4326 = vmatprep.subr.mxu0 0.0
  %4327 = vmatpush1.xpose.msra.mxu0 0.0
  %4328 = vmatprep.subr.mxu0 0.0
  %4329 = vmatpush1.xpose.msra.mxu0 0.0
  %4330 = vmatprep.subr.mxu0 0.0
  %4331 = vmatpush1.xpose.msra.mxu0 0.0
  %4332 = vmatprep.subr.mxu0 0.0
  %4333 = vmatpush1.xpose.msra.mxu0 0.0
  %4334 = vmatprep.subr.mxu0 0.0
  %4335 = vmatpush1.xpose.msra.mxu0 0.0
  %4336 = vmatprep.subr.mxu0 0.0
  %4337 = vmatpush1.xpose.msra.mxu0 0.0
  %4338 = vmatprep.subr.mxu0 0.0
  %4339 = vmatpush1.xpose.msra.mxu0 0.0
  %4340 = vmatprep.subr.mxu0 0.0
  %4341 = vmatpush1.xpose.msra.mxu0 0.0
  %4342 = vmatprep.subr.mxu0 0.0
  %4343 = vmatpush1.xpose.msra.mxu0 0.0
  %4344 = vmatprep.subr.mxu0 0.0
  %4345 = vmatpush1.xpose.msra.mxu0 0.0
  %4346 = vmatprep.subr.mxu0 0.0
  %4347 = vmatpush1.xpose.msra.mxu0 0.0
  %4348 = vmatprep.mubr.f32.mxu0 %v4271
  %4349 = vmatmul.mubr.f32.gmra.mrb[0].mxu0 %v4181
  %v4350 = vpop.f32.mrb[0].mxu0
  %v4351 = vadd.f32 0.0, %v4350
  %v4352 = vpop.f32.mrb[0].mxu0
  %4353 = vdwg.mxu0
  %4356 = vrot.lane.b32.xlu0 %v2828, 29
  %v4357 = vpop.permute.xlu0 %4356
  %4358 = vrot.lane.b32.xlu0 %v2829, 29
  %v4359 = vpop.permute.xlu0 %4358
  %4360 = vrot.lane.b32.xlu0 %v2830, 29
  %v4361 = vpop.permute.xlu0 %4360
  %4362 = vrot.lane.b32.xlu0 %v2831, 29
  %v4363 = vpop.permute.xlu0 %4362
  %v4364 = vsel %vm4201, %v4357, %v4359
  %v4365 = vsel %vm4201, %v4361, %v4363
  %v4368 = vsel %vm3083, %v4364, 0.0
  %v4369 = vsel %vm3083, %v4365, 0.0
  %v4370 = vsel %vm3373, %v4368, 0.0
  %v4371 = vsel %vm3373, %v4369, 0.0
  %v4372 = vsel %vm3376, %v4370, 0.0
  %v4373 = vsel %vm3376, %v4371, 0.0
  %4374 = vrot.lane.b32.xlu0 %v2829, 62
  %v4375 = vpop.permute.xlu0 %4374
  %4376 = vrot.lane.b32.xlu0 %v2831, 62
  %v4377 = vpop.permute.xlu0 %4376
  %v4378 = vsel %vm4216, %v3957, %v4375
  %v4379 = vsel %vm4216, %v3959, %v4377
  %v4382 = vsel %vm3083, 0.0, %v4378
  %v4383 = vsel %vm3083, 0.0, %v4379
  %v4384 = vsel %vm3373, %v4382, 0.0
  %v4385 = vsel %vm3373, %v4383, 0.0
  %v4386 = vsel %vm3376, %v4384, 0.0
  %v4387 = vsel %vm3376, %v4385, 0.0
  %4388 = vrot.lane.b32.xlu0 %v2829, 95
  %v4389 = vpop.permute.xlu0 %4388
  %4390 = vrot.lane.b32.xlu0 %v2831, 95
  %v4391 = vpop.permute.xlu0 %4390
  %v4392 = vsel %vm3269, %v3562, %v4389
  %v4393 = vsel %vm3269, %v3564, %v4391
  %v4396 = vsel %vm3373, 0.0, %v4392
  %v4397 = vsel %vm3373, 0.0, %v4393
  %v4398 = vsel %vm3376, %v4396, 0.0
  %v4399 = vsel %vm3376, %v4397, 0.0
  %v4400 = vsel %vm3376, 0.0, %v2828
  %v4401 = vsel %vm3376, 0.0, %v2830
  %v4404 = vrot.slane %v4386, 7
  %v4405 = vrot.slane %v4387, 7
  %v4406 = vsel %vm3004, %v4404, %v4405
  %v4411 = vrot.slane %v4398, 6
  %v4412 = vrot.slane %v4399, 6
  %v4413 = vsel %vm3428, %v4411, %v4412
  %v4418 = vrot.slane %v4400, 5
  %v4419 = vrot.slane %v2829, 5
  %v4420 = vrot.slane %v4401, 5
  %v4421 = vsel %vm3442, %v4418, %v4420
  %v4422 = vrot.slane %v2831, 5
  %v4423 = vsel %vm3442, %v4419, %v4422
  %v4427 = vsel %vm3004, %v4373, %v4404
  %v4428 = vsel %vm3428, %v4406, %v4411
  %v4429 = vsel %vm3442, %v4413, %v4418
  %v4430 = vsel %vm3442, %v3433, %v4419
  %v4432 = vsel %vm3403, %v4189, 0
  %v4435 = vsel %vm3403, %v4430, 0
  %v4437 = vsel %vm3403, %v4423, 0
  %4439 = vmatprep.subr.mxu0 %v4273
  %4440 = vmatpush1.xpose.msra.mxu0 %v4372
  %4441 = vmatprep.subr.mxu0 %v4275
  %4442 = vmatpush1.xpose.msra.mxu0 %v4427
  %4443 = vmatprep.subr.mxu0 %v4277
  %4444 = vmatpush1.xpose.msra.mxu0 %v4428
  %4445 = vmatprep.subr.mxu0 %v4435
  %4446 = vmatpush1.xpose.msra.mxu0 %v4429
  %4447 = vmatprep.subr.mxu0 %v4437
  %4448 = vmatpush1.xpose.msra.mxu0 %v4421
  %4449 = vmatprep.subr.mxu0 0.0
  %4450 = vmatpush1.xpose.msra.mxu0 0.0
  %4451 = vmatprep.subr.mxu0 0.0
  %4452 = vmatpush1.xpose.msra.mxu0 0.0
  %4453 = vmatprep.subr.mxu0 0.0
  %4454 = vmatpush1.xpose.msra.mxu0 0.0
  %4455 = vmatprep.subr.mxu0 0.0
  %4456 = vmatpush1.xpose.msra.mxu0 0.0
  %4457 = vmatprep.subr.mxu0 0.0
  %4458 = vmatpush1.xpose.msra.mxu0 0.0
  %4459 = vmatprep.subr.mxu0 0.0
  %4460 = vmatpush1.xpose.msra.mxu0 0.0
  %4461 = vmatprep.subr.mxu0 0.0
  %4462 = vmatpush1.xpose.msra.mxu0 0.0
  %4463 = vmatprep.subr.mxu0 0.0
  %4464 = vmatpush1.xpose.msra.mxu0 0.0
  %4465 = vmatprep.subr.mxu0 0.0
  %4466 = vmatpush1.xpose.msra.mxu0 0.0
  %4467 = vmatprep.subr.mxu0 0.0
  %4468 = vmatpush1.xpose.msra.mxu0 0.0
  %4469 = vmatprep.subr.mxu0 0.0
  %4470 = vmatpush1.xpose.msra.mxu0 0.0
  %4471 = vmatprep.subr.mxu0 0.0
  %4472 = vmatpush1.xpose.msra.mxu0 0.0
  %4473 = vmatprep.subr.mxu0 0.0
  %4474 = vmatpush1.xpose.msra.mxu0 0.0
  %4475 = vmatprep.subr.mxu0 0.0
  %4476 = vmatpush1.xpose.msra.mxu0 0.0
  %4477 = vmatprep.subr.mxu0 0.0
  %4478 = vmatpush1.xpose.msra.mxu0 0.0
  %4479 = vmatprep.subr.mxu0 0.0
  %4480 = vmatpush1.xpose.msra.mxu0 0.0
  %4481 = vmatprep.subr.mxu0 0.0
  %4482 = vmatpush1.xpose.msra.mxu0 0.0
  %4483 = vmatprep.subr.mxu0 0.0
  %4484 = vmatpush1.xpose.msra.mxu0 0.0
  %4485 = vmatprep.subr.mxu0 0.0
  %4486 = vmatpush1.xpose.msra.mxu0 0.0
  %4487 = vmatprep.subr.mxu0 0.0
  %4488 = vmatpush1.xpose.msra.mxu0 0.0
  %4489 = vmatprep.subr.mxu0 0.0
  %4490 = vmatpush1.xpose.msra.mxu0 0.0
  %4491 = vmatprep.subr.mxu0 0.0
  %4492 = vmatpush1.xpose.msra.mxu0 0.0
  %4493 = vmatprep.subr.mxu0 0.0
  %4494 = vmatpush1.xpose.msra.mxu0 0.0
  %4495 = vmatprep.subr.mxu0 0.0
  %4496 = vmatpush1.xpose.msra.mxu0 0.0
  %4497 = vmatprep.subr.mxu0 0.0
  %4498 = vmatpush1.xpose.msra.mxu0 0.0
  %4499 = vmatprep.subr.mxu0 0.0
  %4500 = vmatpush1.xpose.msra.mxu0 0.0
  %4501 = vmatprep.subr.mxu0 0.0
  %4502 = vmatpush1.xpose.msra.mxu0 0.0
  %4503 = vmatprep.mubr.f32.mxu0 %v4432
  %4504 = vmatmul.mubr.f32.gmra.mrb[0].mxu0 %v4187
  %v4505 = vpop.f32.mrb[0].mxu0
  %v4506 = vadd.f32 0.0, %v4505
  %v4507 = vpop.f32.mrb[0].mxu0
  %4508 = vdwg.mxu0
  %4509 = vrot.lane.b32.xlu0 %v2957, 28
  %v4510 = vpop.permute.xlu0 %4509
  %4511 = vrot.lane.b32.xlu0 %v2959, 28
  %v4512 = vpop.permute.xlu0 %4511
  %4525 = vrot.lane.b32.xlu0 %v2964, 83
  %v4526 = vpop.permute.xlu0 %4525
  %4527 = vrot.lane.b32.xlu0 %v2965, 83
  %v4528 = vpop.permute.xlu0 %4527
  %4529 = vrot.lane.b32.xlu0 %v2966, 83
  %v4530 = vpop.permute.xlu0 %4529
  %4531 = vrot.lane.b32.xlu0 %v2967, 83
  %v4532 = vpop.permute.xlu0 %4531
  %4533 = vrot.lane.b32.xlu0 %v2973, 83
  %v4534 = vpop.permute.xlu0 %4533
  %4535 = vrot.lane.b32.xlu0 %v2974, 83
  %v4536 = vpop.permute.xlu0 %4535
  %4537 = vrot.lane.b32.xlu0 %v2975, 83
  %v4538 = vpop.permute.xlu0 %4537
  %4539 = vrot.lane.b32.xlu0 %v2976, 83
  %v4540 = vpop.permute.xlu0 %4539
  %4541 = vrot.lane.b32.xlu0 %v2982, 83
  %v4542 = vpop.permute.xlu0 %4541
  %4543 = vrot.lane.b32.xlu0 %v2983, 83
  %v4544 = vpop.permute.xlu0 %4543
  %4545 = vrot.lane.b32.xlu0 %v2984, 83
  %v4546 = vpop.permute.xlu0 %4545
  %4547 = vrot.lane.b32.xlu0 %v2985, 83
  %v4548 = vpop.permute.xlu0 %4547
  %4549 = vrot.lane.b32.xlu0 %v2991, 83
  %v4550 = vpop.permute.xlu0 %4549
  %4551 = vrot.lane.b32.xlu0 %v2992, 83
  %v4552 = vpop.permute.xlu0 %4551
  %4553 = vrot.lane.b32.xlu0 %v2993, 83
  %v4554 = vpop.permute.xlu0 %4553
  %4555 = vrot.lane.b32.xlu0 %v2994, 83
  %v4556 = vpop.permute.xlu0 %4555
  %vm4557 = vcmask 678912
  %v4558 = vsel %vm4557, %v4526, %v4528
  %v4559 = vsel %vm4557, %v4528, %v4530
  %v4560 = vsel %vm4557, %v4530, %v4532
  %v4561 = vsel %vm4557, %v4534, %v4536
  %v4562 = vsel %vm4557, %v4536, %v4538
  %v4563 = vsel %vm4557, %v4538, %v4540
  %v4564 = vsel %vm4557, %v4542, %v4544
  %v4565 = vsel %vm4557, %v4544, %v4546
  %v4566 = vsel %vm4557, %v4546, %v4548
  %v4567 = vsel %vm4557, %v4550, %v4552
  %v4568 = vsel %vm4557, %v4552, %v4554
  %v4569 = vsel %vm4557, %v4554, %v4556
  %v4582 = vsel %vm2997, %v4510, 0
  %v4584 = vsel %vm2997, %v4512, 0
  %v4586 = vsel %vm3004, %v4567, 0
  %v4588 = vsel %vm3004, %v4568, 0
  %v4590 = vsel %vm3004, %v4569, 0
  %v4592 = vsel %vm3004, %v4556, 0
  %4594 = vmatprep.subr.mxu0 %v4559
  %4595 = vmatpush1.msra.mxu0 %v4558
  %4596 = vmatprep.subr.mxu0 %v4562
  %4597 = vmatpush1.msra.mxu0 %v4561
  %4598 = vmatprep.subr.mxu0 %v4565
  %4599 = vmatpush1.msra.mxu0 %v4564
  %4600 = vmatprep.subr.mxu0 %v4588
  %4601 = vmatpush1.msra.mxu0 %v4586
  %4602 = vmatprep.subr.mxu0 0.0
  %4603 = vmatpush1.msra.mxu0 0.0
  %4604 = vmatprep.subr.mxu0 0.0
  %4605 = vmatpush1.msra.mxu0 0.0
  %4606 = vmatprep.subr.mxu0 0.0
  %4607 = vmatpush1.msra.mxu0 0.0
  %4608 = vmatprep.subr.mxu0 0.0
  %4609 = vmatpush1.msra.mxu0 0.0
  %4610 = vmatprep.subr.mxu0 0.0
  %4611 = vmatpush1.msra.mxu0 0.0
  %4612 = vmatprep.subr.mxu0 0.0
  %4613 = vmatpush1.msra.mxu0 0.0
  %4614 = vmatprep.subr.mxu0 0.0
  %4615 = vmatpush1.msra.mxu0 0.0
  %4616 = vmatprep.subr.mxu0 0.0
  %4617 = vmatpush1.msra.mxu0 0.0
  %4618 = vmatprep.subr.mxu0 0.0
  %4619 = vmatpush1.msra.mxu0 0.0
  %4620 = vmatprep.subr.mxu0 0.0
  %4621 = vmatpush1.msra.mxu0 0.0
  %4622 = vmatprep.subr.mxu0 0.0
  %4623 = vmatpush1.msra.mxu0 0.0
  %4624 = vmatprep.subr.mxu0 0.0
  %4625 = vmatpush1.msra.mxu0 0.0
  %4626 = vmatprep.subr.mxu0 0.0
  %4627 = vmatpush1.msra.mxu0 0.0
  %4628 = vmatprep.subr.mxu0 0.0
  %4629 = vmatpush1.msra.mxu0 0.0
  %4630 = vmatprep.subr.mxu0 0.0
  %4631 = vmatpush1.msra.mxu0 0.0
  %4632 = vmatprep.subr.mxu0 0.0
  %4633 = vmatpush1.msra.mxu0 0.0
  %4634 = vmatprep.subr.mxu0 0.0
  %4635 = vmatpush1.msra.mxu0 0.0
  %4636 = vmatprep.subr.mxu0 0.0
  %4637 = vmatpush1.msra.mxu0 0.0
  %4638 = vmatprep.subr.mxu0 0.0
  %4639 = vmatpush1.msra.mxu0 0.0
  %4640 = vmatprep.subr.mxu0 0.0
  %4641 = vmatpush1.msra.mxu0 0.0
  %4642 = vmatprep.subr.mxu0 0.0
  %4643 = vmatpush1.msra.mxu0 0.0
  %4644 = vmatprep.subr.mxu0 0.0
  %4645 = vmatpush1.msra.mxu0 0.0
  %4646 = vmatprep.subr.mxu0 0.0
  %4647 = vmatpush1.msra.mxu0 0.0
  %4648 = vmatprep.subr.mxu0 0.0
  %4649 = vmatpush1.msra.mxu0 0.0
  %4650 = vmatprep.subr.mxu0 0.0
  %4651 = vmatpush1.msra.mxu0 0.0
  %4652 = vmatprep.subr.mxu0 0.0
  %4653 = vmatpush1.msra.mxu0 0.0
  %4654 = vmatprep.subr.mxu0 0.0
  %4655 = vmatpush1.msra.mxu0 0.0
  %4656 = vmatprep.subr.mxu0 0.0
  %4657 = vmatpush1.msra.mxu0 0.0
  %4658 = vmatprep.mubr.f32.mxu0 0.0
  %4659 = vmatmul.mubr.f32.gmra.mrb[0].mxu0 %v4582
  %v4660 = vpop.f32.mrb[0].mxu0
  %v4661 = vadd.f32 0.0, %v4660
  %v4662 = vpop.f32.mrb[0].mxu0
  %v4663 = vadd.f32 0.0, %v4662
  %4664 = vmatprep.mubr.f32.mxu0 0.0
  %4665 = vmatmul.mubr.f32.gmra.mrb[0].mxu0 %v4584
  %v4666 = vpop.f32.mrb[0].mxu0
  %v4667 = vadd.f32 0.0, %v4666
  %v4668 = vpop.f32.mrb[0].mxu0
  %v4669 = vadd.f32 0.0, %v4668
  %4670 = vdwg.mxu0
  %4671 = vmatprep.subr.mxu0 %v4532
  %4672 = vmatpush1.msra.mxu0 %v4560
  %4673 = vmatprep.subr.mxu0 %v4540
  %4674 = vmatpush1.msra.mxu0 %v4563
  %4675 = vmatprep.subr.mxu0 %v4548
  %4676 = vmatpush1.msra.mxu0 %v4566
  %4677 = vmatprep.subr.mxu0 %v4592
  %4678 = vmatpush1.msra.mxu0 %v4590
  %4679 = vmatprep.subr.mxu0 0.0
  %4680 = vmatpush1.msra.mxu0 0.0
  %4681 = vmatprep.subr.mxu0 0.0
  %4682 = vmatpush1.msra.mxu0 0.0
  %4683 = vmatprep.subr.mxu0 0.0
  %4684 = vmatpush1.msra.mxu0 0.0
  %4685 = vmatprep.subr.mxu0 0.0
  %4686 = vmatpush1.msra.mxu0 0.0
  %4687 = vmatprep.subr.mxu0 0.0
  %4688 = vmatpush1.msra.mxu0 0.0
  %4689 = vmatprep.subr.mxu0 0.0
  %4690 = vmatpush1.msra.mxu0 0.0
  %4691 = vmatprep.subr.mxu0 0.0
  %4692 = vmatpush1.msra.mxu0 0.0
  %4693 = vmatprep.subr.mxu0 0.0
  %4694 = vmatpush1.msra.mxu0 0.0
  %4695 = vmatprep.subr.mxu0 0.0
  %4696 = vmatpush1.msra.mxu0 0.0
  %4697 = vmatprep.subr.mxu0 0.0
  %4698 = vmatpush1.msra.mxu0 0.0
  %4699 = vmatprep.subr.mxu0 0.0
  %4700 = vmatpush1.msra.mxu0 0.0
  %4701 = vmatprep.subr.mxu0 0.0
  %4702 = vmatpush1.msra.mxu0 0.0
  %4703 = vmatprep.subr.mxu0 0.0
  %4704 = vmatpush1.msra.mxu0 0.0
  %4705 = vmatprep.subr.mxu0 0.0
  %4706 = vmatpush1.msra.mxu0 0.0
  %4707 = vmatprep.subr.mxu0 0.0
  %4708 = vmatpush1.msra.mxu0 0.0
  %4709 = vmatprep.subr.mxu0 0.0
  %4710 = vmatpush1.msra.mxu0 0.0
  %4711 = vmatprep.subr.mxu0 0.0
  %4712 = vmatpush1.msra.mxu0 0.0
  %4713 = vmatprep.subr.mxu0 0.0
  %4714 = vmatpush1.msra.mxu0 0.0
  %4715 = vmatprep.subr.mxu0 0.0
  %4716 = vmatpush1.msra.mxu0 0.0
  %4717 = vmatprep.subr.mxu0 0.0
  %4718 = vmatpush1.msra.mxu0 0.0
  %4719 = vmatprep.subr.mxu0 0.0
  %4720 = vmatpush1.msra.mxu0 0.0
  %4721 = vmatprep.subr.mxu0 0.0
  %4722 = vmatpush1.msra.mxu0 0.0
  %4723 = vmatprep.subr.mxu0 0.0
  %4724 = vmatpush1.msra.mxu0 0.0
  %4725 = vmatprep.subr.mxu0 0.0
  %4726 = vmatpush1.msra.mxu0 0.0
  %4727 = vmatprep.subr.mxu0 0.0
  %4728 = vmatpush1.msra.mxu0 0.0
  %4729 = vmatprep.subr.mxu0 0.0
  %4730 = vmatpush1.msra.mxu0 0.0
  %4731 = vmatprep.subr.mxu0 0.0
  %4732 = vmatpush1.msra.mxu0 0.0
  %4733 = vmatprep.subr.mxu0 0.0
  %4734 = vmatpush1.msra.mxu0 0.0
  %4735 = vmatprep.mubr.f32.mxu0 0.0
  %4736 = vmatmul.mubr.f32.gmra.mrb[0].mxu0 %v4582
  %v4737 = vpop.f32.mrb[0].mxu0
  %v4738 = vadd.f32 0.0, %v4737
  %v4739 = vpop.f32.mrb[0].mxu0
  %v4740 = vadd.f32 0.0, %v4739
  %4741 = vmatprep.mubr.f32.mxu0 0.0
  %4742 = vmatmul.mubr.f32.gmra.mrb[0].mxu0 %v4584
  %v4743 = vpop.f32.mrb[0].mxu0
  %v4744 = vadd.f32 0.0, %v4743
  %v4745 = vpop.f32.mrb[0].mxu0
  %v4746 = vadd.f32 0.0, %v4745
  %4747 = vdwg.mxu0
  %4748 = vrot.lane.b32.xlu0 %v2720, 124
  %v4749 = vpop.permute.xlu0 %4748
  %4750 = vrot.lane.b32.xlu0 %v2722, 124
  %v4751 = vpop.permute.xlu0 %4750
  %v4754 = vsel %vm3083, %v4749, 0.0
  %v4755 = vsel %vm3083, %v4751, 0.0
  %v4756 = vsel %vm3373, %v4754, 0.0
  %v4757 = vsel %vm3373, %v4755, 0.0
  %v4758 = vsel %vm3376, %v4756, 0.0
  %v4759 = vsel %vm3376, %v4757, 0.0
  %v4762 = vsel %vm3083, 0.0, %v4196
  %v4763 = vsel %vm3083, 0.0, %v4200
  %v4764 = vsel %vm3373, %v4762, 0.0
  %v4765 = vsel %vm3373, %v4763, 0.0
  %v4766 = vsel %vm3376, %v4764, 0.0
  %v4767 = vsel %vm3376, %v4765, 0.0
  %v4770 = vsel %vm3373, 0.0, %v4213
  %v4771 = vsel %vm3373, 0.0, %v4215
  %v4772 = vsel %vm3376, %v4770, 0.0
  %v4773 = vsel %vm3376, %v4771, 0.0
  %v4776 = vsel %vm3376, 0.0, %v4228
  %v4777 = vsel %vm3376, 0.0, %v4230
  %v4778 = vsel %vm3403, %v4228, 0.0
  %v4779 = vsel %vm3403, %v4230, 0.0
  %v4780 = vsel %vm3471, %v4778, 0.0
  %v4781 = vsel %vm3471, %v4779, 0.0
  %vm4782 = vcmask 572416
  %v4783 = vsel %vm4782, %v4780, 0.0
  %v4784 = vsel %vm4782, %v4781, 0.0
  %vm4785 = vcmask 842752
  %v4786 = vsel %vm4785, %v4783, 0.0
  %v4787 = vsel %vm4785, %v4784, 0.0
  %v4788 = vsel %vm3403, 0.0, %v2720
  %v4789 = vsel %vm3403, 0.0, %v2722
  %v4790 = vsel %vm3471, %v4788, 0.0
  %v4791 = vsel %vm3471, %v4789, 0.0
  %v4792 = vsel %vm4782, %v4790, 0.0
  %v4793 = vsel %vm4782, %v4791, 0.0
  %v4794 = vsel %vm4785, %v4792, 0.0
  %v4795 = vsel %vm4785, %v4793, 0.0
  %4796 = vrot.lane.b32.xlu0 %v2720, 33
  %v4797 = vpop.permute.xlu0 %4796
  %4798 = vrot.lane.b32.xlu0 %v2722, 33
  %v4799 = vpop.permute.xlu0 %4798
  %v4802 = vsel %vm3471, 0.0, %v4797
  %v4803 = vsel %vm3471, 0.0, %v4799
  %v4804 = vsel %vm4782, %v4802, 0.0
  %v4805 = vsel %vm4782, %v4803, 0.0
  %v4806 = vsel %vm4785, %v4804, 0.0
  %v4807 = vsel %vm4785, %v4805, 0.0
  %4808 = vrot.lane.b32.xlu0 %v2720, 66
  %v4809 = vpop.permute.xlu0 %4808
  %4810 = vrot.lane.b32.xlu0 %v2722, 66
  %v4811 = vpop.permute.xlu0 %4810
  %v4814 = vsel %vm4782, 0.0, %v4809
  %v4815 = vsel %vm4782, 0.0, %v4811
  %v4816 = vsel %vm4785, %v4814, 0.0
  %v4817 = vsel %vm4785, %v4815, 0.0
  %4818 = vrot.lane.b32.xlu0 %v2720, 99
  %v4819 = vpop.permute.xlu0 %4818
  %4820 = vrot.lane.b32.xlu0 %v2722, 99
  %v4821 = vpop.permute.xlu0 %4820
  %v4824 = vsel %vm4785, 0.0, %v4819
  %v4825 = vsel %vm4785, 0.0, %v4821
  %vm4826 = vcmask 64512
  %v4827 = vsel %vm4826, %v4819, 0.0
  %v4828 = vsel %vm4826, %v4821, 0.0
  %vm4829 = vcmask 334848
  %v4830 = vsel %vm4829, %v4827, 0.0
  %v4831 = vsel %vm4829, %v4828, 0.0
  %vm4832 = vcmask 605184
  %v4833 = vsel %vm4832, %v4830, 0.0
  %v4834 = vsel %vm4832, %v4831, 0.0
  %vm4835 = vcmask 875520
  %v4836 = vsel %vm4835, %v4833, 0.0
  %v4837 = vsel %vm4835, %v4834, 0.0
  %4838 = vrot.lane.b32.xlu0 %v2720, 4
  %v4839 = vpop.permute.xlu0 %4838
  %4840 = vrot.lane.b32.xlu0 %v2722, 4
  %v4841 = vpop.permute.xlu0 %4840
  %v4844 = vsel %vm4826, 0.0, %v4839
  %v4845 = vsel %vm4826, 0.0, %v4841
  %v4846 = vsel %vm4829, %v4844, 0.0
  %v4847 = vsel %vm4829, %v4845, 0.0
  %v4848 = vsel %vm4832, %v4846, 0.0
  %v4849 = vsel %vm4832, %v4847, 0.0
  %v4850 = vsel %vm4835, %v4848, 0.0
  %v4851 = vsel %vm4835, %v4849, 0.0
  %4852 = vrot.lane.b32.xlu0 %v2720, 37
  %v4853 = vpop.permute.xlu0 %4852
  %4854 = vrot.lane.b32.xlu0 %v2722, 37
  %v4855 = vpop.permute.xlu0 %4854
  %v4858 = vsel %vm4829, 0.0, %v4853
  %v4859 = vsel %vm4829, 0.0, %v4855
  %v4860 = vsel %vm4832, %v4858, 0.0
  %v4861 = vsel %vm4832, %v4859, 0.0
  %v4862 = vsel %vm4835, %v4860, 0.0
  %v4863 = vsel %vm4835, %v4861, 0.0
  %4864 = vrot.lane.b32.xlu0 %v2720, 70
  %v4865 = vpop.permute.xlu0 %4864
  %4866 = vrot.lane.b32.xlu0 %v2722, 70
  %v4867 = vpop.permute.xlu0 %4866
  %v4870 = vsel %vm4832, 0.0, %v4865
  %v4871 = vsel %vm4832, 0.0, %v4867
  %v4872 = vsel %vm4835, %v4870, 0.0
  %v4873 = vsel %vm4835, %v4871, 0.0
  %4874 = vrot.lane.b32.xlu0 %v2720, 103
  %v4875 = vpop.permute.xlu0 %4874
  %4876 = vrot.lane.b32.xlu0 %v2722, 103
  %v4877 = vpop.permute.xlu0 %4876
  %v4880 = vsel %vm4835, 0.0, %v4875
  %v4881 = vsel %vm4835, 0.0, %v4877
  %v4884 = vrot.slane %v4766, 7
  %v4885 = vrot.slane %v4767, 7
  %v4886 = vsel %vm3004, %v4884, %v4885
  %v4891 = vrot.slane %v4772, 6
  %v4892 = vrot.slane %v4773, 6
  %v4893 = vsel %vm3428, %v4891, %v4892
  %v4900 = vrot.slane %v4776, 5
  %v4901 = vrot.slane %v4786, 5
  %v4902 = vrot.slane 0.0, 5
  %v4903 = vrot.slane %v4777, 5
  %v4904 = vsel %vm3442, %v4900, %v4903
  %v4905 = vrot.slane %v4787, 5
  %v4906 = vsel %vm3442, %v4901, %v4905
  %v4907 = vsel %vm3442, %v4902, %v4902
  %v4916 = vrot.slane %v4794, 4
  %v4917 = vrot.slane %v4795, 4
  %v4918 = vsel %vm201, %v4916, %v4917
  %vm4923 = vcmask 1044480
  %v4924 = vrot.slane 0.0, 3
  %v4925 = vrot.slane %v4806, 3
  %v4926 = vsel %vm4923, %v4924, %v4924
  %v4927 = vrot.slane %v4807, 3
  %v4928 = vsel %vm4923, %v4925, %v4927
  %vm4935 = vcmask 1045504
  %v4936 = vrot.slane 0.0, 2
  %v4937 = vrot.slane %v4816, 2
  %v4938 = vsel %vm4935, %v4936, %v4936
  %v4939 = vrot.slane %v4817, 2
  %v4940 = vsel %vm4935, %v4937, %v4939
  %vm4949 = vcmask 1046528
  %v4950 = vrot.slane 0.0, 1
  %v4951 = vrot.slane %v4824, 1
  %v4952 = vrot.slane %v4836, 1
  %v4953 = vsel %vm4949, %v4950, %v4950
  %v4954 = vrot.slane %v4825, 1
  %v4955 = vsel %vm4949, %v4951, %v4954
  %v4956 = vrot.slane %v4837, 1
  %v4957 = vsel %vm4949, %v4952, %v4956
  %v4966 = vrot.slane %v4862, 7
  %v4967 = vrot.slane %v4863, 7
  %v4968 = vsel %vm3004, %v4966, %v4967
  %v4973 = vrot.slane %v4872, 6
  %v4974 = vrot.slane %v4873, 6
  %v4975 = vsel %vm3428, %v4973, %v4974
  %v4980 = vrot.slane %v4880, 5
  %v4981 = vrot.slane %v4875, 5
  %v4982 = vrot.slane %v4881, 5
  %v4983 = vsel %vm3442, %v4980, %v4982
  %v4984 = vrot.slane %v4877, 5
  %v4985 = vsel %vm3442, %v4981, %v4984
  %v4989 = vsel %vm3004, %v4759, %v4884
  %v4990 = vsel %vm3428, %v4886, %v4891
  %v4991 = vsel %vm3442, %v4893, %v4900
  %v4992 = vsel %vm3442, %v3433, %v4901
  %v4993 = vsel %vm3442, %v3433, %v4902
  %v4994 = vsel %vm201, %v4904, %v3455
  %v4995 = vsel %vm201, %v4906, %v4916
  %v4996 = vsel %vm201, %v4907, %v3455
  %v4997 = vsel %vm4923, %v3457, %v4924
  %v4998 = vsel %vm4923, %v4918, %v4925
  %v4999 = vsel %vm4935, %v4926, %v4936
  %v5000 = vsel %vm4935, %v4928, %v4937
  %v5001 = vsel %vm4949, %v4938, %v4950
  %v5002 = vsel %vm4949, %v4940, %v4951
  %v5003 = vsel %vm4949, %v4938, %v4952
  %v5004 = vsel %vm3004, %v4851, %v4966
  %v5005 = vsel %vm3428, %v4968, %v4973
  %v5006 = vsel %vm3442, %v4975, %v4980
  %v5007 = vsel %vm3442, %v3433, %v4981
  %vm5008 = vcmask 97280
  %v5010 = vsel %vm5008, %v4740, 0
  %v5012 = vsel %vm5008, 0.0, 0
  %v5014 = vsel %vm5008, %v3464, 0
  %v5016 = vsel %vm5008, %v3466, 0
  %v5019 = vsel %vm5008, %v4993, 0
  %v5022 = vsel %vm5008, %v4996, 0
  %v5025 = vsel %vm5008, %v4997, 0
  %v5028 = vsel %vm5008, %v4999, 0
  %v5031 = vsel %vm5008, %v5001, 0
  %v5033 = vsel %vm5008, %v4953, 0
  %v5036 = vsel %vm5008, %v5007, 0
  %v5038 = vsel %vm5008, %v4985, 0
  %5040 = vmatprep.subr.mxu0 0.0
  %5041 = vmatpush1.xpose.msra.mxu0 %v4758
  %5042 = vmatprep.subr.mxu0 %v3464
  %5043 = vmatpush1.xpose.msra.mxu0 %v4989
  %5044 = vmatprep.subr.mxu0 %v3466
  %5045 = vmatpush1.xpose.msra.mxu0 %v4990
  %5046 = vmatprep.subr.mxu0 %v4992
  %5047 = vmatpush1.xpose.msra.mxu0 %v4991
  %5048 = vmatprep.subr.mxu0 %v4995
  %5049 = vmatpush1.xpose.msra.mxu0 %v4994
  %5050 = vmatprep.subr.mxu0 %v4998
  %5051 = vmatpush1.xpose.msra.mxu0 %v4997
  %5052 = vmatprep.subr.mxu0 %v5000
  %5053 = vmatpush1.xpose.msra.mxu0 %v4999
  %5054 = vmatprep.subr.mxu0 %v5002
  %5055 = vmatpush1.xpose.msra.mxu0 %v5001
  %5056 = vmatprep.subr.mxu0 %v4955
  %5057 = vmatpush1.xpose.msra.mxu0 %v4953
  %5058 = vmatprep.subr.mxu0 0.0
  %5059 = vmatpush1.xpose.msra.mxu0 0.0
  %5060 = vmatprep.subr.mxu0 %v3464
  %5061 = vmatpush1.xpose.msra.mxu0 %v3464
  %5062 = vmatprep.subr.mxu0 %v3466
  %5063 = vmatpush1.xpose.msra.mxu0 %v3466
  %5064 = vmatprep.subr.mxu0 %v4993
  %5065 = vmatpush1.xpose.msra.mxu0 %v4993
  %5066 = vmatprep.subr.mxu0 %v4907
  %5067 = vmatpush1.xpose.msra.mxu0 %v4907
  %5068 = vmatprep.subr.mxu0 0.0
  %5069 = vmatpush1.xpose.msra.mxu0 0.0
  %5070 = vmatprep.subr.mxu0 0.0
  %5071 = vmatpush1.xpose.msra.mxu0 0.0
  %5072 = vmatprep.subr.mxu0 0.0
  %5073 = vmatpush1.xpose.msra.mxu0 0.0
  %5074 = vmatprep.subr.mxu0 0.0
  %5075 = vmatpush1.xpose.msra.mxu0 0.0
  %5076 = vmatprep.subr.mxu0 0.0
  %5077 = vmatpush1.xpose.msra.mxu0 0.0
  %5078 = vmatprep.subr.mxu0 0.0
  %5079 = vmatpush1.xpose.msra.mxu0 0.0
  %5080 = vmatprep.subr.mxu0 0.0
  %5081 = vmatpush1.xpose.msra.mxu0 0.0
  %5082 = vmatprep.subr.mxu0 0.0
  %5083 = vmatpush1.xpose.msra.mxu0 0.0
  %5084 = vmatprep.subr.mxu0 0.0
  %5085 = vmatpush1.xpose.msra.mxu0 0.0
  %5086 = vmatprep.subr.mxu0 0.0
  %5087 = vmatpush1.xpose.msra.mxu0 0.0
  %5088 = vmatprep.subr.mxu0 0.0
  %5089 = vmatpush1.xpose.msra.mxu0 0.0
  %5090 = vmatprep.subr.mxu0 0.0
  %5091 = vmatpush1.xpose.msra.mxu0 0.0
  %5092 = vmatprep.subr.mxu0 0.0
  %5093 = vmatpush1.xpose.msra.mxu0 0.0
  %5094 = vmatprep.subr.mxu0 0.0
  %5095 = vmatpush1.xpose.msra.mxu0 0.0
  %5096 = vmatprep.subr.mxu0 0.0
  %5097 = vmatpush1.xpose.msra.mxu0 0.0
  %5098 = vmatprep.subr.mxu0 0.0
  %5099 = vmatpush1.xpose.msra.mxu0 0.0
  %5100 = vmatprep.subr.mxu0 0.0
  %5101 = vmatpush1.xpose.msra.mxu0 0.0
  %5102 = vmatprep.subr.mxu0 0.0
  %5103 = vmatpush1.xpose.msra.mxu0 0.0
  %5104 = vmatprep.mubr.f32.mxu0 %v4663
  %5105 = vmatmul.mubr.f32.gmra.mrb[0].mxu0 %v4661
  %v5106 = vpop.f32.mrb[0].mxu0
  %v5107 = vadd.f32 0.0, %v5106
  %v5108 = vpop.f32.mrb[0].mxu0
  %5109 = vdwg.mxu0
  %5110 = vmatprep.subr.mxu0 %v5012
  %5111 = vmatpush1.xpose.msra.mxu0 0.0
  %5112 = vmatprep.subr.mxu0 %v5014
  %5113 = vmatpush1.xpose.msra.mxu0 %v3464
  %5114 = vmatprep.subr.mxu0 %v5016
  %5115 = vmatpush1.xpose.msra.mxu0 %v3466
  %5116 = vmatprep.subr.mxu0 %v5019
  %5117 = vmatpush1.xpose.msra.mxu0 %v4993
  %5118 = vmatprep.subr.mxu0 %v5022
  %5119 = vmatpush1.xpose.msra.mxu0 %v4996
  %5120 = vmatprep.subr.mxu0 %v5025
  %5121 = vmatpush1.xpose.msra.mxu0 %v4997
  %5122 = vmatprep.subr.mxu0 %v5028
  %5123 = vmatpush1.xpose.msra.mxu0 %v4999
  %5124 = vmatprep.subr.mxu0 %v5031
  %5125 = vmatpush1.xpose.msra.mxu0 %v5003
  %5126 = vmatprep.subr.mxu0 %v5033
  %5127 = vmatpush1.xpose.msra.mxu0 %v4957
  %5128 = vmatprep.subr.mxu0 %v5012
  %5129 = vmatpush1.xpose.msra.mxu0 %v4850
  %5130 = vmatprep.subr.mxu0 %v5014
  %5131 = vmatpush1.xpose.msra.mxu0 %v5004
  %5132 = vmatprep.subr.mxu0 %v5016
  %5133 = vmatpush1.xpose.msra.mxu0 %v5005
  %5134 = vmatprep.subr.mxu0 %v5036
  %5135 = vmatpush1.xpose.msra.mxu0 %v5006
  %5136 = vmatprep.subr.mxu0 %v5038
  %5137 = vmatpush1.xpose.msra.mxu0 %v4983
  %5138 = vmatprep.subr.mxu0 0.0
  %5139 = vmatpush1.xpose.msra.mxu0 0.0
  %5140 = vmatprep.subr.mxu0 0.0
  %5141 = vmatpush1.xpose.msra.mxu0 0.0
  %5142 = vmatprep.subr.mxu0 0.0
  %5143 = vmatpush1.xpose.msra.mxu0 0.0
  %5144 = vmatprep.subr.mxu0 0.0
  %5145 = vmatpush1.xpose.msra.mxu0 0.0
  %5146 = vmatprep.subr.mxu0 0.0
  %5147 = vmatpush1.xpose.msra.mxu0 0.0
  %5148 = vmatprep.subr.mxu0 0.0
  %5149 = vmatpush1.xpose.msra.mxu0 0.0
  %5150 = vmatprep.subr.mxu0 0.0
  %5151 = vmatpush1.xpose.msra.mxu0 0.0
  %5152 = vmatprep.subr.mxu0 0.0
  %5153 = vmatpush1.xpose.msra.mxu0 0.0
  %5154 = vmatprep.subr.mxu0 0.0
  %5155 = vmatpush1.xpose.msra.mxu0 0.0
  %5156 = vmatprep.subr.mxu0 0.0
  %5157 = vmatpush1.xpose.msra.mxu0 0.0
  %5158 = vmatprep.subr.mxu0 0.0
  %5159 = vmatpush1.xpose.msra.mxu0 0.0
  %5160 = vmatprep.subr.mxu0 0.0
  %5161 = vmatpush1.xpose.msra.mxu0 0.0
  %5162 = vmatprep.subr.mxu0 0.0
  %5163 = vmatpush1.xpose.msra.mxu0 0.0
  %5164 = vmatprep.subr.mxu0 0.0
  %5165 = vmatpush1.xpose.msra.mxu0 0.0
  %5166 = vmatprep.subr.mxu0 0.0
  %5167 = vmatpush1.xpose.msra.mxu0 0.0
  %5168 = vmatprep.subr.mxu0 0.0
  %5169 = vmatpush1.xpose.msra.mxu0 0.0
  %5170 = vmatprep.subr.mxu0 0.0
  %5171 = vmatpush1.xpose.msra.mxu0 0.0
  %5172 = vmatprep.subr.mxu0 0.0
  %5173 = vmatpush1.xpose.msra.mxu0 0.0
  %5174 = vmatprep.mubr.f32.mxu0 %v5010
  %5175 = vmatmul.mubr.f32.gmra.mrb[0].mxu0 %v4738
  %v5176 = vpop.f32.mrb[0].mxu0
  %v5177 = vadd.f32 %v5107, %v5176
  %v5178 = vpop.f32.mrb[0].mxu0
  %5179 = vdwg.mxu0
  %5180 = vrot.lane.b32.xlu0 %v2829, 124
  %v5181 = vpop.permute.xlu0 %5180
  %5182 = vrot.lane.b32.xlu0 %v2831, 124
  %v5183 = vpop.permute.xlu0 %5182
  %v5186 = vsel %vm3083, %v5181, 0.0
  %v5187 = vsel %vm3083, %v5183, 0.0
  %v5188 = vsel %vm3373, %v5186, 0.0
  %v5189 = vsel %vm3373, %v5187, 0.0
  %v5190 = vsel %vm3376, %v5188, 0.0
  %v5191 = vsel %vm3376, %v5189, 0.0
  %v5194 = vsel %vm3083, 0.0, %v4359
  %v5195 = vsel %vm3083, 0.0, %v4363
  %v5196 = vsel %vm3373, %v5194, 0.0
  %v5197 = vsel %vm3373, %v5195, 0.0
  %v5198 = vsel %vm3376, %v5196, 0.0
  %v5199 = vsel %vm3376, %v5197, 0.0
  %v5202 = vsel %vm3373, 0.0, %v4375
  %v5203 = vsel %vm3373, 0.0, %v4377
  %v5204 = vsel %vm3376, %v5202, 0.0
  %v5205 = vsel %vm3376, %v5203, 0.0
  %v5208 = vsel %vm3376, 0.0, %v4389
  %v5209 = vsel %vm3376, 0.0, %v4391
  %v5210 = vsel %vm3403, %v4389, 0.0
  %v5211 = vsel %vm3403, %v4391, 0.0
  %v5212 = vsel %vm3471, %v5210, 0.0
  %v5213 = vsel %vm3471, %v5211, 0.0
  %v5214 = vsel %vm4782, %v5212, 0.0
  %v5215 = vsel %vm4782, %v5213, 0.0
  %v5216 = vsel %vm4785, %v5214, 0.0
  %v5217 = vsel %vm4785, %v5215, 0.0
  %v5218 = vsel %vm3403, 0.0, %v2829
  %v5219 = vsel %vm3403, 0.0, %v2831
  %v5220 = vsel %vm3471, %v5218, 0.0
  %v5221 = vsel %vm3471, %v5219, 0.0
  %v5222 = vsel %vm4782, %v5220, 0.0
  %v5223 = vsel %vm4782, %v5221, 0.0
  %v5224 = vsel %vm4785, %v5222, 0.0
  %v5225 = vsel %vm4785, %v5223, 0.0
  %5226 = vrot.lane.b32.xlu0 %v2829, 33
  %v5227 = vpop.permute.xlu0 %5226
  %5228 = vrot.lane.b32.xlu0 %v2831, 33
  %v5229 = vpop.permute.xlu0 %5228
  %v5232 = vsel %vm3471, 0.0, %v5227
  %v5233 = vsel %vm3471, 0.0, %v5229
  %v5234 = vsel %vm4782, %v5232, 0.0
  %v5235 = vsel %vm4782, %v5233, 0.0
  %v5236 = vsel %vm4785, %v5234, 0.0
  %v5237 = vsel %vm4785, %v5235, 0.0
  %5238 = vrot.lane.b32.xlu0 %v2829, 66
  %v5239 = vpop.permute.xlu0 %5238
  %5240 = vrot.lane.b32.xlu0 %v2831, 66
  %v5241 = vpop.permute.xlu0 %5240
  %v5244 = vsel %vm4782, 0.0, %v5239
  %v5245 = vsel %vm4782, 0.0, %v5241
  %v5246 = vsel %vm4785, %v5244, 0.0
  %v5247 = vsel %vm4785, %v5245, 0.0
  %5248 = vrot.lane.b32.xlu0 %v2829, 99
  %v5249 = vpop.permute.xlu0 %5248
  %5250 = vrot.lane.b32.xlu0 %v2831, 99
  %v5251 = vpop.permute.xlu0 %5250
  %v5254 = vsel %vm4785, 0.0, %v5249
  %v5255 = vsel %vm4785, 0.0, %v5251
  %v5256 = vsel %vm4826, %v5249, 0.0
  %v5257 = vsel %vm4826, %v5251, 0.0
  %v5258 = vsel %vm4829, %v5256, 0.0
  %v5259 = vsel %vm4829, %v5257, 0.0
  %v5260 = vsel %vm4832, %v5258, 0.0
  %v5261 = vsel %vm4832, %v5259, 0.0
  %v5262 = vsel %vm4835, %v5260, 0.0
  %v5263 = vsel %vm4835, %v5261, 0.0
  %5264 = vrot.lane.b32.xlu0 %v2829, 4
  %v5265 = vpop.permute.xlu0 %5264
  %5266 = vrot.lane.b32.xlu0 %v2831, 4
  %v5267 = vpop.permute.xlu0 %5266
  %v5270 = vsel %vm4826, 0.0, %v5265
  %v5271 = vsel %vm4826, 0.0, %v5267
  %v5272 = vsel %vm4829, %v5270, 0.0
  %v5273 = vsel %vm4829, %v5271, 0.0
  %v5274 = vsel %vm4832, %v5272, 0.0
  %v5275 = vsel %vm4832, %v5273, 0.0
  %v5276 = vsel %vm4835, %v5274, 0.0
  %v5277 = vsel %vm4835, %v5275, 0.0
  %5278 = vrot.lane.b32.xlu0 %v2829, 37
  %v5279 = vpop.permute.xlu0 %5278
  %5280 = vrot.lane.b32.xlu0 %v2831, 37
  %v5281 = vpop.permute.xlu0 %5280
  %v5284 = vsel %vm4829, 0.0, %v5279
  %v5285 = vsel %vm4829, 0.0, %v5281
  %v5286 = vsel %vm4832, %v5284, 0.0
  %v5287 = vsel %vm4832, %v5285, 0.0
  %v5288 = vsel %vm4835, %v5286, 0.0
  %v5289 = vsel %vm4835, %v5287, 0.0
  %5290 = vrot.lane.b32.xlu0 %v2829, 70
  %v5291 = vpop.permute.xlu0 %5290
  %5292 = vrot.lane.b32.xlu0 %v2831, 70
  %v5293 = vpop.permute.xlu0 %5292
  %v5296 = vsel %vm4832, 0.0, %v5291
  %v5297 = vsel %vm4832, 0.0, %v5293
  %v5298 = vsel %vm4835, %v5296, 0.0
  %v5299 = vsel %vm4835, %v5297, 0.0
  %5300 = vrot.lane.b32.xlu0 %v2829, 103
  %v5301 = vpop.permute.xlu0 %5300
  %5302 = vrot.lane.b32.xlu0 %v2831, 103
  %v5303 = vpop.permute.xlu0 %5302
  %v5306 = vsel %vm4835, 0.0, %v5301
  %v5307 = vsel %vm4835, 0.0, %v5303
  %v5310 = vrot.slane %v5198, 7
  %v5311 = vrot.slane %v5199, 7
  %v5312 = vsel %vm3004, %v5310, %v5311
  %v5317 = vrot.slane %v5204, 6
  %v5318 = vrot.slane %v5205, 6
  %v5319 = vsel %vm3428, %v5317, %v5318
  %v5326 = vrot.slane %v5208, 5
  %v5327 = vrot.slane %v5216, 5
  %v5328 = vrot.slane %v5209, 5
  %v5329 = vsel %vm3442, %v5326, %v5328
  %v5330 = vrot.slane %v5217, 5
  %v5331 = vsel %vm3442, %v5327, %v5330
  %v5338 = vrot.slane %v5224, 4
  %v5339 = vrot.slane %v5225, 4
  %v5340 = vsel %vm201, %v5338, %v5339
  %v5345 = vrot.slane %v5236, 3
  %v5346 = vrot.slane %v5237, 3
  %v5347 = vsel %vm4923, %v5345, %v5346
  %v5352 = vrot.slane %v5246, 2
  %v5353 = vrot.slane %v5247, 2
  %v5354 = vsel %vm4935, %v5352, %v5353
  %v5361 = vrot.slane %v5254, 1
  %v5362 = vrot.slane %v5262, 1
  %v5363 = vrot.slane %v5255, 1
  %v5364 = vsel %vm4949, %v5361, %v5363
  %v5365 = vrot.slane %v5263, 1
  %v5366 = vsel %vm4949, %v5362, %v5365
  %v5373 = vrot.slane %v5288, 7
  %v5374 = vrot.slane %v5289, 7
  %v5375 = vsel %vm3004, %v5373, %v5374
  %v5380 = vrot.slane %v5298, 6
  %v5381 = vrot.slane %v5299, 6
  %v5382 = vsel %vm3428, %v5380, %v5381
  %v5387 = vrot.slane %v5306, 5
  %v5388 = vrot.slane %v5301, 5
  %v5389 = vrot.slane %v5307, 5
  %v5390 = vsel %vm3442, %v5387, %v5389
  %v5391 = vrot.slane %v5303, 5
  %v5392 = vsel %vm3442, %v5388, %v5391
  %v5396 = vsel %vm3004, %v5191, %v5310
  %v5397 = vsel %vm3428, %v5312, %v5317
  %v5398 = vsel %vm3442, %v5319, %v5326
  %v5399 = vsel %vm3442, %v3433, %v5327
  %v5400 = vsel %vm201, %v5329, %v3455
  %v5401 = vsel %vm201, %v5331, %v5338
  %v5402 = vsel %vm4923, %v5340, %v5345
  %v5403 = vsel %vm4935, %v5347, %v5352
  %v5404 = vsel %vm4949, %v5354, %v5361
  %v5405 = vsel %vm4949, %v4938, %v5362
  %v5406 = vsel %vm3004, %v5277, %v5373
  %v5407 = vsel %vm3428, %v5375, %v5380
  %v5408 = vsel %vm3442, %v5382, %v5387
  %v5409 = vsel %vm3442, %v3433, %v5388
  %v5411 = vsel %vm5008, %v4746, 0
  %v5414 = vsel %vm5008, %v5409, 0
  %v5416 = vsel %vm5008, %v5392, 0
  %5418 = vmatprep.subr.mxu0 0.0
  %5419 = vmatpush1.xpose.msra.mxu0 %v5190
  %5420 = vmatprep.subr.mxu0 %v3464
  %5421 = vmatpush1.xpose.msra.mxu0 %v5396
  %5422 = vmatprep.subr.mxu0 %v3466
  %5423 = vmatpush1.xpose.msra.mxu0 %v5397
  %5424 = vmatprep.subr.mxu0 %v5399
  %5425 = vmatpush1.xpose.msra.mxu0 %v5398
  %5426 = vmatprep.subr.mxu0 %v5401
  %5427 = vmatpush1.xpose.msra.mxu0 %v5400
  %5428 = vmatprep.subr.mxu0 %v5402
  %5429 = vmatpush1.xpose.msra.mxu0 %v4997
  %5430 = vmatprep.subr.mxu0 %v5403
  %5431 = vmatpush1.xpose.msra.mxu0 %v4999
  %5432 = vmatprep.subr.mxu0 %v5404
  %5433 = vmatpush1.xpose.msra.mxu0 %v5001
  %5434 = vmatprep.subr.mxu0 %v5364
  %5435 = vmatpush1.xpose.msra.mxu0 %v4953
  %5436 = vmatprep.subr.mxu0 0.0
  %5437 = vmatpush1.xpose.msra.mxu0 0.0
  %5438 = vmatprep.subr.mxu0 %v3464
  %5439 = vmatpush1.xpose.msra.mxu0 %v3464
  %5440 = vmatprep.subr.mxu0 %v3466
  %5441 = vmatpush1.xpose.msra.mxu0 %v3466
  %5442 = vmatprep.subr.mxu0 %v4993
  %5443 = vmatpush1.xpose.msra.mxu0 %v4993
  %5444 = vmatprep.subr.mxu0 %v4907
  %5445 = vmatpush1.xpose.msra.mxu0 %v4907
  %5446 = vmatprep.subr.mxu0 0.0
  %5447 = vmatpush1.xpose.msra.mxu0 0.0
  %5448 = vmatprep.subr.mxu0 0.0
  %5449 = vmatpush1.xpose.msra.mxu0 0.0
  %5450 = vmatprep.subr.mxu0 0.0
  %5451 = vmatpush1.xpose.msra.mxu0 0.0
  %5452 = vmatprep.subr.mxu0 0.0
  %5453 = vmatpush1.xpose.msra.mxu0 0.0
  %5454 = vmatprep.subr.mxu0 0.0
  %5455 = vmatpush1.xpose.msra.mxu0 0.0
  %5456 = vmatprep.subr.mxu0 0.0
  %5457 = vmatpush1.xpose.msra.mxu0 0.0
  %5458 = vmatprep.subr.mxu0 0.0
  %5459 = vmatpush1.xpose.msra.mxu0 0.0
  %5460 = vmatprep.subr.mxu0 0.0
  %5461 = vmatpush1.xpose.msra.mxu0 0.0
  %5462 = vmatprep.subr.mxu0 0.0
  %5463 = vmatpush1.xpose.msra.mxu0 0.0
  %5464 = vmatprep.subr.mxu0 0.0
  %5465 = vmatpush1.xpose.msra.mxu0 0.0
  %5466 = vmatprep.subr.mxu0 0.0
  %5467 = vmatpush1.xpose.msra.mxu0 0.0
  %5468 = vmatprep.subr.mxu0 0.0
  %5469 = vmatpush1.xpose.msra.mxu0 0.0
  %5470 = vmatprep.subr.mxu0 0.0
  %5471 = vmatpush1.xpose.msra.mxu0 0.0
  %5472 = vmatprep.subr.mxu0 0.0
  %5473 = vmatpush1.xpose.msra.mxu0 0.0
  %5474 = vmatprep.subr.mxu0 0.0
  %5475 = vmatpush1.xpose.msra.mxu0 0.0
  %5476 = vmatprep.subr.mxu0 0.0
  %5477 = vmatpush1.xpose.msra.mxu0 0.0
  %5478 = vmatprep.subr.mxu0 0.0
  %5479 = vmatpush1.xpose.msra.mxu0 0.0
  %5480 = vmatprep.subr.mxu0 0.0
  %5481 = vmatpush1.xpose.msra.mxu0 0.0
  %5482 = vmatprep.mubr.f32.mxu0 %v4669
  %5483 = vmatmul.mubr.f32.gmra.mrb[0].mxu0 %v4667
  %v5484 = vpop.f32.mrb[0].mxu0
  %v5485 = vadd.f32 0.0, %v5484
  %v5486 = vpop.f32.mrb[0].mxu0
  %5487 = vdwg.mxu0
  %5488 = vmatprep.subr.mxu0 %v5012
  %5489 = vmatpush1.xpose.msra.mxu0 0.0
  %5490 = vmatprep.subr.mxu0 %v5014
  %5491 = vmatpush1.xpose.msra.mxu0 %v3464
  %5492 = vmatprep.subr.mxu0 %v5016
  %5493 = vmatpush1.xpose.msra.mxu0 %v3466
  %5494 = vmatprep.subr.mxu0 %v5019
  %5495 = vmatpush1.xpose.msra.mxu0 %v4993
  %5496 = vmatprep.subr.mxu0 %v5022
  %5497 = vmatpush1.xpose.msra.mxu0 %v4996
  %5498 = vmatprep.subr.mxu0 %v5025
  %5499 = vmatpush1.xpose.msra.mxu0 %v4997
  %5500 = vmatprep.subr.mxu0 %v5028
  %5501 = vmatpush1.xpose.msra.mxu0 %v4999
  %5502 = vmatprep.subr.mxu0 %v5031
  %5503 = vmatpush1.xpose.msra.mxu0 %v5405
  %5504 = vmatprep.subr.mxu0 %v5033
  %5505 = vmatpush1.xpose.msra.mxu0 %v5366
  %5506 = vmatprep.subr.mxu0 %v5012
  %5507 = vmatpush1.xpose.msra.mxu0 %v5276
  %5508 = vmatprep.subr.mxu0 %v5014
  %5509 = vmatpush1.xpose.msra.mxu0 %v5406
  %5510 = vmatprep.subr.mxu0 %v5016
  %5511 = vmatpush1.xpose.msra.mxu0 %v5407
  %5512 = vmatprep.subr.mxu0 %v5414
  %5513 = vmatpush1.xpose.msra.mxu0 %v5408
  %5514 = vmatprep.subr.mxu0 %v5416
  %5515 = vmatpush1.xpose.msra.mxu0 %v5390
  %5516 = vmatprep.subr.mxu0 0.0
  %5517 = vmatpush1.xpose.msra.mxu0 0.0
  %5518 = vmatprep.subr.mxu0 0.0
  %5519 = vmatpush1.xpose.msra.mxu0 0.0
  %5520 = vmatprep.subr.mxu0 0.0
  %5521 = vmatpush1.xpose.msra.mxu0 0.0
  %5522 = vmatprep.subr.mxu0 0.0
  %5523 = vmatpush1.xpose.msra.mxu0 0.0
  %5524 = vmatprep.subr.mxu0 0.0
  %5525 = vmatpush1.xpose.msra.mxu0 0.0
  %5526 = vmatprep.subr.mxu0 0.0
  %5527 = vmatpush1.xpose.msra.mxu0 0.0
  %5528 = vmatprep.subr.mxu0 0.0
  %5529 = vmatpush1.xpose.msra.mxu0 0.0
  %5530 = vmatprep.subr.mxu0 0.0
  %5531 = vmatpush1.xpose.msra.mxu0 0.0
  %5532 = vmatprep.subr.mxu0 0.0
  %5533 = vmatpush1.xpose.msra.mxu0 0.0
  %5534 = vmatprep.subr.mxu0 0.0
  %5535 = vmatpush1.xpose.msra.mxu0 0.0
  %5536 = vmatprep.subr.mxu0 0.0
  %5537 = vmatpush1.xpose.msra.mxu0 0.0
  %5538 = vmatprep.subr.mxu0 0.0
  %5539 = vmatpush1.xpose.msra.mxu0 0.0
  %5540 = vmatprep.subr.mxu0 0.0
  %5541 = vmatpush1.xpose.msra.mxu0 0.0
  %5542 = vmatprep.subr.mxu0 0.0
  %5543 = vmatpush1.xpose.msra.mxu0 0.0
  %5544 = vmatprep.subr.mxu0 0.0
  %5545 = vmatpush1.xpose.msra.mxu0 0.0
  %5546 = vmatprep.subr.mxu0 0.0
  %5547 = vmatpush1.xpose.msra.mxu0 0.0
  %5548 = vmatprep.subr.mxu0 0.0
  %5549 = vmatpush1.xpose.msra.mxu0 0.0
  %5550 = vmatprep.subr.mxu0 0.0
  %5551 = vmatpush1.xpose.msra.mxu0 0.0
  %5552 = vmatprep.mubr.f32.mxu0 %v5411
  %5553 = vmatmul.mubr.f32.gmra.mrb[0].mxu0 %v4744
  %v5554 = vpop.f32.mrb[0].mxu0
  %v5555 = vadd.f32 %v5485, %v5554
  %v5556 = vpop.f32.mrb[0].mxu0
  %5557 = vdwg.mxu0
  %5560 = vrot.lane.b32.xlu0 %v2957, 3
  %v5561 = vpop.permute.xlu0 %5560
  %5562 = vrot.lane.b32.xlu0 %v2958, 3
  %v5563 = vpop.permute.xlu0 %5562
  %5564 = vrot.lane.b32.xlu0 %v2959, 3
  %v5565 = vpop.permute.xlu0 %5564
  %5566 = vrot.lane.b32.xlu0 %v2960, 3
  %v5567 = vpop.permute.xlu0 %5566
  %vm5568 = vcmask 23552
  %v5569 = vsel %vm5568, %v5561, %v5563
  %v5570 = vsel %vm5568, %v5565, %v5567
  %5579 = vrot.lane.b32.xlu0 %v2967, 71
  %v5580 = vpop.permute.xlu0 %5579
  %5581 = vrot.lane.b32.xlu0 %v2968, 71
  %v5582 = vpop.permute.xlu0 %5581
  %5583 = vrot.lane.b32.xlu0 %v2969, 71
  %v5584 = vpop.permute.xlu0 %5583
  %5585 = vrot.lane.b32.xlu0 %v2976, 71
  %v5586 = vpop.permute.xlu0 %5585
  %5587 = vrot.lane.b32.xlu0 %v2977, 71
  %v5588 = vpop.permute.xlu0 %5587
  %5589 = vrot.lane.b32.xlu0 %v2978, 71
  %v5590 = vpop.permute.xlu0 %5589
  %5591 = vrot.lane.b32.xlu0 %v2985, 71
  %v5592 = vpop.permute.xlu0 %5591
  %5593 = vrot.lane.b32.xlu0 %v2986, 71
  %v5594 = vpop.permute.xlu0 %5593
  %5595 = vrot.lane.b32.xlu0 %v2987, 71
  %v5596 = vpop.permute.xlu0 %5595
  %5597 = vrot.lane.b32.xlu0 %v2994, 71
  %v5598 = vpop.permute.xlu0 %5597
  %5599 = vrot.lane.b32.xlu0 %v2995, 71
  %v5600 = vpop.permute.xlu0 %5599
  %5601 = vrot.lane.b32.xlu0 %v2996, 71
  %v5602 = vpop.permute.xlu0 %5601
  %vm5603 = vcmask 580608
  %v5604 = vsel %vm5603, %v5580, %v5582
  %v5605 = vsel %vm5603, %v5582, %v5584
  %v5606 = vsel %vm5603, %v5586, %v5588
  %v5607 = vsel %vm5603, %v5588, %v5590
  %v5608 = vsel %vm5603, %v5592, %v5594
  %v5609 = vsel %vm5603, %v5594, %v5596
  %v5610 = vsel %vm5603, %v5598, %v5600
  %v5611 = vsel %vm5603, %v5600, %v5602
  %v5621 = vsel %vm2997, %v5569, 0
  %v5623 = vsel %vm2997, %v5570, 0
  %v5625 = vsel %vm3004, %v5610, 0
  %v5627 = vsel %vm3004, %v5611, 0
  %v5629 = vsel %vm3004, %v5602, 0
  %5631 = vmatprep.subr.mxu0 %v5605
  %5632 = vmatpush1.msra.mxu0 %v5604
  %5633 = vmatprep.subr.mxu0 %v5607
  %5634 = vmatpush1.msra.mxu0 %v5606
  %5635 = vmatprep.subr.mxu0 %v5609
  %5636 = vmatpush1.msra.mxu0 %v5608
  %5637 = vmatprep.subr.mxu0 %v5627
  %5638 = vmatpush1.msra.mxu0 %v5625
  %5639 = vmatprep.subr.mxu0 0.0
  %5640 = vmatpush1.msra.mxu0 0.0
  %5641 = vmatprep.subr.mxu0 0.0
  %5642 = vmatpush1.msra.mxu0 0.0
  %5643 = vmatprep.subr.mxu0 0.0
  %5644 = vmatpush1.msra.mxu0 0.0
  %5645 = vmatprep.subr.mxu0 0.0
  %5646 = vmatpush1.msra.mxu0 0.0
  %5647 = vmatprep.subr.mxu0 0.0
  %5648 = vmatpush1.msra.mxu0 0.0
  %5649 = vmatprep.subr.mxu0 0.0
  %5650 = vmatpush1.msra.mxu0 0.0
  %5651 = vmatprep.subr.mxu0 0.0
  %5652 = vmatpush1.msra.mxu0 0.0
  %5653 = vmatprep.subr.mxu0 0.0
  %5654 = vmatpush1.msra.mxu0 0.0
  %5655 = vmatprep.subr.mxu0 0.0
  %5656 = vmatpush1.msra.mxu0 0.0
  %5657 = vmatprep.subr.mxu0 0.0
  %5658 = vmatpush1.msra.mxu0 0.0
  %5659 = vmatprep.subr.mxu0 0.0
  %5660 = vmatpush1.msra.mxu0 0.0
  %5661 = vmatprep.subr.mxu0 0.0
  %5662 = vmatpush1.msra.mxu0 0.0
  %5663 = vmatprep.subr.mxu0 0.0
  %5664 = vmatpush1.msra.mxu0 0.0
  %5665 = vmatprep.subr.mxu0 0.0
  %5666 = vmatpush1.msra.mxu0 0.0
  %5667 = vmatprep.subr.mxu0 0.0
  %5668 = vmatpush1.msra.mxu0 0.0
  %5669 = vmatprep.subr.mxu0 0.0
  %5670 = vmatpush1.msra.mxu0 0.0
  %5671 = vmatprep.subr.mxu0 0.0
  %5672 = vmatpush1.msra.mxu0 0.0
  %5673 = vmatprep.subr.mxu0 0.0
  %5674 = vmatpush1.msra.mxu0 0.0
  %5675 = vmatprep.subr.mxu0 0.0
  %5676 = vmatpush1.msra.mxu0 0.0
  %5677 = vmatprep.subr.mxu0 0.0
  %5678 = vmatpush1.msra.mxu0 0.0
  %5679 = vmatprep.subr.mxu0 0.0
  %5680 = vmatpush1.msra.mxu0 0.0
  %5681 = vmatprep.subr.mxu0 0.0
  %5682 = vmatpush1.msra.mxu0 0.0
  %5683 = vmatprep.subr.mxu0 0.0
  %5684 = vmatpush1.msra.mxu0 0.0
  %5685 = vmatprep.subr.mxu0 0.0
  %5686 = vmatpush1.msra.mxu0 0.0
  %5687 = vmatprep.subr.mxu0 0.0
  %5688 = vmatpush1.msra.mxu0 0.0
  %5689 = vmatprep.subr.mxu0 0.0
  %5690 = vmatpush1.msra.mxu0 0.0
  %5691 = vmatprep.subr.mxu0 0.0
  %5692 = vmatpush1.msra.mxu0 0.0
  %5693 = vmatprep.subr.mxu0 0.0
  %5694 = vmatpush1.msra.mxu0 0.0
  %5695 = vmatprep.mubr.f32.mxu0 0.0
  %5696 = vmatmul.mubr.f32.gmra.mrb[0].mxu0 %v5621
  %v5697 = vpop.f32.mrb[0].mxu0
  %v5698 = vadd.f32 0.0, %v5697
  %v5699 = vpop.f32.mrb[0].mxu0
  %v5700 = vadd.f32 0.0, %v5699
  %5701 = vmatprep.mubr.f32.mxu0 0.0
  %5702 = vmatmul.mubr.f32.gmra.mrb[0].mxu0 %v5623
  %v5703 = vpop.f32.mrb[0].mxu0
  %v5704 = vadd.f32 0.0, %v5703
  %v5705 = vpop.f32.mrb[0].mxu0
  %v5706 = vadd.f32 0.0, %v5705
  %5707 = vdwg.mxu0
  %5708 = vmatprep.subr.mxu0 0.0
  %5709 = vmatpush1.msra.mxu0 %v5584
  %5710 = vmatprep.subr.mxu0 0.0
  %5711 = vmatpush1.msra.mxu0 %v5590
  %5712 = vmatprep.subr.mxu0 0.0
  %5713 = vmatpush1.msra.mxu0 %v5596
  %5714 = vmatprep.subr.mxu0 0.0
  %5715 = vmatpush1.msra.mxu0 %v5629
  %5716 = vmatprep.subr.mxu0 0.0
  %5717 = vmatpush1.msra.mxu0 0.0
  %5718 = vmatprep.subr.mxu0 0.0
  %5719 = vmatpush1.msra.mxu0 0.0
  %5720 = vmatprep.subr.mxu0 0.0
  %5721 = vmatpush1.msra.mxu0 0.0
  %5722 = vmatprep.subr.mxu0 0.0
  %5723 = vmatpush1.msra.mxu0 0.0
  %5724 = vmatprep.subr.mxu0 0.0
  %5725 = vmatpush1.msra.mxu0 0.0
  %5726 = vmatprep.subr.mxu0 0.0
  %5727 = vmatpush1.msra.mxu0 0.0
  %5728 = vmatprep.subr.mxu0 0.0
  %5729 = vmatpush1.msra.mxu0 0.0
  %5730 = vmatprep.subr.mxu0 0.0
  %5731 = vmatpush1.msra.mxu0 0.0
  %5732 = vmatprep.subr.mxu0 0.0
  %5733 = vmatpush1.msra.mxu0 0.0
  %5734 = vmatprep.subr.mxu0 0.0
  %5735 = vmatpush1.msra.mxu0 0.0
  %5736 = vmatprep.subr.mxu0 0.0
  %5737 = vmatpush1.msra.mxu0 0.0
  %5738 = vmatprep.subr.mxu0 0.0
  %5739 = vmatpush1.msra.mxu0 0.0
  %5740 = vmatprep.subr.mxu0 0.0
  %5741 = vmatpush1.msra.mxu0 0.0
  %5742 = vmatprep.subr.mxu0 0.0
  %5743 = vmatpush1.msra.mxu0 0.0
  %5744 = vmatprep.subr.mxu0 0.0
  %5745 = vmatpush1.msra.mxu0 0.0
  %5746 = vmatprep.subr.mxu0 0.0
  %5747 = vmatpush1.msra.mxu0 0.0
  %5748 = vmatprep.subr.mxu0 0.0
  %5749 = vmatpush1.msra.mxu0 0.0
  %5750 = vmatprep.subr.mxu0 0.0
  %5751 = vmatpush1.msra.mxu0 0.0
  %5752 = vmatprep.subr.mxu0 0.0
  %5753 = vmatpush1.msra.mxu0 0.0
  %5754 = vmatprep.subr.mxu0 0.0
  %5755 = vmatpush1.msra.mxu0 0.0
  %5756 = vmatprep.subr.mxu0 0.0
  %5757 = vmatpush1.msra.mxu0 0.0
  %5758 = vmatprep.subr.mxu0 0.0
  %5759 = vmatpush1.msra.mxu0 0.0
  %5760 = vmatprep.subr.mxu0 0.0
  %5761 = vmatpush1.msra.mxu0 0.0
  %5762 = vmatprep.subr.mxu0 0.0
  %5763 = vmatpush1.msra.mxu0 0.0
  %5764 = vmatprep.subr.mxu0 0.0
  %5765 = vmatpush1.msra.mxu0 0.0
  %5766 = vmatprep.subr.mxu0 0.0
  %5767 = vmatpush1.msra.mxu0 0.0
  %5768 = vmatprep.subr.mxu0 0.0
  %5769 = vmatpush1.msra.mxu0 0.0
  %5770 = vmatprep.subr.mxu0 0.0
  %5771 = vmatpush1.msra.mxu0 0.0
  %5772 = vmatprep.mubr.f32.mxu0 0.0
  %5773 = vmatmul.mubr.f32.gmra.mrb[0].mxu0 %v5621
  %v5774 = vpop.f32.mrb[0].mxu0
  %v5775 = vadd.f32 0.0, %v5774
  %v5776 = vpop.f32.mrb[0].mxu0
  %5777 = vmatprep.mubr.f32.mxu0 0.0
  %5778 = vmatmul.mubr.f32.gmra.mrb[0].mxu0 %v5623
  %v5779 = vpop.f32.mrb[0].mxu0
  %v5780 = vadd.f32 0.0, %v5779
  %v5781 = vpop.f32.mrb[0].mxu0
  %5782 = vdwg.mxu0
  %5783 = vrot.lane.b32.xlu0 %v2720, 91
  %v5784 = vpop.permute.xlu0 %5783
  %5785 = vrot.lane.b32.xlu0 %v2722, 91
  %v5786 = vpop.permute.xlu0 %5785
  %v5789 = vsel %vm3083, %v5784, 0.0
  %v5790 = vsel %vm3083, %v5786, 0.0
  %v5791 = vsel %vm3373, %v5789, 0.0
  %v5792 = vsel %vm3373, %v5790, 0.0
  %v5793 = vsel %vm3376, %v5791, 0.0
  %v5794 = vsel %vm3376, %v5792, 0.0
  %v5795 = vsel %vm3083, 0.0, %v4749
  %v5796 = vsel %vm3083, 0.0, %v4751
  %v5797 = vsel %vm3373, %v5795, 0.0
  %v5798 = vsel %vm3373, %v5796, 0.0
  %v5799 = vsel %vm3376, %v5797, 0.0
  %v5800 = vsel %vm3376, %v5798, 0.0
  %v5801 = vsel %vm3373, 0.0, %v4196
  %v5802 = vsel %vm3373, 0.0, %v4200
  %v5803 = vsel %vm3376, %v5801, 0.0
  %v5804 = vsel %vm3376, %v5802, 0.0
  %v5805 = vsel %vm3376, 0.0, %v4213
  %v5806 = vsel %vm3376, 0.0, %v4215
  %v5807 = vsel %vm3403, %v4213, 0.0
  %v5808 = vsel %vm3403, %v4215, 0.0
  %v5809 = vsel %vm3471, %v5807, 0.0
  %v5810 = vsel %vm3471, %v5808, 0.0
  %v5811 = vsel %vm4782, %v5809, 0.0
  %v5812 = vsel %vm4782, %v5810, 0.0
  %v5813 = vsel %vm4785, %v5811, 0.0
  %v5814 = vsel %vm4785, %v5812, 0.0
  %v5815 = vsel %vm3403, 0.0, %v4228
  %v5816 = vsel %vm3403, 0.0, %v4230
  %v5817 = vsel %vm3471, %v5815, 0.0
  %v5818 = vsel %vm3471, %v5816, 0.0
  %v5819 = vsel %vm4782, %v5817, 0.0
  %v5820 = vsel %vm4782, %v5818, 0.0
  %v5821 = vsel %vm4785, %v5819, 0.0
  %v5822 = vsel %vm4785, %v5820, 0.0
  %v5823 = vsel %vm3471, 0.0, %v2720
  %v5824 = vsel %vm3471, 0.0, %v2722
  %v5825 = vsel %vm4782, %v5823, 0.0
  %v5826 = vsel %vm4782, %v5824, 0.0
  %v5827 = vsel %vm4785, %v5825, 0.0
  %v5828 = vsel %vm4785, %v5826, 0.0
  %v5829 = vsel %vm4782, 0.0, %v4797
  %v5830 = vsel %vm4782, 0.0, %v4799
  %v5831 = vsel %vm4785, %v5829, 0.0
  %v5832 = vsel %vm4785, %v5830, 0.0
  %v5833 = vsel %vm4785, 0.0, %v4809
  %v5834 = vsel %vm4785, 0.0, %v4811
  %v5837 = vrot.slane %v5799, 7
  %v5838 = vrot.slane %v5800, 7
  %v5839 = vsel %vm3004, %v5837, %v5838
  %v5844 = vrot.slane %v5803, 6
  %v5845 = vrot.slane %v5804, 6
  %v5846 = vsel %vm3428, %v5844, %v5845
  %v5853 = vrot.slane %v5805, 5
  %v5854 = vrot.slane %v5813, 5
  %v5855 = vrot.slane %v5806, 5
  %v5856 = vsel %vm3442, %v5853, %v5855
  %v5857 = vrot.slane %v5814, 5
  %v5858 = vsel %vm3442, %v5854, %v5857
  %v5865 = vrot.slane %v5821, 4
  %v5866 = vrot.slane %v5822, 4
  %v5867 = vsel %vm201, %v5865, %v5866
  %v5872 = vrot.slane %v5827, 3
  %v5873 = vrot.slane %v5828, 3
  %v5874 = vsel %vm4923, %v5872, %v5873
  %v5879 = vrot.slane %v5831, 2
  %v5880 = vrot.slane %v5832, 2
  %v5881 = vsel %vm4935, %v5879, %v5880
  %v5886 = vrot.slane %v5833, 1
  %v5887 = vrot.slane %v4809, 1
  %v5888 = vrot.slane %v5834, 1
  %v5889 = vsel %vm4949, %v5886, %v5888
  %v5890 = vrot.slane %v4811, 1
  %v5891 = vsel %vm4949, %v5887, %v5890
  %v5895 = vsel %vm3004, %v5794, %v5837
  %v5896 = vsel %vm3428, %v5839, %v5844
  %v5897 = vsel %vm3442, %v5846, %v5853
  %v5898 = vsel %vm3442, %v3433, %v5854
  %v5899 = vsel %vm201, %v5856, %v3455
  %v5900 = vsel %vm201, %v5858, %v5865
  %v5901 = vsel %vm4923, %v5867, %v5872
  %v5902 = vsel %vm4935, %v5874, %v5879
  %v5903 = vsel %vm4949, %v5881, %v5886
  %v5904 = vsel %vm4949, %v4938, %v5887
  %v5906 = vsel %vm4826, %v5775, 0
  %v5908 = vsel %vm4826, 0.0, 0
  %v5910 = vsel %vm4826, %v3464, 0
  %v5912 = vsel %vm4826, %v3466, 0
  %v5914 = vsel %vm4826, %v4993, 0
  %v5916 = vsel %vm4826, %v4996, 0
  %v5918 = vsel %vm4826, %v4997, 0
  %v5920 = vsel %vm4826, %v4999, 0
  %v5923 = vsel %vm4826, %v5904, 0
  %v5925 = vsel %vm4826, %v5891, 0
  %5927 = vmatprep.subr.mxu0 0.0
  %5928 = vmatpush1.xpose.msra.mxu0 %v5793
  %5929 = vmatprep.subr.mxu0 %v3464
  %5930 = vmatpush1.xpose.msra.mxu0 %v5895
  %5931 = vmatprep.subr.mxu0 %v3466
  %5932 = vmatpush1.xpose.msra.mxu0 %v5896
  %5933 = vmatprep.subr.mxu0 %v5898
  %5934 = vmatpush1.xpose.msra.mxu0 %v5897
  %5935 = vmatprep.subr.mxu0 %v5900
  %5936 = vmatpush1.xpose.msra.mxu0 %v5899
  %5937 = vmatprep.subr.mxu0 %v5901
  %5938 = vmatpush1.xpose.msra.mxu0 %v4997
  %5939 = vmatprep.subr.mxu0 %v5902
  %5940 = vmatpush1.xpose.msra.mxu0 %v4999
  %5941 = vmatprep.subr.mxu0 %v5903
  %5942 = vmatpush1.xpose.msra.mxu0 %v5001
  %5943 = vmatprep.subr.mxu0 %v5889
  %5944 = vmatpush1.xpose.msra.mxu0 %v4953
  %5945 = vmatprep.subr.mxu0 0.0
  %5946 = vmatpush1.xpose.msra.mxu0 0.0
  %5947 = vmatprep.subr.mxu0 0.0
  %5948 = vmatpush1.xpose.msra.mxu0 0.0
  %5949 = vmatprep.subr.mxu0 0.0
  %5950 = vmatpush1.xpose.msra.mxu0 0.0
  %5951 = vmatprep.subr.mxu0 0.0
  %5952 = vmatpush1.xpose.msra.mxu0 0.0
  %5953 = vmatprep.subr.mxu0 0.0
  %5954 = vmatpush1.xpose.msra.mxu0 0.0
  %5955 = vmatprep.subr.mxu0 0.0
  %5956 = vmatpush1.xpose.msra.mxu0 0.0
  %5957 = vmatprep.subr.mxu0 0.0
  %5958 = vmatpush1.xpose.msra.mxu0 0.0
  %5959 = vmatprep.subr.mxu0 0.0
  %5960 = vmatpush1.xpose.msra.mxu0 0.0
  %5961 = vmatprep.subr.mxu0 0.0
  %5962 = vmatpush1.xpose.msra.mxu0 0.0
  %5963 = vmatprep.subr.mxu0 0.0
  %5964 = vmatpush1.xpose.msra.mxu0 0.0
  %5965 = vmatprep.subr.mxu0 0.0
  %5966 = vmatpush1.xpose.msra.mxu0 0.0
  %5967 = vmatprep.subr.mxu0 0.0
  %5968 = vmatpush1.xpose.msra.mxu0 0.0
  %5969 = vmatprep.subr.mxu0 0.0
  %5970 = vmatpush1.xpose.msra.mxu0 0.0
  %5971 = vmatprep.subr.mxu0 0.0
  %5972 = vmatpush1.xpose.msra.mxu0 0.0
  %5973 = vmatprep.subr.mxu0 0.0
  %5974 = vmatpush1.xpose.msra.mxu0 0.0
  %5975 = vmatprep.subr.mxu0 0.0
  %5976 = vmatpush1.xpose.msra.mxu0 0.0
  %5977 = vmatprep.subr.mxu0 0.0
  %5978 = vmatpush1.xpose.msra.mxu0 0.0
  %5979 = vmatprep.subr.mxu0 0.0
  %5980 = vmatpush1.xpose.msra.mxu0 0.0
  %5981 = vmatprep.subr.mxu0 0.0
  %5982 = vmatpush1.xpose.msra.mxu0 0.0
  %5983 = vmatprep.subr.mxu0 0.0
  %5984 = vmatpush1.xpose.msra.mxu0 0.0
  %5985 = vmatprep.subr.mxu0 0.0
  %5986 = vmatpush1.xpose.msra.mxu0 0.0
  %5987 = vmatprep.subr.mxu0 0.0
  %5988 = vmatpush1.xpose.msra.mxu0 0.0
  %5989 = vmatprep.subr.mxu0 0.0
  %5990 = vmatpush1.xpose.msra.mxu0 0.0
  %5991 = vmatprep.mubr.f32.mxu0 %v5700
  %5992 = vmatmul.mubr.f32.gmra.mrb[0].mxu0 %v5698
  %v5993 = vpop.f32.mrb[0].mxu0
  %v5994 = vadd.f32 0.0, %v5993
  %v5995 = vpop.f32.mrb[0].mxu0
  %5996 = vdwg.mxu0
  %5997 = vmatprep.subr.mxu0 0.0
  %5998 = vmatpush1.xpose.msra.mxu0 %v5908
  %5999 = vmatprep.subr.mxu0 0.0
  %6000 = vmatpush1.xpose.msra.mxu0 %v5910
  %6001 = vmatprep.subr.mxu0 0.0
  %6002 = vmatpush1.xpose.msra.mxu0 %v5912
  %6003 = vmatprep.subr.mxu0 0.0
  %6004 = vmatpush1.xpose.msra.mxu0 %v5914
  %6005 = vmatprep.subr.mxu0 0.0
  %6006 = vmatpush1.xpose.msra.mxu0 %v5916
  %6007 = vmatprep.subr.mxu0 0.0
  %6008 = vmatpush1.xpose.msra.mxu0 %v5918
  %6009 = vmatprep.subr.mxu0 0.0
  %6010 = vmatpush1.xpose.msra.mxu0 %v5920
  %6011 = vmatprep.subr.mxu0 0.0
  %6012 = vmatpush1.xpose.msra.mxu0 %v5923
  %6013 = vmatprep.subr.mxu0 0.0
  %6014 = vmatpush1.xpose.msra.mxu0 %v5925
  %6015 = vmatprep.subr.mxu0 0.0
  %6016 = vmatpush1.xpose.msra.mxu0 0.0
  %6017 = vmatprep.subr.mxu0 0.0
  %6018 = vmatpush1.xpose.msra.mxu0 0.0
  %6019 = vmatprep.subr.mxu0 0.0
  %6020 = vmatpush1.xpose.msra.mxu0 0.0
  %6021 = vmatprep.subr.mxu0 0.0
  %6022 = vmatpush1.xpose.msra.mxu0 0.0
  %6023 = vmatprep.subr.mxu0 0.0
  %6024 = vmatpush1.xpose.msra.mxu0 0.0
  %6025 = vmatprep.subr.mxu0 0.0
  %6026 = vmatpush1.xpose.msra.mxu0 0.0
  %6027 = vmatprep.subr.mxu0 0.0
  %6028 = vmatpush1.xpose.msra.mxu0 0.0
  %6029 = vmatprep.subr.mxu0 0.0
  %6030 = vmatpush1.xpose.msra.mxu0 0.0
  %6031 = vmatprep.subr.mxu0 0.0
  %6032 = vmatpush1.xpose.msra.mxu0 0.0
  %6033 = vmatprep.subr.mxu0 0.0
  %6034 = vmatpush1.xpose.msra.mxu0 0.0
  %6035 = vmatprep.subr.mxu0 0.0
  %6036 = vmatpush1.xpose.msra.mxu0 0.0
  %6037 = vmatprep.subr.mxu0 0.0
  %6038 = vmatpush1.xpose.msra.mxu0 0.0
  %6039 = vmatprep.subr.mxu0 0.0
  %6040 = vmatpush1.xpose.msra.mxu0 0.0
  %6041 = vmatprep.subr.mxu0 0.0
  %6042 = vmatpush1.xpose.msra.mxu0 0.0
  %6043 = vmatprep.subr.mxu0 0.0
  %6044 = vmatpush1.xpose.msra.mxu0 0.0
  %6045 = vmatprep.subr.mxu0 0.0
  %6046 = vmatpush1.xpose.msra.mxu0 0.0
  %6047 = vmatprep.subr.mxu0 0.0
  %6048 = vmatpush1.xpose.msra.mxu0 0.0
  %6049 = vmatprep.subr.mxu0 0.0
  %6050 = vmatpush1.xpose.msra.mxu0 0.0
  %6051 = vmatprep.subr.mxu0 0.0
  %6052 = vmatpush1.xpose.msra.mxu0 0.0
  %6053 = vmatprep.subr.mxu0 0.0
  %6054 = vmatpush1.xpose.msra.mxu0 0.0
  %6055 = vmatprep.subr.mxu0 0.0
  %6056 = vmatpush1.xpose.msra.mxu0 0.0
  %6057 = vmatprep.subr.mxu0 0.0
  %6058 = vmatpush1.xpose.msra.mxu0 0.0
  %6059 = vmatprep.subr.mxu0 0.0
  %6060 = vmatpush1.xpose.msra.mxu0 0.0
  %6061 = vmatprep.mubr.f32.mxu0 0.0
  %6062 = vmatmul.mubr.f32.gmra.mrb[0].mxu0 %v5906
  %v6063 = vpop.f32.mrb[0].mxu0
  %v6064 = vadd.f32 %v5994, %v6063
  %v6065 = vpop.f32.mrb[0].mxu0
  %6066 = vdwg.mxu0
  %6067 = vrot.lane.b32.xlu0 %v2829, 91
  %v6068 = vpop.permute.xlu0 %6067
  %6069 = vrot.lane.b32.xlu0 %v2831, 91
  %v6070 = vpop.permute.xlu0 %6069
  %v6073 = vsel %vm3083, %v6068, 0.0
  %v6074 = vsel %vm3083, %v6070, 0.0
  %v6075 = vsel %vm3373, %v6073, 0.0
  %v6076 = vsel %vm3373, %v6074, 0.0
  %v6077 = vsel %vm3376, %v6075, 0.0
  %v6078 = vsel %vm3376, %v6076, 0.0
  %v6079 = vsel %vm3083, 0.0, %v5181
  %v6080 = vsel %vm3083, 0.0, %v5183
  %v6081 = vsel %vm3373, %v6079, 0.0
  %v6082 = vsel %vm3373, %v6080, 0.0
  %v6083 = vsel %vm3376, %v6081, 0.0
  %v6084 = vsel %vm3376, %v6082, 0.0
  %v6085 = vsel %vm3373, 0.0, %v4359
  %v6086 = vsel %vm3373, 0.0, %v4363
  %v6087 = vsel %vm3376, %v6085, 0.0
  %v6088 = vsel %vm3376, %v6086, 0.0
  %v6089 = vsel %vm3376, 0.0, %v4375
  %v6090 = vsel %vm3376, 0.0, %v4377
  %v6091 = vsel %vm3403, %v4375, 0.0
  %v6092 = vsel %vm3403, %v4377, 0.0
  %v6093 = vsel %vm3471, %v6091, 0.0
  %v6094 = vsel %vm3471, %v6092, 0.0
  %v6095 = vsel %vm4782, %v6093, 0.0
  %v6096 = vsel %vm4782, %v6094, 0.0
  %v6097 = vsel %vm4785, %v6095, 0.0
  %v6098 = vsel %vm4785, %v6096, 0.0
  %v6099 = vsel %vm3403, 0.0, %v4389
  %v6100 = vsel %vm3403, 0.0, %v4391
  %v6101 = vsel %vm3471, %v6099, 0.0
  %v6102 = vsel %vm3471, %v6100, 0.0
  %v6103 = vsel %vm4782, %v6101, 0.0
  %v6104 = vsel %vm4782, %v6102, 0.0
  %v6105 = vsel %vm4785, %v6103, 0.0
  %v6106 = vsel %vm4785, %v6104, 0.0
  %v6107 = vsel %vm3471, 0.0, %v2829
  %v6108 = vsel %vm3471, 0.0, %v2831
  %v6109 = vsel %vm4782, %v6107, 0.0
  %v6110 = vsel %vm4782, %v6108, 0.0
  %v6111 = vsel %vm4785, %v6109, 0.0
  %v6112 = vsel %vm4785, %v6110, 0.0
  %v6113 = vsel %vm4782, 0.0, %v5227
  %v6114 = vsel %vm4782, 0.0, %v5229
  %v6115 = vsel %vm4785, %v6113, 0.0
  %v6116 = vsel %vm4785, %v6114, 0.0
  %v6117 = vsel %vm4785, 0.0, %v5239
  %v6118 = vsel %vm4785, 0.0, %v5241
  %v6121 = vrot.slane %v6083, 7
  %v6122 = vrot.slane %v6084, 7
  %v6123 = vsel %vm3004, %v6121, %v6122
  %v6128 = vrot.slane %v6087, 6
  %v6129 = vrot.slane %v6088, 6
  %v6130 = vsel %vm3428, %v6128, %v6129
  %v6137 = vrot.slane %v6089, 5
  %v6138 = vrot.slane %v6097, 5
  %v6139 = vrot.slane %v6090, 5
  %v6140 = vsel %vm3442, %v6137, %v6139
  %v6141 = vrot.slane %v6098, 5
  %v6142 = vsel %vm3442, %v6138, %v6141
  %v6149 = vrot.slane %v6105, 4
  %v6150 = vrot.slane %v6106, 4
  %v6151 = vsel %vm201, %v6149, %v6150
  %v6156 = vrot.slane %v6111, 3
  %v6157 = vrot.slane %v6112, 3
  %v6158 = vsel %vm4923, %v6156, %v6157
  %v6163 = vrot.slane %v6115, 2
  %v6164 = vrot.slane %v6116, 2
  %v6165 = vsel %vm4935, %v6163, %v6164
  %v6170 = vrot.slane %v6117, 1
  %v6171 = vrot.slane %v5239, 1
  %v6172 = vrot.slane %v6118, 1
  %v6173 = vsel %vm4949, %v6170, %v6172
  %v6174 = vrot.slane %v5241, 1
  %v6175 = vsel %vm4949, %v6171, %v6174
  %v6179 = vsel %vm3004, %v6078, %v6121
  %v6180 = vsel %vm3428, %v6123, %v6128
  %v6181 = vsel %vm3442, %v6130, %v6137
  %v6182 = vsel %vm3442, %v3433, %v6138
  %v6183 = vsel %vm201, %v6140, %v3455
  %v6184 = vsel %vm201, %v6142, %v6149
  %v6185 = vsel %vm4923, %v6151, %v6156
  %v6186 = vsel %vm4935, %v6158, %v6163
  %v6187 = vsel %vm4949, %v6165, %v6170
  %v6188 = vsel %vm4949, %v4938, %v6171
  %v6190 = vsel %vm4826, %v5780, 0
  %v6193 = vsel %vm4826, %v6188, 0
  %v6195 = vsel %vm4826, %v6175, 0
  %6197 = vmatprep.subr.mxu0 0.0
  %6198 = vmatpush1.xpose.msra.mxu0 %v6077
  %6199 = vmatprep.subr.mxu0 %v3464
  %6200 = vmatpush1.xpose.msra.mxu0 %v6179
  %6201 = vmatprep.subr.mxu0 %v3466
  %6202 = vmatpush1.xpose.msra.mxu0 %v6180
  %6203 = vmatprep.subr.mxu0 %v6182
  %6204 = vmatpush1.xpose.msra.mxu0 %v6181
  %6205 = vmatprep.subr.mxu0 %v6184
  %6206 = vmatpush1.xpose.msra.mxu0 %v6183
  %6207 = vmatprep.subr.mxu0 %v6185
  %6208 = vmatpush1.xpose.msra.mxu0 %v4997
  %6209 = vmatprep.subr.mxu0 %v6186
  %6210 = vmatpush1.xpose.msra.mxu0 %v4999
  %6211 = vmatprep.subr.mxu0 %v6187
  %6212 = vmatpush1.xpose.msra.mxu0 %v5001
  %6213 = vmatprep.subr.mxu0 %v6173
  %6214 = vmatpush1.xpose.msra.mxu0 %v4953
  %6215 = vmatprep.subr.mxu0 0.0
  %6216 = vmatpush1.xpose.msra.mxu0 0.0
  %6217 = vmatprep.subr.mxu0 0.0
  %6218 = vmatpush1.xpose.msra.mxu0 0.0
  %6219 = vmatprep.subr.mxu0 0.0
  %6220 = vmatpush1.xpose.msra.mxu0 0.0
  %6221 = vmatprep.subr.mxu0 0.0
  %6222 = vmatpush1.xpose.msra.mxu0 0.0
  %6223 = vmatprep.subr.mxu0 0.0
  %6224 = vmatpush1.xpose.msra.mxu0 0.0
  %6225 = vmatprep.subr.mxu0 0.0
  %6226 = vmatpush1.xpose.msra.mxu0 0.0
  %6227 = vmatprep.subr.mxu0 0.0
  %6228 = vmatpush1.xpose.msra.mxu0 0.0
  %6229 = vmatprep.subr.mxu0 0.0
  %6230 = vmatpush1.xpose.msra.mxu0 0.0
  %6231 = vmatprep.subr.mxu0 0.0
  %6232 = vmatpush1.xpose.msra.mxu0 0.0
  %6233 = vmatprep.subr.mxu0 0.0
  %6234 = vmatpush1.xpose.msra.mxu0 0.0
  %6235 = vmatprep.subr.mxu0 0.0
  %6236 = vmatpush1.xpose.msra.mxu0 0.0
  %6237 = vmatprep.subr.mxu0 0.0
  %6238 = vmatpush1.xpose.msra.mxu0 0.0
  %6239 = vmatprep.subr.mxu0 0.0
  %6240 = vmatpush1.xpose.msra.mxu0 0.0
  %6241 = vmatprep.subr.mxu0 0.0
  %6242 = vmatpush1.xpose.msra.mxu0 0.0
  %6243 = vmatprep.subr.mxu0 0.0
  %6244 = vmatpush1.xpose.msra.mxu0 0.0
  %6245 = vmatprep.subr.mxu0 0.0
  %6246 = vmatpush1.xpose.msra.mxu0 0.0
  %6247 = vmatprep.subr.mxu0 0.0
  %6248 = vmatpush1.xpose.msra.mxu0 0.0
  %6249 = vmatprep.subr.mxu0 0.0
  %6250 = vmatpush1.xpose.msra.mxu0 0.0
  %6251 = vmatprep.subr.mxu0 0.0
  %6252 = vmatpush1.xpose.msra.mxu0 0.0
  %6253 = vmatprep.subr.mxu0 0.0
  %6254 = vmatpush1.xpose.msra.mxu0 0.0
  %6255 = vmatprep.subr.mxu0 0.0
  %6256 = vmatpush1.xpose.msra.mxu0 0.0
  %6257 = vmatprep.subr.mxu0 0.0
  %6258 = vmatpush1.xpose.msra.mxu0 0.0
  %6259 = vmatprep.subr.mxu0 0.0
  %6260 = vmatpush1.xpose.msra.mxu0 0.0
  %6261 = vmatprep.mubr.f32.mxu0 %v5706
  %6262 = vmatmul.mubr.f32.gmra.mrb[0].mxu0 %v5704
  %v6263 = vpop.f32.mrb[0].mxu0
  %v6264 = vadd.f32 0.0, %v6263
  %v6265 = vpop.f32.mrb[0].mxu0
  %6266 = vdwg.mxu0
  %6267 = vmatprep.subr.mxu0 0.0
  %6268 = vmatpush1.xpose.msra.mxu0 %v5908
  %6269 = vmatprep.subr.mxu0 0.0
  %6270 = vmatpush1.xpose.msra.mxu0 %v5910
  %6271 = vmatprep.subr.mxu0 0.0
  %6272 = vmatpush1.xpose.msra.mxu0 %v5912
  %6273 = vmatprep.subr.mxu0 0.0
  %6274 = vmatpush1.xpose.msra.mxu0 %v5914
  %6275 = vmatprep.subr.mxu0 0.0
  %6276 = vmatpush1.xpose.msra.mxu0 %v5916
  %6277 = vmatprep.subr.mxu0 0.0
  %6278 = vmatpush1.xpose.msra.mxu0 %v5918
  %6279 = vmatprep.subr.mxu0 0.0
  %6280 = vmatpush1.xpose.msra.mxu0 %v5920
  %6281 = vmatprep.subr.mxu0 0.0
  %6282 = vmatpush1.xpose.msra.mxu0 %v6193
  %6283 = vmatprep.subr.mxu0 0.0
  %6284 = vmatpush1.xpose.msra.mxu0 %v6195
  %6285 = vmatprep.subr.mxu0 0.0
  %6286 = vmatpush1.xpose.msra.mxu0 0.0
  %6287 = vmatprep.subr.mxu0 0.0
  %6288 = vmatpush1.xpose.msra.mxu0 0.0
  %6289 = vmatprep.subr.mxu0 0.0
  %6290 = vmatpush1.xpose.msra.mxu0 0.0
  %6291 = vmatprep.subr.mxu0 0.0
  %6292 = vmatpush1.xpose.msra.mxu0 0.0
  %6293 = vmatprep.subr.mxu0 0.0
  %6294 = vmatpush1.xpose.msra.mxu0 0.0
  %6295 = vmatprep.subr.mxu0 0.0
  %6296 = vmatpush1.xpose.msra.mxu0 0.0
  %6297 = vmatprep.subr.mxu0 0.0
  %6298 = vmatpush1.xpose.msra.mxu0 0.0
  %6299 = vmatprep.subr.mxu0 0.0
  %6300 = vmatpush1.xpose.msra.mxu0 0.0
  %6301 = vmatprep.subr.mxu0 0.0
  %6302 = vmatpush1.xpose.msra.mxu0 0.0
  %6303 = vmatprep.subr.mxu0 0.0
  %6304 = vmatpush1.xpose.msra.mxu0 0.0
  %6305 = vmatprep.subr.mxu0 0.0
  %6306 = vmatpush1.xpose.msra.mxu0 0.0
  %6307 = vmatprep.subr.mxu0 0.0
  %6308 = vmatpush1.xpose.msra.mxu0 0.0
  %6309 = vmatprep.subr.mxu0 0.0
  %6310 = vmatpush1.xpose.msra.mxu0 0.0
  %6311 = vmatprep.subr.mxu0 0.0
  %6312 = vmatpush1.xpose.msra.mxu0 0.0
  %6313 = vmatprep.subr.mxu0 0.0
  %6314 = vmatpush1.xpose.msra.mxu0 0.0
  %6315 = vmatprep.subr.mxu0 0.0
  %6316 = vmatpush1.xpose.msra.mxu0 0.0
  %6317 = vmatprep.subr.mxu0 0.0
  %6318 = vmatpush1.xpose.msra.mxu0 0.0
  %6319 = vmatprep.subr.mxu0 0.0
  %6320 = vmatpush1.xpose.msra.mxu0 0.0
  %6321 = vmatprep.subr.mxu0 0.0
  %6322 = vmatpush1.xpose.msra.mxu0 0.0
  %6323 = vmatprep.subr.mxu0 0.0
  %6324 = vmatpush1.xpose.msra.mxu0 0.0
  %6325 = vmatprep.subr.mxu0 0.0
  %6326 = vmatpush1.xpose.msra.mxu0 0.0
  %6327 = vmatprep.subr.mxu0 0.0
  %6328 = vmatpush1.xpose.msra.mxu0 0.0
  %6329 = vmatprep.subr.mxu0 0.0
  %6330 = vmatpush1.xpose.msra.mxu0 0.0
  %6331 = vmatprep.mubr.f32.mxu0 0.0
  %6332 = vmatmul.mubr.f32.gmra.mrb[0].mxu0 %v6190
  %v6333 = vpop.f32.mrb[0].mxu0
  %v6334 = vadd.f32 %v6264, %v6333
  %v6335 = vpop.f32.mrb[0].mxu0
  %6336 = vdwg.mxu0
  %6338 = vrot.lane.b32.xlu0 %v3558, 9
  %v6339 = vpop.permute.xlu0 %6338
  %6342 = vrot.lane.b32.xlu0 %v3953, 54
  %v6343 = vpop.permute.xlu0 %6342
  %6346 = vrot.lane.b32.xlu0 %v4351, 81
  %v6347 = vpop.permute.xlu0 %6346
  %6350 = vrot.lane.b32.xlu0 %v5177, 117
  %v6351 = vpop.permute.xlu0 %6350
  %6354 = vrot.lane.b32.xlu0 %v6064, 97
  %v6355 = vpop.permute.xlu0 %6354
  %vm6357 = vcmask 72704
  %v6358 = vsel %vm6357, %v3160, %v6339
  %vm6359 = vcmask 441344
  %v6360 = vsel %vm6359, %v6358, %v6343
  %vm6361 = vcmask 662528
  %v6362 = vsel %vm6361, %v6360, %v6347
  %vm6363 = vcmask 957440
  %v6364 = vsel %vm6363, %v6362, %v6351
  %vm6365 = vcmask 793600
  %v6366 = vsel %vm6365, %v6351, %v6355
  %6368 = vrot.lane.b32.xlu0 %v3725, 9
  %v6369 = vpop.permute.xlu0 %6368
  %6372 = vrot.lane.b32.xlu0 %v4068, 54
  %v6373 = vpop.permute.xlu0 %6372
  %6376 = vrot.lane.b32.xlu0 %v4506, 81
  %v6377 = vpop.permute.xlu0 %6376
  %6380 = vrot.lane.b32.xlu0 %v5555, 117
  %v6381 = vpop.permute.xlu0 %6380
  %6384 = vrot.lane.b32.xlu0 %v6334, 97
  %v6385 = vpop.permute.xlu0 %6384
  %v6387 = vsel %vm6357, %v3239, %v6369
  %v6388 = vsel %vm6359, %v6387, %v6373
  %v6389 = vsel %vm6361, %v6388, %v6377
  %v6390 = vsel %vm6363, %v6389, %v6381
  %v6391 = vsel %vm6365, %v6381, %v6385
  %v6392 = vld [vmem:[%s5] sm:$0xff]
  %v6393 = vld [vmem:[%s5 + $0x8] sm:$0xff]
  %v6394 = vld [vmem:[%s5 + $0x10] sm:$0xff]
  %v6395 = vld [vmem:[%s5 + $0x18] sm:$0xff]
  %v6396 = vld [vmem:[%s5 + $0x20] sm:$0xff]
  %v6397 = vld [vmem:[%s5 + $0x28] sm:$0xff]
  %v6398 = vadd.f32 %v6364, %v6392
  %v6399 = vadd.f32 %v6366, %v6393
  %v6400 = vadd.f32 %v6355, %v6394
  %v6401 = vadd.f32 %v6390, %v6395
  %v6402 = vadd.f32 %v6391, %v6396
  %v6403 = vadd.f32 %v6385, %v6397
  %6404 = vst [vmem:[%s21] sm:$0xff] %v6398
  %6405 = vst [vmem:[%s21 + $0x8] sm:$0xff] %v6399
  %6406 = vst.msk [vmem:[%s21 + $0x10] sm:$0xff] %vm4829, %v6400
  %6407 = vst [vmem:[%s21 + $0x18] sm:$0xff] %v6401
  %6408 = vst [vmem:[%s21 + $0x20] sm:$0xff] %v6402
  %6409 = vst.msk [vmem:[%s21 + $0x28] sm:$0xff] %vm4829, %v6403
  // Predicated region
  $region86: #{tiger_forward.1} parent=0 // pred_check
    _
  $region87: #{tiger_forward.1} parent=0 // pred_check_branch
    %6411 = sbr.rel (0) target = $region89
  $region88: #{tiger_forward.1} parent=0 // pred_region
    _
  $region89: #{tiger_forward.1} parent=0 // pred_fallthru
    _
  // Predicated region
  $region90: #{tiger_forward.1} parent=0 // pred_check
    _
  $region91: #{tiger_forward.1} parent=0 // pred_check_branch
    %6413 = sbr.rel (0) target = $region93
  $region92: #{tiger_forward.1} parent=0 // pred_region
    _
  $region93: #{tiger_forward.1} parent=0 // pred_fallthru
    _

</llo_original>
